<compile_context>
chip_gen: v7x
topology: tpu7x:2x2x1
jax: 0.10.0
libtpu: 0.0.40
codegen_flags: <defaults>
</compile_context>

<pallas_src>
import functools
import math

import jax
import jax.numpy as jnp
from jax import lax
from jax.experimental import pallas as pl
from jax.experimental.pallas import tpu as pltpu


def _conv3x3(src_ref, w_ref, b_ref, HO, W, C, group_dx):
    """3x3 'valid' conv over the zero-padded (HO+2, W+2, C) bf16 source scratch.

    w_ref: (9*C, C) bf16 flattened HWIO weights (row index = (dy*3 + dx)*C + c_in).
    b_ref: (1, C) f32 bias.  Returns the (HO*W, C) f32 conv output with bias added.
    """
    acc = None
    if group_dx:
        # Per-dy grouping: three K=3C matmuls.  Sources are already bf16 (scratch dtype),
        # so the concat moves bf16, not f32, and the patch buffer is (HO*W, 3C) bf16 only.
        for dy in range(3):
            taps = [src_ref[dy:dy + HO, dx:dx + W, :] for dx in range(3)]      # bf16
            patch = jnp.concatenate(taps, axis=-1).reshape(HO * W, 3 * C)      # (HO*W, 3C)
            part = jnp.dot(patch, w_ref[dy * 3 * C:(dy + 1) * 3 * C, :],
                           preferred_element_type=jnp.float32)
            acc = part if acc is None else acc + part
    else:
        # Fallback: 9 accumulating K=C matmuls, no lane concat at all.
        for dy in range(3):
            for dx in range(3):
                k = dy * 3 + dx
                tap = src_ref[dy:dy + HO, dx:dx + W, :].reshape(HO * W, C)
                part = jnp.dot(tap, w_ref[k * C:(k + 1) * C, :],
                               preferred_element_type=jnp.float32)
                acc = part if acc is None else acc + part
    return acc + b_ref[...]


def _resblock_kernel(x_ref, xt_ref, xb_ref, w1_ref, b1_ref, w2_ref, b2_ref,
                     o_ref, xp_ref, mid_ref, *, group_dx, lane_dense_out):
    """One (batch, row-band) tile per grid step.

    x_ref:   (1, TH, W, C) f32   main band rows (residual source + conv input interior)
    xt_ref:  (1, 2,  W, C) f32   2 input rows above the band (valid only when t > 0)
    xb_ref:  (1, 2,  W, C) f32   2 input rows below the band (valid only when t < nt-1)
    w*_ref:  (9*C, C) bf16       flattened conv weights (res_scale folded into w2)
    b*_ref:  (1, C)   f32        biases (res_scale folded into b2)
    o_ref:   (1, TH, W*C) f32    lane-dense output band (or (1, TH, W, C) in fallback mode)
    xp_ref:  (TH+4, W+2, C) bf16 scratch: zero-padded input band (2-row halo, 1-col pad)
    mid_ref: (TH+2, W+2, C) bf16 scratch: zero-padded ReLU(conv1) (1-row halo, 1-col pad)
    """
    TH, W, C = x_ref.shape[1], x_ref.shape[2], x_ref.shape[3]
    HP = TH + 4                       # padded-input rows
    HM = TH + 2                       # mid (conv1-output) rows, incl. 1-row halo each side
    t = pl.program_id(1)
    nt = pl.num_programs(1)

    # ---- build the zero-padded bf16 input band in VMEM (SAME padding) ----
    # TODO(synk): DMA x straight into xp_ref (memory_space=pl.ANY + make_async_copy) to
    # drop this VMEM->VMEM copy once manual prefetch/double-buffering is owned here.
    zc = jnp.zeros((HP, 1, C), xp_ref.dtype)
    xp_ref[:, 0:1, :] = zc                               # left zero column
    xp_ref[:, W + 1:W + 2, :] = zc                       # right zero column
    x = x_ref[0]                                         # (TH, W, C) f32 residual source
    xp_ref[2:2 + TH, 1:1 + W, :] = x.astype(xp_ref.dtype)

    @pl.when(t > 0)
    def _():
        xp_ref[0:2, 1:1 + W, :] = xt_ref[0].astype(xp_ref.dtype)

    @pl.when(t == 0)
    def _():
        xp_ref[0:2, 1:1 + W, :] = jnp.zeros((2, W, C), xp_ref.dtype)

    @pl.when(t < nt - 1)
    def _():
        xp_ref[2 + TH:4 + TH, 1:1 + W, :] = xb_ref[0].astype(xp_ref.dtype)

    @pl.when(t == nt - 1)
    def _():
        xp_ref[2 + TH:4 + TH, 1:1 + W, :] = jnp.zeros((2, W, C), xp_ref.dtype)

    # ---- conv1 + bias + ReLU -> bf16 mid scratch (halo recompute: TH+2 rows) ----
    h1 = jnp.maximum(_conv3x3(xp_ref, w1_ref, b1_ref, HM, W, C, group_dx), 0.0)
    zm = jnp.zeros((HM, 1, C), mid_ref.dtype)
    mid_ref[:, 0:1, :] = zm
    mid_ref[:, W + 1:W + 2, :] = zm
    # ReLU folded into the bf16 cast/store of the interior.
    mid_ref[:, 1:1 + W, :] = h1.reshape(HM, W, C).astype(mid_ref.dtype)
    # mid rows outside the image are conv2's SAME padding -> must be exactly zero
    # (NOT conv1(zero rows) + bias).
    @pl.when(t == 0)
    def _():
        mid_ref[0:1, :, :] = jnp.zeros((1, W + 2, C), mid_ref.dtype)

    @pl.when(t == nt - 1)
    def _():
        mid_ref[HM - 1:HM, :, :] = jnp.zeros((1, W + 2, C), mid_ref.dtype)

    # ---- conv2 (res_scale pre-folded into w2/b2) + f32 residual add ----
    h2 = _conv3x3(mid_ref, w2_ref, b2_ref, TH, W, C, group_dx)          # (TH*W, C) f32
    if lane_dense_out:
        o_ref[0] = (h2.reshape(TH, W * C) + x.reshape(TH, W * C)).astype(o_ref.dtype)
    else:
        o_ref[0] = (h2.reshape(TH, W, C) + x).astype(o_ref.dtype)


def _pick_band_rows(H, W, C, requested=None):
    """Pick a row-band height TH that divides H (and is even when there are >1 bands)."""
    if requested is None:
        # Keep the per-step working set ~<= 24 MiB so the kernel fits v7x's 64 MiB VMEM with
        # double-buffering headroom.  TODO(synk): raise this budget (and vmem_limit_bytes)
        # when targeting only v5e/v6e (128 MiB physical VMEM) for fewer, larger bands.
        budget = 24 * 1024 * 1024
        per_row = ((W + 2) * C * 2 * 2            # xp + mid bf16 scratch rows
                   + W * C * 4 * 2 * 2            # double-buffered f32 x-in + out blocks
                   + W * 3 * C * 2 + W * C * 4)   # im2col group (bf16) + f32 accumulator
        TH = max(1, min(H, budget // max(per_row, 1)))
    else:
        TH = max(1, min(H, int(requested)))
    # Multi-band requires TH even so the 2-row halo BlockSpecs land on block boundaries.
    while TH > 1 and (H % TH != 0 or (TH < H and TH % 2 != 0)):
        TH -= 1
    if TH < H and TH % 2 != 0:
        TH = H                                      # fall back to a single full-frame band
    return TH


def resblock(x_nchw, w1, b1, w2, b2, *, res_scale=1.0, band_rows=None,
             group_dx=True, lane_dense_out=True):
    """ResBlock forward. x_nchw: (N, C, H, W) f32; w: (3,3,C,C) HWIO; b: (C,)."""
    x = jnp.transpose(x_nchw, (0, 2, 3, 1)).astype(jnp.float32)     # NCHW -> NHWC (glue)
    N, H, W, C = x.shape
    TH = _pick_band_rows(H, W, C, band_rows)
    nt = H // TH

    # Hoisted weight prep: flatten HWIO -> (9C, C), fold res_scale into conv2, bf16 once.
    w1f = w1.reshape(9 * C, C).astype(jnp.bfloat16)
    b1f = b1.reshape(1, C).astype(jnp.float32)
    w2f = (w2.reshape(9 * C, C) * res_scale).astype(jnp.bfloat16)
    b2f = (b2.reshape(1, C) * res_scale).astype(jnp.float32)

    hb_max = (H - 1) // 2          # last valid 2-row block index along H

    def top_map(n, t):             # 2 rows above the band (clamped; zeroed in-kernel at t==0)
        return (n, jnp.maximum(t * (TH // 2) - 1, 0), 0, 0)

    def bot_map(n, t):             # 2 rows below the band (clamped; zeroed at last band)
        return (n, jnp.minimum((t + 1) * (TH // 2), hb_max), 0, 0)

    if lane_dense_out:
        out_shape = jax.ShapeDtypeStruct((N, H, W * C), x.dtype)
        out_spec = pl.BlockSpec((1, TH, W * C), lambda n, t: (n, t, 0))
    else:
        out_shape = jax.ShapeDtypeStruct((N, H, W, C), x.dtype)
        out_spec = pl.BlockSpec((1, TH, W, C), lambda n, t: (n, t, 0, 0))

    grid_spec = pltpu.PrefetchScalarGridSpec(
        num_scalar_prefetch=0,
        grid=(N, nt),
        in_specs=[
            pl.BlockSpec((1, TH, W, C), lambda n, t: (n, t, 0, 0)),   # main band
            pl.BlockSpec((1, 2, W, C), top_map),                      # top halo rows
            pl.BlockSpec((1, 2, W, C), bot_map),                      # bottom halo rows
            pl.BlockSpec((9 * C, C), lambda n, t: (0, 0)),            # w1 (bf16)
            pl.BlockSpec((1, C), lambda n, t: (0, 0)),                # b1
            pl.BlockSpec((9 * C, C), lambda n, t: (0, 0)),            # w2 * res_scale (bf16)
            pl.BlockSpec((1, C), lambda n, t: (0, 0)),                # b2 * res_scale
        ],
        out_specs=out_spec,
        scratch_shapes=[pltpu.VMEM((TH + 4, W + 2, C), jnp.bfloat16),   # padded input band
                        pltpu.VMEM((TH + 2, W + 2, C), jnp.bfloat16)],  # padded ReLU(conv1)
        # TODO(synk): round the padded width (W+2) up to the sublane multiple and wrap tap
        # slice starts in pl.multiple_of once profiling shows the slice/store phase dominates.
    )

    flops = N * W * 2 * 9 * C * C * ((H + 2 * nt) + H)               # conv1 (w/ halo) + conv2
    bytes_accessed = (N * H * W * C * 4                              # x band reads
                      + N * nt * 4 * W * C * 4                       # halo-row reads
                      + N * H * W * C * 4                            # output writes
                      + 2 * 9 * C * C * 2 + 2 * C * 4)               # bf16 weights + biases

    kern = functools.partial(_resblock_kernel, group_dx=group_dx,
                             lane_dense_out=lane_dense_out)
    out = pl.pallas_call(
        kern,
        out_shape=out_shape,
        grid_spec=grid_spec,
        compiler_params=pltpu.CompilerParams(
            dimension_semantics=("parallel", "parallel"),     # batch x band (v7x megacore)
            vmem_limit_bytes=56 * 1024 * 1024,                # <= v7x 64 MiB physical VMEM
        ),
        cost_estimate=pl.CostEstimate(flops=flops, transcendentals=0,
                                      bytes_accessed=bytes_accessed),
    )(x, x, x, w1f, b1f, w2f, b2f)

    if lane_dense_out:
        out = out.reshape(N, H, W, C)
    return jnp.transpose(out, (0, 3, 1, 2))                  # NHWC -> NCHW (glue)


def resblock_ref(x_nchw, w1, b1, w2, b2, res_scale=1.0):
    """Pure-JAX f32 reference (lax conv) for correctness check."""
    x = jnp.transpose(x_nchw, (0, 2, 3, 1))
    dn = ('NHWC', 'HWIO', 'NHWC')
    y = lax.conv_general_dilated(x, w1, (1, 1), 'SAME', dimension_numbers=dn) + b1
    y = jnp.maximum(y, 0.0)
    y = lax.conv_general_dilated(y, w2, (1, 1), 'SAME', dimension_numbers=dn) + b2
    out = y * res_scale + x
    return jnp.transpose(out, (0, 3, 1, 2))


if __name__ == "__main__":
    # Shapes consistent with the module: n_feats channels, 3x3 conv, bias=True, bn=False.
    N, n_feats, H, W, ksize = 2, 4, 16, 16, 3

    key = jax.random.PRNGKey(0)
    k1, k2, k3, k4, k5 = jax.random.split(key, 5)
    fan_in = n_feats * ksize * ksize
    scale = 1.0 / math.sqrt(fan_in)
    # Deterministic synthetic params (PyTorch Conv2d default init range), HWIO layout.
    w1 = jax.random.uniform(k1, (ksize, ksize, n_feats, n_feats), jnp.float32, -scale, scale)
    b1 = jax.random.uniform(k2, (n_feats,), jnp.float32, -scale, scale)
    w2 = jax.random.uniform(k3, (ksize, ksize, n_feats, n_feats), jnp.float32, -scale, scale)
    b2 = jax.random.uniform(k4, (n_feats,), jnp.float32, -scale, scale)
    x = jax.random.normal(k5, (N, n_feats, H, W), jnp.float32)

    def run(res_scale, band_rows):
        try:
            o = resblock(x, w1, b1, w2, b2, res_scale=res_scale, band_rows=band_rows,
                         group_dx=True, lane_dense_out=True)
        except Exception:
            # Conservative fallback: 9 separate K=C matmuls (no lane concat) + 4D output.
            o = resblock(x, w1, b1, w2, b2, res_scale=res_scale, band_rows=band_rows,
                         group_dx=False, lane_dense_out=False)
        return jax.block_until_ready(o)

    # (a) multi-band (exercises the halo path), (b) auto band + folded res_scale.
    for res_scale, band_rows in ((1.0, 8), (0.1, None)):
        out = run(res_scale, band_rows)
        ref = resblock_ref(x, w1, b1, w2, b2, res_scale)
        assert out.shape == x.shape and out.dtype == x.dtype
        # bf16 MXU operands / bf16 mid scratch (f32 accumulate + f32 residual).
        rel_err = float(jnp.max(jnp.abs(out - ref)) / jnp.max(jnp.abs(ref)))
        assert rel_err < 1e-2, (
            f"mismatch vs reference (res_scale={res_scale}, band_rows={band_rows}): "
            f"rel-max err {rel_err:.3e}")
    print("KERNEL_OK")
</pallas_src>

<mosaic_0001>
module attributes {stable_mosaic.version = 11 : i64} {
  func.func @_resblock_kernel(%arg0: i32, %arg1: i32, %arg2: memref<1x8x16x4xf32, #tpu.memory_space<vmem>>, %arg3: memref<1x2x16x4xf32, #tpu.memory_space<vmem>>, %arg4: memref<1x2x16x4xf32, #tpu.memory_space<vmem>>, %arg5: memref<36x4xbf16, #tpu.memory_space<vmem>>, %arg6: memref<1x4xf32, #tpu.memory_space<vmem>>, %arg7: memref<36x4xbf16, #tpu.memory_space<vmem>>, %arg8: memref<1x4xf32, #tpu.memory_space<vmem>>, %arg9: memref<1x8x64xf32, #tpu.memory_space<vmem>>, %arg10: memref<12x18x4xbf16, #tpu.memory_space<vmem>>, %arg11: memref<10x18x4xbf16, #tpu.memory_space<vmem>>) attributes {dimension_semantics = [#tpu.dimension_semantics<parallel>, #tpu.dimension_semantics<parallel>], iteration_bounds = array<i64: 2, 2>, scalar_prefetch = 0 : i64, scratch_operands = 2 : i64, tpu.core_type = #tpu.core_type<tc>, window_params = [{transform_indices = @transform_0, window_bounds = array<i64: 1, 8, 16, 4>}, {transform_indices = @transform_1, window_bounds = array<i64: 1, 2, 16, 4>}, {transform_indices = @transform_2, window_bounds = array<i64: 1, 2, 16, 4>}, {pipeline_mode = #tpu.pipeline_mode<synchronous>, transform_indices = @transform_3, window_bounds = array<i64: 36, 4>}, {pipeline_mode = #tpu.pipeline_mode<synchronous>, transform_indices = @transform_4, window_bounds = array<i64: 1, 4>}, {pipeline_mode = #tpu.pipeline_mode<synchronous>, transform_indices = @transform_5, window_bounds = array<i64: 36, 4>}, {pipeline_mode = #tpu.pipeline_mode<synchronous>, transform_indices = @transform_6, window_bounds = array<i64: 1, 4>}, {transform_indices = @transform_7, window_bounds = array<i64: 1, 8, 64>}]} {
    %cst = arith.constant 0.000000e+00 : bf16
    %0 = vector.broadcast %cst : bf16 to vector<12x1x4xbf16>
    %c0 = arith.constant 0 : index
    %c0_0 = arith.constant 0 : index
    %c0_1 = arith.constant 0 : index
    %1 = vector.load %arg10[%c0, %c0_0, %c0_1] : memref<12x18x4xbf16, #tpu.memory_space<vmem>>, vector<12x1x4xbf16>
    tpu.vector_store %arg10[%c0, %c0_0, %c0_1], %0 {strides = array<i32>} : memref<12x18x4xbf16, #tpu.memory_space<vmem>>, vector<12x1x4xbf16>,
    %c0_2 = arith.constant 0 : index
    %c17 = arith.constant 17 : index
    %c0_3 = arith.constant 0 : index
    %2 = vector.load %arg10[%c0_2, %c17, %c0_3] : memref<12x18x4xbf16, #tpu.memory_space<vmem>>, vector<12x1x4xbf16>
    tpu.vector_store %arg10[%c0_2, %c17, %c0_3], %0 {strides = array<i32>} : memref<12x18x4xbf16, #tpu.memory_space<vmem>>, vector<12x1x4xbf16>,
    %c0_4 = arith.constant 0 : index
    %c0_5 = arith.constant 0 : index
    %c0_6 = arith.constant 0 : index
    %c0_7 = arith.constant 0 : index
    %3 = vector.load %arg2[%c0_4, %c0_5, %c0_6, %c0_7] : memref<1x8x16x4xf32, #tpu.memory_space<vmem>>, vector<1x8x16x4xf32>
    %4 = vector.shape_cast %3 : vector<1x8x16x4xf32> to vector<8x16x4xf32>
    %5 = arith.truncf %4 : vector<8x16x4xf32> to vector<8x16x4xbf16>
    %c2 = arith.constant 2 : index
    %c1 = arith.constant 1 : index
    %c0_8 = arith.constant 0 : index
    %6 = vector.load %arg10[%c2, %c1, %c0_8] : memref<12x18x4xbf16, #tpu.memory_space<vmem>>, vector<8x16x4xbf16>
    tpu.vector_store %arg10[%c2, %c1, %c0_8], %5 {strides = array<i32>} : memref<12x18x4xbf16, #tpu.memory_space<vmem>>, vector<8x16x4xbf16>,
    %c0_i32 = arith.constant 0 : i32
    %7 = arith.cmpi sgt, %arg1, %c0_i32 : i32
    %8 = arith.extui %7 : i1 to i32
    %c0_i32_9 = arith.constant 0 : i32
    %9 = arith.cmpi ne, %8, %c0_i32_9 : i32
    scf.if %9 {
      %c0_107 = arith.constant 0 : index
      %c0_108 = arith.constant 0 : index
      %c0_109 = arith.constant 0 : index
      %c0_110 = arith.constant 0 : index
      %91 = vector.load %arg3[%c0_107, %c0_108, %c0_109, %c0_110] : memref<1x2x16x4xf32, #tpu.memory_space<vmem>>, vector<1x2x16x4xf32>
      %92 = vector.shape_cast %91 : vector<1x2x16x4xf32> to vector<2x16x4xf32>
      %93 = arith.truncf %92 : vector<2x16x4xf32> to vector<2x16x4xbf16>
      %c0_111 = arith.constant 0 : index
      %c1_112 = arith.constant 1 : index
      %c0_113 = arith.constant 0 : index
      %94 = vector.load %arg10[%c0_111, %c1_112, %c0_113] : memref<12x18x4xbf16, #tpu.memory_space<vmem>>, vector<2x16x4xbf16>
      tpu.vector_store %arg10[%c0_111, %c1_112, %c0_113], %93 {strides = array<i32>} : memref<12x18x4xbf16, #tpu.memory_space<vmem>>, vector<2x16x4xbf16>,
    } else {
    }
    %c0_i32_10 = arith.constant 0 : i32
    %10 = arith.cmpi eq, %arg1, %c0_i32_10 : i32
    %11 = arith.extui %10 : i1 to i32
    %c0_i32_11 = arith.constant 0 : i32
    %12 = arith.cmpi ne, %11, %c0_i32_11 : i32
    scf.if %12 {
      %cst_107 = arith.constant 0.000000e+00 : bf16
      %91 = vector.broadcast %cst_107 : bf16 to vector<2x16x4xbf16>
      %c0_108 = arith.constant 0 : index
      %c1_109 = arith.constant 1 : index
      %c0_110 = arith.constant 0 : index
      %92 = vector.load %arg10[%c0_108, %c1_109, %c0_110] : memref<12x18x4xbf16, #tpu.memory_space<vmem>>, vector<2x16x4xbf16>
      tpu.vector_store %arg10[%c0_108, %c1_109, %c0_110], %91 {strides = array<i32>} : memref<12x18x4xbf16, #tpu.memory_space<vmem>>, vector<2x16x4xbf16>,
    } else {
    }
    %c1_i32 = arith.constant 1 : i32
    %13 = arith.cmpi slt, %arg1, %c1_i32 : i32
    %14 = arith.extui %13 : i1 to i32
    %c0_i32_12 = arith.constant 0 : i32
    %15 = arith.cmpi ne, %14, %c0_i32_12 : i32
    scf.if %15 {
      %c0_107 = arith.constant 0 : index
      %c0_108 = arith.constant 0 : index
      %c0_109 = arith.constant 0 : index
      %c0_110 = arith.constant 0 : index
      %91 = vector.load %arg4[%c0_107, %c0_108, %c0_109, %c0_110] : memref<1x2x16x4xf32, #tpu.memory_space<vmem>>, vector<1x2x16x4xf32>
      %92 = vector.shape_cast %91 : vector<1x2x16x4xf32> to vector<2x16x4xf32>
      %93 = arith.truncf %92 : vector<2x16x4xf32> to vector<2x16x4xbf16>
      %c10 = arith.constant 10 : index
      %c1_111 = arith.constant 1 : index
      %c0_112 = arith.constant 0 : index
      %94 = vector.load %arg10[%c10, %c1_111, %c0_112] : memref<12x18x4xbf16, #tpu.memory_space<vmem>>, vector<2x16x4xbf16>
      tpu.vector_store %arg10[%c10, %c1_111, %c0_112], %93 {strides = array<i32>} : memref<12x18x4xbf16, #tpu.memory_space<vmem>>, vector<2x16x4xbf16>,
    } else {
    }
    %c1_i32_13 = arith.constant 1 : i32
    %16 = arith.cmpi eq, %arg1, %c1_i32_13 : i32
    %17 = arith.extui %16 : i1 to i32
    %c0_i32_14 = arith.constant 0 : i32
    %18 = arith.cmpi ne, %17, %c0_i32_14 : i32
    scf.if %18 {
      %cst_107 = arith.constant 0.000000e+00 : bf16
      %91 = vector.broadcast %cst_107 : bf16 to vector<2x16x4xbf16>
      %c10 = arith.constant 10 : index
      %c1_108 = arith.constant 1 : index
      %c0_109 = arith.constant 0 : index
      %92 = vector.load %arg10[%c10, %c1_108, %c0_109] : memref<12x18x4xbf16, #tpu.memory_space<vmem>>, vector<2x16x4xbf16>
      tpu.vector_store %arg10[%c10, %c1_108, %c0_109], %91 {strides = array<i32>} : memref<12x18x4xbf16, #tpu.memory_space<vmem>>, vector<2x16x4xbf16>,
    } else {
    }
    %c0_15 = arith.constant 0 : index
    %c0_16 = arith.constant 0 : index
    %c0_17 = arith.constant 0 : index
    %19 = vector.load %arg10[%c0_15, %c0_16, %c0_17] : memref<12x18x4xbf16, #tpu.memory_space<vmem>>, vector<10x16x4xbf16>
    %c0_18 = arith.constant 0 : index
    %c1_19 = arith.constant 1 : index
    %c0_20 = arith.constant 0 : index
    %20 = vector.load %arg10[%c0_18, %c1_19, %c0_20] : memref<12x18x4xbf16, #tpu.memory_space<vmem>>, vector<10x16x4xbf16>
    %c0_21 = arith.constant 0 : index
    %c2_22 = arith.constant 2 : index
    %c0_23 = arith.constant 0 : index
    %21 = vector.load %arg10[%c0_21, %c2_22, %c0_23] : memref<12x18x4xbf16, #tpu.memory_space<vmem>>, vector<10x16x4xbf16>
    %22 = tpu.concatenate %19, %20, %21 in 2 : vector<10x16x4xbf16>, vector<10x16x4xbf16>, vector<10x16x4xbf16> -> vector<10x16x12xbf16>
    %23 = vector.shape_cast %22 : vector<10x16x12xbf16> to vector<160x12xbf16>
    %c0_24 = arith.constant 0 : index
    %c0_25 = arith.constant 0 : index
    %24 = vector.load %arg5[%c0_24, %c0_25] : memref<36x4xbf16, #tpu.memory_space<vmem>>, vector<12x4xbf16>
    %cst_26 = arith.constant dense<0.000000e+00> : vector<160x4xf32>
    %25 = tpu.matmul %23, %24, %cst_26 {dimension_numbers = #tpu.dot_dimension_numbers<[1], [0], [0], [1], [0, 0, 1, 1], [], []>} : vector<160x12xbf16>, vector<12x4xbf16>, vector<160x4xf32> -> vector<160x4xf32>
    %c1_27 = arith.constant 1 : index
    %c0_28 = arith.constant 0 : index
    %c0_29 = arith.constant 0 : index
    %26 = vector.load %arg10[%c1_27, %c0_28, %c0_29] : memref<12x18x4xbf16, #tpu.memory_space<vmem>>, vector<10x16x4xbf16>
    %c1_30 = arith.constant 1 : index
    %c1_31 = arith.constant 1 : index
    %c0_32 = arith.constant 0 : index
    %27 = vector.load %arg10[%c1_30, %c1_31, %c0_32] : memref<12x18x4xbf16, #tpu.memory_space<vmem>>, vector<10x16x4xbf16>
    %c1_33 = arith.constant 1 : index
    %c2_34 = arith.constant 2 : index
    %c0_35 = arith.constant 0 : index
    %28 = vector.load %arg10[%c1_33, %c2_34, %c0_35] : memref<12x18x4xbf16, #tpu.memory_space<vmem>>, vector<10x16x4xbf16>
    %29 = tpu.concatenate %26, %27, %28 in 2 : vector<10x16x4xbf16>, vector<10x16x4xbf16>, vector<10x16x4xbf16> -> vector<10x16x12xbf16>
    %30 = vector.shape_cast %29 : vector<10x16x12xbf16> to vector<160x12xbf16>
    %c12 = arith.constant 12 : index
    %c0_36 = arith.constant 0 : index
    %31 = vector.load %arg5[%c12, %c0_36] : memref<36x4xbf16, #tpu.memory_space<vmem>>, vector<12x4xbf16>
    %cst_37 = arith.constant dense<0.000000e+00> : vector<160x4xf32>
    %32 = tpu.matmul %30, %31, %cst_37 {dimension_numbers = #tpu.dot_dimension_numbers<[1], [0], [0], [1], [0, 0, 1, 1], [], []>} : vector<160x12xbf16>, vector<12x4xbf16>, vector<160x4xf32> -> vector<160x4xf32>
    %33 = arith.addf %25, %32 : vector<160x4xf32>
    %c2_38 = arith.constant 2 : index
    %c0_39 = arith.constant 0 : index
    %c0_40 = arith.constant 0 : index
    %34 = vector.load %arg10[%c2_38, %c0_39, %c0_40] : memref<12x18x4xbf16, #tpu.memory_space<vmem>>, vector<10x16x4xbf16>
    %c2_41 = arith.constant 2 : index
    %c1_42 = arith.constant 1 : index
    %c0_43 = arith.constant 0 : index
    %35 = vector.load %arg10[%c2_41, %c1_42, %c0_43] : memref<12x18x4xbf16, #tpu.memory_space<vmem>>, vector<10x16x4xbf16>
    %c2_44 = arith.constant 2 : index
    %c2_45 = arith.constant 2 : index
    %c0_46 = arith.constant 0 : index
    %36 = vector.load %arg10[%c2_44, %c2_45, %c0_46] : memref<12x18x4xbf16, #tpu.memory_space<vmem>>, vector<10x16x4xbf16>
    %37 = tpu.concatenate %34, %35, %36 in 2 : vector<10x16x4xbf16>, vector<10x16x4xbf16>, vector<10x16x4xbf16> -> vector<10x16x12xbf16>
    %38 = vector.shape_cast %37 : vector<10x16x12xbf16> to vector<160x12xbf16>
    %c24 = arith.constant 24 : index
    %c0_47 = arith.constant 0 : index
    %39 = vector.load %arg5[%c24, %c0_47] : memref<36x4xbf16, #tpu.memory_space<vmem>>, vector<12x4xbf16>
    %cst_48 = arith.constant dense<0.000000e+00> : vector<160x4xf32>
    %40 = tpu.matmul %38, %39, %cst_48 {dimension_numbers = #tpu.dot_dimension_numbers<[1], [0], [0], [1], [0, 0, 1, 1], [], []>} : vector<160x12xbf16>, vector<12x4xbf16>, vector<160x4xf32> -> vector<160x4xf32>
    %41 = arith.addf %33, %40 : vector<160x4xf32>
    %c0_49 = arith.constant 0 : index
    %c0_50 = arith.constant 0 : index
    %42 = vector.load %arg6[%c0_49, %c0_50] : memref<1x4xf32, #tpu.memory_space<vmem>>, vector<1x4xf32>
    %43 = vector.broadcast %42 : vector<1x4xf32> to vector<160x4xf32>
    %44 = arith.addf %41, %43 : vector<160x4xf32>
    %cst_51 = arith.constant 0.000000e+00 : f32
    %45 = vector.broadcast %cst_51 : f32 to vector<160x4xf32>
    %46 = arith.maximumf %44, %45 : vector<160x4xf32>
    %cst_52 = arith.constant 0.000000e+00 : bf16
    %47 = vector.broadcast %cst_52 : bf16 to vector<10x1x4xbf16>
    %c0_53 = arith.constant 0 : index
    %c0_54 = arith.constant 0 : index
    %c0_55 = arith.constant 0 : index
    %48 = vector.load %arg11[%c0_53, %c0_54, %c0_55] : memref<10x18x4xbf16, #tpu.memory_space<vmem>>, vector<10x1x4xbf16>
    tpu.vector_store %arg11[%c0_53, %c0_54, %c0_55], %47 {strides = array<i32>} : memref<10x18x4xbf16, #tpu.memory_space<vmem>>, vector<10x1x4xbf16>,
    %c0_56 = arith.constant 0 : index
    %c17_57 = arith.constant 17 : index
    %c0_58 = arith.constant 0 : index
    %49 = vector.load %arg11[%c0_56, %c17_57, %c0_58] : memref<10x18x4xbf16, #tpu.memory_space<vmem>>, vector<10x1x4xbf16>
    tpu.vector_store %arg11[%c0_56, %c17_57, %c0_58], %47 {strides = array<i32>} : memref<10x18x4xbf16, #tpu.memory_space<vmem>>, vector<10x1x4xbf16>,
    %50 = vector.shape_cast %46 : vector<160x4xf32> to vector<10x16x4xf32>
    %51 = arith.truncf %50 : vector<10x16x4xf32> to vector<10x16x4xbf16>
    %c0_59 = arith.constant 0 : index
    %c1_60 = arith.constant 1 : index
    %c0_61 = arith.constant 0 : index
    %52 = vector.load %arg11[%c0_59, %c1_60, %c0_61] : memref<10x18x4xbf16, #tpu.memory_space<vmem>>, vector<10x16x4xbf16>
    tpu.vector_store %arg11[%c0_59, %c1_60, %c0_61], %51 {strides = array<i32>} : memref<10x18x4xbf16, #tpu.memory_space<vmem>>, vector<10x16x4xbf16>,
    %c0_i32_62 = arith.constant 0 : i32
    %53 = arith.cmpi eq, %arg1, %c0_i32_62 : i32
    %54 = arith.extui %53 : i1 to i32
    %c0_i32_63 = arith.constant 0 : i32
    %55 = arith.cmpi ne, %54, %c0_i32_63 : i32
    scf.if %55 {
      %cst_107 = arith.constant 0.000000e+00 : bf16
      %91 = vector.broadcast %cst_107 : bf16 to vector<1x18x4xbf16>
      %c0_108 = arith.constant 0 : index
      %c0_109 = arith.constant 0 : index
      %c0_110 = arith.constant 0 : index
      %92 = vector.load %arg11[%c0_108, %c0_109, %c0_110] : memref<10x18x4xbf16, #tpu.memory_space<vmem>>, vector<1x18x4xbf16>
      tpu.vector_store %arg11[%c0_108, %c0_109, %c0_110], %91 {strides = array<i32>} : memref<10x18x4xbf16, #tpu.memory_space<vmem>>, vector<1x18x4xbf16>,
    } else {
    }
    %c1_i32_64 = arith.constant 1 : i32
    %56 = arith.cmpi eq, %arg1, %c1_i32_64 : i32
    %57 = arith.extui %56 : i1 to i32
    %c0_i32_65 = arith.constant 0 : i32
    %58 = arith.cmpi ne, %57, %c0_i32_65 : i32
    scf.if %58 {
      %cst_107 = arith.constant 0.000000e+00 : bf16
      %91 = vector.broadcast %cst_107 : bf16 to vector<1x18x4xbf16>
      %c9 = arith.constant 9 : index
      %c0_108 = arith.constant 0 : index
      %c0_109 = arith.constant 0 : index
      %92 = vector.load %arg11[%c9, %c0_108, %c0_109] : memref<10x18x4xbf16, #tpu.memory_space<vmem>>, vector<1x18x4xbf16>
      tpu.vector_store %arg11[%c9, %c0_108, %c0_109], %91 {strides = array<i32>} : memref<10x18x4xbf16, #tpu.memory_space<vmem>>, vector<1x18x4xbf16>,
    } else {
    }
    %c0_66 = arith.constant 0 : index
    %c0_67 = arith.constant 0 : index
    %c0_68 = arith.constant 0 : index
    %59 = vector.load %arg11[%c0_66, %c0_67, %c0_68] : memref<10x18x4xbf16, #tpu.memory_space<vmem>>, vector<8x16x4xbf16>
    %c0_69 = arith.constant 0 : index
    %c1_70 = arith.constant 1 : index
    %c0_71 = arith.constant 0 : index
    %60 = vector.load %arg11[%c0_69, %c1_70, %c0_71] : memref<10x18x4xbf16, #tpu.memory_space<vmem>>, vector<8x16x4xbf16>
    %c0_72 = arith.constant 0 : index
    %c2_73 = arith.constant 2 : index
    %c0_74 = arith.constant 0 : index
    %61 = vector.load %arg11[%c0_72, %c2_73, %c0_74] : memref<10x18x4xbf16, #tpu.memory_space<vmem>>, vector<8x16x4xbf16>
    %62 = tpu.concatenate %59, %60, %61 in 2 : vector<8x16x4xbf16>, vector<8x16x4xbf16>, vector<8x16x4xbf16> -> vector<8x16x12xbf16>
    %63 = vector.shape_cast %62 : vector<8x16x12xbf16> to vector<128x12xbf16>
    %c0_75 = arith.constant 0 : index
    %c0_76 = arith.constant 0 : index
    %64 = vector.load %arg7[%c0_75, %c0_76] : memref<36x4xbf16, #tpu.memory_space<vmem>>, vector<12x4xbf16>
    %cst_77 = arith.constant dense<0.000000e+00> : vector<128x4xf32>
    %65 = tpu.matmul %63, %64, %cst_77 {dimension_numbers = #tpu.dot_dimension_numbers<[1], [0], [0], [1], [0, 0, 1, 1], [], []>} : vector<128x12xbf16>, vector<12x4xbf16>, vector<128x4xf32> -> vector<128x4xf32>
    %c1_78 = arith.constant 1 : index
    %c0_79 = arith.constant 0 : index
    %c0_80 = arith.constant 0 : index
    %66 = vector.load %arg11[%c1_78, %c0_79, %c0_80] : memref<10x18x4xbf16, #tpu.memory_space<vmem>>, vector<8x16x4xbf16>
    %c1_81 = arith.constant 1 : index
    %c1_82 = arith.constant 1 : index
    %c0_83 = arith.constant 0 : index
    %67 = vector.load %arg11[%c1_81, %c1_82, %c0_83] : memref<10x18x4xbf16, #tpu.memory_space<vmem>>, vector<8x16x4xbf16>
    %c1_84 = arith.constant 1 : index
    %c2_85 = arith.constant 2 : index
    %c0_86 = arith.constant 0 : index
    %68 = vector.load %arg11[%c1_84, %c2_85, %c0_86] : memref<10x18x4xbf16, #tpu.memory_space<vmem>>, vector<8x16x4xbf16>
    %69 = tpu.concatenate %66, %67, %68 in 2 : vector<8x16x4xbf16>, vector<8x16x4xbf16>, vector<8x16x4xbf16> -> vector<8x16x12xbf16>
    %70 = vector.shape_cast %69 : vector<8x16x12xbf16> to vector<128x12xbf16>
    %c12_87 = arith.constant 12 : index
    %c0_88 = arith.constant 0 : index
    %71 = vector.load %arg7[%c12_87, %c0_88] : memref<36x4xbf16, #tpu.memory_space<vmem>>, vector<12x4xbf16>
    %cst_89 = arith.constant dense<0.000000e+00> : vector<128x4xf32>
    %72 = tpu.matmul %70, %71, %cst_89 {dimension_numbers = #tpu.dot_dimension_numbers<[1], [0], [0], [1], [0, 0, 1, 1], [], []>} : vector<128x12xbf16>, vector<12x4xbf16>, vector<128x4xf32> -> vector<128x4xf32>
    %73 = arith.addf %65, %72 : vector<128x4xf32>
    %c2_90 = arith.constant 2 : index
    %c0_91 = arith.constant 0 : index
    %c0_92 = arith.constant 0 : index
    %74 = vector.load %arg11[%c2_90, %c0_91, %c0_92] : memref<10x18x4xbf16, #tpu.memory_space<vmem>>, vector<8x16x4xbf16>
    %c2_93 = arith.constant 2 : index
    %c1_94 = arith.constant 1 : index
    %c0_95 = arith.constant 0 : index
    %75 = vector.load %arg11[%c2_93, %c1_94, %c0_95] : memref<10x18x4xbf16, #tpu.memory_space<vmem>>, vector<8x16x4xbf16>
    %c2_96 = arith.constant 2 : index
    %c2_97 = arith.constant 2 : index
    %c0_98 = arith.constant 0 : index
    %76 = vector.load %arg11[%c2_96, %c2_97, %c0_98] : memref<10x18x4xbf16, #tpu.memory_space<vmem>>, vector<8x16x4xbf16>
    %77 = tpu.concatenate %74, %75, %76 in 2 : vector<8x16x4xbf16>, vector<8x16x4xbf16>, vector<8x16x4xbf16> -> vector<8x16x12xbf16>
    %78 = vector.shape_cast %77 : vector<8x16x12xbf16> to vector<128x12xbf16>
    %c24_99 = arith.constant 24 : index
    %c0_100 = arith.constant 0 : index
    %79 = vector.load %arg7[%c24_99, %c0_100] : memref<36x4xbf16, #tpu.memory_space<vmem>>, vector<12x4xbf16>
    %cst_101 = arith.constant dense<0.000000e+00> : vector<128x4xf32>
    %80 = tpu.matmul %78, %79, %cst_101 {dimension_numbers = #tpu.dot_dimension_numbers<[1], [0], [0], [1], [0, 0, 1, 1], [], []>} : vector<128x12xbf16>, vector<12x4xbf16>, vector<128x4xf32> -> vector<128x4xf32>
    %81 = arith.addf %73, %80 : vector<128x4xf32>
    %c0_102 = arith.constant 0 : index
    %c0_103 = arith.constant 0 : index
    %82 = vector.load %arg8[%c0_102, %c0_103] : memref<1x4xf32, #tpu.memory_space<vmem>>, vector<1x4xf32>
    %83 = vector.broadcast %82 : vector<1x4xf32> to vector<128x4xf32>
    %84 = arith.addf %81, %83 : vector<128x4xf32>
    %85 = vector.shape_cast %84 : vector<128x4xf32> to vector<8x64xf32>
    %86 = vector.shape_cast %4 : vector<8x16x4xf32> to vector<8x64xf32>
    %87 = arith.addf %85, %86 : vector<8x64xf32>
    %c0_104 = arith.constant 0 : index
    %c0_105 = arith.constant 0 : index
    %c0_106 = arith.constant 0 : index
    %88 = vector.load %arg9[%c0_104, %c0_105, %c0_106] : memref<1x8x64xf32, #tpu.memory_space<vmem>>, vector<1x8x64xf32>
    %89 = vector.shape_cast %88 : vector<1x8x64xf32> to vector<8x64xf32>
    %90 = vector.shape_cast %87 : vector<8x64xf32> to vector<1x8x64xf32>
    tpu.vector_store %arg9[%c0_104, %c0_105, %c0_106], %90 {strides = array<i32>} : memref<1x8x64xf32, #tpu.memory_space<vmem>>, vector<1x8x64xf32>,
    return
  }
  func.func @transform_0(%arg0: i32, %arg1: i32) -> (i32, i32, i32, i32) {
    %c0_i32 = arith.constant 0 : i32
    %c0_i32_0 = arith.constant 0 : i32
    %c0_i32_1 = arith.constant 0 : i32
    return %arg0, %arg1, %c0_i32, %c0_i32_0 : i32, i32, i32, i32
  }
  func.func @transform_1(%arg0: i32, %arg1: i32) -> (i32, i32, i32, i32) {
    %c4_i32 = arith.constant 4 : i32
    %0 = arith.muli %arg1, %c4_i32 : i32
    %c1_i32 = arith.constant 1 : i32
    %1 = arith.subi %0, %c1_i32 : i32
    %c0_i32 = arith.constant 0 : i32
    %2 = arith.maxsi %1, %c0_i32 : i32
    %c0_i32_0 = arith.constant 0 : i32
    %c0_i32_1 = arith.constant 0 : i32
    %c0_i32_2 = arith.constant 0 : i32
    return %arg0, %2, %c0_i32_0, %c0_i32_1 : i32, i32, i32, i32
  }
  func.func @transform_2(%arg0: i32, %arg1: i32) -> (i32, i32, i32, i32) {
    %c1_i32 = arith.constant 1 : i32
    %0 = arith.addi %arg1, %c1_i32 : i32
    %c4_i32 = arith.constant 4 : i32
    %1 = arith.muli %0, %c4_i32 : i32
    %c7_i32 = arith.constant 7 : i32
    %2 = arith.minsi %1, %c7_i32 : i32
    %c0_i32 = arith.constant 0 : i32
    %c0_i32_0 = arith.constant 0 : i32
    %c0_i32_1 = arith.constant 0 : i32
    return %arg0, %2, %c0_i32, %c0_i32_0 : i32, i32, i32, i32
  }
  func.func @transform_3(%arg0: i32, %arg1: i32) -> (i32, i32) {
    %c0_i32 = arith.constant 0 : i32
    %c0_i32_0 = arith.constant 0 : i32
    %c0_i32_1 = arith.constant 0 : i32
    return %c0_i32, %c0_i32_0 : i32, i32
  }
  func.func @transform_4(%arg0: i32, %arg1: i32) -> (i32, i32) {
    %c0_i32 = arith.constant 0 : i32
    %c0_i32_0 = arith.constant 0 : i32
    %c0_i32_1 = arith.constant 0 : i32
    return %c0_i32, %c0_i32_0 : i32, i32
  }
  func.func @transform_5(%arg0: i32, %arg1: i32) -> (i32, i32) {
    %c0_i32 = arith.constant 0 : i32
    %c0_i32_0 = arith.constant 0 : i32
    %c0_i32_1 = arith.constant 0 : i32
    return %c0_i32, %c0_i32_0 : i32, i32
  }
  func.func @transform_6(%arg0: i32, %arg1: i32) -> (i32, i32) {
    %c0_i32 = arith.constant 0 : i32
    %c0_i32_0 = arith.constant 0 : i32
    %c0_i32_1 = arith.constant 0 : i32
    return %c0_i32, %c0_i32_0 : i32, i32
  }
  func.func @transform_7(%arg0: i32, %arg1: i32) -> (i32, i32, i32) {
    %c0_i32 = arith.constant 0 : i32
    %c0_i32_0 = arith.constant 0 : i32
    return %arg0, %arg1, %c0_i32 : i32, i32, i32
  }
}

module attributes {stable_mosaic.version = 11 : i64} {
  func.func @_resblock_kernel(%arg0: i32, %arg1: i32, %arg2: memref<1x8x16x4xf32, #tpu.memory_space<vmem>>, %arg3: memref<1x2x16x4xf32, #tpu.memory_space<vmem>>, %arg4: memref<1x2x16x4xf32, #tpu.memory_space<vmem>>, %arg5: memref<36x4xbf16, #tpu.memory_space<vmem>>, %arg6: memref<1x4xf32, #tpu.memory_space<vmem>>, %arg7: memref<36x4xbf16, #tpu.memory_space<vmem>>, %arg8: memref<1x4xf32, #tpu.memory_space<vmem>>, %arg9: memref<1x8x16x4xf32, #tpu.memory_space<vmem>>, %arg10: memref<12x18x4xbf16, #tpu.memory_space<vmem>>, %arg11: memref<10x18x4xbf16, #tpu.memory_space<vmem>>) attributes {dimension_semantics = [#tpu.dimension_semantics<parallel>, #tpu.dimension_semantics<parallel>], iteration_bounds = array<i64: 2, 2>, scalar_prefetch = 0 : i64, scratch_operands = 2 : i64, tpu.core_type = #tpu.core_type<tc>, window_params = [{transform_indices = @transform_0, window_bounds = array<i64: 1, 8, 16, 4>}, {transform_indices = @transform_1, window_bounds = array<i64: 1, 2, 16, 4>}, {transform_indices = @transform_2, window_bounds = array<i64: 1, 2, 16, 4>}, {pipeline_mode = #tpu.pipeline_mode<synchronous>, transform_indices = @transform_3, window_bounds = array<i64: 36, 4>}, {pipeline_mode = #tpu.pipeline_mode<synchronous>, transform_indices = @transform_4, window_bounds = array<i64: 1, 4>}, {pipeline_mode = #tpu.pipeline_mode<synchronous>, transform_indices = @transform_5, window_bounds = array<i64: 36, 4>}, {pipeline_mode = #tpu.pipeline_mode<synchronous>, transform_indices = @transform_6, window_bounds = array<i64: 1, 4>}, {transform_indices = @transform_7, window_bounds = array<i64: 1, 8, 16, 4>}]} {
    %cst = arith.constant 0.000000e+00 : bf16
    %0 = vector.broadcast %cst : bf16 to vector<12x1x4xbf16>
    %c0 = arith.constant 0 : index
    %c0_0 = arith.constant 0 : index
    %c0_1 = arith.constant 0 : index
    %1 = vector.load %arg10[%c0, %c0_0, %c0_1] : memref<12x18x4xbf16, #tpu.memory_space<vmem>>, vector<12x1x4xbf16>
    tpu.vector_store %arg10[%c0, %c0_0, %c0_1], %0 {strides = array<i32>} : memref<12x18x4xbf16, #tpu.memory_space<vmem>>, vector<12x1x4xbf16>,
    %c0_2 = arith.constant 0 : index
    %c17 = arith.constant 17 : index
    %c0_3 = arith.constant 0 : index
    %2 = vector.load %arg10[%c0_2, %c17, %c0_3] : memref<12x18x4xbf16, #tpu.memory_space<vmem>>, vector<12x1x4xbf16>
    tpu.vector_store %arg10[%c0_2, %c17, %c0_3], %0 {strides = array<i32>} : memref<12x18x4xbf16, #tpu.memory_space<vmem>>, vector<12x1x4xbf16>,
    %c0_4 = arith.constant 0 : index
    %c0_5 = arith.constant 0 : index
    %c0_6 = arith.constant 0 : index
    %c0_7 = arith.constant 0 : index
    %3 = vector.load %arg2[%c0_4, %c0_5, %c0_6, %c0_7] : memref<1x8x16x4xf32, #tpu.memory_space<vmem>>, vector<1x8x16x4xf32>
    %4 = vector.shape_cast %3 : vector<1x8x16x4xf32> to vector<8x16x4xf32>
    %5 = arith.truncf %4 : vector<8x16x4xf32> to vector<8x16x4xbf16>
    %c2 = arith.constant 2 : index
    %c1 = arith.constant 1 : index
    %c0_8 = arith.constant 0 : index
    %6 = vector.load %arg10[%c2, %c1, %c0_8] : memref<12x18x4xbf16, #tpu.memory_space<vmem>>, vector<8x16x4xbf16>
    tpu.vector_store %arg10[%c2, %c1, %c0_8], %5 {strides = array<i32>} : memref<12x18x4xbf16, #tpu.memory_space<vmem>>, vector<8x16x4xbf16>,
    %c0_i32 = arith.constant 0 : i32
    %7 = arith.cmpi sgt, %arg1, %c0_i32 : i32
    %8 = arith.extui %7 : i1 to i32
    %c0_i32_9 = arith.constant 0 : i32
    %9 = arith.cmpi ne, %8, %c0_i32_9 : i32
    scf.if %9 {
      %c0_138 = arith.constant 0 : index
      %c0_139 = arith.constant 0 : index
      %c0_140 = arith.constant 0 : index
      %c0_141 = arith.constant 0 : index
      %132 = vector.load %arg3[%c0_138, %c0_139, %c0_140, %c0_141] : memref<1x2x16x4xf32, #tpu.memory_space<vmem>>, vector<1x2x16x4xf32>
      %133 = vector.shape_cast %132 : vector<1x2x16x4xf32> to vector<2x16x4xf32>
      %134 = arith.truncf %133 : vector<2x16x4xf32> to vector<2x16x4xbf16>
      %c0_142 = arith.constant 0 : index
      %c1_143 = arith.constant 1 : index
      %c0_144 = arith.constant 0 : index
      %135 = vector.load %arg10[%c0_142, %c1_143, %c0_144] : memref<12x18x4xbf16, #tpu.memory_space<vmem>>, vector<2x16x4xbf16>
      tpu.vector_store %arg10[%c0_142, %c1_143, %c0_144], %134 {strides = array<i32>} : memref<12x18x4xbf16, #tpu.memory_space<vmem>>, vector<2x16x4xbf16>,
    } else {
    }
    %c0_i32_10 = arith.constant 0 : i32
    %10 = arith.cmpi eq, %arg1, %c0_i32_10 : i32
    %11 = arith.extui %10 : i1 to i32
    %c0_i32_11 = arith.constant 0 : i32
    %12 = arith.cmpi ne, %11, %c0_i32_11 : i32
    scf.if %12 {
      %cst_138 = arith.constant 0.000000e+00 : bf16
      %132 = vector.broadcast %cst_138 : bf16 to vector<2x16x4xbf16>
      %c0_139 = arith.constant 0 : index
      %c1_140 = arith.constant 1 : index
      %c0_141 = arith.constant 0 : index
      %133 = vector.load %arg10[%c0_139, %c1_140, %c0_141] : memref<12x18x4xbf16, #tpu.memory_space<vmem>>, vector<2x16x4xbf16>
      tpu.vector_store %arg10[%c0_139, %c1_140, %c0_141], %132 {strides = array<i32>} : memref<12x18x4xbf16, #tpu.memory_space<vmem>>, vector<2x16x4xbf16>,
    } else {
    }
    %c1_i32 = arith.constant 1 : i32
    %13 = arith.cmpi slt, %arg1, %c1_i32 : i32
    %14 = arith.extui %13 : i1 to i32
    %c0_i32_12 = arith.constant 0 : i32
    %15 = arith.cmpi ne, %14, %c0_i32_12 : i32
    scf.if %15 {
      %c0_138 = arith.constant 0 : index
      %c0_139 = arith.constant 0 : index
      %c0_140 = arith.constant 0 : index
      %c0_141 = arith.constant 0 : index
      %132 = vector.load %arg4[%c0_138, %c0_139, %c0_140, %c0_141] : memref<1x2x16x4xf32, #tpu.memory_space<vmem>>, vector<1x2x16x4xf32>
      %133 = vector.shape_cast %132 : vector<1x2x16x4xf32> to vector<2x16x4xf32>
      %134 = arith.truncf %133 : vector<2x16x4xf32> to vector<2x16x4xbf16>
      %c10 = arith.constant 10 : index
      %c1_142 = arith.constant 1 : index
      %c0_143 = arith.constant 0 : index
      %135 = vector.load %arg10[%c10, %c1_142, %c0_143] : memref<12x18x4xbf16, #tpu.memory_space<vmem>>, vector<2x16x4xbf16>
      tpu.vector_store %arg10[%c10, %c1_142, %c0_143], %134 {strides = array<i32>} : memref<12x18x4xbf16, #tpu.memory_space<vmem>>, vector<2x16x4xbf16>,
    } else {
    }
    %c1_i32_13 = arith.constant 1 : i32
    %16 = arith.cmpi eq, %arg1, %c1_i32_13 : i32
    %17 = arith.extui %16 : i1 to i32
    %c0_i32_14 = arith.constant 0 : i32
    %18 = arith.cmpi ne, %17, %c0_i32_14 : i32
    scf.if %18 {
      %cst_138 = arith.constant 0.000000e+00 : bf16
      %132 = vector.broadcast %cst_138 : bf16 to vector<2x16x4xbf16>
      %c10 = arith.constant 10 : index
      %c1_139 = arith.constant 1 : index
      %c0_140 = arith.constant 0 : index
      %133 = vector.load %arg10[%c10, %c1_139, %c0_140] : memref<12x18x4xbf16, #tpu.memory_space<vmem>>, vector<2x16x4xbf16>
      tpu.vector_store %arg10[%c10, %c1_139, %c0_140], %132 {strides = array<i32>} : memref<12x18x4xbf16, #tpu.memory_space<vmem>>, vector<2x16x4xbf16>,
    } else {
    }
    %c0_15 = arith.constant 0 : index
    %c0_16 = arith.constant 0 : index
    %c0_17 = arith.constant 0 : index
    %19 = vector.load %arg10[%c0_15, %c0_16, %c0_17] : memref<12x18x4xbf16, #tpu.memory_space<vmem>>, vector<10x16x4xbf16>
    %20 = vector.shape_cast %19 : vector<10x16x4xbf16> to vector<160x4xbf16>
    %c0_18 = arith.constant 0 : index
    %c0_19 = arith.constant 0 : index
    %21 = vector.load %arg5[%c0_18, %c0_19] : memref<36x4xbf16, #tpu.memory_space<vmem>>, vector<4x4xbf16>
    %cst_20 = arith.constant dense<0.000000e+00> : vector<160x4xf32>
    %22 = tpu.matmul %20, %21, %cst_20 {dimension_numbers = #tpu.dot_dimension_numbers<[1], [0], [0], [1], [0, 0, 1, 1], [], []>} : vector<160x4xbf16>, vector<4x4xbf16>, vector<160x4xf32> -> vector<160x4xf32>
    %c0_21 = arith.constant 0 : index
    %c1_22 = arith.constant 1 : index
    %c0_23 = arith.constant 0 : index
    %23 = vector.load %arg10[%c0_21, %c1_22, %c0_23] : memref<12x18x4xbf16, #tpu.memory_space<vmem>>, vector<10x16x4xbf16>
    %24 = vector.shape_cast %23 : vector<10x16x4xbf16> to vector<160x4xbf16>
    %c4 = arith.constant 4 : index
    %c0_24 = arith.constant 0 : index
    %25 = vector.load %arg5[%c4, %c0_24] : memref<36x4xbf16, #tpu.memory_space<vmem>>, vector<4x4xbf16>
    %cst_25 = arith.constant dense<0.000000e+00> : vector<160x4xf32>
    %26 = tpu.matmul %24, %25, %cst_25 {dimension_numbers = #tpu.dot_dimension_numbers<[1], [0], [0], [1], [0, 0, 1, 1], [], []>} : vector<160x4xbf16>, vector<4x4xbf16>, vector<160x4xf32> -> vector<160x4xf32>
    %27 = arith.addf %22, %26 : vector<160x4xf32>
    %c0_26 = arith.constant 0 : index
    %c2_27 = arith.constant 2 : index
    %c0_28 = arith.constant 0 : index
    %28 = vector.load %arg10[%c0_26, %c2_27, %c0_28] : memref<12x18x4xbf16, #tpu.memory_space<vmem>>, vector<10x16x4xbf16>
    %29 = vector.shape_cast %28 : vector<10x16x4xbf16> to vector<160x4xbf16>
    %c8 = arith.constant 8 : index
    %c0_29 = arith.constant 0 : index
    %30 = vector.load %arg5[%c8, %c0_29] : memref<36x4xbf16, #tpu.memory_space<vmem>>, vector<4x4xbf16>
    %cst_30 = arith.constant dense<0.000000e+00> : vector<160x4xf32>
    %31 = tpu.matmul %29, %30, %cst_30 {dimension_numbers = #tpu.dot_dimension_numbers<[1], [0], [0], [1], [0, 0, 1, 1], [], []>} : vector<160x4xbf16>, vector<4x4xbf16>, vector<160x4xf32> -> vector<160x4xf32>
    %32 = arith.addf %27, %31 : vector<160x4xf32>
    %c1_31 = arith.constant 1 : index
    %c0_32 = arith.constant 0 : index
    %c0_33 = arith.constant 0 : index
    %33 = vector.load %arg10[%c1_31, %c0_32, %c0_33] : memref<12x18x4xbf16, #tpu.memory_space<vmem>>, vector<10x16x4xbf16>
    %34 = vector.shape_cast %33 : vector<10x16x4xbf16> to vector<160x4xbf16>
    %c12 = arith.constant 12 : index
    %c0_34 = arith.constant 0 : index
    %35 = vector.load %arg5[%c12, %c0_34] : memref<36x4xbf16, #tpu.memory_space<vmem>>, vector<4x4xbf16>
    %cst_35 = arith.constant dense<0.000000e+00> : vector<160x4xf32>
    %36 = tpu.matmul %34, %35, %cst_35 {dimension_numbers = #tpu.dot_dimension_numbers<[1], [0], [0], [1], [0, 0, 1, 1], [], []>} : vector<160x4xbf16>, vector<4x4xbf16>, vector<160x4xf32> -> vector<160x4xf32>
    %37 = arith.addf %32, %36 : vector<160x4xf32>
    %c1_36 = arith.constant 1 : index
    %c1_37 = arith.constant 1 : index
    %c0_38 = arith.constant 0 : index
    %38 = vector.load %arg10[%c1_36, %c1_37, %c0_38] : memref<12x18x4xbf16, #tpu.memory_space<vmem>>, vector<10x16x4xbf16>
    %39 = vector.shape_cast %38 : vector<10x16x4xbf16> to vector<160x4xbf16>
    %c16 = arith.constant 16 : index
    %c0_39 = arith.constant 0 : index
    %40 = vector.load %arg5[%c16, %c0_39] : memref<36x4xbf16, #tpu.memory_space<vmem>>, vector<4x4xbf16>
    %cst_40 = arith.constant dense<0.000000e+00> : vector<160x4xf32>
    %41 = tpu.matmul %39, %40, %cst_40 {dimension_numbers = #tpu.dot_dimension_numbers<[1], [0], [0], [1], [0, 0, 1, 1], [], []>} : vector<160x4xbf16>, vector<4x4xbf16>, vector<160x4xf32> -> vector<160x4xf32>
    %42 = arith.addf %37, %41 : vector<160x4xf32>
    %c1_41 = arith.constant 1 : index
    %c2_42 = arith.constant 2 : index
    %c0_43 = arith.constant 0 : index
    %43 = vector.load %arg10[%c1_41, %c2_42, %c0_43] : memref<12x18x4xbf16, #tpu.memory_space<vmem>>, vector<10x16x4xbf16>
    %44 = vector.shape_cast %43 : vector<10x16x4xbf16> to vector<160x4xbf16>
    %c20 = arith.constant 20 : index
    %c0_44 = arith.constant 0 : index
    %45 = vector.load %arg5[%c20, %c0_44] : memref<36x4xbf16, #tpu.memory_space<vmem>>, vector<4x4xbf16>
    %cst_45 = arith.constant dense<0.000000e+00> : vector<160x4xf32>
    %46 = tpu.matmul %44, %45, %cst_45 {dimension_numbers = #tpu.dot_dimension_numbers<[1], [0], [0], [1], [0, 0, 1, 1], [], []>} : vector<160x4xbf16>, vector<4x4xbf16>, vector<160x4xf32> -> vector<160x4xf32>
    %47 = arith.addf %42, %46 : vector<160x4xf32>
    %c2_46 = arith.constant 2 : index
    %c0_47 = arith.constant 0 : index
    %c0_48 = arith.constant 0 : index
    %48 = vector.load %arg10[%c2_46, %c0_47, %c0_48] : memref<12x18x4xbf16, #tpu.memory_space<vmem>>, vector<10x16x4xbf16>
    %49 = vector.shape_cast %48 : vector<10x16x4xbf16> to vector<160x4xbf16>
    %c24 = arith.constant 24 : index
    %c0_49 = arith.constant 0 : index
    %50 = vector.load %arg5[%c24, %c0_49] : memref<36x4xbf16, #tpu.memory_space<vmem>>, vector<4x4xbf16>
    %cst_50 = arith.constant dense<0.000000e+00> : vector<160x4xf32>
    %51 = tpu.matmul %49, %50, %cst_50 {dimension_numbers = #tpu.dot_dimension_numbers<[1], [0], [0], [1], [0, 0, 1, 1], [], []>} : vector<160x4xbf16>, vector<4x4xbf16>, vector<160x4xf32> -> vector<160x4xf32>
    %52 = arith.addf %47, %51 : vector<160x4xf32>
    %c2_51 = arith.constant 2 : index
    %c1_52 = arith.constant 1 : index
    %c0_53 = arith.constant 0 : index
    %53 = vector.load %arg10[%c2_51, %c1_52, %c0_53] : memref<12x18x4xbf16, #tpu.memory_space<vmem>>, vector<10x16x4xbf16>
    %54 = vector.shape_cast %53 : vector<10x16x4xbf16> to vector<160x4xbf16>
    %c28 = arith.constant 28 : index
    %c0_54 = arith.constant 0 : index
    %55 = vector.load %arg5[%c28, %c0_54] : memref<36x4xbf16, #tpu.memory_space<vmem>>, vector<4x4xbf16>
    %cst_55 = arith.constant dense<0.000000e+00> : vector<160x4xf32>
    %56 = tpu.matmul %54, %55, %cst_55 {dimension_numbers = #tpu.dot_dimension_numbers<[1], [0], [0], [1], [0, 0, 1, 1], [], []>} : vector<160x4xbf16>, vector<4x4xbf16>, vector<160x4xf32> -> vector<160x4xf32>
    %57 = arith.addf %52, %56 : vector<160x4xf32>
    %c2_56 = arith.constant 2 : index
    %c2_57 = arith.constant 2 : index
    %c0_58 = arith.constant 0 : index
    %58 = vector.load %arg10[%c2_56, %c2_57, %c0_58] : memref<12x18x4xbf16, #tpu.memory_space<vmem>>, vector<10x16x4xbf16>
    %59 = vector.shape_cast %58 : vector<10x16x4xbf16> to vector<160x4xbf16>
    %c32 = arith.constant 32 : index
    %c0_59 = arith.constant 0 : index
    %60 = vector.load %arg5[%c32, %c0_59] : memref<36x4xbf16, #tpu.memory_space<vmem>>, vector<4x4xbf16>
    %cst_60 = arith.constant dense<0.000000e+00> : vector<160x4xf32>
    %61 = tpu.matmul %59, %60, %cst_60 {dimension_numbers = #tpu.dot_dimension_numbers<[1], [0], [0], [1], [0, 0, 1, 1], [], []>} : vector<160x4xbf16>, vector<4x4xbf16>, vector<160x4xf32> -> vector<160x4xf32>
    %62 = arith.addf %57, %61 : vector<160x4xf32>
    %c0_61 = arith.constant 0 : index
    %c0_62 = arith.constant 0 : index
    %63 = vector.load %arg6[%c0_61, %c0_62] : memref<1x4xf32, #tpu.memory_space<vmem>>, vector<1x4xf32>
    %64 = vector.broadcast %63 : vector<1x4xf32> to vector<160x4xf32>
    %65 = arith.addf %62, %64 : vector<160x4xf32>
    %cst_63 = arith.constant 0.000000e+00 : f32
    %66 = vector.broadcast %cst_63 : f32 to vector<160x4xf32>
    %67 = arith.maximumf %65, %66 : vector<160x4xf32>
    %cst_64 = arith.constant 0.000000e+00 : bf16
    %68 = vector.broadcast %cst_64 : bf16 to vector<10x1x4xbf16>
    %c0_65 = arith.constant 0 : index
    %c0_66 = arith.constant 0 : index
    %c0_67 = arith.constant 0 : index
    %69 = vector.load %arg11[%c0_65, %c0_66, %c0_67] : memref<10x18x4xbf16, #tpu.memory_space<vmem>>, vector<10x1x4xbf16>
    tpu.vector_store %arg11[%c0_65, %c0_66, %c0_67], %68 {strides = array<i32>} : memref<10x18x4xbf16, #tpu.memory_space<vmem>>, vector<10x1x4xbf16>,
    %c0_68 = arith.constant 0 : index
    %c17_69 = arith.constant 17 : index
    %c0_70 = arith.constant 0 : index
    %70 = vector.load %arg11[%c0_68, %c17_69, %c0_70] : memref<10x18x4xbf16, #tpu.memory_space<vmem>>, vector<10x1x4xbf16>
    tpu.vector_store %arg11[%c0_68, %c17_69, %c0_70], %68 {strides = array<i32>} : memref<10x18x4xbf16, #tpu.memory_space<vmem>>, vector<10x1x4xbf16>,
    %71 = vector.shape_cast %67 : vector<160x4xf32> to vector<10x16x4xf32>
    %72 = arith.truncf %71 : vector<10x16x4xf32> to vector<10x16x4xbf16>
    %c0_71 = arith.constant 0 : index
    %c1_72 = arith.constant 1 : index
    %c0_73 = arith.constant 0 : index
    %73 = vector.load %arg11[%c0_71, %c1_72, %c0_73] : memref<10x18x4xbf16, #tpu.memory_space<vmem>>, vector<10x16x4xbf16>
    tpu.vector_store %arg11[%c0_71, %c1_72, %c0_73], %72 {strides = array<i32>} : memref<10x18x4xbf16, #tpu.memory_space<vmem>>, vector<10x16x4xbf16>,
    %c0_i32_74 = arith.constant 0 : i32
    %74 = arith.cmpi eq, %arg1, %c0_i32_74 : i32
    %75 = arith.extui %74 : i1 to i32
    %c0_i32_75 = arith.constant 0 : i32
    %76 = arith.cmpi ne, %75, %c0_i32_75 : i32
    scf.if %76 {
      %cst_138 = arith.constant 0.000000e+00 : bf16
      %132 = vector.broadcast %cst_138 : bf16 to vector<1x18x4xbf16>
      %c0_139 = arith.constant 0 : index
      %c0_140 = arith.constant 0 : index
      %c0_141 = arith.constant 0 : index
      %133 = vector.load %arg11[%c0_139, %c0_140, %c0_141] : memref<10x18x4xbf16, #tpu.memory_space<vmem>>, vector<1x18x4xbf16>
      tpu.vector_store %arg11[%c0_139, %c0_140, %c0_141], %132 {strides = array<i32>} : memref<10x18x4xbf16, #tpu.memory_space<vmem>>, vector<1x18x4xbf16>,
    } else {
    }
    %c1_i32_76 = arith.constant 1 : i32
    %77 = arith.cmpi eq, %arg1, %c1_i32_76 : i32
    %78 = arith.extui %77 : i1 to i32
    %c0_i32_77 = arith.constant 0 : i32
    %79 = arith.cmpi ne, %78, %c0_i32_77 : i32
    scf.if %79 {
      %cst_138 = arith.constant 0.000000e+00 : bf16
      %132 = vector.broadcast %cst_138 : bf16 to vector<1x18x4xbf16>
      %c9 = arith.constant 9 : index
      %c0_139 = arith.constant 0 : index
      %c0_140 = arith.constant 0 : index
      %133 = vector.load %arg11[%c9, %c0_139, %c0_140] : memref<10x18x4xbf16, #tpu.memory_space<vmem>>, vector<1x18x4xbf16>
      tpu.vector_store %arg11[%c9, %c0_139, %c0_140], %132 {strides = array<i32>} : memref<10x18x4xbf16, #tpu.memory_space<vmem>>, vector<1x18x4xbf16>,
    } else {
    }
    %c0_78 = arith.constant 0 : index
    %c0_79 = arith.constant 0 : index
    %c0_80 = arith.constant 0 : index
    %80 = vector.load %arg11[%c0_78, %c0_79, %c0_80] : memref<10x18x4xbf16, #tpu.memory_space<vmem>>, vector<8x16x4xbf16>
    %81 = vector.shape_cast %80 : vector<8x16x4xbf16> to vector<128x4xbf16>
    %c0_81 = arith.constant 0 : index
    %c0_82 = arith.constant 0 : index
    %82 = vector.load %arg7[%c0_81, %c0_82] : memref<36x4xbf16, #tpu.memory_space<vmem>>, vector<4x4xbf16>
    %cst_83 = arith.constant dense<0.000000e+00> : vector<128x4xf32>
    %83 = tpu.matmul %81, %82, %cst_83 {dimension_numbers = #tpu.dot_dimension_numbers<[1], [0], [0], [1], [0, 0, 1, 1], [], []>} : vector<128x4xbf16>, vector<4x4xbf16>, vector<128x4xf32> -> vector<128x4xf32>
    %c0_84 = arith.constant 0 : index
    %c1_85 = arith.constant 1 : index
    %c0_86 = arith.constant 0 : index
    %84 = vector.load %arg11[%c0_84, %c1_85, %c0_86] : memref<10x18x4xbf16, #tpu.memory_space<vmem>>, vector<8x16x4xbf16>
    %85 = vector.shape_cast %84 : vector<8x16x4xbf16> to vector<128x4xbf16>
    %c4_87 = arith.constant 4 : index
    %c0_88 = arith.constant 0 : index
    %86 = vector.load %arg7[%c4_87, %c0_88] : memref<36x4xbf16, #tpu.memory_space<vmem>>, vector<4x4xbf16>
    %cst_89 = arith.constant dense<0.000000e+00> : vector<128x4xf32>
    %87 = tpu.matmul %85, %86, %cst_89 {dimension_numbers = #tpu.dot_dimension_numbers<[1], [0], [0], [1], [0, 0, 1, 1], [], []>} : vector<128x4xbf16>, vector<4x4xbf16>, vector<128x4xf32> -> vector<128x4xf32>
    %88 = arith.addf %83, %87 : vector<128x4xf32>
    %c0_90 = arith.constant 0 : index
    %c2_91 = arith.constant 2 : index
    %c0_92 = arith.constant 0 : index
    %89 = vector.load %arg11[%c0_90, %c2_91, %c0_92] : memref<10x18x4xbf16, #tpu.memory_space<vmem>>, vector<8x16x4xbf16>
    %90 = vector.shape_cast %89 : vector<8x16x4xbf16> to vector<128x4xbf16>
    %c8_93 = arith.constant 8 : index
    %c0_94 = arith.constant 0 : index
    %91 = vector.load %arg7[%c8_93, %c0_94] : memref<36x4xbf16, #tpu.memory_space<vmem>>, vector<4x4xbf16>
    %cst_95 = arith.constant dense<0.000000e+00> : vector<128x4xf32>
    %92 = tpu.matmul %90, %91, %cst_95 {dimension_numbers = #tpu.dot_dimension_numbers<[1], [0], [0], [1], [0, 0, 1, 1], [], []>} : vector<128x4xbf16>, vector<4x4xbf16>, vector<128x4xf32> -> vector<128x4xf32>
    %93 = arith.addf %88, %92 : vector<128x4xf32>
    %c1_96 = arith.constant 1 : index
    %c0_97 = arith.constant 0 : index
    %c0_98 = arith.constant 0 : index
    %94 = vector.load %arg11[%c1_96, %c0_97, %c0_98] : memref<10x18x4xbf16, #tpu.memory_space<vmem>>, vector<8x16x4xbf16>
    %95 = vector.shape_cast %94 : vector<8x16x4xbf16> to vector<128x4xbf16>
    %c12_99 = arith.constant 12 : index
    %c0_100 = arith.constant 0 : index
    %96 = vector.load %arg7[%c12_99, %c0_100] : memref<36x4xbf16, #tpu.memory_space<vmem>>, vector<4x4xbf16>
    %cst_101 = arith.constant dense<0.000000e+00> : vector<128x4xf32>
    %97 = tpu.matmul %95, %96, %cst_101 {dimension_numbers = #tpu.dot_dimension_numbers<[1], [0], [0], [1], [0, 0, 1, 1], [], []>} : vector<128x4xbf16>, vector<4x4xbf16>, vector<128x4xf32> -> vector<128x4xf32>
    %98 = arith.addf %93, %97 : vector<128x4xf32>
    %c1_102 = arith.constant 1 : index
    %c1_103 = arith.constant 1 : index
    %c0_104 = arith.constant 0 : index
    %99 = vector.load %arg11[%c1_102, %c1_103, %c0_104] : memref<10x18x4xbf16, #tpu.memory_space<vmem>>, vector<8x16x4xbf16>
    %100 = vector.shape_cast %99 : vector<8x16x4xbf16> to vector<128x4xbf16>
    %c16_105 = arith.constant 16 : index
    %c0_106 = arith.constant 0 : index
    %101 = vector.load %arg7[%c16_105, %c0_106] : memref<36x4xbf16, #tpu.memory_space<vmem>>, vector<4x4xbf16>
    %cst_107 = arith.constant dense<0.000000e+00> : vector<128x4xf32>
    %102 = tpu.matmul %100, %101, %cst_107 {dimension_numbers = #tpu.dot_dimension_numbers<[1], [0], [0], [1], [0, 0, 1, 1], [], []>} : vector<128x4xbf16>, vector<4x4xbf16>, vector<128x4xf32> -> vector<128x4xf32>
    %103 = arith.addf %98, %102 : vector<128x4xf32>
    %c1_108 = arith.constant 1 : index
    %c2_109 = arith.constant 2 : index
    %c0_110 = arith.constant 0 : index
    %104 = vector.load %arg11[%c1_108, %c2_109, %c0_110] : memref<10x18x4xbf16, #tpu.memory_space<vmem>>, vector<8x16x4xbf16>
    %105 = vector.shape_cast %104 : vector<8x16x4xbf16> to vector<128x4xbf16>
    %c20_111 = arith.constant 20 : index
    %c0_112 = arith.constant 0 : index
    %106 = vector.load %arg7[%c20_111, %c0_112] : memref<36x4xbf16, #tpu.memory_space<vmem>>, vector<4x4xbf16>
    %cst_113 = arith.constant dense<0.000000e+00> : vector<128x4xf32>
    %107 = tpu.matmul %105, %106, %cst_113 {dimension_numbers = #tpu.dot_dimension_numbers<[1], [0], [0], [1], [0, 0, 1, 1], [], []>} : vector<128x4xbf16>, vector<4x4xbf16>, vector<128x4xf32> -> vector<128x4xf32>
    %108 = arith.addf %103, %107 : vector<128x4xf32>
    %c2_114 = arith.constant 2 : index
    %c0_115 = arith.constant 0 : index
    %c0_116 = arith.constant 0 : index
    %109 = vector.load %arg11[%c2_114, %c0_115, %c0_116] : memref<10x18x4xbf16, #tpu.memory_space<vmem>>, vector<8x16x4xbf16>
    %110 = vector.shape_cast %109 : vector<8x16x4xbf16> to vector<128x4xbf16>
    %c24_117 = arith.constant 24 : index
    %c0_118 = arith.constant 0 : index
    %111 = vector.load %arg7[%c24_117, %c0_118] : memref<36x4xbf16, #tpu.memory_space<vmem>>, vector<4x4xbf16>
    %cst_119 = arith.constant dense<0.000000e+00> : vector<128x4xf32>
    %112 = tpu.matmul %110, %111, %cst_119 {dimension_numbers = #tpu.dot_dimension_numbers<[1], [0], [0], [1], [0, 0, 1, 1], [], []>} : vector<128x4xbf16>, vector<4x4xbf16>, vector<128x4xf32> -> vector<128x4xf32>
    %113 = arith.addf %108, %112 : vector<128x4xf32>
    %c2_120 = arith.constant 2 : index
    %c1_121 = arith.constant 1 : index
    %c0_122 = arith.constant 0 : index
    %114 = vector.load %arg11[%c2_120, %c1_121, %c0_122] : memref<10x18x4xbf16, #tpu.memory_space<vmem>>, vector<8x16x4xbf16>
    %115 = vector.shape_cast %114 : vector<8x16x4xbf16> to vector<128x4xbf16>
    %c28_123 = arith.constant 28 : index
    %c0_124 = arith.constant 0 : index
    %116 = vector.load %arg7[%c28_123, %c0_124] : memref<36x4xbf16, #tpu.memory_space<vmem>>, vector<4x4xbf16>
    %cst_125 = arith.constant dense<0.000000e+00> : vector<128x4xf32>
    %117 = tpu.matmul %115, %116, %cst_125 {dimension_numbers = #tpu.dot_dimension_numbers<[1], [0], [0], [1], [0, 0, 1, 1], [], []>} : vector<128x4xbf16>, vector<4x4xbf16>, vector<128x4xf32> -> vector<128x4xf32>
    %118 = arith.addf %113, %117 : vector<128x4xf32>
    %c2_126 = arith.constant 2 : index
    %c2_127 = arith.constant 2 : index
    %c0_128 = arith.constant 0 : index
    %119 = vector.load %arg11[%c2_126, %c2_127, %c0_128] : memref<10x18x4xbf16, #tpu.memory_space<vmem>>, vector<8x16x4xbf16>
    %120 = vector.shape_cast %119 : vector<8x16x4xbf16> to vector<128x4xbf16>
    %c32_129 = arith.constant 32 : index
    %c0_130 = arith.constant 0 : index
    %121 = vector.load %arg7[%c32_129, %c0_130] : memref<36x4xbf16, #tpu.memory_space<vmem>>, vector<4x4xbf16>
    %cst_131 = arith.constant dense<0.000000e+00> : vector<128x4xf32>
    %122 = tpu.matmul %120, %121, %cst_131 {dimension_numbers = #tpu.dot_dimension_numbers<[1], [0], [0], [1], [0, 0, 1, 1], [], []>} : vector<128x4xbf16>, vector<4x4xbf16>, vector<128x4xf32> -> vector<128x4xf32>
    %123 = arith.addf %118, %122 : vector<128x4xf32>
    %c0_132 = arith.constant 0 : index
    %c0_133 = arith.constant 0 : index
    %124 = vector.load %arg8[%c0_132, %c0_133] : memref<1x4xf32, #tpu.memory_space<vmem>>, vector<1x4xf32>
    %125 = vector.broadcast %124 : vector<1x4xf32> to vector<128x4xf32>
    %126 = arith.addf %123, %125 : vector<128x4xf32>
    %127 = vector.shape_cast %126 : vector<128x4xf32> to vector<8x16x4xf32>
    %128 = arith.addf %127, %4 : vector<8x16x4xf32>
    %c0_134 = arith.constant 0 : index
    %c0_135 = arith.constant 0 : index
    %c0_136 = arith.constant 0 : index
    %c0_137 = arith.constant 0 : index
    %129 = vector.load %arg9[%c0_134, %c0_135, %c0_136, %c0_137] : memref<1x8x16x4xf32, #tpu.memory_space<vmem>>, vector<1x8x16x4xf32>
    %130 = vector.shape_cast %129 : vector<1x8x16x4xf32> to vector<8x16x4xf32>
    %131 = vector.shape_cast %128 : vector<8x16x4xf32> to vector<1x8x16x4xf32>
    tpu.vector_store %arg9[%c0_134, %c0_135, %c0_136, %c0_137], %131 {strides = array<i32>} : memref<1x8x16x4xf32, #tpu.memory_space<vmem>>, vector<1x8x16x4xf32>,
    return
  }
  func.func @transform_0(%arg0: i32, %arg1: i32) -> (i32, i32, i32, i32) {
    %c0_i32 = arith.constant 0 : i32
    %c0_i32_0 = arith.constant 0 : i32
    %c0_i32_1 = arith.constant 0 : i32
    return %arg0, %arg1, %c0_i32, %c0_i32_0 : i32, i32, i32, i32
  }
  func.func @transform_1(%arg0: i32, %arg1: i32) -> (i32, i32, i32, i32) {
    %c4_i32 = arith.constant 4 : i32
    %0 = arith.muli %arg1, %c4_i32 : i32
    %c1_i32 = arith.constant 1 : i32
    %1 = arith.subi %0, %c1_i32 : i32
    %c0_i32 = arith.constant 0 : i32
    %2 = arith.maxsi %1, %c0_i32 : i32
    %c0_i32_0 = arith.constant 0 : i32
    %c0_i32_1 = arith.constant 0 : i32
    %c0_i32_2 = arith.constant 0 : i32
    return %arg0, %2, %c0_i32_0, %c0_i32_1 : i32, i32, i32, i32
  }
  func.func @transform_2(%arg0: i32, %arg1: i32) -> (i32, i32, i32, i32) {
    %c1_i32 = arith.constant 1 : i32
    %0 = arith.addi %arg1, %c1_i32 : i32
    %c4_i32 = arith.constant 4 : i32
    %1 = arith.muli %0, %c4_i32 : i32
    %c7_i32 = arith.constant 7 : i32
    %2 = arith.minsi %1, %c7_i32 : i32
    %c0_i32 = arith.constant 0 : i32
    %c0_i32_0 = arith.constant 0 : i32
    %c0_i32_1 = arith.constant 0 : i32
    return %arg0, %2, %c0_i32, %c0_i32_0 : i32, i32, i32, i32
  }
  func.func @transform_3(%arg0: i32, %arg1: i32) -> (i32, i32) {
    %c0_i32 = arith.constant 0 : i32
    %c0_i32_0 = arith.constant 0 : i32
    %c0_i32_1 = arith.constant 0 : i32
    return %c0_i32, %c0_i32_0 : i32, i32
  }
  func.func @transform_4(%arg0: i32, %arg1: i32) -> (i32, i32) {
    %c0_i32 = arith.constant 0 : i32
    %c0_i32_0 = arith.constant 0 : i32
    %c0_i32_1 = arith.constant 0 : i32
    return %c0_i32, %c0_i32_0 : i32, i32
  }
  func.func @transform_5(%arg0: i32, %arg1: i32) -> (i32, i32) {
    %c0_i32 = arith.constant 0 : i32
    %c0_i32_0 = arith.constant 0 : i32
    %c0_i32_1 = arith.constant 0 : i32
    return %c0_i32, %c0_i32_0 : i32, i32
  }
  func.func @transform_6(%arg0: i32, %arg1: i32) -> (i32, i32) {
    %c0_i32 = arith.constant 0 : i32
    %c0_i32_0 = arith.constant 0 : i32
    %c0_i32_1 = arith.constant 0 : i32
    return %c0_i32, %c0_i32_0 : i32, i32
  }
  func.func @transform_7(%arg0: i32, %arg1: i32) -> (i32, i32, i32, i32) {
    %c0_i32 = arith.constant 0 : i32
    %c0_i32_0 = arith.constant 0 : i32
    %c0_i32_1 = arith.constant 0 : i32
    return %arg0, %arg1, %c0_i32, %c0_i32_0 : i32, i32, i32, i32
  }
}

</mosaic_0001>

<llo_original>
// kernel: tpu_custom_call.1
$region0: #{tpu_custom_call.1}
  #allocation0 [shape = 'u32[]', space=smem, size = 0x4, offset = 0x4, fixed_abs, tag = 'smem constant byte address 0x4 - core index']
  #allocation1 [shape = 'u32[144,128]{1,0:T(1,128)}', space=vmem, size = 0x12000, scoped, tag = 'internal scratch']
  #allocation2 [shape = 'bf16[12,18,4]{2,1,0:T(8,128)(2,1)}', space=vmem, size = 0x12000, scoped, tag = 'scratch operand']
  #allocation3 [shape = 'bf16[10,18,4]{2,1,0:T(8,128)(2,1)}', space=vmem, size = 0xf000, scoped, tag = 'scratch operand']
  %s0 = inlined_call_operand.vmem [shape: f32[2,16,16,4], index: 0, kind: input, shape index: {}]
  %s1 = inlined_call_operand.vmem [shape: f32[2,16,16,4], index: 1, kind: input, shape index: {}]
  %s2 = inlined_call_operand.vmem [shape: f32[2,16,16,4], index: 2, kind: input, shape index: {}]
  %s3 = inlined_call_operand.vmem [shape: bf16[36,4], index: 3, kind: input, shape index: {}]
  %s4 = inlined_call_operand.vmem [shape: f32[1,4], index: 4, kind: input, shape index: {}]
  %s5 = inlined_call_operand.vmem [shape: bf16[36,4], index: 5, kind: input, shape index: {}]
  %s6 = inlined_call_operand.vmem [shape: f32[1,4], index: 6, kind: input, shape index: {}]
  %s7 = inlined_call_operand.vmem [shape: f32[2,16,16,4], index: 7, kind: output, shape index: {}]
  %s8 = sld [smem:[#allocation0]]
  $region85: #{tpu_custom_call.1} parent=0
    _
  %s10 = ssub.s32 1, %s8
  %s11 = scalar_select 0, %s10, %s8
  loop: start=0, step=1, limit=6
  $region2: #{tpu_custom_call.1} parent=0 // loop_pre_header
    _
  $region3: #{tpu_custom_call.1} parent=0 // loop_header
    %s13 = sphi 0, %s17
    %p14 = scmp.ge.s32.totalorder %s13, 6
    %s20 = sphi 0, %s32
    %s21 = sphi 0, %s28
    %s22 = sphi 0, %s20
    %s23 = sphi 0, %s21
    %s24 = sphi 0, %s22
    %s25 = sphi 0, %s23
    %s37 = sphi 0, %s39
    %s40 = sphi 0, %s37
    %s41 = sphi 0, %s40
    %s57 = sphi 0, %s41
    %s73 = sphi 0, %s75
    %s76 = sphi 0, %s73
    %s77 = sphi 0, %s76
    %s93 = sphi 0, %s77
    %s109 = sphi 0, %s111
    %s112 = sphi 0, %s109
    %s113 = sphi 0, %s112
    %s129 = sphi 0, %s113
    %s133 = sphi 0, %s133
    %s135 = sphi 0, %s133
    %s136 = sphi 0, %s135
    %s150 = sphi 0, %s136
    %s154 = sphi 0, %s154
    %s156 = sphi 0, %s154
    %s157 = sphi 0, %s156
    %s171 = sphi 0, %s157
    %s175 = sphi 0, %s175
    %s177 = sphi 0, %s175
    %s178 = sphi 0, %s177
    %s192 = sphi 0, %s178
    %s196 = sphi 0, %s196
    %s198 = sphi 0, %s196
    %s199 = sphi 0, %s198
    %s213 = sphi 0, %s199
    %s221 = sphi 0, %s223
    %s224 = sphi 0, %s221
    %s225 = sphi 0, %s224
    %s241 = sphi 0, %s225
  $region4: #{tpu_custom_call.1} parent=0 // loop_header_branch
    %16 = sbr.rel (%p14) target = $region8
  $region5: #{tpu_custom_call.1} parent=0 // loop_body
    %s18 = ssub.s32 %s13, 1
    %s19 = ssub.s32 %s13, 2
    %s26 = sadd.s32 1, %s21
    %p27 = scmp.ge.s32.totalorder %s26, 2
    %s28 = scalar_select %p27, 0, %s26
    %s29 = sadd.s32 1, %s20
    %s30 = scalar_select %p27, %s29, %s20
    %p31 = scmp.ge.s32.totalorder %s30, 2
    %s32 = scalar_select %p31, 0, %s30
    %s33 = ssub.s32 %s20, %s32
    %s34 = ssub.s32 %s21, %s28
    %s35 = sor.u32 %s33, %s34
    %p36 = scmp.eq.s32.totalorder %s35, 0
    %s38 = sadd.s32 %s37, 1
    %s39 = scalar_select %p36, %s37, %s38
    %p42 = pneg %p36
    %p43 = scmp.eq.s32.totalorder %s13, 3
    %p44 = por %p42, %p43
    %p45 = scmp.ne.s32.totalorder %s37, %s40
    %p46 = scmp.eq.s32.totalorder %s13, 0
    %p47 = por %p45, %p46
    %p48 = scmp.ne.s32.totalorder %s37, %s40
    %p49 = scmp.eq.s32.totalorder %s18, 3
    %p50 = por %p48, %p49
    %p51 = scmp.ne.s32.totalorder %s40, %s41
    %p52 = scmp.eq.s32.totalorder %s18, 0
    %p53 = por %p51, %p52
    %p54 = scmp.ne.s32.totalorder %s40, %s41
    %p55 = scmp.eq.s32.totalorder %s19, 3
    %p56 = por %p54, %p55
    %p58 = scmp.ne.s32.totalorder %s41, %s57
    %p59 = scmp.eq.s32.totalorder %s19, 0
    %p60 = por %p58, %p59
    %s61 = smul.u32 %s21, 4
    %s62 = ssub.s32 %s61, 1
    %p63 = scmp.gt.s32.totalorder %s62, 0
    %s64 = scalar_select %p63, %s62, 0
    %s65 = smul.u32 %s28, 4
    %s66 = ssub.s32 %s65, 1
    %p67 = scmp.gt.s32.totalorder %s66, 0
    %s68 = scalar_select %p67, %s66, 0
    %s69 = ssub.s32 %s20, %s32
    %s70 = ssub.s32 %s64, %s68
    %s71 = sor.u32 %s69, %s70
    %p72 = scmp.eq.s32.totalorder %s71, 0
    %s74 = sadd.s32 %s73, 1
    %s75 = scalar_select %p72, %s73, %s74
    %p78 = pneg %p72
    %p79 = scmp.eq.s32.totalorder %s13, 3
    %p80 = por %p78, %p79
    %p81 = scmp.ne.s32.totalorder %s73, %s76
    %p82 = scmp.eq.s32.totalorder %s13, 0
    %p83 = por %p81, %p82
    %p84 = scmp.ne.s32.totalorder %s73, %s76
    %p85 = scmp.eq.s32.totalorder %s18, 3
    %p86 = por %p84, %p85
    %p87 = scmp.ne.s32.totalorder %s76, %s77
    %p88 = scmp.eq.s32.totalorder %s18, 0
    %p89 = por %p87, %p88
    %p90 = scmp.ne.s32.totalorder %s76, %s77
    %p91 = scmp.eq.s32.totalorder %s19, 3
    %p92 = por %p90, %p91
    %p94 = scmp.ne.s32.totalorder %s77, %s93
    %p95 = scmp.eq.s32.totalorder %s19, 0
    %p96 = por %p94, %p95
    %s97 = sadd.s32 %s21, 1
    %s98 = smul.u32 %s97, 4
    %p99 = scmp.lt.s32.totalorder %s98, 7
    %s100 = scalar_select %p99, %s98, 7
    %s101 = sadd.s32 %s28, 1
    %s102 = smul.u32 %s101, 4
    %p103 = scmp.lt.s32.totalorder %s102, 7
    %s104 = scalar_select %p103, %s102, 7
    %s105 = ssub.s32 %s20, %s32
    %s106 = ssub.s32 %s100, %s104
    %s107 = sor.u32 %s105, %s106
    %p108 = scmp.eq.s32.totalorder %s107, 0
    %s110 = sadd.s32 %s109, 1
    %s111 = scalar_select %p108, %s109, %s110
    %p114 = pneg %p108
    %p115 = scmp.eq.s32.totalorder %s13, 3
    %p116 = por %p114, %p115
    %p117 = scmp.ne.s32.totalorder %s109, %s112
    %p118 = scmp.eq.s32.totalorder %s13, 0
    %p119 = por %p117, %p118
    %p120 = scmp.ne.s32.totalorder %s109, %s112
    %p121 = scmp.eq.s32.totalorder %s18, 3
    %p122 = por %p120, %p121
    %p123 = scmp.ne.s32.totalorder %s112, %s113
    %p124 = scmp.eq.s32.totalorder %s18, 0
    %p125 = por %p123, %p124
    %p126 = scmp.ne.s32.totalorder %s112, %s113
    %p127 = scmp.eq.s32.totalorder %s19, 3
    %p128 = por %p126, %p127
    %p130 = scmp.ne.s32.totalorder %s113, %s129
    %p131 = scmp.eq.s32.totalorder %s19, 0
    %p132 = por %p130, %p131
    %s134 = sadd.s32 %s133, 1
    %p137 = scmp.eq.s32.totalorder %s13, 3
    %p138 = scmp.ne.s32.totalorder %s133, %s135
    %p139 = scmp.eq.s32.totalorder %s13, 0
    %p140 = por %p138, %p139
    %p141 = scmp.ne.s32.totalorder %s133, %s135
    %p142 = scmp.eq.s32.totalorder %s18, 3
    %p143 = por %p141, %p142
    %p144 = scmp.ne.s32.totalorder %s135, %s136
    %p145 = scmp.eq.s32.totalorder %s18, 0
    %p146 = por %p144, %p145
    %p147 = scmp.ne.s32.totalorder %s135, %s136
    %p148 = scmp.eq.s32.totalorder %s19, 3
    %p149 = por %p147, %p148
    %p151 = scmp.ne.s32.totalorder %s136, %s150
    %p152 = scmp.eq.s32.totalorder %s19, 0
    %p153 = por %p151, %p152
    %s155 = sadd.s32 %s154, 1
    %p158 = scmp.eq.s32.totalorder %s13, 3
    %p159 = scmp.ne.s32.totalorder %s154, %s156
    %p160 = scmp.eq.s32.totalorder %s13, 0
    %p161 = por %p159, %p160
    %p162 = scmp.ne.s32.totalorder %s154, %s156
    %p163 = scmp.eq.s32.totalorder %s18, 3
    %p164 = por %p162, %p163
    %p165 = scmp.ne.s32.totalorder %s156, %s157
    %p166 = scmp.eq.s32.totalorder %s18, 0
    %p167 = por %p165, %p166
    %p168 = scmp.ne.s32.totalorder %s156, %s157
    %p169 = scmp.eq.s32.totalorder %s19, 3
    %p170 = por %p168, %p169
    %p172 = scmp.ne.s32.totalorder %s157, %s171
    %p173 = scmp.eq.s32.totalorder %s19, 0
    %p174 = por %p172, %p173
    %s176 = sadd.s32 %s175, 1
    %p179 = scmp.eq.s32.totalorder %s13, 3
    %p180 = scmp.ne.s32.totalorder %s175, %s177
    %p181 = scmp.eq.s32.totalorder %s13, 0
    %p182 = por %p180, %p181
    %p183 = scmp.ne.s32.totalorder %s175, %s177
    %p184 = scmp.eq.s32.totalorder %s18, 3
    %p185 = por %p183, %p184
    %p186 = scmp.ne.s32.totalorder %s177, %s178
    %p187 = scmp.eq.s32.totalorder %s18, 0
    %p188 = por %p186, %p187
    %p189 = scmp.ne.s32.totalorder %s177, %s178
    %p190 = scmp.eq.s32.totalorder %s19, 3
    %p191 = por %p189, %p190
    %p193 = scmp.ne.s32.totalorder %s178, %s192
    %p194 = scmp.eq.s32.totalorder %s19, 0
    %p195 = por %p193, %p194
    %s197 = sadd.s32 %s196, 1
    %p200 = scmp.eq.s32.totalorder %s13, 3
    %p201 = scmp.ne.s32.totalorder %s196, %s198
    %p202 = scmp.eq.s32.totalorder %s13, 0
    %p203 = por %p201, %p202
    %p204 = scmp.ne.s32.totalorder %s196, %s198
    %p205 = scmp.eq.s32.totalorder %s18, 3
    %p206 = por %p204, %p205
    %p207 = scmp.ne.s32.totalorder %s198, %s199
    %p208 = scmp.eq.s32.totalorder %s18, 0
    %p209 = por %p207, %p208
    %p210 = scmp.ne.s32.totalorder %s198, %s199
    %p211 = scmp.eq.s32.totalorder %s19, 3
    %p212 = por %p210, %p211
    %p214 = scmp.ne.s32.totalorder %s199, %s213
    %p215 = scmp.eq.s32.totalorder %s19, 0
    %p216 = por %p214, %p215
    %s217 = ssub.s32 %s20, %s32
    %s218 = ssub.s32 %s21, %s28
    %s219 = sor.u32 %s217, %s218
    %p220 = scmp.eq.s32.totalorder %s219, 0
    %s222 = sadd.s32 %s221, 1
    %s223 = scalar_select %p220, %s221, %s222
    %p226 = pneg %p220
    %p227 = scmp.eq.s32.totalorder %s13, 3
    %p228 = por %p226, %p227
    %p229 = scmp.ne.s32.totalorder %s221, %s224
    %p230 = scmp.eq.s32.totalorder %s13, 0
    %p231 = por %p229, %p230
    %p232 = scmp.ne.s32.totalorder %s221, %s224
    %p233 = scmp.eq.s32.totalorder %s18, 3
    %p234 = por %p232, %p233
    %p235 = scmp.ne.s32.totalorder %s224, %s225
    %p236 = scmp.eq.s32.totalorder %s18, 0
    %p237 = por %p235, %p236
    %p238 = scmp.ne.s32.totalorder %s224, %s225
    %p239 = scmp.eq.s32.totalorder %s19, 3
    %p240 = por %p238, %p239
    %p242 = scmp.ne.s32.totalorder %s225, %s241
    %p243 = scmp.eq.s32.totalorder %s19, 0
    %p244 = por %p242, %p243
    %p245 = scmp.le.s32.totalorder 1, %s13
    %p246 = scmp.lt.s32.totalorder %s13, 5
    %p247 = pnand %p245, %p246
    %p248 = pneg %p247
    // Predicated region
    $region9: #{tpu_custom_call.1} parent=5 // pred_check
      _
    $region10: #{tpu_custom_call.1} parent=5 // pred_check_branch
      %250 = sbr.rel (%p247) target = $region12
    $region11: #{tpu_custom_call.1} parent=5 // pred_region
      %s251 = ssub.s32 %s13, 1
      // Predicated region
      $region13: #{tpu_custom_call.1} parent=11 // pred_check
        %p252 = pneg %p146
      $region14: #{tpu_custom_call.1} parent=11 // pred_check_branch
        %254 = sbr.rel (%p252) target = $region16
      $region15: #{tpu_custom_call.1} parent=11 // pred_region
        _
      $region16: #{tpu_custom_call.1} parent=11 // pred_fallthru
        _
      // Predicated region
      $region17: #{tpu_custom_call.1} parent=11 // pred_check
        %p255 = pneg %p167
      $region18: #{tpu_custom_call.1} parent=11 // pred_check_branch
        %257 = sbr.rel (%p255) target = $region20
      $region19: #{tpu_custom_call.1} parent=11 // pred_region
        _
      $region20: #{tpu_custom_call.1} parent=11 // pred_fallthru
        _
      // Predicated region
      $region21: #{tpu_custom_call.1} parent=11 // pred_check
        %p258 = pneg %p188
      $region22: #{tpu_custom_call.1} parent=11 // pred_check_branch
        %260 = sbr.rel (%p258) target = $region24
      $region23: #{tpu_custom_call.1} parent=11 // pred_region
        _
      $region24: #{tpu_custom_call.1} parent=11 // pred_fallthru
        _
      // Predicated region
      $region25: #{tpu_custom_call.1} parent=11 // pred_check
        %p261 = pneg %p209
      $region26: #{tpu_custom_call.1} parent=11 // pred_check_branch
        %263 = sbr.rel (%p261) target = $region28
      $region27: #{tpu_custom_call.1} parent=11 // pred_region
        _
      $region28: #{tpu_custom_call.1} parent=11 // pred_fallthru
        _
    $region12: #{tpu_custom_call.1} parent=5 // pred_fallthru
      _
    %p264 = scmp.lt.s32.totalorder %s13, 4
    // Predicated region
    $region29: #{tpu_custom_call.1} parent=5 // pred_check
      %p265 = pneg %p264
    $region30: #{tpu_custom_call.1} parent=5 // pred_check_branch
      %267 = sbr.rel (%p265) target = $region32
    $region31: #{tpu_custom_call.1} parent=5 // pred_region
      // Predicated region
      $region33: #{tpu_custom_call.1} parent=31 // pred_check
        %p268 = pneg %p47
      $region34: #{tpu_custom_call.1} parent=31 // pred_check_branch
        %270 = sbr.rel (%p268) target = $region36
      $region35: #{tpu_custom_call.1} parent=31 // pred_region
        %s271 = smul.u32 8, %s21
        %p272 = scmp.lt.s32.totalorder %s20, 1
        %s273 = scalar_select %p272, %s20, 1
        %p274 = scmp.lt.s32.totalorder %s271, 15
        %s275 = scalar_select %p274, %s271, 15
        %s276 = smul.addr %s275, 2
        %s277 = smul.addr %s273, 32
        %s278 = sadd.s32 %s276, %s277
        %s279 = smul.addr %s278, 8
        %s280 = scalar_lea.vmem %s0, %s279
        %s281 = smul.u32 8, %s21
      $region36: #{tpu_custom_call.1} parent=31 // pred_fallthru
        _
      // Predicated region
      $region37: #{tpu_custom_call.1} parent=31 // pred_check
        %p282 = pneg %p83
      $region38: #{tpu_custom_call.1} parent=31 // pred_check_branch
        %284 = sbr.rel (%p282) target = $region40
      $region39: #{tpu_custom_call.1} parent=31 // pred_region
        %s285 = smul.u32 %s21, 4
        %s286 = ssub.s32 %s285, 1
        %p287 = scmp.gt.s32.totalorder %s286, 0
        %s288 = scalar_select %p287, %s286, 0
        %s289 = smul.u32 2, %s288
        %p290 = scmp.lt.s32.totalorder %s20, 1
        %s291 = scalar_select %p290, %s20, 1
        %p292 = scmp.lt.s32.totalorder %s289, 15
        %s293 = scalar_select %p292, %s289, 15
        %s294 = smul.addr %s293, 2
        %s295 = smul.addr %s291, 32
        %s296 = sadd.s32 %s294, %s295
        %s297 = smul.addr %s296, 8
        %s298 = scalar_lea.vmem %s1, %s297
        %s299 = smul.u32 %s21, 4
        %s300 = ssub.s32 %s299, 1
        %p301 = scmp.gt.s32.totalorder %s300, 0
        %s302 = scalar_select %p301, %s300, 0
        %s303 = smul.u32 2, %s302
      $region40: #{tpu_custom_call.1} parent=31 // pred_fallthru
        _
      // Predicated region
      $region41: #{tpu_custom_call.1} parent=31 // pred_check
        %p304 = pneg %p119
      $region42: #{tpu_custom_call.1} parent=31 // pred_check_branch
        %306 = sbr.rel (%p304) target = $region44
      $region43: #{tpu_custom_call.1} parent=31 // pred_region
        %s307 = sadd.s32 %s21, 1
        %s308 = smul.u32 %s307, 4
        %p309 = scmp.lt.s32.totalorder %s308, 7
        %s310 = scalar_select %p309, %s308, 7
        %s311 = smul.u32 2, %s310
        %p312 = scmp.lt.s32.totalorder %s20, 1
        %s313 = scalar_select %p312, %s20, 1
        %p314 = scmp.lt.s32.totalorder %s311, 15
        %s315 = scalar_select %p314, %s311, 15
        %s316 = smul.addr %s315, 2
        %s317 = smul.addr %s313, 32
        %s318 = sadd.s32 %s316, %s317
        %s319 = smul.addr %s318, 8
        %s320 = scalar_lea.vmem %s2, %s319
        %s321 = sadd.s32 %s21, 1
        %s322 = smul.u32 %s321, 4
        %p323 = scmp.lt.s32.totalorder %s322, 7
        %s324 = scalar_select %p323, %s322, 7
        %s325 = smul.u32 2, %s324
      $region44: #{tpu_custom_call.1} parent=31 // pred_fallthru
        _
    $region32: #{tpu_custom_call.1} parent=5 // pred_fallthru
      _
    %p326 = scmp.le.s32.totalorder 1, %s13
    %p327 = scmp.lt.s32.totalorder %s13, 5
    %p328 = pnand %p326, %p327
    %p329 = pneg %p328
    // Predicated region
    $region45: #{tpu_custom_call.1} parent=5 // pred_check
      _
    $region46: #{tpu_custom_call.1} parent=5 // pred_check_branch
      %331 = sbr.rel (%p328) target = $region48
    $region47: #{tpu_custom_call.1} parent=5 // pred_region
      %s332 = ssub.s32 %s13, 1
      %s333 = smul.u32 8, %s23
      %p334 = scmp.lt.s32.totalorder %s22, 1
      %s335 = scalar_select %p334, %s22, 1
      %p336 = scmp.lt.s32.totalorder %s333, 15
      %s337 = scalar_select %p336, %s333, 15
      %s338 = smul.addr %s337, 2
      %s339 = smul.addr %s335, 32
      %s340 = sadd.s32 %s338, %s339
      %s341 = smul.addr %s340, 8
      %s342 = scalar_lea.vmem %s0, %s341
      %p343 = pneg %p53
      %p344 = pneg %p50
      %s345 = smul.u32 %s23, 4
      %s346 = ssub.s32 %s345, 1
      %p347 = scmp.gt.s32.totalorder %s346, 0
      %s348 = scalar_select %p347, %s346, 0
      %s349 = smul.u32 2, %s348
      %p350 = scmp.lt.s32.totalorder %s22, 1
      %s351 = scalar_select %p350, %s22, 1
      %p352 = scmp.lt.s32.totalorder %s349, 15
      %s353 = scalar_select %p352, %s349, 15
      %s354 = smul.addr %s353, 2
      %s355 = smul.addr %s351, 32
      %s356 = sadd.s32 %s354, %s355
      %s357 = smul.addr %s356, 8
      %s358 = scalar_lea.vmem %s1, %s357
      %p359 = pneg %p89
      %p360 = pneg %p86
      %s361 = sadd.s32 %s23, 1
      %s362 = smul.u32 %s361, 4
      %p363 = scmp.lt.s32.totalorder %s362, 7
      %s364 = scalar_select %p363, %s362, 7
      %s365 = smul.u32 2, %s364
      %p366 = scmp.lt.s32.totalorder %s22, 1
      %s367 = scalar_select %p366, %s22, 1
      %p368 = scmp.lt.s32.totalorder %s365, 15
      %s369 = scalar_select %p368, %s365, 15
      %s370 = smul.addr %s369, 2
      %s371 = smul.addr %s367, 32
      %s372 = sadd.s32 %s370, %s371
      %s373 = smul.addr %s372, 8
      %s374 = scalar_lea.vmem %s2, %s373
      %p375 = pneg %p125
      %p376 = pneg %p122
      %p377 = pneg %p146
      %p378 = pneg %p143
      %p379 = pneg %p167
      %p380 = pneg %p164
      %p381 = pneg %p188
      %p382 = pneg %p185
      %p383 = pneg %p209
      %p384 = pneg %p206
      %p385 = pneg %p237
      %p386 = pneg %p234
      %s387 = smul.u32 8, %s23
      %p388 = scmp.lt.s32.totalorder %s22, 1
      %s389 = scalar_select %p388, %s22, 1
      %p390 = scmp.lt.s32.totalorder %s387, 15
      %s391 = scalar_select %p390, %s387, 15
      %s392 = smul.addr %s391, 2
      %s393 = smul.addr %s389, 32
      %s394 = sadd.s32 %s392, %s393
      %s395 = smul.addr %s394, 8
      %s396 = scalar_lea.vmem %s7, %s395
      %s397 = smul.u32 8, %s23
      %p398 = scmp.lt.s32.totalorder %s22, 1
      %s399 = scalar_select %p398, %s22, 1
      %p400 = scmp.lt.s32.totalorder %s397, 15
      %s401 = scalar_select %p400, %s397, 15
      %s402 = smul.addr %s401, 2
      %s403 = smul.addr %s399, 32
      %s404 = sadd.s32 %s402, %s403
      %s405 = smul.addr %s404, 8
      %s406 = scalar_lea.vmem %s0, %s405
      %s407 = smul.u32 8, %s23
      %s408 = smul.u32 %s23, 4
      %s409 = ssub.s32 %s408, 1
      %p410 = scmp.gt.s32.totalorder %s409, 0
      %s411 = scalar_select %p410, %s409, 0
      %s412 = smul.u32 2, %s411
      %p413 = scmp.lt.s32.totalorder %s22, 1
      %s414 = scalar_select %p413, %s22, 1
      %p415 = scmp.lt.s32.totalorder %s412, 15
      %s416 = scalar_select %p415, %s412, 15
      %s417 = smul.addr %s416, 2
      %s418 = smul.addr %s414, 32
      %s419 = sadd.s32 %s417, %s418
      %s420 = smul.addr %s419, 8
      %s421 = scalar_lea.vmem %s1, %s420
      %s422 = smul.u32 %s23, 4
      %s423 = ssub.s32 %s422, 1
      %p424 = scmp.gt.s32.totalorder %s423, 0
      %s425 = scalar_select %p424, %s423, 0
      %s426 = smul.u32 2, %s425
      %s427 = sadd.s32 %s23, 1
      %s428 = smul.u32 %s427, 4
      %p429 = scmp.lt.s32.totalorder %s428, 7
      %s430 = scalar_select %p429, %s428, 7
      %s431 = smul.u32 2, %s430
      %p432 = scmp.lt.s32.totalorder %s22, 1
      %s433 = scalar_select %p432, %s22, 1
      %p434 = scmp.lt.s32.totalorder %s431, 15
      %s435 = scalar_select %p434, %s431, 15
      %s436 = smul.addr %s435, 2
      %s437 = smul.addr %s433, 32
      %s438 = sadd.s32 %s436, %s437
      %s439 = smul.addr %s438, 8
      %s440 = scalar_lea.vmem %s2, %s439
      %s441 = sadd.s32 %s23, 1
      %s442 = smul.u32 %s441, 4
      %p443 = scmp.lt.s32.totalorder %s442, 7
      %s444 = scalar_select %p443, %s442, 7
      %s445 = smul.u32 2, %s444
      %s446 = smul.u32 8, %s23
      %p447 = scmp.lt.s32.totalorder %s22, 1
      %s448 = scalar_select %p447, %s22, 1
      %p449 = scmp.lt.s32.totalorder %s446, 15
      %s450 = scalar_select %p449, %s446, 15
      %s451 = smul.addr %s450, 2
      %s452 = smul.addr %s448, 32
      %s453 = sadd.s32 %s451, %s452
      %s454 = smul.addr %s453, 8
      %s455 = scalar_lea.vmem %s7, %s454
      %s456 = smul.u32 8, %s23
      %vm458 = vcmask 24576
      %vm459 = vsmask.f32 256
      %vm460 = vmand %vm458, %vm459
      %v461 = vld [vmem:[#allocation2] sm:$0x1]
      %v462 = vsel %vm460, 0, %v461
      %463 = vst [vmem:[#allocation2] sm:$0x1] %v462
      %v464 = vld [vmem:[#allocation2 + $0xc] sm:$0x1]
      %v465 = vsel %vm460, 0, %v464
      %466 = vst [vmem:[#allocation2 + $0xc] sm:$0x1] %v465
      %v467 = vld [vmem:[#allocation2 + $0x18] sm:$0x1]
      %v468 = vsel %vm460, 0, %v467
      %469 = vst [vmem:[#allocation2 + $0x18] sm:$0x1] %v468
      %v470 = vld [vmem:[#allocation2 + $0x24] sm:$0x1]
      %v471 = vsel %vm460, 0, %v470
      %472 = vst [vmem:[#allocation2 + $0x24] sm:$0x1] %v471
      %v473 = vld [vmem:[#allocation2 + $0x30] sm:$0x1]
      %v474 = vsel %vm460, 0, %v473
      %475 = vst [vmem:[#allocation2 + $0x30] sm:$0x1] %v474
      %v476 = vld [vmem:[#allocation2 + $0x3c] sm:$0x1]
      %v477 = vsel %vm460, 0, %v476
      %478 = vst [vmem:[#allocation2 + $0x3c] sm:$0x1] %v477
      %v479 = vld [vmem:[#allocation2 + $0x48] sm:$0x1]
      %v480 = vsel %vm460, 0, %v479
      %481 = vst [vmem:[#allocation2 + $0x48] sm:$0x1] %v480
      %v482 = vld [vmem:[#allocation2 + $0x54] sm:$0x1]
      %v483 = vsel %vm460, 0, %v482
      %484 = vst [vmem:[#allocation2 + $0x54] sm:$0x1] %v483
      %v485 = vld [vmem:[#allocation2 + $0x60] sm:$0x1]
      %v486 = vsel %vm460, 0, %v485
      %487 = vst [vmem:[#allocation2 + $0x60] sm:$0x1] %v486
      %v488 = vld [vmem:[#allocation2 + $0x6c] sm:$0x1]
      %v489 = vsel %vm460, 0, %v488
      %490 = vst [vmem:[#allocation2 + $0x6c] sm:$0x1] %v489
      %v491 = vld [vmem:[#allocation2 + $0x78] sm:$0x1]
      %v492 = vsel %vm460, 0, %v491
      %493 = vst [vmem:[#allocation2 + $0x78] sm:$0x1] %v492
      %v494 = vld [vmem:[#allocation2 + $0x84] sm:$0x1]
      %v495 = vsel %vm460, 0, %v494
      %496 = vst [vmem:[#allocation2 + $0x84] sm:$0x1] %v495
      %vm497 = vsmask.f32 7938
      %vm498 = vmand %vm458, %vm497
      %v499 = vld [vmem:[#allocation2 + $0x8] sm:$0x1]
      %v500 = vsel %vm498, 0, %v499
      %501 = vst [vmem:[#allocation2 + $0x8] sm:$0x1] %v500
      %v502 = vld [vmem:[#allocation2 + $0x14] sm:$0x1]
      %v503 = vsel %vm498, 0, %v502
      %504 = vst [vmem:[#allocation2 + $0x14] sm:$0x1] %v503
      %v505 = vld [vmem:[#allocation2 + $0x20] sm:$0x1]
      %v506 = vsel %vm498, 0, %v505
      %507 = vst [vmem:[#allocation2 + $0x20] sm:$0x1] %v506
      %v508 = vld [vmem:[#allocation2 + $0x2c] sm:$0x1]
      %v509 = vsel %vm498, 0, %v508
      %510 = vst [vmem:[#allocation2 + $0x2c] sm:$0x1] %v509
      %v511 = vld [vmem:[#allocation2 + $0x38] sm:$0x1]
      %v512 = vsel %vm498, 0, %v511
      %513 = vst [vmem:[#allocation2 + $0x38] sm:$0x1] %v512
      %v514 = vld [vmem:[#allocation2 + $0x44] sm:$0x1]
      %v515 = vsel %vm498, 0, %v514
      %516 = vst [vmem:[#allocation2 + $0x44] sm:$0x1] %v515
      %v517 = vld [vmem:[#allocation2 + $0x50] sm:$0x1]
      %v518 = vsel %vm498, 0, %v517
      %519 = vst [vmem:[#allocation2 + $0x50] sm:$0x1] %v518
      %v520 = vld [vmem:[#allocation2 + $0x5c] sm:$0x1]
      %v521 = vsel %vm498, 0, %v520
      %522 = vst [vmem:[#allocation2 + $0x5c] sm:$0x1] %v521
      %v523 = vld [vmem:[#allocation2 + $0x68] sm:$0x1]
      %v524 = vsel %vm498, 0, %v523
      %525 = vst [vmem:[#allocation2 + $0x68] sm:$0x1] %v524
      %v526 = vld [vmem:[#allocation2 + $0x74] sm:$0x1]
      %v527 = vsel %vm498, 0, %v526
      %528 = vst [vmem:[#allocation2 + $0x74] sm:$0x1] %v527
      %v529 = vld [vmem:[#allocation2 + $0x80] sm:$0x1]
      %v530 = vsel %vm498, 0, %v529
      %531 = vst [vmem:[#allocation2 + $0x80] sm:$0x1] %v530
      %v532 = vld [vmem:[#allocation2 + $0x8c] sm:$0x1]
      %v533 = vsel %vm498, 0, %v532
      %534 = vst [vmem:[#allocation2 + $0x8c] sm:$0x1] %v533
      %v535 = vld [vmem:[%s406] sm:$0xff]
      %v536 = vld [vmem:[%s406 + $0x8] sm:$0xff]
      %v537 = vld [vmem:[%s406 + $0x10] sm:$0xff]
      %v538 = vld [vmem:[%s406 + $0x18] sm:$0xff]
      %v539 = vld [vmem:[%s406 + $0x20] sm:$0xff]
      %v540 = vld [vmem:[%s406 + $0x28] sm:$0xff]
      %v541 = vld [vmem:[%s406 + $0x30] sm:$0xff]
      %v542 = vld [vmem:[%s406 + $0x38] sm:$0xff]
      %v543 = vld [vmem:[%s406 + $0x40] sm:$0xff]
      %v544 = vld [vmem:[%s406 + $0x48] sm:$0xff]
      %v545 = vld [vmem:[%s406 + $0x50] sm:$0xff]
      %v546 = vld [vmem:[%s406 + $0x58] sm:$0xff]
      %v547 = vld [vmem:[%s406 + $0x60] sm:$0xff]
      %v548 = vld [vmem:[%s406 + $0x68] sm:$0xff]
      %v549 = vld [vmem:[%s406 + $0x70] sm:$0xff]
      %v550 = vld [vmem:[%s406 + $0x78] sm:$0xff]
      %v551 = vpack.c.bf16 %v536, %v535
      %v552 = vpack.c.bf16 %v538, %v537
      %v553 = vpack.c.bf16 %v540, %v539
      %v554 = vpack.c.bf16 %v542, %v541
      %v555 = vpack.c.bf16 %v544, %v543
      %v556 = vpack.c.bf16 %v546, %v545
      %v557 = vpack.c.bf16 %v548, %v547
      %v558 = vpack.c.bf16 %v550, %v549
      %v567 = vunpack.c.l.b16 %v551
      %v568 = vunpack.c.h.b16 %v551
      %v569 = vunpack.c.l.b16 %v552
      %v570 = vunpack.c.h.b16 %v552
      %v571 = vunpack.c.l.b16 %v553
      %v572 = vunpack.c.h.b16 %v553
      %v573 = vunpack.c.l.b16 %v554
      %v574 = vunpack.c.h.b16 %v554
      %v575 = vunpack.c.l.b16 %v555
      %v576 = vunpack.c.h.b16 %v555
      %v577 = vunpack.c.l.b16 %v556
      %v578 = vunpack.c.h.b16 %v556
      %v579 = vunpack.c.l.b16 %v557
      %v580 = vunpack.c.h.b16 %v557
      %v581 = vunpack.c.l.b16 %v558
      %v582 = vunpack.c.h.b16 %v558
      %v583 = vpack.c.b16 %v567, %v567
      %v584 = vpack.c.b16 %v568, %v568
      %v585 = vpack.c.b16 %v569, %v569
      %v586 = vpack.c.b16 %v570, %v570
      %v587 = vpack.c.b16 %v571, %v571
      %v588 = vpack.c.b16 %v572, %v572
      %v589 = vpack.c.b16 %v573, %v573
      %v590 = vpack.c.b16 %v574, %v574
      %v591 = vpack.c.b16 %v575, %v575
      %v592 = vpack.c.b16 %v576, %v576
      %v593 = vpack.c.b16 %v577, %v577
      %v594 = vpack.c.b16 %v578, %v578
      %v595 = vpack.c.b16 %v579, %v579
      %v596 = vpack.c.b16 %v580, %v580
      %v597 = vpack.c.b16 %v581, %v581
      %v598 = vpack.c.b16 %v582, %v582
      %vm599 = vsmask.f32 4368
      %vm600 = vmor %vm459, %vm599
      %v602 = vshrl.u32 %v583, 16
      %v604 = vrot.slane %v602, 7
      %v605 = vshll.u32 %v583, 16
      %v607 = vor.u32 %v604, %v605
      %v608 = vrot.slane %v604, 4
      %v610 = vshrl.u32 %v584, 16
      %v612 = vrot.slane %v610, 7
      %v613 = vshll.u32 %v584, 16
      %v615 = vor.u32 %v612, %v613
      %v616 = vsel %vm600, %v608, %v615
      %v617 = vrot.slane %v612, 4
      %v619 = vshrl.u32 %v585, 16
      %v621 = vrot.slane %v619, 7
      %v622 = vshll.u32 %v585, 16
      %v624 = vor.u32 %v621, %v622
      %v625 = vrot.slane %v621, 4
      %v627 = vshrl.u32 %v586, 16
      %v629 = vrot.slane %v627, 7
      %v630 = vshll.u32 %v586, 16
      %v632 = vor.u32 %v629, %v630
      %v633 = vsel %vm600, %v625, %v632
      %v634 = vrot.slane %v629, 4
      %v636 = vshrl.u32 %v587, 16
      %v638 = vrot.slane %v636, 7
      %v639 = vshll.u32 %v587, 16
      %v641 = vor.u32 %v638, %v639
      %v642 = vrot.slane %v638, 4
      %v644 = vshrl.u32 %v588, 16
      %v646 = vrot.slane %v644, 7
      %v647 = vshll.u32 %v588, 16
      %v649 = vor.u32 %v646, %v647
      %v650 = vsel %vm600, %v642, %v649
      %v651 = vrot.slane %v646, 4
      %v653 = vshrl.u32 %v589, 16
      %v655 = vrot.slane %v653, 7
      %v656 = vshll.u32 %v589, 16
      %v658 = vor.u32 %v655, %v656
      %v659 = vrot.slane %v655, 4
      %v661 = vshrl.u32 %v590, 16
      %v663 = vrot.slane %v661, 7
      %v664 = vshll.u32 %v590, 16
      %v666 = vor.u32 %v663, %v664
      %v667 = vsel %vm600, %v659, %v666
      %v668 = vrot.slane %v663, 4
      %v670 = vshrl.u32 %v591, 16
      %v672 = vrot.slane %v670, 7
      %v673 = vshll.u32 %v591, 16
      %v675 = vor.u32 %v672, %v673
      %v676 = vrot.slane %v672, 4
      %v678 = vshrl.u32 %v592, 16
      %v680 = vrot.slane %v678, 7
      %v681 = vshll.u32 %v592, 16
      %v683 = vor.u32 %v680, %v681
      %v684 = vsel %vm600, %v676, %v683
      %v685 = vrot.slane %v680, 4
      %v687 = vshrl.u32 %v593, 16
      %v689 = vrot.slane %v687, 7
      %v690 = vshll.u32 %v593, 16
      %v692 = vor.u32 %v689, %v690
      %v693 = vrot.slane %v689, 4
      %v695 = vshrl.u32 %v594, 16
      %v697 = vrot.slane %v695, 7
      %v698 = vshll.u32 %v594, 16
      %v700 = vor.u32 %v697, %v698
      %v701 = vsel %vm600, %v693, %v700
      %v702 = vrot.slane %v697, 4
      %v704 = vshrl.u32 %v595, 16
      %v706 = vrot.slane %v704, 7
      %v707 = vshll.u32 %v595, 16
      %v709 = vor.u32 %v706, %v707
      %v710 = vrot.slane %v706, 4
      %v712 = vshrl.u32 %v596, 16
      %v714 = vrot.slane %v712, 7
      %v715 = vshll.u32 %v596, 16
      %v717 = vor.u32 %v714, %v715
      %v718 = vsel %vm600, %v710, %v717
      %v719 = vrot.slane %v714, 4
      %v721 = vshrl.u32 %v597, 16
      %v723 = vrot.slane %v721, 7
      %v724 = vshll.u32 %v597, 16
      %v726 = vor.u32 %v723, %v724
      %v727 = vrot.slane %v723, 4
      %v729 = vshrl.u32 %v598, 16
      %v731 = vrot.slane %v729, 7
      %v732 = vshll.u32 %v598, 16
      %v734 = vor.u32 %v731, %v732
      %v735 = vsel %vm600, %v727, %v734
      %v736 = vrot.slane %v731, 4
      %s761 = scalar_lea.vmem [#allocation2], 24
      %vm762 = vcmask 27648
      %vm763 = vmand %vm762, %vm497
      %v764 = vld [vmem:[%s761] sm:$0xf]
      %v765 = vsel %vm763, %v607, %v764
      %766 = vst [vmem:[%s761] sm:$0xf] %v765
      %vm767 = vcmask 27648
      %768 = vst.msk [vmem:[%s761 + $0x4] sm:$0xf] %vm767, %v616
      %v769 = vld [vmem:[%s761 + $0x8] sm:$0x1]
      %v770 = vsel %vm460, %v617, %v769
      %771 = vst [vmem:[%s761 + $0x8] sm:$0x1] %v770
      %v772 = vld [vmem:[%s761 + $0xc] sm:$0xf]
      %v773 = vsel %vm763, %v624, %v772
      %774 = vst [vmem:[%s761 + $0xc] sm:$0xf] %v773
      %775 = vst.msk [vmem:[%s761 + $0x10] sm:$0xf] %vm767, %v633
      %v776 = vld [vmem:[%s761 + $0x14] sm:$0x1]
      %v777 = vsel %vm460, %v634, %v776
      %778 = vst [vmem:[%s761 + $0x14] sm:$0x1] %v777
      %v779 = vld [vmem:[%s761 + $0x18] sm:$0xf]
      %v780 = vsel %vm763, %v641, %v779
      %781 = vst [vmem:[%s761 + $0x18] sm:$0xf] %v780
      %782 = vst.msk [vmem:[%s761 + $0x1c] sm:$0xf] %vm767, %v650
      %v783 = vld [vmem:[%s761 + $0x20] sm:$0x1]
      %v784 = vsel %vm460, %v651, %v783
      %785 = vst [vmem:[%s761 + $0x20] sm:$0x1] %v784
      %v786 = vld [vmem:[%s761 + $0x24] sm:$0xf]
      %v787 = vsel %vm763, %v658, %v786
      %788 = vst [vmem:[%s761 + $0x24] sm:$0xf] %v787
      %789 = vst.msk [vmem:[%s761 + $0x28] sm:$0xf] %vm767, %v667
      %v790 = vld [vmem:[%s761 + $0x2c] sm:$0x1]
      %v791 = vsel %vm460, %v668, %v790
      %792 = vst [vmem:[%s761 + $0x2c] sm:$0x1] %v791
      %v793 = vld [vmem:[%s761 + $0x30] sm:$0xf]
      %v794 = vsel %vm763, %v675, %v793
      %795 = vst [vmem:[%s761 + $0x30] sm:$0xf] %v794
      %796 = vst.msk [vmem:[%s761 + $0x34] sm:$0xf] %vm767, %v684
      %v797 = vld [vmem:[%s761 + $0x38] sm:$0x1]
      %v798 = vsel %vm460, %v685, %v797
      %799 = vst [vmem:[%s761 + $0x38] sm:$0x1] %v798
      %v800 = vld [vmem:[%s761 + $0x3c] sm:$0xf]
      %v801 = vsel %vm763, %v692, %v800
      %802 = vst [vmem:[%s761 + $0x3c] sm:$0xf] %v801
      %803 = vst.msk [vmem:[%s761 + $0x40] sm:$0xf] %vm767, %v701
      %v804 = vld [vmem:[%s761 + $0x44] sm:$0x1]
      %v805 = vsel %vm460, %v702, %v804
      %806 = vst [vmem:[%s761 + $0x44] sm:$0x1] %v805
      %v807 = vld [vmem:[%s761 + $0x48] sm:$0xf]
      %v808 = vsel %vm763, %v709, %v807
      %809 = vst [vmem:[%s761 + $0x48] sm:$0xf] %v808
      %810 = vst.msk [vmem:[%s761 + $0x4c] sm:$0xf] %vm767, %v718
      %v811 = vld [vmem:[%s761 + $0x50] sm:$0x1]
      %v812 = vsel %vm460, %v719, %v811
      %813 = vst [vmem:[%s761 + $0x50] sm:$0x1] %v812
      %v814 = vld [vmem:[%s761 + $0x54] sm:$0xf]
      %v815 = vsel %vm763, %v726, %v814
      %816 = vst [vmem:[%s761 + $0x54] sm:$0xf] %v815
      %817 = vst.msk [vmem:[%s761 + $0x58] sm:$0xf] %vm767, %v735
      %v818 = vld [vmem:[%s761 + $0x5c] sm:$0x1]
      %v819 = vsel %vm460, %v736, %v818
      %820 = vst [vmem:[%s761 + $0x5c] sm:$0x1] %v819
      %p821 = scmp.gt.s32.totalorder %s23, 0
      // Predicated region
      $region49: #{tpu_custom_call.1} parent=47 // pred_check
        %p822 = pneg %p821
      $region50: #{tpu_custom_call.1} parent=47 // pred_check_branch
        %824 = sbr.rel (%p822) target = $region52
      $region51: #{tpu_custom_call.1} parent=47 // pred_region
        %v825 = vld [vmem:[%s421] sm:$0xff]
        %v826 = vld [vmem:[%s421 + $0x8] sm:$0xff]
        %v827 = vld [vmem:[%s421 + $0x10] sm:$0xff]
        %v828 = vld [vmem:[%s421 + $0x18] sm:$0xff]
        %v829 = vpack.c.bf16 %v826, %v825
        %v830 = vpack.c.bf16 %v828, %v827
        %v833 = vunpack.c.l.b16 %v829
        %v834 = vunpack.c.h.b16 %v829
        %v835 = vunpack.c.l.b16 %v830
        %v836 = vunpack.c.h.b16 %v830
        %v837 = vpack.c.b16 %v833, %v833
        %v838 = vpack.c.b16 %v834, %v834
        %v839 = vpack.c.b16 %v835, %v835
        %v840 = vpack.c.b16 %v836, %v836
        %v842 = vshrl.u32 %v837, 16
        %v844 = vrot.slane %v842, 7
        %v845 = vshll.u32 %v837, 16
        %v847 = vor.u32 %v844, %v845
        %v848 = vrot.slane %v844, 4
        %v850 = vshrl.u32 %v838, 16
        %v852 = vrot.slane %v850, 7
        %v853 = vshll.u32 %v838, 16
        %v855 = vor.u32 %v852, %v853
        %v856 = vsel %vm600, %v848, %v855
        %v857 = vrot.slane %v852, 4
        %v859 = vshrl.u32 %v839, 16
        %v861 = vrot.slane %v859, 7
        %v862 = vshll.u32 %v839, 16
        %v864 = vor.u32 %v861, %v862
        %v865 = vrot.slane %v861, 4
        %v867 = vshrl.u32 %v840, 16
        %v869 = vrot.slane %v867, 7
        %v870 = vshll.u32 %v840, 16
        %v872 = vor.u32 %v869, %v870
        %v873 = vsel %vm600, %v865, %v872
        %v874 = vrot.slane %v869, 4
        %v881 = vld [vmem:[#allocation2] sm:$0xf]
        %v882 = vsel %vm763, %v847, %v881
        %883 = vst [vmem:[#allocation2] sm:$0xf] %v882
        %884 = vst.msk [vmem:[#allocation2 + $0x4] sm:$0xf] %vm767, %v856
        %v885 = vld [vmem:[#allocation2 + $0x8] sm:$0x1]
        %v886 = vsel %vm460, %v857, %v885
        %887 = vst [vmem:[#allocation2 + $0x8] sm:$0x1] %v886
        %v888 = vld [vmem:[#allocation2 + $0xc] sm:$0xf]
        %v889 = vsel %vm763, %v864, %v888
        %890 = vst [vmem:[#allocation2 + $0xc] sm:$0xf] %v889
        %891 = vst.msk [vmem:[#allocation2 + $0x10] sm:$0xf] %vm767, %v873
        %v892 = vld [vmem:[#allocation2 + $0x14] sm:$0x1]
        %v893 = vsel %vm460, %v874, %v892
        %894 = vst [vmem:[#allocation2 + $0x14] sm:$0x1] %v893
      $region52: #{tpu_custom_call.1} parent=47 // pred_fallthru
        _
      %p895 = scmp.eq.s32.totalorder %s23, 0
      // Predicated region
      $region53: #{tpu_custom_call.1} parent=47 // pred_check
        %p896 = pneg %p895
      $region54: #{tpu_custom_call.1} parent=47 // pred_check_branch
        %898 = sbr.rel (%p896) target = $region56
      $region55: #{tpu_custom_call.1} parent=47 // pred_region
        %v899 = vld [vmem:[#allocation2] sm:$0xf]
        %v900 = vsel %vm763, 0, %v899
        %901 = vst [vmem:[#allocation2] sm:$0xf] %v900
        %902 = vst.msk [vmem:[#allocation2 + $0x4] sm:$0xf] %vm767, 0
        %v903 = vld [vmem:[#allocation2 + $0x8] sm:$0x1]
        %v904 = vsel %vm460, 0, %v903
        %905 = vst [vmem:[#allocation2 + $0x8] sm:$0x1] %v904
        %v906 = vld [vmem:[#allocation2 + $0xc] sm:$0xf]
        %v907 = vsel %vm763, 0, %v906
        %908 = vst [vmem:[#allocation2 + $0xc] sm:$0xf] %v907
        %909 = vst.msk [vmem:[#allocation2 + $0x10] sm:$0xf] %vm767, 0
        %v910 = vld [vmem:[#allocation2 + $0x14] sm:$0x1]
        %v911 = vsel %vm460, 0, %v910
        %912 = vst [vmem:[#allocation2 + $0x14] sm:$0x1] %v911
      $region56: #{tpu_custom_call.1} parent=47 // pred_fallthru
        _
      %p913 = scmp.lt.s32.totalorder %s23, 1
      // Predicated region
      $region57: #{tpu_custom_call.1} parent=47 // pred_check
        %p914 = pneg %p913
      $region58: #{tpu_custom_call.1} parent=47 // pred_check_branch
        %916 = sbr.rel (%p914) target = $region60
      $region59: #{tpu_custom_call.1} parent=47 // pred_region
        %v917 = vld [vmem:[%s440] sm:$0xff]
        %v918 = vld [vmem:[%s440 + $0x8] sm:$0xff]
        %v919 = vld [vmem:[%s440 + $0x10] sm:$0xff]
        %v920 = vld [vmem:[%s440 + $0x18] sm:$0xff]
        %v921 = vpack.c.bf16 %v918, %v917
        %v922 = vpack.c.bf16 %v920, %v919
        %v925 = vunpack.c.l.b16 %v921
        %v926 = vunpack.c.h.b16 %v921
        %v927 = vunpack.c.l.b16 %v922
        %v928 = vunpack.c.h.b16 %v922
        %v929 = vpack.c.b16 %v925, %v925
        %v930 = vpack.c.b16 %v926, %v926
        %v931 = vpack.c.b16 %v927, %v927
        %v932 = vpack.c.b16 %v928, %v928
        %v934 = vshrl.u32 %v929, 16
        %v936 = vrot.slane %v934, 7
        %v937 = vshll.u32 %v929, 16
        %v939 = vor.u32 %v936, %v937
        %v940 = vrot.slane %v936, 4
        %v942 = vshrl.u32 %v930, 16
        %v944 = vrot.slane %v942, 7
        %v945 = vshll.u32 %v930, 16
        %v947 = vor.u32 %v944, %v945
        %v948 = vsel %vm600, %v940, %v947
        %v949 = vrot.slane %v944, 4
        %v951 = vshrl.u32 %v931, 16
        %v953 = vrot.slane %v951, 7
        %v954 = vshll.u32 %v931, 16
        %v956 = vor.u32 %v953, %v954
        %v957 = vrot.slane %v953, 4
        %v959 = vshrl.u32 %v932, 16
        %v961 = vrot.slane %v959, 7
        %v962 = vshll.u32 %v932, 16
        %v964 = vor.u32 %v961, %v962
        %v965 = vsel %vm600, %v957, %v964
        %v966 = vrot.slane %v961, 4
        %s973 = scalar_lea.vmem [#allocation2], 120
        %v974 = vld [vmem:[%s973] sm:$0xf]
        %v975 = vsel %vm763, %v939, %v974
        %976 = vst [vmem:[%s973] sm:$0xf] %v975
        %977 = vst.msk [vmem:[%s973 + $0x4] sm:$0xf] %vm767, %v948
        %v978 = vld [vmem:[%s973 + $0x8] sm:$0x1]
        %v979 = vsel %vm460, %v949, %v978
        %980 = vst [vmem:[%s973 + $0x8] sm:$0x1] %v979
        %v981 = vld [vmem:[%s973 + $0xc] sm:$0xf]
        %v982 = vsel %vm763, %v956, %v981
        %983 = vst [vmem:[%s973 + $0xc] sm:$0xf] %v982
        %984 = vst.msk [vmem:[%s973 + $0x10] sm:$0xf] %vm767, %v965
        %v985 = vld [vmem:[%s973 + $0x14] sm:$0x1]
        %v986 = vsel %vm460, %v966, %v985
        %987 = vst [vmem:[%s973 + $0x14] sm:$0x1] %v986
      $region60: #{tpu_custom_call.1} parent=47 // pred_fallthru
        _
      %p988 = scmp.eq.s32.totalorder %s23, 1
      // Predicated region
      $region61: #{tpu_custom_call.1} parent=47 // pred_check
        %p989 = pneg %p988
      $region62: #{tpu_custom_call.1} parent=47 // pred_check_branch
        %991 = sbr.rel (%p989) target = $region64
      $region63: #{tpu_custom_call.1} parent=47 // pred_region
        %s992 = scalar_lea.vmem [#allocation2], 120
        %v993 = vld [vmem:[%s992] sm:$0xf]
        %v994 = vsel %vm763, 0, %v993
        %995 = vst [vmem:[%s992] sm:$0xf] %v994
        %996 = vst.msk [vmem:[%s992 + $0x4] sm:$0xf] %vm767, 0
        %v997 = vld [vmem:[%s992 + $0x8] sm:$0x1]
        %v998 = vsel %vm460, 0, %v997
        %999 = vst [vmem:[%s992 + $0x8] sm:$0x1] %v998
        %v1000 = vld [vmem:[%s992 + $0xc] sm:$0xf]
        %v1001 = vsel %vm763, 0, %v1000
        %1002 = vst [vmem:[%s992 + $0xc] sm:$0xf] %v1001
        %1003 = vst.msk [vmem:[%s992 + $0x10] sm:$0xf] %vm767, 0
        %v1004 = vld [vmem:[%s992 + $0x14] sm:$0x1]
        %v1005 = vsel %vm460, 0, %v1004
        %1006 = vst [vmem:[%s992 + $0x14] sm:$0x1] %v1005
      $region64: #{tpu_custom_call.1} parent=47 // pred_fallthru
        _
      %v1007 = vld [vmem:[#allocation2] sm:$0xf]
      %v1008 = vld [vmem:[#allocation2 + $0x4] sm:$0xf]
      %v1009 = vld [vmem:[#allocation2 + $0xc] sm:$0xf]
      %v1010 = vld [vmem:[#allocation2 + $0x10] sm:$0xf]
      %v1011 = vld [vmem:[#allocation2 + $0x18] sm:$0xf]
      %v1012 = vld [vmem:[#allocation2 + $0x1c] sm:$0xf]
      %v1013 = vld [vmem:[#allocation2 + $0x24] sm:$0xf]
      %v1014 = vld [vmem:[#allocation2 + $0x28] sm:$0xf]
      %v1015 = vld [vmem:[#allocation2 + $0x30] sm:$0xf]
      %v1016 = vld [vmem:[#allocation2 + $0x34] sm:$0xf]
      %v1017 = vld [vmem:[#allocation2 + $0x3c] sm:$0xf]
      %v1018 = vld [vmem:[#allocation2 + $0x40] sm:$0xf]
      %v1019 = vld [vmem:[#allocation2 + $0x48] sm:$0xf]
      %v1020 = vld [vmem:[#allocation2 + $0x4c] sm:$0xf]
      %v1021 = vld [vmem:[#allocation2 + $0x54] sm:$0xf]
      %v1022 = vld [vmem:[#allocation2 + $0x58] sm:$0xf]
      %v1023 = vld [vmem:[#allocation2 + $0x60] sm:$0xf]
      %v1024 = vld [vmem:[#allocation2 + $0x64] sm:$0xf]
      %v1025 = vld [vmem:[#allocation2 + $0x6c] sm:$0xf]
      %v1026 = vld [vmem:[#allocation2 + $0x70] sm:$0xf]
      %v1027 = vld [vmem:[%s3] sm:$0x3]
      %v1028 = vld [vmem:[#allocation2 + $0x8] sm:$0x1]
      %v1029 = vld [vmem:[#allocation2 + $0x14] sm:$0x1]
      %v1030 = vld [vmem:[#allocation2 + $0x20] sm:$0x1]
      %v1031 = vld [vmem:[#allocation2 + $0x2c] sm:$0x1]
      %v1032 = vld [vmem:[#allocation2 + $0x38] sm:$0x1]
      %v1033 = vld [vmem:[#allocation2 + $0x44] sm:$0x1]
      %v1034 = vld [vmem:[#allocation2 + $0x50] sm:$0x1]
      %v1035 = vld [vmem:[#allocation2 + $0x5c] sm:$0x1]
      %v1036 = vld [vmem:[#allocation2 + $0x68] sm:$0x1]
      %v1037 = vld [vmem:[#allocation2 + $0x74] sm:$0x1]
      %vm1038 = vsmask.f32 3328
      %vm1039 = vsmask.f32 7440
      %vm1040 = vmor %vm1038, %vm1039
      %v1042 = vshrl.u32 %v1007, 16
      %v1044 = vrot.slane %v1042, 4
      %v1045 = vshll.u32 %v1007, 16
      %v1047 = vrot.slane %v1045, 5
      %v1048 = vor.u32 %v1044, %v1047
      %v1049 = vrot.slane %v1048, 4
      %v1051 = vshll.u32 %v1008, 16
      %v1053 = vrot.slane %v1051, 5
      %v1054 = vsel %vm1040, %v1049, %v1053
      %v1055 = vshrl.u32 %v1008, 16
      %v1057 = vrot.slane %v1055, 4
      %v1058 = vor.u32 %v1057, %v1053
      %v1059 = vrot.slane %v1058, 4
      %v1061 = vshll.u32 %v1028, 16
      %v1063 = vrot.slane %v1061, 5
      %v1064 = vsel %vm1040, %v1059, %v1063
      %v1066 = vshrl.u32 %v1009, 16
      %v1068 = vrot.slane %v1066, 4
      %v1069 = vshll.u32 %v1009, 16
      %v1071 = vrot.slane %v1069, 5
      %v1072 = vor.u32 %v1068, %v1071
      %v1073 = vrot.slane %v1072, 4
      %v1075 = vshll.u32 %v1010, 16
      %v1077 = vrot.slane %v1075, 5
      %v1078 = vsel %vm1040, %v1073, %v1077
      %v1079 = vshrl.u32 %v1010, 16
      %v1081 = vrot.slane %v1079, 4
      %v1082 = vor.u32 %v1081, %v1077
      %v1083 = vrot.slane %v1082, 4
      %v1085 = vshll.u32 %v1029, 16
      %v1087 = vrot.slane %v1085, 5
      %v1088 = vsel %vm1040, %v1083, %v1087
      %v1090 = vshrl.u32 %v1011, 16
      %v1092 = vrot.slane %v1090, 4
      %v1093 = vshll.u32 %v1011, 16
      %v1095 = vrot.slane %v1093, 5
      %v1096 = vor.u32 %v1092, %v1095
      %v1097 = vrot.slane %v1096, 4
      %v1099 = vshll.u32 %v1012, 16
      %v1101 = vrot.slane %v1099, 5
      %v1102 = vsel %vm1040, %v1097, %v1101
      %v1103 = vshrl.u32 %v1012, 16
      %v1105 = vrot.slane %v1103, 4
      %v1106 = vor.u32 %v1105, %v1101
      %v1107 = vrot.slane %v1106, 4
      %v1109 = vshll.u32 %v1030, 16
      %v1111 = vrot.slane %v1109, 5
      %v1112 = vsel %vm1040, %v1107, %v1111
      %v1114 = vshrl.u32 %v1013, 16
      %v1116 = vrot.slane %v1114, 4
      %v1117 = vshll.u32 %v1013, 16
      %v1119 = vrot.slane %v1117, 5
      %v1120 = vor.u32 %v1116, %v1119
      %v1121 = vrot.slane %v1120, 4
      %v1123 = vshll.u32 %v1014, 16
      %v1125 = vrot.slane %v1123, 5
      %v1126 = vsel %vm1040, %v1121, %v1125
      %v1127 = vshrl.u32 %v1014, 16
      %v1129 = vrot.slane %v1127, 4
      %v1130 = vor.u32 %v1129, %v1125
      %v1131 = vrot.slane %v1130, 4
      %v1133 = vshll.u32 %v1031, 16
      %v1135 = vrot.slane %v1133, 5
      %v1136 = vsel %vm1040, %v1131, %v1135
      %v1138 = vshrl.u32 %v1015, 16
      %v1140 = vrot.slane %v1138, 4
      %v1141 = vshll.u32 %v1015, 16
      %v1143 = vrot.slane %v1141, 5
      %v1144 = vor.u32 %v1140, %v1143
      %v1145 = vrot.slane %v1144, 4
      %v1147 = vshll.u32 %v1016, 16
      %v1149 = vrot.slane %v1147, 5
      %v1150 = vsel %vm1040, %v1145, %v1149
      %v1151 = vshrl.u32 %v1016, 16
      %v1153 = vrot.slane %v1151, 4
      %v1154 = vor.u32 %v1153, %v1149
      %v1155 = vrot.slane %v1154, 4
      %v1157 = vshll.u32 %v1032, 16
      %v1159 = vrot.slane %v1157, 5
      %v1160 = vsel %vm1040, %v1155, %v1159
      %v1162 = vshrl.u32 %v1017, 16
      %v1164 = vrot.slane %v1162, 4
      %v1165 = vshll.u32 %v1017, 16
      %v1167 = vrot.slane %v1165, 5
      %v1168 = vor.u32 %v1164, %v1167
      %v1169 = vrot.slane %v1168, 4
      %v1171 = vshll.u32 %v1018, 16
      %v1173 = vrot.slane %v1171, 5
      %v1174 = vsel %vm1040, %v1169, %v1173
      %v1175 = vshrl.u32 %v1018, 16
      %v1177 = vrot.slane %v1175, 4
      %v1178 = vor.u32 %v1177, %v1173
      %v1179 = vrot.slane %v1178, 4
      %v1181 = vshll.u32 %v1033, 16
      %v1183 = vrot.slane %v1181, 5
      %v1184 = vsel %vm1040, %v1179, %v1183
      %v1186 = vshrl.u32 %v1019, 16
      %v1188 = vrot.slane %v1186, 4
      %v1189 = vshll.u32 %v1019, 16
      %v1191 = vrot.slane %v1189, 5
      %v1192 = vor.u32 %v1188, %v1191
      %v1193 = vrot.slane %v1192, 4
      %v1195 = vshll.u32 %v1020, 16
      %v1197 = vrot.slane %v1195, 5
      %v1198 = vsel %vm1040, %v1193, %v1197
      %v1199 = vshrl.u32 %v1020, 16
      %v1201 = vrot.slane %v1199, 4
      %v1202 = vor.u32 %v1201, %v1197
      %v1203 = vrot.slane %v1202, 4
      %v1205 = vshll.u32 %v1034, 16
      %v1207 = vrot.slane %v1205, 5
      %v1208 = vsel %vm1040, %v1203, %v1207
      %v1210 = vshrl.u32 %v1021, 16
      %v1212 = vrot.slane %v1210, 4
      %v1213 = vshll.u32 %v1021, 16
      %v1215 = vrot.slane %v1213, 5
      %v1216 = vor.u32 %v1212, %v1215
      %v1217 = vrot.slane %v1216, 4
      %v1219 = vshll.u32 %v1022, 16
      %v1221 = vrot.slane %v1219, 5
      %v1222 = vsel %vm1040, %v1217, %v1221
      %v1223 = vshrl.u32 %v1022, 16
      %v1225 = vrot.slane %v1223, 4
      %v1226 = vor.u32 %v1225, %v1221
      %v1227 = vrot.slane %v1226, 4
      %v1229 = vshll.u32 %v1035, 16
      %v1231 = vrot.slane %v1229, 5
      %v1232 = vsel %vm1040, %v1227, %v1231
      %v1234 = vshrl.u32 %v1023, 16
      %v1236 = vrot.slane %v1234, 4
      %v1237 = vshll.u32 %v1023, 16
      %v1239 = vrot.slane %v1237, 5
      %v1240 = vor.u32 %v1236, %v1239
      %v1241 = vrot.slane %v1240, 4
      %v1243 = vshll.u32 %v1024, 16
      %v1245 = vrot.slane %v1243, 5
      %v1246 = vsel %vm1040, %v1241, %v1245
      %v1247 = vshrl.u32 %v1024, 16
      %v1249 = vrot.slane %v1247, 4
      %v1250 = vor.u32 %v1249, %v1245
      %v1251 = vrot.slane %v1250, 4
      %v1253 = vshll.u32 %v1036, 16
      %v1255 = vrot.slane %v1253, 5
      %v1256 = vsel %vm1040, %v1251, %v1255
      %v1258 = vshrl.u32 %v1025, 16
      %v1260 = vrot.slane %v1258, 4
      %v1261 = vshll.u32 %v1025, 16
      %v1263 = vrot.slane %v1261, 5
      %v1264 = vor.u32 %v1260, %v1263
      %v1265 = vrot.slane %v1264, 4
      %v1267 = vshll.u32 %v1026, 16
      %v1269 = vrot.slane %v1267, 5
      %v1270 = vsel %vm1040, %v1265, %v1269
      %v1271 = vshrl.u32 %v1026, 16
      %v1273 = vrot.slane %v1271, 4
      %v1274 = vor.u32 %v1273, %v1269
      %v1275 = vrot.slane %v1274, 4
      %v1277 = vshll.u32 %v1037, 16
      %v1279 = vrot.slane %v1277, 5
      %v1280 = vsel %vm1040, %v1275, %v1279
      %v1281 = vld [vmem:[%s3] sm:$0xc]
      %v1282 = vunpack.c.l.b16 %v1054
      %v1283 = vunpack.c.l.b16 %v1064
      %v1284 = vunpack.c.l.b16 %v1078
      %v1285 = vunpack.c.l.b16 %v1088
      %v1286 = vunpack.c.l.b16 %v1102
      %v1287 = vunpack.c.l.b16 %v1112
      %v1288 = vunpack.c.l.b16 %v1126
      %v1289 = vunpack.c.l.b16 %v1136
      %v1290 = vunpack.c.l.b16 %v1150
      %v1291 = vunpack.c.l.b16 %v1160
      %v1292 = vunpack.c.l.b16 %v1174
      %v1293 = vunpack.c.l.b16 %v1184
      %v1294 = vunpack.c.l.b16 %v1198
      %v1295 = vunpack.c.l.b16 %v1208
      %v1296 = vunpack.c.l.b16 %v1222
      %v1297 = vunpack.c.l.b16 %v1232
      %v1298 = vunpack.c.l.b16 %v1246
      %v1299 = vunpack.c.l.b16 %v1256
      %v1300 = vunpack.c.l.b16 %v1270
      %v1301 = vunpack.c.l.b16 %v1280
      %v1302 = vpack.c.b16 %v1283, %v1282
      %v1303 = vpack.c.b16 %v1285, %v1284
      %v1304 = vpack.c.b16 %v1287, %v1286
      %v1305 = vpack.c.b16 %v1289, %v1288
      %v1306 = vpack.c.b16 %v1291, %v1290
      %v1307 = vpack.c.b16 %v1293, %v1292
      %v1308 = vpack.c.b16 %v1295, %v1294
      %v1309 = vpack.c.b16 %v1297, %v1296
      %v1310 = vpack.c.b16 %v1299, %v1298
      %v1311 = vpack.c.b16 %v1301, %v1300
      %v1313 = vunpack.c.l.b16 %v1281
      %v1314 = vpack.c.b16 %v1313, %v1313
      %v1315 = vrot.slane %v1314, 2
      %vm1316 = vcmask 31744
      %v1318 = vsel %vm1316, %v1302, 0
      %v1321 = vsel %vm1316, %v1303, 0
      %v1324 = vsel %vm1316, %v1304, 0
      %v1327 = vsel %vm1316, %v1305, 0
      %v1330 = vsel %vm1316, %v1306, 0
      %v1333 = vsel %vm1316, %v1307, 0
      %v1336 = vsel %vm1316, %v1308, 0
      %v1339 = vsel %vm1316, %v1309, 0
      %v1342 = vsel %vm1316, %v1310, 0
      %v1345 = vsel %vm1316, %v1311, 0
      %vm1347 = vcmask 1041408
      %v1349 = vsel %vm1347, %v1315, 0
      %1351 = vmatprep.subr.bf16.mxu0 0
      %1352 = vmatpush1.bf16.msra.mxu0 %v1349
      %1353 = vmatprep.subr.bf16.mxu0 0
      %1354 = vmatpush1.bf16.msra.mxu0 0
      %1355 = vmatprep.subr.bf16.mxu0 0
      %1356 = vmatpush1.bf16.msra.mxu0 0
      %1357 = vmatprep.subr.bf16.mxu0 0
      %1358 = vmatpush1.bf16.msra.mxu0 0
      %1359 = vmatprep.subr.bf16.mxu0 0
      %1360 = vmatpush1.bf16.msra.mxu0 0
      %1361 = vmatprep.subr.bf16.mxu0 0
      %1362 = vmatpush1.bf16.msra.mxu0 0
      %1363 = vmatprep.subr.bf16.mxu0 0
      %1364 = vmatpush1.bf16.msra.mxu0 0
      %1365 = vmatprep.subr.bf16.mxu0 0
      %1366 = vmatpush1.bf16.msra.mxu0 0
      %1367 = vmatprep.subr.bf16.mxu0 0
      %1368 = vmatpush1.bf16.msra.mxu0 0
      %1369 = vmatprep.subr.bf16.mxu0 0
      %1370 = vmatpush1.bf16.msra.mxu0 0
      %1371 = vmatprep.subr.bf16.mxu0 0
      %1372 = vmatpush1.bf16.msra.mxu0 0
      %1373 = vmatprep.subr.bf16.mxu0 0
      %1374 = vmatpush1.bf16.msra.mxu0 0
      %1375 = vmatprep.subr.bf16.mxu0 0
      %1376 = vmatpush1.bf16.msra.mxu0 0
      %1377 = vmatprep.subr.bf16.mxu0 0
      %1378 = vmatpush1.bf16.msra.mxu0 0
      %1379 = vmatprep.subr.bf16.mxu0 0
      %1380 = vmatpush1.bf16.msra.mxu0 0
      %1381 = vmatprep.subr.bf16.mxu0 0
      %1382 = vmatpush1.bf16.msra.mxu0 0
      %1383 = vmatprep.mubr.bf16.mxu0 0
      %1384 = vmatmul.mubr.bf16.gmra.mrb[0].mxu0 %v1318
      %v1385 = vpop.f32.mrb[0].mxu0
      %v1386 = vadd.f32 0.0, %v1385
      %v1387 = vpop.f32.mrb[0].mxu0
      %v1388 = vpop.f32.mrb[0].mxu0
      %v1389 = vadd.f32 0.0, %v1388
      %v1390 = vpop.f32.mrb[0].mxu0
      %1391 = vmatprep.mubr.bf16.mxu0 0
      %1392 = vmatmul.mubr.bf16.gmra.mrb[0].mxu0 %v1321
      %v1393 = vpop.f32.mrb[0].mxu0
      %v1394 = vadd.f32 0.0, %v1393
      %v1395 = vpop.f32.mrb[0].mxu0
      %v1396 = vpop.f32.mrb[0].mxu0
      %v1397 = vadd.f32 0.0, %v1396
      %v1398 = vpop.f32.mrb[0].mxu0
      %1399 = vmatprep.mubr.bf16.mxu0 0
      %1400 = vmatmul.mubr.bf16.gmra.mrb[0].mxu0 %v1324
      %v1401 = vpop.f32.mrb[0].mxu0
      %v1402 = vadd.f32 0.0, %v1401
      %v1403 = vpop.f32.mrb[0].mxu0
      %v1404 = vpop.f32.mrb[0].mxu0
      %v1405 = vadd.f32 0.0, %v1404
      %v1406 = vpop.f32.mrb[0].mxu0
      %1407 = vmatprep.mubr.bf16.mxu0 0
      %1408 = vmatmul.mubr.bf16.gmra.mrb[0].mxu0 %v1327
      %v1409 = vpop.f32.mrb[0].mxu0
      %v1410 = vadd.f32 0.0, %v1409
      %v1411 = vpop.f32.mrb[0].mxu0
      %v1412 = vpop.f32.mrb[0].mxu0
      %v1413 = vadd.f32 0.0, %v1412
      %v1414 = vpop.f32.mrb[0].mxu0
      %1415 = vmatprep.mubr.bf16.mxu0 0
      %1416 = vmatmul.mubr.bf16.gmra.mrb[0].mxu0 %v1330
      %v1417 = vpop.f32.mrb[0].mxu0
      %v1418 = vadd.f32 0.0, %v1417
      %v1419 = vpop.f32.mrb[0].mxu0
      %v1420 = vpop.f32.mrb[0].mxu0
      %v1421 = vadd.f32 0.0, %v1420
      %v1422 = vpop.f32.mrb[0].mxu0
      %1423 = vmatprep.mubr.bf16.mxu0 0
      %1424 = vmatmul.mubr.bf16.gmra.mrb[0].mxu0 %v1333
      %v1425 = vpop.f32.mrb[0].mxu0
      %v1426 = vadd.f32 0.0, %v1425
      %v1427 = vpop.f32.mrb[0].mxu0
      %v1428 = vpop.f32.mrb[0].mxu0
      %v1429 = vadd.f32 0.0, %v1428
      %v1430 = vpop.f32.mrb[0].mxu0
      %1431 = vmatprep.mubr.bf16.mxu0 0
      %1432 = vmatmul.mubr.bf16.gmra.mrb[0].mxu0 %v1336
      %v1433 = vpop.f32.mrb[0].mxu0
      %v1434 = vadd.f32 0.0, %v1433
      %v1435 = vpop.f32.mrb[0].mxu0
      %v1436 = vpop.f32.mrb[0].mxu0
      %v1437 = vadd.f32 0.0, %v1436
      %v1438 = vpop.f32.mrb[0].mxu0
      %1439 = vmatprep.mubr.bf16.mxu0 0
      %1440 = vmatmul.mubr.bf16.gmra.mrb[0].mxu0 %v1339
      %v1441 = vpop.f32.mrb[0].mxu0
      %v1442 = vadd.f32 0.0, %v1441
      %v1443 = vpop.f32.mrb[0].mxu0
      %v1444 = vpop.f32.mrb[0].mxu0
      %v1445 = vadd.f32 0.0, %v1444
      %v1446 = vpop.f32.mrb[0].mxu0
      %1447 = vmatprep.mubr.bf16.mxu0 0
      %1448 = vmatmul.mubr.bf16.gmra.mrb[0].mxu0 %v1342
      %v1449 = vpop.f32.mrb[0].mxu0
      %v1450 = vadd.f32 0.0, %v1449
      %v1451 = vpop.f32.mrb[0].mxu0
      %v1452 = vpop.f32.mrb[0].mxu0
      %v1453 = vadd.f32 0.0, %v1452
      %v1454 = vpop.f32.mrb[0].mxu0
      %1455 = vmatprep.mubr.bf16.mxu0 0
      %1456 = vmatmul.mubr.bf16.gmra.mrb[0].mxu0 %v1345
      %v1457 = vpop.f32.mrb[0].mxu0
      %v1458 = vadd.f32 0.0, %v1457
      %v1459 = vpop.f32.mrb[0].mxu0
      %v1460 = vpop.f32.mrb[0].mxu0
      %v1461 = vadd.f32 0.0, %v1460
      %v1462 = vpop.f32.mrb[0].mxu0
      %1463 = vdwg.mxu0
      %v1484 = vunpack.c.l.b16 %v1007
      %v1485 = vunpack.c.l.b16 %v1008
      %v1486 = vunpack.c.l.b16 %v1009
      %v1487 = vunpack.c.l.b16 %v1010
      %v1488 = vunpack.c.l.b16 %v1011
      %v1489 = vunpack.c.l.b16 %v1012
      %v1490 = vunpack.c.l.b16 %v1013
      %v1491 = vunpack.c.l.b16 %v1014
      %v1492 = vunpack.c.l.b16 %v1015
      %v1493 = vunpack.c.l.b16 %v1016
      %v1494 = vunpack.c.l.b16 %v1017
      %v1495 = vunpack.c.l.b16 %v1018
      %v1496 = vunpack.c.l.b16 %v1019
      %v1497 = vunpack.c.l.b16 %v1020
      %v1498 = vunpack.c.l.b16 %v1021
      %v1499 = vunpack.c.l.b16 %v1022
      %v1500 = vunpack.c.l.b16 %v1023
      %v1501 = vunpack.c.l.b16 %v1024
      %v1502 = vunpack.c.l.b16 %v1025
      %v1503 = vunpack.c.l.b16 %v1026
      %v1504 = vpack.c.b16 %v1485, %v1484
      %v1505 = vpack.c.b16 %v1487, %v1486
      %v1506 = vpack.c.b16 %v1489, %v1488
      %v1507 = vpack.c.b16 %v1491, %v1490
      %v1508 = vpack.c.b16 %v1493, %v1492
      %v1509 = vpack.c.b16 %v1495, %v1494
      %v1510 = vpack.c.b16 %v1497, %v1496
      %v1511 = vpack.c.b16 %v1499, %v1498
      %v1512 = vpack.c.b16 %v1501, %v1500
      %v1513 = vpack.c.b16 %v1503, %v1502
      %v1515 = vsel %vm1316, %v1504, 0
      %v1518 = vsel %vm1316, %v1505, 0
      %v1521 = vsel %vm1316, %v1506, 0
      %v1524 = vsel %vm1316, %v1507, 0
      %v1527 = vsel %vm1316, %v1508, 0
      %v1530 = vsel %vm1316, %v1509, 0
      %v1533 = vsel %vm1316, %v1510, 0
      %v1536 = vsel %vm1316, %v1511, 0
      %v1539 = vsel %vm1316, %v1512, 0
      %v1542 = vsel %vm1316, %v1513, 0
      %v1545 = vsel %vm1347, %v1027, 0
      %1547 = vmatprep.subr.bf16.mxu0 0
      %1548 = vmatpush1.bf16.msra.mxu0 %v1545
      %1549 = vmatprep.subr.bf16.mxu0 0
      %1550 = vmatpush1.bf16.msra.mxu0 0
      %1551 = vmatprep.subr.bf16.mxu0 0
      %1552 = vmatpush1.bf16.msra.mxu0 0
      %1553 = vmatprep.subr.bf16.mxu0 0
      %1554 = vmatpush1.bf16.msra.mxu0 0
      %1555 = vmatprep.subr.bf16.mxu0 0
      %1556 = vmatpush1.bf16.msra.mxu0 0
      %1557 = vmatprep.subr.bf16.mxu0 0
      %1558 = vmatpush1.bf16.msra.mxu0 0
      %1559 = vmatprep.subr.bf16.mxu0 0
      %1560 = vmatpush1.bf16.msra.mxu0 0
      %1561 = vmatprep.subr.bf16.mxu0 0
      %1562 = vmatpush1.bf16.msra.mxu0 0
      %1563 = vmatprep.subr.bf16.mxu0 0
      %1564 = vmatpush1.bf16.msra.mxu0 0
      %1565 = vmatprep.subr.bf16.mxu0 0
      %1566 = vmatpush1.bf16.msra.mxu0 0
      %1567 = vmatprep.subr.bf16.mxu0 0
      %1568 = vmatpush1.bf16.msra.mxu0 0
      %1569 = vmatprep.subr.bf16.mxu0 0
      %1570 = vmatpush1.bf16.msra.mxu0 0
      %1571 = vmatprep.subr.bf16.mxu0 0
      %1572 = vmatpush1.bf16.msra.mxu0 0
      %1573 = vmatprep.subr.bf16.mxu0 0
      %1574 = vmatpush1.bf16.msra.mxu0 0
      %1575 = vmatprep.subr.bf16.mxu0 0
      %1576 = vmatpush1.bf16.msra.mxu0 0
      %1577 = vmatprep.subr.bf16.mxu0 0
      %1578 = vmatpush1.bf16.msra.mxu0 0
      %1579 = vmatprep.mubr.bf16.mxu0 0
      %1580 = vmatmul.mubr.bf16.gmra.mrb[0].mxu0 %v1515
      %v1581 = vpop.f32.mrb[0].mxu0
      %v1582 = vadd.f32 %v1386, %v1581
      %v1583 = vpop.f32.mrb[0].mxu0
      %v1584 = vpop.f32.mrb[0].mxu0
      %v1585 = vadd.f32 %v1389, %v1584
      %v1586 = vpop.f32.mrb[0].mxu0
      %1587 = vmatprep.mubr.bf16.mxu0 0
      %1588 = vmatmul.mubr.bf16.gmra.mrb[0].mxu0 %v1518
      %v1589 = vpop.f32.mrb[0].mxu0
      %v1590 = vadd.f32 %v1394, %v1589
      %v1591 = vpop.f32.mrb[0].mxu0
      %v1592 = vpop.f32.mrb[0].mxu0
      %v1593 = vadd.f32 %v1397, %v1592
      %v1594 = vpop.f32.mrb[0].mxu0
      %1595 = vmatprep.mubr.bf16.mxu0 0
      %1596 = vmatmul.mubr.bf16.gmra.mrb[0].mxu0 %v1521
      %v1597 = vpop.f32.mrb[0].mxu0
      %v1598 = vadd.f32 %v1402, %v1597
      %v1599 = vpop.f32.mrb[0].mxu0
      %v1600 = vpop.f32.mrb[0].mxu0
      %v1601 = vadd.f32 %v1405, %v1600
      %v1602 = vpop.f32.mrb[0].mxu0
      %1603 = vmatprep.mubr.bf16.mxu0 0
      %1604 = vmatmul.mubr.bf16.gmra.mrb[0].mxu0 %v1524
      %v1605 = vpop.f32.mrb[0].mxu0
      %v1606 = vadd.f32 %v1410, %v1605
      %v1607 = vpop.f32.mrb[0].mxu0
      %v1608 = vpop.f32.mrb[0].mxu0
      %v1609 = vadd.f32 %v1413, %v1608
      %v1610 = vpop.f32.mrb[0].mxu0
      %1611 = vmatprep.mubr.bf16.mxu0 0
      %1612 = vmatmul.mubr.bf16.gmra.mrb[0].mxu0 %v1527
      %v1613 = vpop.f32.mrb[0].mxu0
      %v1614 = vadd.f32 %v1418, %v1613
      %v1615 = vpop.f32.mrb[0].mxu0
      %v1616 = vpop.f32.mrb[0].mxu0
      %v1617 = vadd.f32 %v1421, %v1616
      %v1618 = vpop.f32.mrb[0].mxu0
      %1619 = vmatprep.mubr.bf16.mxu0 0
      %1620 = vmatmul.mubr.bf16.gmra.mrb[0].mxu0 %v1530
      %v1621 = vpop.f32.mrb[0].mxu0
      %v1622 = vadd.f32 %v1426, %v1621
      %v1623 = vpop.f32.mrb[0].mxu0
      %v1624 = vpop.f32.mrb[0].mxu0
      %v1625 = vadd.f32 %v1429, %v1624
      %v1626 = vpop.f32.mrb[0].mxu0
      %1627 = vmatprep.mubr.bf16.mxu0 0
      %1628 = vmatmul.mubr.bf16.gmra.mrb[0].mxu0 %v1533
      %v1629 = vpop.f32.mrb[0].mxu0
      %v1630 = vadd.f32 %v1434, %v1629
      %v1631 = vpop.f32.mrb[0].mxu0
      %v1632 = vpop.f32.mrb[0].mxu0
      %v1633 = vadd.f32 %v1437, %v1632
      %v1634 = vpop.f32.mrb[0].mxu0
      %1635 = vmatprep.mubr.bf16.mxu0 0
      %1636 = vmatmul.mubr.bf16.gmra.mrb[0].mxu0 %v1536
      %v1637 = vpop.f32.mrb[0].mxu0
      %v1638 = vadd.f32 %v1442, %v1637
      %v1639 = vpop.f32.mrb[0].mxu0
      %v1640 = vpop.f32.mrb[0].mxu0
      %v1641 = vadd.f32 %v1445, %v1640
      %v1642 = vpop.f32.mrb[0].mxu0
      %1643 = vmatprep.mubr.bf16.mxu0 0
      %1644 = vmatmul.mubr.bf16.gmra.mrb[0].mxu0 %v1539
      %v1645 = vpop.f32.mrb[0].mxu0
      %v1646 = vadd.f32 %v1450, %v1645
      %v1647 = vpop.f32.mrb[0].mxu0
      %v1648 = vpop.f32.mrb[0].mxu0
      %v1649 = vadd.f32 %v1453, %v1648
      %v1650 = vpop.f32.mrb[0].mxu0
      %1651 = vmatprep.mubr.bf16.mxu0 0
      %1652 = vmatmul.mubr.bf16.gmra.mrb[0].mxu0 %v1542
      %v1653 = vpop.f32.mrb[0].mxu0
      %v1654 = vadd.f32 %v1458, %v1653
      %v1655 = vpop.f32.mrb[0].mxu0
      %v1656 = vpop.f32.mrb[0].mxu0
      %v1657 = vadd.f32 %v1461, %v1656
      %v1658 = vpop.f32.mrb[0].mxu0
      %1659 = vdwg.mxu0
      %v1660 = vld [vmem:[#allocation2] sm:$0xe]
      %v1661 = vld [vmem:[#allocation2 + $0xc] sm:$0xe]
      %v1662 = vld [vmem:[#allocation2 + $0x18] sm:$0xe]
      %v1663 = vld [vmem:[#allocation2 + $0x24] sm:$0xe]
      %v1664 = vld [vmem:[#allocation2 + $0x30] sm:$0xe]
      %v1665 = vld [vmem:[#allocation2 + $0x3c] sm:$0xe]
      %v1666 = vld [vmem:[#allocation2 + $0x48] sm:$0xe]
      %v1667 = vld [vmem:[#allocation2 + $0x54] sm:$0xe]
      %v1668 = vld [vmem:[#allocation2 + $0x60] sm:$0xe]
      %v1669 = vld [vmem:[#allocation2 + $0x6c] sm:$0xe]
      %vm1690 = vcmask 1042432
      %vm1691 = vcmask 1046532
      %vm1692 = vmor %vm1690, %vm1691
      %v1693 = vrot.slane %v1660, 5
      %v1694 = vrot.slane %v1693, 4
      %v1695 = vrot.slane %v1008, 5
      %v1696 = vsel %vm1692, %v1694, %v1695
      %v1697 = vrot.slane %v1695, 4
      %v1698 = vrot.slane %v1028, 5
      %v1699 = vsel %vm1692, %v1697, %v1698
      %v1700 = vrot.slane %v1661, 5
      %v1701 = vrot.slane %v1700, 4
      %v1702 = vrot.slane %v1010, 5
      %v1703 = vsel %vm1692, %v1701, %v1702
      %v1704 = vrot.slane %v1702, 4
      %v1705 = vrot.slane %v1029, 5
      %v1706 = vsel %vm1692, %v1704, %v1705
      %v1707 = vrot.slane %v1662, 5
      %v1708 = vrot.slane %v1707, 4
      %v1709 = vrot.slane %v1012, 5
      %v1710 = vsel %vm1692, %v1708, %v1709
      %v1711 = vrot.slane %v1709, 4
      %v1712 = vrot.slane %v1030, 5
      %v1713 = vsel %vm1692, %v1711, %v1712
      %v1714 = vrot.slane %v1663, 5
      %v1715 = vrot.slane %v1714, 4
      %v1716 = vrot.slane %v1014, 5
      %v1717 = vsel %vm1692, %v1715, %v1716
      %v1718 = vrot.slane %v1716, 4
      %v1719 = vrot.slane %v1031, 5
      %v1720 = vsel %vm1692, %v1718, %v1719
      %v1721 = vrot.slane %v1664, 5
      %v1722 = vrot.slane %v1721, 4
      %v1723 = vrot.slane %v1016, 5
      %v1724 = vsel %vm1692, %v1722, %v1723
      %v1725 = vrot.slane %v1723, 4
      %v1726 = vrot.slane %v1032, 5
      %v1727 = vsel %vm1692, %v1725, %v1726
      %v1728 = vrot.slane %v1665, 5
      %v1729 = vrot.slane %v1728, 4
      %v1730 = vrot.slane %v1018, 5
      %v1731 = vsel %vm1692, %v1729, %v1730
      %v1732 = vrot.slane %v1730, 4
      %v1733 = vrot.slane %v1033, 5
      %v1734 = vsel %vm1692, %v1732, %v1733
      %v1735 = vrot.slane %v1666, 5
      %v1736 = vrot.slane %v1735, 4
      %v1737 = vrot.slane %v1020, 5
      %v1738 = vsel %vm1692, %v1736, %v1737
      %v1739 = vrot.slane %v1737, 4
      %v1740 = vrot.slane %v1034, 5
      %v1741 = vsel %vm1692, %v1739, %v1740
      %v1742 = vrot.slane %v1667, 5
      %v1743 = vrot.slane %v1742, 4
      %v1744 = vrot.slane %v1022, 5
      %v1745 = vsel %vm1692, %v1743, %v1744
      %v1746 = vrot.slane %v1744, 4
      %v1747 = vrot.slane %v1035, 5
      %v1748 = vsel %vm1692, %v1746, %v1747
      %v1749 = vrot.slane %v1668, 5
      %v1750 = vrot.slane %v1749, 4
      %v1751 = vrot.slane %v1024, 5
      %v1752 = vsel %vm1692, %v1750, %v1751
      %v1753 = vrot.slane %v1751, 4
      %v1754 = vrot.slane %v1036, 5
      %v1755 = vsel %vm1692, %v1753, %v1754
      %v1756 = vrot.slane %v1669, 5
      %v1757 = vrot.slane %v1756, 4
      %v1758 = vrot.slane %v1026, 5
      %v1759 = vsel %vm1692, %v1757, %v1758
      %v1760 = vrot.slane %v1758, 4
      %v1761 = vrot.slane %v1037, 5
      %v1762 = vsel %vm1692, %v1760, %v1761
      %v1763 = vld [vmem:[%s3 + $0x4] sm:$0x3]
      %v1764 = vunpack.c.l.b16 %v1696
      %v1765 = vunpack.c.l.b16 %v1699
      %v1766 = vunpack.c.l.b16 %v1703
      %v1767 = vunpack.c.l.b16 %v1706
      %v1768 = vunpack.c.l.b16 %v1710
      %v1769 = vunpack.c.l.b16 %v1713
      %v1770 = vunpack.c.l.b16 %v1717
      %v1771 = vunpack.c.l.b16 %v1720
      %v1772 = vunpack.c.l.b16 %v1724
      %v1773 = vunpack.c.l.b16 %v1727
      %v1774 = vunpack.c.l.b16 %v1731
      %v1775 = vunpack.c.l.b16 %v1734
      %v1776 = vunpack.c.l.b16 %v1738
      %v1777 = vunpack.c.l.b16 %v1741
      %v1778 = vunpack.c.l.b16 %v1745
      %v1779 = vunpack.c.l.b16 %v1748
      %v1780 = vunpack.c.l.b16 %v1752
      %v1781 = vunpack.c.l.b16 %v1755
      %v1782 = vunpack.c.l.b16 %v1759
      %v1783 = vunpack.c.l.b16 %v1762
      %v1784 = vpack.c.b16 %v1765, %v1764
      %v1785 = vpack.c.b16 %v1767, %v1766
      %v1786 = vpack.c.b16 %v1769, %v1768
      %v1787 = vpack.c.b16 %v1771, %v1770
      %v1788 = vpack.c.b16 %v1773, %v1772
      %v1789 = vpack.c.b16 %v1775, %v1774
      %v1790 = vpack.c.b16 %v1777, %v1776
      %v1791 = vpack.c.b16 %v1779, %v1778
      %v1792 = vpack.c.b16 %v1781, %v1780
      %v1793 = vpack.c.b16 %v1783, %v1782
      %v1795 = vsel %vm1316, %v1784, 0
      %v1798 = vsel %vm1316, %v1785, 0
      %v1801 = vsel %vm1316, %v1786, 0
      %v1804 = vsel %vm1316, %v1787, 0
      %v1807 = vsel %vm1316, %v1788, 0
      %v1810 = vsel %vm1316, %v1789, 0
      %v1813 = vsel %vm1316, %v1790, 0
      %v1816 = vsel %vm1316, %v1791, 0
      %v1819 = vsel %vm1316, %v1792, 0
      %v1822 = vsel %vm1316, %v1793, 0
      %v1825 = vsel %vm1347, %v1763, 0
      %1827 = vmatprep.subr.bf16.mxu0 0
      %1828 = vmatpush1.bf16.msra.mxu0 %v1825
      %1829 = vmatprep.subr.bf16.mxu0 0
      %1830 = vmatpush1.bf16.msra.mxu0 0
      %1831 = vmatprep.subr.bf16.mxu0 0
      %1832 = vmatpush1.bf16.msra.mxu0 0
      %1833 = vmatprep.subr.bf16.mxu0 0
      %1834 = vmatpush1.bf16.msra.mxu0 0
      %1835 = vmatprep.subr.bf16.mxu0 0
      %1836 = vmatpush1.bf16.msra.mxu0 0
      %1837 = vmatprep.subr.bf16.mxu0 0
      %1838 = vmatpush1.bf16.msra.mxu0 0
      %1839 = vmatprep.subr.bf16.mxu0 0
      %1840 = vmatpush1.bf16.msra.mxu0 0
      %1841 = vmatprep.subr.bf16.mxu0 0
      %1842 = vmatpush1.bf16.msra.mxu0 0
      %1843 = vmatprep.subr.bf16.mxu0 0
      %1844 = vmatpush1.bf16.msra.mxu0 0
      %1845 = vmatprep.subr.bf16.mxu0 0
      %1846 = vmatpush1.bf16.msra.mxu0 0
      %1847 = vmatprep.subr.bf16.mxu0 0
      %1848 = vmatpush1.bf16.msra.mxu0 0
      %1849 = vmatprep.subr.bf16.mxu0 0
      %1850 = vmatpush1.bf16.msra.mxu0 0
      %1851 = vmatprep.subr.bf16.mxu0 0
      %1852 = vmatpush1.bf16.msra.mxu0 0
      %1853 = vmatprep.subr.bf16.mxu0 0
      %1854 = vmatpush1.bf16.msra.mxu0 0
      %1855 = vmatprep.subr.bf16.mxu0 0
      %1856 = vmatpush1.bf16.msra.mxu0 0
      %1857 = vmatprep.subr.bf16.mxu0 0
      %1858 = vmatpush1.bf16.msra.mxu0 0
      %1859 = vmatprep.mubr.bf16.mxu0 0
      %1860 = vmatmul.mubr.bf16.gmra.mrb[0].mxu0 %v1795
      %v1861 = vpop.f32.mrb[0].mxu0
      %v1862 = vadd.f32 0.0, %v1861
      %v1863 = vpop.f32.mrb[0].mxu0
      %v1864 = vpop.f32.mrb[0].mxu0
      %v1865 = vadd.f32 0.0, %v1864
      %v1866 = vpop.f32.mrb[0].mxu0
      %1867 = vmatprep.mubr.bf16.mxu0 0
      %1868 = vmatmul.mubr.bf16.gmra.mrb[0].mxu0 %v1798
      %v1869 = vpop.f32.mrb[0].mxu0
      %v1870 = vadd.f32 0.0, %v1869
      %v1871 = vpop.f32.mrb[0].mxu0
      %v1872 = vpop.f32.mrb[0].mxu0
      %v1873 = vadd.f32 0.0, %v1872
      %v1874 = vpop.f32.mrb[0].mxu0
      %1875 = vmatprep.mubr.bf16.mxu0 0
      %1876 = vmatmul.mubr.bf16.gmra.mrb[0].mxu0 %v1801
      %v1877 = vpop.f32.mrb[0].mxu0
      %v1878 = vadd.f32 0.0, %v1877
      %v1879 = vpop.f32.mrb[0].mxu0
      %v1880 = vpop.f32.mrb[0].mxu0
      %v1881 = vadd.f32 0.0, %v1880
      %v1882 = vpop.f32.mrb[0].mxu0
      %1883 = vmatprep.mubr.bf16.mxu0 0
      %1884 = vmatmul.mubr.bf16.gmra.mrb[0].mxu0 %v1804
      %v1885 = vpop.f32.mrb[0].mxu0
      %v1886 = vadd.f32 0.0, %v1885
      %v1887 = vpop.f32.mrb[0].mxu0
      %v1888 = vpop.f32.mrb[0].mxu0
      %v1889 = vadd.f32 0.0, %v1888
      %v1890 = vpop.f32.mrb[0].mxu0
      %1891 = vmatprep.mubr.bf16.mxu0 0
      %1892 = vmatmul.mubr.bf16.gmra.mrb[0].mxu0 %v1807
      %v1893 = vpop.f32.mrb[0].mxu0
      %v1894 = vadd.f32 0.0, %v1893
      %v1895 = vpop.f32.mrb[0].mxu0
      %v1896 = vpop.f32.mrb[0].mxu0
      %v1897 = vadd.f32 0.0, %v1896
      %v1898 = vpop.f32.mrb[0].mxu0
      %1899 = vmatprep.mubr.bf16.mxu0 0
      %1900 = vmatmul.mubr.bf16.gmra.mrb[0].mxu0 %v1810
      %v1901 = vpop.f32.mrb[0].mxu0
      %v1902 = vadd.f32 0.0, %v1901
      %v1903 = vpop.f32.mrb[0].mxu0
      %v1904 = vpop.f32.mrb[0].mxu0
      %v1905 = vadd.f32 0.0, %v1904
      %v1906 = vpop.f32.mrb[0].mxu0
      %1907 = vmatprep.mubr.bf16.mxu0 0
      %1908 = vmatmul.mubr.bf16.gmra.mrb[0].mxu0 %v1813
      %v1909 = vpop.f32.mrb[0].mxu0
      %v1910 = vadd.f32 0.0, %v1909
      %v1911 = vpop.f32.mrb[0].mxu0
      %v1912 = vpop.f32.mrb[0].mxu0
      %v1913 = vadd.f32 0.0, %v1912
      %v1914 = vpop.f32.mrb[0].mxu0
      %1915 = vmatprep.mubr.bf16.mxu0 0
      %1916 = vmatmul.mubr.bf16.gmra.mrb[0].mxu0 %v1816
      %v1917 = vpop.f32.mrb[0].mxu0
      %v1918 = vadd.f32 0.0, %v1917
      %v1919 = vpop.f32.mrb[0].mxu0
      %v1920 = vpop.f32.mrb[0].mxu0
      %v1921 = vadd.f32 0.0, %v1920
      %v1922 = vpop.f32.mrb[0].mxu0
      %1923 = vmatprep.mubr.bf16.mxu0 0
      %1924 = vmatmul.mubr.bf16.gmra.mrb[0].mxu0 %v1819
      %v1925 = vpop.f32.mrb[0].mxu0
      %v1926 = vadd.f32 0.0, %v1925
      %v1927 = vpop.f32.mrb[0].mxu0
      %v1928 = vpop.f32.mrb[0].mxu0
      %v1929 = vadd.f32 0.0, %v1928
      %v1930 = vpop.f32.mrb[0].mxu0
      %1931 = vmatprep.mubr.bf16.mxu0 0
      %1932 = vmatmul.mubr.bf16.gmra.mrb[0].mxu0 %v1822
      %v1933 = vpop.f32.mrb[0].mxu0
      %v1934 = vadd.f32 0.0, %v1933
      %v1935 = vpop.f32.mrb[0].mxu0
      %v1936 = vpop.f32.mrb[0].mxu0
      %v1937 = vadd.f32 0.0, %v1936
      %v1938 = vpop.f32.mrb[0].mxu0
      %1939 = vdwg.mxu0
      %v1940 = vadd.f32 %v1582, %v1862
      %v1941 = vadd.f32 %v1585, %v1865
      %v1942 = vadd.f32 %v1590, %v1870
      %v1943 = vadd.f32 %v1593, %v1873
      %v1944 = vadd.f32 %v1598, %v1878
      %v1945 = vadd.f32 %v1601, %v1881
      %v1946 = vadd.f32 %v1606, %v1886
      %v1947 = vadd.f32 %v1609, %v1889
      %v1948 = vadd.f32 %v1614, %v1894
      %v1949 = vadd.f32 %v1617, %v1897
      %v1950 = vadd.f32 %v1622, %v1902
      %v1951 = vadd.f32 %v1625, %v1905
      %v1952 = vadd.f32 %v1630, %v1910
      %v1953 = vadd.f32 %v1633, %v1913
      %v1954 = vadd.f32 %v1638, %v1918
      %v1955 = vadd.f32 %v1641, %v1921
      %v1956 = vadd.f32 %v1646, %v1926
      %v1957 = vadd.f32 %v1649, %v1929
      %v1958 = vadd.f32 %v1654, %v1934
      %v1959 = vadd.f32 %v1657, %v1937
      %s1960 = scalar_lea.vmem [#allocation2], 12
      %v1961 = vld [vmem:[%s1960] sm:$0xf]
      %v1962 = vld [vmem:[%s1960 + $0x4] sm:$0xf]
      %v1963 = vld [vmem:[%s1960 + $0xc] sm:$0xf]
      %v1964 = vld [vmem:[%s1960 + $0x10] sm:$0xf]
      %v1965 = vld [vmem:[%s1960 + $0x18] sm:$0xf]
      %v1966 = vld [vmem:[%s1960 + $0x1c] sm:$0xf]
      %v1967 = vld [vmem:[%s1960 + $0x24] sm:$0xf]
      %v1968 = vld [vmem:[%s1960 + $0x28] sm:$0xf]
      %v1969 = vld [vmem:[%s1960 + $0x30] sm:$0xf]
      %v1970 = vld [vmem:[%s1960 + $0x34] sm:$0xf]
      %v1971 = vld [vmem:[%s1960 + $0x3c] sm:$0xf]
      %v1972 = vld [vmem:[%s1960 + $0x40] sm:$0xf]
      %v1973 = vld [vmem:[%s1960 + $0x48] sm:$0xf]
      %v1974 = vld [vmem:[%s1960 + $0x4c] sm:$0xf]
      %v1975 = vld [vmem:[%s1960 + $0x54] sm:$0xf]
      %v1976 = vld [vmem:[%s1960 + $0x58] sm:$0xf]
      %v1977 = vld [vmem:[%s1960 + $0x60] sm:$0xf]
      %v1978 = vld [vmem:[%s1960 + $0x64] sm:$0xf]
      %v1979 = vld [vmem:[%s1960 + $0x6c] sm:$0xf]
      %v1980 = vld [vmem:[%s1960 + $0x70] sm:$0xf]
      %v1981 = vld [vmem:[%s3 + $0x4] sm:$0xc]
      %v2002 = vunpack.c.l.b16 %v1961
      %v2003 = vunpack.c.l.b16 %v1962
      %v2004 = vunpack.c.l.b16 %v1963
      %v2005 = vunpack.c.l.b16 %v1964
      %v2006 = vunpack.c.l.b16 %v1965
      %v2007 = vunpack.c.l.b16 %v1966
      %v2008 = vunpack.c.l.b16 %v1967
      %v2009 = vunpack.c.l.b16 %v1968
      %v2010 = vunpack.c.l.b16 %v1969
      %v2011 = vunpack.c.l.b16 %v1970
      %v2012 = vunpack.c.l.b16 %v1971
      %v2013 = vunpack.c.l.b16 %v1972
      %v2014 = vunpack.c.l.b16 %v1973
      %v2015 = vunpack.c.l.b16 %v1974
      %v2016 = vunpack.c.l.b16 %v1975
      %v2017 = vunpack.c.l.b16 %v1976
      %v2018 = vunpack.c.l.b16 %v1977
      %v2019 = vunpack.c.l.b16 %v1978
      %v2020 = vunpack.c.l.b16 %v1979
      %v2021 = vunpack.c.l.b16 %v1980
      %v2022 = vpack.c.b16 %v2003, %v2002
      %v2023 = vpack.c.b16 %v2005, %v2004
      %v2024 = vpack.c.b16 %v2007, %v2006
      %v2025 = vpack.c.b16 %v2009, %v2008
      %v2026 = vpack.c.b16 %v2011, %v2010
      %v2027 = vpack.c.b16 %v2013, %v2012
      %v2028 = vpack.c.b16 %v2015, %v2014
      %v2029 = vpack.c.b16 %v2017, %v2016
      %v2030 = vpack.c.b16 %v2019, %v2018
      %v2031 = vpack.c.b16 %v2021, %v2020
      %v2033 = vunpack.c.l.b16 %v1981
      %v2034 = vpack.c.b16 %v2033, %v2033
      %v2035 = vrot.slane %v2034, 2
      %v2037 = vsel %vm1316, %v2022, 0
      %v2040 = vsel %vm1316, %v2023, 0
      %v2043 = vsel %vm1316, %v2024, 0
      %v2046 = vsel %vm1316, %v2025, 0
      %v2049 = vsel %vm1316, %v2026, 0
      %v2052 = vsel %vm1316, %v2027, 0
      %v2055 = vsel %vm1316, %v2028, 0
      %v2058 = vsel %vm1316, %v2029, 0
      %v2061 = vsel %vm1316, %v2030, 0
      %v2064 = vsel %vm1316, %v2031, 0
      %v2067 = vsel %vm1347, %v2035, 0
      %2069 = vmatprep.subr.bf16.mxu0 0
      %2070 = vmatpush1.bf16.msra.mxu0 %v2067
      %2071 = vmatprep.subr.bf16.mxu0 0
      %2072 = vmatpush1.bf16.msra.mxu0 0
      %2073 = vmatprep.subr.bf16.mxu0 0
      %2074 = vmatpush1.bf16.msra.mxu0 0
      %2075 = vmatprep.subr.bf16.mxu0 0
      %2076 = vmatpush1.bf16.msra.mxu0 0
      %2077 = vmatprep.subr.bf16.mxu0 0
      %2078 = vmatpush1.bf16.msra.mxu0 0
      %2079 = vmatprep.subr.bf16.mxu0 0
      %2080 = vmatpush1.bf16.msra.mxu0 0
      %2081 = vmatprep.subr.bf16.mxu0 0
      %2082 = vmatpush1.bf16.msra.mxu0 0
      %2083 = vmatprep.subr.bf16.mxu0 0
      %2084 = vmatpush1.bf16.msra.mxu0 0
      %2085 = vmatprep.subr.bf16.mxu0 0
      %2086 = vmatpush1.bf16.msra.mxu0 0
      %2087 = vmatprep.subr.bf16.mxu0 0
      %2088 = vmatpush1.bf16.msra.mxu0 0
      %2089 = vmatprep.subr.bf16.mxu0 0
      %2090 = vmatpush1.bf16.msra.mxu0 0
      %2091 = vmatprep.subr.bf16.mxu0 0
      %2092 = vmatpush1.bf16.msra.mxu0 0
      %2093 = vmatprep.subr.bf16.mxu0 0
      %2094 = vmatpush1.bf16.msra.mxu0 0
      %2095 = vmatprep.subr.bf16.mxu0 0
      %2096 = vmatpush1.bf16.msra.mxu0 0
      %2097 = vmatprep.subr.bf16.mxu0 0
      %2098 = vmatpush1.bf16.msra.mxu0 0
      %2099 = vmatprep.subr.bf16.mxu0 0
      %2100 = vmatpush1.bf16.msra.mxu0 0
      %2101 = vmatprep.mubr.bf16.mxu0 0
      %2102 = vmatmul.mubr.bf16.gmra.mrb[0].mxu0 %v2037
      %v2103 = vpop.f32.mrb[0].mxu0
      %v2104 = vadd.f32 0.0, %v2103
      %v2105 = vpop.f32.mrb[0].mxu0
      %v2106 = vpop.f32.mrb[0].mxu0
      %v2107 = vadd.f32 0.0, %v2106
      %v2108 = vpop.f32.mrb[0].mxu0
      %2109 = vmatprep.mubr.bf16.mxu0 0
      %2110 = vmatmul.mubr.bf16.gmra.mrb[0].mxu0 %v2040
      %v2111 = vpop.f32.mrb[0].mxu0
      %v2112 = vadd.f32 0.0, %v2111
      %v2113 = vpop.f32.mrb[0].mxu0
      %v2114 = vpop.f32.mrb[0].mxu0
      %v2115 = vadd.f32 0.0, %v2114
      %v2116 = vpop.f32.mrb[0].mxu0
      %2117 = vmatprep.mubr.bf16.mxu0 0
      %2118 = vmatmul.mubr.bf16.gmra.mrb[0].mxu0 %v2043
      %v2119 = vpop.f32.mrb[0].mxu0
      %v2120 = vadd.f32 0.0, %v2119
      %v2121 = vpop.f32.mrb[0].mxu0
      %v2122 = vpop.f32.mrb[0].mxu0
      %v2123 = vadd.f32 0.0, %v2122
      %v2124 = vpop.f32.mrb[0].mxu0
      %2125 = vmatprep.mubr.bf16.mxu0 0
      %2126 = vmatmul.mubr.bf16.gmra.mrb[0].mxu0 %v2046
      %v2127 = vpop.f32.mrb[0].mxu0
      %v2128 = vadd.f32 0.0, %v2127
      %v2129 = vpop.f32.mrb[0].mxu0
      %v2130 = vpop.f32.mrb[0].mxu0
      %v2131 = vadd.f32 0.0, %v2130
      %v2132 = vpop.f32.mrb[0].mxu0
      %2133 = vmatprep.mubr.bf16.mxu0 0
      %2134 = vmatmul.mubr.bf16.gmra.mrb[0].mxu0 %v2049
      %v2135 = vpop.f32.mrb[0].mxu0
      %v2136 = vadd.f32 0.0, %v2135
      %v2137 = vpop.f32.mrb[0].mxu0
      %v2138 = vpop.f32.mrb[0].mxu0
      %v2139 = vadd.f32 0.0, %v2138
      %v2140 = vpop.f32.mrb[0].mxu0
      %2141 = vmatprep.mubr.bf16.mxu0 0
      %2142 = vmatmul.mubr.bf16.gmra.mrb[0].mxu0 %v2052
      %v2143 = vpop.f32.mrb[0].mxu0
      %v2144 = vadd.f32 0.0, %v2143
      %v2145 = vpop.f32.mrb[0].mxu0
      %v2146 = vpop.f32.mrb[0].mxu0
      %v2147 = vadd.f32 0.0, %v2146
      %v2148 = vpop.f32.mrb[0].mxu0
      %2149 = vmatprep.mubr.bf16.mxu0 0
      %2150 = vmatmul.mubr.bf16.gmra.mrb[0].mxu0 %v2055
      %v2151 = vpop.f32.mrb[0].mxu0
      %v2152 = vadd.f32 0.0, %v2151
      %v2153 = vpop.f32.mrb[0].mxu0
      %v2154 = vpop.f32.mrb[0].mxu0
      %v2155 = vadd.f32 0.0, %v2154
      %v2156 = vpop.f32.mrb[0].mxu0
      %2157 = vmatprep.mubr.bf16.mxu0 0
      %2158 = vmatmul.mubr.bf16.gmra.mrb[0].mxu0 %v2058
      %v2159 = vpop.f32.mrb[0].mxu0
      %v2160 = vadd.f32 0.0, %v2159
      %v2161 = vpop.f32.mrb[0].mxu0
      %v2162 = vpop.f32.mrb[0].mxu0
      %v2163 = vadd.f32 0.0, %v2162
      %v2164 = vpop.f32.mrb[0].mxu0
      %2165 = vmatprep.mubr.bf16.mxu0 0
      %2166 = vmatmul.mubr.bf16.gmra.mrb[0].mxu0 %v2061
      %v2167 = vpop.f32.mrb[0].mxu0
      %v2168 = vadd.f32 0.0, %v2167
      %v2169 = vpop.f32.mrb[0].mxu0
      %v2170 = vpop.f32.mrb[0].mxu0
      %v2171 = vadd.f32 0.0, %v2170
      %v2172 = vpop.f32.mrb[0].mxu0
      %2173 = vmatprep.mubr.bf16.mxu0 0
      %2174 = vmatmul.mubr.bf16.gmra.mrb[0].mxu0 %v2064
      %v2175 = vpop.f32.mrb[0].mxu0
      %v2176 = vadd.f32 0.0, %v2175
      %v2177 = vpop.f32.mrb[0].mxu0
      %v2178 = vpop.f32.mrb[0].mxu0
      %v2179 = vadd.f32 0.0, %v2178
      %v2180 = vpop.f32.mrb[0].mxu0
      %2181 = vdwg.mxu0
      %v2182 = vadd.f32 %v1940, %v2104
      %v2183 = vadd.f32 %v1941, %v2107
      %v2184 = vadd.f32 %v1942, %v2112
      %v2185 = vadd.f32 %v1943, %v2115
      %v2186 = vadd.f32 %v1944, %v2120
      %v2187 = vadd.f32 %v1945, %v2123
      %v2188 = vadd.f32 %v1946, %v2128
      %v2189 = vadd.f32 %v1947, %v2131
      %v2190 = vadd.f32 %v1948, %v2136
      %v2191 = vadd.f32 %v1949, %v2139
      %v2192 = vadd.f32 %v1950, %v2144
      %v2193 = vadd.f32 %v1951, %v2147
      %v2194 = vadd.f32 %v1952, %v2152
      %v2195 = vadd.f32 %v1953, %v2155
      %v2196 = vadd.f32 %v1954, %v2160
      %v2197 = vadd.f32 %v1955, %v2163
      %v2198 = vadd.f32 %v1956, %v2168
      %v2199 = vadd.f32 %v1957, %v2171
      %v2200 = vadd.f32 %v1958, %v2176
      %v2201 = vadd.f32 %v1959, %v2179
      %v2202 = vld [vmem:[%s1960] sm:$0xf]
      %v2203 = vld [vmem:[%s1960 + $0x4] sm:$0xf]
      %v2204 = vld [vmem:[%s1960 + $0x8] sm:$0x1]
      %v2205 = vld [vmem:[%s1960 + $0xc] sm:$0xf]
      %v2206 = vld [vmem:[%s1960 + $0x10] sm:$0xf]
      %v2207 = vld [vmem:[%s1960 + $0x14] sm:$0x1]
      %v2208 = vld [vmem:[%s1960 + $0x18] sm:$0xf]
      %v2209 = vld [vmem:[%s1960 + $0x1c] sm:$0xf]
      %v2210 = vld [vmem:[%s1960 + $0x20] sm:$0x1]
      %v2211 = vld [vmem:[%s1960 + $0x24] sm:$0xf]
      %v2212 = vld [vmem:[%s1960 + $0x28] sm:$0xf]
      %v2213 = vld [vmem:[%s1960 + $0x2c] sm:$0x1]
      %v2214 = vld [vmem:[%s1960 + $0x30] sm:$0xf]
      %v2215 = vld [vmem:[%s1960 + $0x34] sm:$0xf]
      %v2216 = vld [vmem:[%s1960 + $0x38] sm:$0x1]
      %v2217 = vld [vmem:[%s1960 + $0x3c] sm:$0xf]
      %v2218 = vld [vmem:[%s1960 + $0x40] sm:$0xf]
      %v2219 = vld [vmem:[%s1960 + $0x44] sm:$0x1]
      %v2220 = vld [vmem:[%s1960 + $0x48] sm:$0xf]
      %v2221 = vld [vmem:[%s1960 + $0x4c] sm:$0xf]
      %v2222 = vld [vmem:[%s1960 + $0x50] sm:$0x1]
      %v2223 = vld [vmem:[%s1960 + $0x54] sm:$0xf]
      %v2224 = vld [vmem:[%s1960 + $0x58] sm:$0xf]
      %v2225 = vld [vmem:[%s1960 + $0x5c] sm:$0x1]
      %v2226 = vld [vmem:[%s1960 + $0x60] sm:$0xf]
      %v2227 = vld [vmem:[%s1960 + $0x64] sm:$0xf]
      %v2228 = vld [vmem:[%s1960 + $0x68] sm:$0x1]
      %v2229 = vld [vmem:[%s1960 + $0x6c] sm:$0xf]
      %v2230 = vld [vmem:[%s1960 + $0x70] sm:$0xf]
      %v2231 = vld [vmem:[%s1960 + $0x74] sm:$0x1]
      %v2233 = vshrl.u32 %v2202, 16
      %v2235 = vrot.slane %v2233, 4
      %v2236 = vshll.u32 %v2202, 16
      %v2238 = vrot.slane %v2236, 5
      %v2239 = vor.u32 %v2235, %v2238
      %v2240 = vrot.slane %v2239, 4
      %v2242 = vshll.u32 %v2203, 16
      %v2244 = vrot.slane %v2242, 5
      %v2245 = vsel %vm1040, %v2240, %v2244
      %v2246 = vshrl.u32 %v2203, 16
      %v2248 = vrot.slane %v2246, 4
      %v2249 = vor.u32 %v2248, %v2244
      %v2250 = vrot.slane %v2249, 4
      %v2252 = vshll.u32 %v2204, 16
      %v2254 = vrot.slane %v2252, 5
      %v2255 = vsel %vm1040, %v2250, %v2254
      %v2257 = vshrl.u32 %v2205, 16
      %v2259 = vrot.slane %v2257, 4
      %v2260 = vshll.u32 %v2205, 16
      %v2262 = vrot.slane %v2260, 5
      %v2263 = vor.u32 %v2259, %v2262
      %v2264 = vrot.slane %v2263, 4
      %v2266 = vshll.u32 %v2206, 16
      %v2268 = vrot.slane %v2266, 5
      %v2269 = vsel %vm1040, %v2264, %v2268
      %v2270 = vshrl.u32 %v2206, 16
      %v2272 = vrot.slane %v2270, 4
      %v2273 = vor.u32 %v2272, %v2268
      %v2274 = vrot.slane %v2273, 4
      %v2276 = vshll.u32 %v2207, 16
      %v2278 = vrot.slane %v2276, 5
      %v2279 = vsel %vm1040, %v2274, %v2278
      %v2281 = vshrl.u32 %v2208, 16
      %v2283 = vrot.slane %v2281, 4
      %v2284 = vshll.u32 %v2208, 16
      %v2286 = vrot.slane %v2284, 5
      %v2287 = vor.u32 %v2283, %v2286
      %v2288 = vrot.slane %v2287, 4
      %v2290 = vshll.u32 %v2209, 16
      %v2292 = vrot.slane %v2290, 5
      %v2293 = vsel %vm1040, %v2288, %v2292
      %v2294 = vshrl.u32 %v2209, 16
      %v2296 = vrot.slane %v2294, 4
      %v2297 = vor.u32 %v2296, %v2292
      %v2298 = vrot.slane %v2297, 4
      %v2300 = vshll.u32 %v2210, 16
      %v2302 = vrot.slane %v2300, 5
      %v2303 = vsel %vm1040, %v2298, %v2302
      %v2305 = vshrl.u32 %v2211, 16
      %v2307 = vrot.slane %v2305, 4
      %v2308 = vshll.u32 %v2211, 16
      %v2310 = vrot.slane %v2308, 5
      %v2311 = vor.u32 %v2307, %v2310
      %v2312 = vrot.slane %v2311, 4
      %v2314 = vshll.u32 %v2212, 16
      %v2316 = vrot.slane %v2314, 5
      %v2317 = vsel %vm1040, %v2312, %v2316
      %v2318 = vshrl.u32 %v2212, 16
      %v2320 = vrot.slane %v2318, 4
      %v2321 = vor.u32 %v2320, %v2316
      %v2322 = vrot.slane %v2321, 4
      %v2324 = vshll.u32 %v2213, 16
      %v2326 = vrot.slane %v2324, 5
      %v2327 = vsel %vm1040, %v2322, %v2326
      %v2329 = vshrl.u32 %v2214, 16
      %v2331 = vrot.slane %v2329, 4
      %v2332 = vshll.u32 %v2214, 16
      %v2334 = vrot.slane %v2332, 5
      %v2335 = vor.u32 %v2331, %v2334
      %v2336 = vrot.slane %v2335, 4
      %v2338 = vshll.u32 %v2215, 16
      %v2340 = vrot.slane %v2338, 5
      %v2341 = vsel %vm1040, %v2336, %v2340
      %v2342 = vshrl.u32 %v2215, 16
      %v2344 = vrot.slane %v2342, 4
      %v2345 = vor.u32 %v2344, %v2340
      %v2346 = vrot.slane %v2345, 4
      %v2348 = vshll.u32 %v2216, 16
      %v2350 = vrot.slane %v2348, 5
      %v2351 = vsel %vm1040, %v2346, %v2350
      %v2353 = vshrl.u32 %v2217, 16
      %v2355 = vrot.slane %v2353, 4
      %v2356 = vshll.u32 %v2217, 16
      %v2358 = vrot.slane %v2356, 5
      %v2359 = vor.u32 %v2355, %v2358
      %v2360 = vrot.slane %v2359, 4
      %v2362 = vshll.u32 %v2218, 16
      %v2364 = vrot.slane %v2362, 5
      %v2365 = vsel %vm1040, %v2360, %v2364
      %v2366 = vshrl.u32 %v2218, 16
      %v2368 = vrot.slane %v2366, 4
      %v2369 = vor.u32 %v2368, %v2364
      %v2370 = vrot.slane %v2369, 4
      %v2372 = vshll.u32 %v2219, 16
      %v2374 = vrot.slane %v2372, 5
      %v2375 = vsel %vm1040, %v2370, %v2374
      %v2377 = vshrl.u32 %v2220, 16
      %v2379 = vrot.slane %v2377, 4
      %v2380 = vshll.u32 %v2220, 16
      %v2382 = vrot.slane %v2380, 5
      %v2383 = vor.u32 %v2379, %v2382
      %v2384 = vrot.slane %v2383, 4
      %v2386 = vshll.u32 %v2221, 16
      %v2388 = vrot.slane %v2386, 5
      %v2389 = vsel %vm1040, %v2384, %v2388
      %v2390 = vshrl.u32 %v2221, 16
      %v2392 = vrot.slane %v2390, 4
      %v2393 = vor.u32 %v2392, %v2388
      %v2394 = vrot.slane %v2393, 4
      %v2396 = vshll.u32 %v2222, 16
      %v2398 = vrot.slane %v2396, 5
      %v2399 = vsel %vm1040, %v2394, %v2398
      %v2401 = vshrl.u32 %v2223, 16
      %v2403 = vrot.slane %v2401, 4
      %v2404 = vshll.u32 %v2223, 16
      %v2406 = vrot.slane %v2404, 5
      %v2407 = vor.u32 %v2403, %v2406
      %v2408 = vrot.slane %v2407, 4
      %v2410 = vshll.u32 %v2224, 16
      %v2412 = vrot.slane %v2410, 5
      %v2413 = vsel %vm1040, %v2408, %v2412
      %v2414 = vshrl.u32 %v2224, 16
      %v2416 = vrot.slane %v2414, 4
      %v2417 = vor.u32 %v2416, %v2412
      %v2418 = vrot.slane %v2417, 4
      %v2420 = vshll.u32 %v2225, 16
      %v2422 = vrot.slane %v2420, 5
      %v2423 = vsel %vm1040, %v2418, %v2422
      %v2425 = vshrl.u32 %v2226, 16
      %v2427 = vrot.slane %v2425, 4
      %v2428 = vshll.u32 %v2226, 16
      %v2430 = vrot.slane %v2428, 5
      %v2431 = vor.u32 %v2427, %v2430
      %v2432 = vrot.slane %v2431, 4
      %v2434 = vshll.u32 %v2227, 16
      %v2436 = vrot.slane %v2434, 5
      %v2437 = vsel %vm1040, %v2432, %v2436
      %v2438 = vshrl.u32 %v2227, 16
      %v2440 = vrot.slane %v2438, 4
      %v2441 = vor.u32 %v2440, %v2436
      %v2442 = vrot.slane %v2441, 4
      %v2444 = vshll.u32 %v2228, 16
      %v2446 = vrot.slane %v2444, 5
      %v2447 = vsel %vm1040, %v2442, %v2446
      %v2449 = vshrl.u32 %v2229, 16
      %v2451 = vrot.slane %v2449, 4
      %v2452 = vshll.u32 %v2229, 16
      %v2454 = vrot.slane %v2452, 5
      %v2455 = vor.u32 %v2451, %v2454
      %v2456 = vrot.slane %v2455, 4
      %v2458 = vshll.u32 %v2230, 16
      %v2460 = vrot.slane %v2458, 5
      %v2461 = vsel %vm1040, %v2456, %v2460
      %v2462 = vshrl.u32 %v2230, 16
      %v2464 = vrot.slane %v2462, 4
      %v2465 = vor.u32 %v2464, %v2460
      %v2466 = vrot.slane %v2465, 4
      %v2468 = vshll.u32 %v2231, 16
      %v2470 = vrot.slane %v2468, 5
      %v2471 = vsel %vm1040, %v2466, %v2470
      %v2472 = vld [vmem:[%s3 + $0x8] sm:$0x3]
      %v2473 = vunpack.c.l.b16 %v2245
      %v2474 = vunpack.c.l.b16 %v2255
      %v2475 = vunpack.c.l.b16 %v2269
      %v2476 = vunpack.c.l.b16 %v2279
      %v2477 = vunpack.c.l.b16 %v2293
      %v2478 = vunpack.c.l.b16 %v2303
      %v2479 = vunpack.c.l.b16 %v2317
      %v2480 = vunpack.c.l.b16 %v2327
      %v2481 = vunpack.c.l.b16 %v2341
      %v2482 = vunpack.c.l.b16 %v2351
      %v2483 = vunpack.c.l.b16 %v2365
      %v2484 = vunpack.c.l.b16 %v2375
      %v2485 = vunpack.c.l.b16 %v2389
      %v2486 = vunpack.c.l.b16 %v2399
      %v2487 = vunpack.c.l.b16 %v2413
      %v2488 = vunpack.c.l.b16 %v2423
      %v2489 = vunpack.c.l.b16 %v2437
      %v2490 = vunpack.c.l.b16 %v2447
      %v2491 = vunpack.c.l.b16 %v2461
      %v2492 = vunpack.c.l.b16 %v2471
      %v2493 = vpack.c.b16 %v2474, %v2473
      %v2494 = vpack.c.b16 %v2476, %v2475
      %v2495 = vpack.c.b16 %v2478, %v2477
      %v2496 = vpack.c.b16 %v2480, %v2479
      %v2497 = vpack.c.b16 %v2482, %v2481
      %v2498 = vpack.c.b16 %v2484, %v2483
      %v2499 = vpack.c.b16 %v2486, %v2485
      %v2500 = vpack.c.b16 %v2488, %v2487
      %v2501 = vpack.c.b16 %v2490, %v2489
      %v2502 = vpack.c.b16 %v2492, %v2491
      %v2504 = vsel %vm1316, %v2493, 0
      %v2507 = vsel %vm1316, %v2494, 0
      %v2510 = vsel %vm1316, %v2495, 0
      %v2513 = vsel %vm1316, %v2496, 0
      %v2516 = vsel %vm1316, %v2497, 0
      %v2519 = vsel %vm1316, %v2498, 0
      %v2522 = vsel %vm1316, %v2499, 0
      %v2525 = vsel %vm1316, %v2500, 0
      %v2528 = vsel %vm1316, %v2501, 0
      %v2531 = vsel %vm1316, %v2502, 0
      %v2534 = vsel %vm1347, %v2472, 0
      %2536 = vmatprep.subr.bf16.mxu0 0
      %2537 = vmatpush1.bf16.msra.mxu0 %v2534
      %2538 = vmatprep.subr.bf16.mxu0 0
      %2539 = vmatpush1.bf16.msra.mxu0 0
      %2540 = vmatprep.subr.bf16.mxu0 0
      %2541 = vmatpush1.bf16.msra.mxu0 0
      %2542 = vmatprep.subr.bf16.mxu0 0
      %2543 = vmatpush1.bf16.msra.mxu0 0
      %2544 = vmatprep.subr.bf16.mxu0 0
      %2545 = vmatpush1.bf16.msra.mxu0 0
      %2546 = vmatprep.subr.bf16.mxu0 0
      %2547 = vmatpush1.bf16.msra.mxu0 0
      %2548 = vmatprep.subr.bf16.mxu0 0
      %2549 = vmatpush1.bf16.msra.mxu0 0
      %2550 = vmatprep.subr.bf16.mxu0 0
      %2551 = vmatpush1.bf16.msra.mxu0 0
      %2552 = vmatprep.subr.bf16.mxu0 0
      %2553 = vmatpush1.bf16.msra.mxu0 0
      %2554 = vmatprep.subr.bf16.mxu0 0
      %2555 = vmatpush1.bf16.msra.mxu0 0
      %2556 = vmatprep.subr.bf16.mxu0 0
      %2557 = vmatpush1.bf16.msra.mxu0 0
      %2558 = vmatprep.subr.bf16.mxu0 0
      %2559 = vmatpush1.bf16.msra.mxu0 0
      %2560 = vmatprep.subr.bf16.mxu0 0
      %2561 = vmatpush1.bf16.msra.mxu0 0
      %2562 = vmatprep.subr.bf16.mxu0 0
      %2563 = vmatpush1.bf16.msra.mxu0 0
      %2564 = vmatprep.subr.bf16.mxu0 0
      %2565 = vmatpush1.bf16.msra.mxu0 0
      %2566 = vmatprep.subr.bf16.mxu0 0
      %2567 = vmatpush1.bf16.msra.mxu0 0
      %2568 = vmatprep.mubr.bf16.mxu0 0
      %2569 = vmatmul.mubr.bf16.gmra.mrb[0].mxu0 %v2504
      %v2570 = vpop.f32.mrb[0].mxu0
      %v2571 = vadd.f32 0.0, %v2570
      %v2572 = vpop.f32.mrb[0].mxu0
      %v2573 = vpop.f32.mrb[0].mxu0
      %v2574 = vadd.f32 0.0, %v2573
      %v2575 = vpop.f32.mrb[0].mxu0
      %2576 = vmatprep.mubr.bf16.mxu0 0
      %2577 = vmatmul.mubr.bf16.gmra.mrb[0].mxu0 %v2507
      %v2578 = vpop.f32.mrb[0].mxu0
      %v2579 = vadd.f32 0.0, %v2578
      %v2580 = vpop.f32.mrb[0].mxu0
      %v2581 = vpop.f32.mrb[0].mxu0
      %v2582 = vadd.f32 0.0, %v2581
      %v2583 = vpop.f32.mrb[0].mxu0
      %2584 = vmatprep.mubr.bf16.mxu0 0
      %2585 = vmatmul.mubr.bf16.gmra.mrb[0].mxu0 %v2510
      %v2586 = vpop.f32.mrb[0].mxu0
      %v2587 = vadd.f32 0.0, %v2586
      %v2588 = vpop.f32.mrb[0].mxu0
      %v2589 = vpop.f32.mrb[0].mxu0
      %v2590 = vadd.f32 0.0, %v2589
      %v2591 = vpop.f32.mrb[0].mxu0
      %2592 = vmatprep.mubr.bf16.mxu0 0
      %2593 = vmatmul.mubr.bf16.gmra.mrb[0].mxu0 %v2513
      %v2594 = vpop.f32.mrb[0].mxu0
      %v2595 = vadd.f32 0.0, %v2594
      %v2596 = vpop.f32.mrb[0].mxu0
      %v2597 = vpop.f32.mrb[0].mxu0
      %v2598 = vadd.f32 0.0, %v2597
      %v2599 = vpop.f32.mrb[0].mxu0
      %2600 = vmatprep.mubr.bf16.mxu0 0
      %2601 = vmatmul.mubr.bf16.gmra.mrb[0].mxu0 %v2516
      %v2602 = vpop.f32.mrb[0].mxu0
      %v2603 = vadd.f32 0.0, %v2602
      %v2604 = vpop.f32.mrb[0].mxu0
      %v2605 = vpop.f32.mrb[0].mxu0
      %v2606 = vadd.f32 0.0, %v2605
      %v2607 = vpop.f32.mrb[0].mxu0
      %2608 = vmatprep.mubr.bf16.mxu0 0
      %2609 = vmatmul.mubr.bf16.gmra.mrb[0].mxu0 %v2519
      %v2610 = vpop.f32.mrb[0].mxu0
      %v2611 = vadd.f32 0.0, %v2610
      %v2612 = vpop.f32.mrb[0].mxu0
      %v2613 = vpop.f32.mrb[0].mxu0
      %v2614 = vadd.f32 0.0, %v2613
      %v2615 = vpop.f32.mrb[0].mxu0
      %2616 = vmatprep.mubr.bf16.mxu0 0
      %2617 = vmatmul.mubr.bf16.gmra.mrb[0].mxu0 %v2522
      %v2618 = vpop.f32.mrb[0].mxu0
      %v2619 = vadd.f32 0.0, %v2618
      %v2620 = vpop.f32.mrb[0].mxu0
      %v2621 = vpop.f32.mrb[0].mxu0
      %v2622 = vadd.f32 0.0, %v2621
      %v2623 = vpop.f32.mrb[0].mxu0
      %2624 = vmatprep.mubr.bf16.mxu0 0
      %2625 = vmatmul.mubr.bf16.gmra.mrb[0].mxu0 %v2525
      %v2626 = vpop.f32.mrb[0].mxu0
      %v2627 = vadd.f32 0.0, %v2626
      %v2628 = vpop.f32.mrb[0].mxu0
      %v2629 = vpop.f32.mrb[0].mxu0
      %v2630 = vadd.f32 0.0, %v2629
      %v2631 = vpop.f32.mrb[0].mxu0
      %2632 = vmatprep.mubr.bf16.mxu0 0
      %2633 = vmatmul.mubr.bf16.gmra.mrb[0].mxu0 %v2528
      %v2634 = vpop.f32.mrb[0].mxu0
      %v2635 = vadd.f32 0.0, %v2634
      %v2636 = vpop.f32.mrb[0].mxu0
      %v2637 = vpop.f32.mrb[0].mxu0
      %v2638 = vadd.f32 0.0, %v2637
      %v2639 = vpop.f32.mrb[0].mxu0
      %2640 = vmatprep.mubr.bf16.mxu0 0
      %2641 = vmatmul.mubr.bf16.gmra.mrb[0].mxu0 %v2531
      %v2642 = vpop.f32.mrb[0].mxu0
      %v2643 = vadd.f32 0.0, %v2642
      %v2644 = vpop.f32.mrb[0].mxu0
      %v2645 = vpop.f32.mrb[0].mxu0
      %v2646 = vadd.f32 0.0, %v2645
      %v2647 = vpop.f32.mrb[0].mxu0
      %2648 = vdwg.mxu0
      %v2649 = vadd.f32 %v2182, %v2571
      %v2650 = vadd.f32 %v2183, %v2574
      %v2651 = vadd.f32 %v2184, %v2579
      %v2652 = vadd.f32 %v2185, %v2582
      %v2653 = vadd.f32 %v2186, %v2587
      %v2654 = vadd.f32 %v2187, %v2590
      %v2655 = vadd.f32 %v2188, %v2595
      %v2656 = vadd.f32 %v2189, %v2598
      %v2657 = vadd.f32 %v2190, %v2603
      %v2658 = vadd.f32 %v2191, %v2606
      %v2659 = vadd.f32 %v2192, %v2611
      %v2660 = vadd.f32 %v2193, %v2614
      %v2661 = vadd.f32 %v2194, %v2619
      %v2662 = vadd.f32 %v2195, %v2622
      %v2663 = vadd.f32 %v2196, %v2627
      %v2664 = vadd.f32 %v2197, %v2630
      %v2665 = vadd.f32 %v2198, %v2635
      %v2666 = vadd.f32 %v2199, %v2638
      %v2667 = vadd.f32 %v2200, %v2643
      %v2668 = vadd.f32 %v2201, %v2646
      %v2669 = vld [vmem:[%s1960] sm:$0xe]
      %v2670 = vld [vmem:[%s1960 + $0xc] sm:$0xe]
      %v2671 = vld [vmem:[%s1960 + $0x18] sm:$0xe]
      %v2672 = vld [vmem:[%s1960 + $0x24] sm:$0xe]
      %v2673 = vld [vmem:[%s1960 + $0x30] sm:$0xe]
      %v2674 = vld [vmem:[%s1960 + $0x3c] sm:$0xe]
      %v2675 = vld [vmem:[%s1960 + $0x48] sm:$0xe]
      %v2676 = vld [vmem:[%s1960 + $0x54] sm:$0xe]
      %v2677 = vld [vmem:[%s1960 + $0x60] sm:$0xe]
      %v2678 = vld [vmem:[%s1960 + $0x6c] sm:$0xe]
      %v2709 = vrot.slane %v2669, 5
      %v2710 = vrot.slane %v2709, 4
      %v2711 = vrot.slane %v2203, 5
      %v2712 = vsel %vm1692, %v2710, %v2711
      %v2713 = vrot.slane %v2711, 4
      %v2714 = vrot.slane %v2204, 5
      %v2715 = vsel %vm1692, %v2713, %v2714
      %v2716 = vrot.slane %v2670, 5
      %v2717 = vrot.slane %v2716, 4
      %v2718 = vrot.slane %v2206, 5
      %v2719 = vsel %vm1692, %v2717, %v2718
      %v2720 = vrot.slane %v2718, 4
      %v2721 = vrot.slane %v2207, 5
      %v2722 = vsel %vm1692, %v2720, %v2721
      %v2723 = vrot.slane %v2671, 5
      %v2724 = vrot.slane %v2723, 4
      %v2725 = vrot.slane %v2209, 5
      %v2726 = vsel %vm1692, %v2724, %v2725
      %v2727 = vrot.slane %v2725, 4
      %v2728 = vrot.slane %v2210, 5
      %v2729 = vsel %vm1692, %v2727, %v2728
      %v2730 = vrot.slane %v2672, 5
      %v2731 = vrot.slane %v2730, 4
      %v2732 = vrot.slane %v2212, 5
      %v2733 = vsel %vm1692, %v2731, %v2732
      %v2734 = vrot.slane %v2732, 4
      %v2735 = vrot.slane %v2213, 5
      %v2736 = vsel %vm1692, %v2734, %v2735
      %v2737 = vrot.slane %v2673, 5
      %v2738 = vrot.slane %v2737, 4
      %v2739 = vrot.slane %v2215, 5
      %v2740 = vsel %vm1692, %v2738, %v2739
      %v2741 = vrot.slane %v2739, 4
      %v2742 = vrot.slane %v2216, 5
      %v2743 = vsel %vm1692, %v2741, %v2742
      %v2744 = vrot.slane %v2674, 5
      %v2745 = vrot.slane %v2744, 4
      %v2746 = vrot.slane %v2218, 5
      %v2747 = vsel %vm1692, %v2745, %v2746
      %v2748 = vrot.slane %v2746, 4
      %v2749 = vrot.slane %v2219, 5
      %v2750 = vsel %vm1692, %v2748, %v2749
      %v2751 = vrot.slane %v2675, 5
      %v2752 = vrot.slane %v2751, 4
      %v2753 = vrot.slane %v2221, 5
      %v2754 = vsel %vm1692, %v2752, %v2753
      %v2755 = vrot.slane %v2753, 4
      %v2756 = vrot.slane %v2222, 5
      %v2757 = vsel %vm1692, %v2755, %v2756
      %v2758 = vrot.slane %v2676, 5
      %v2759 = vrot.slane %v2758, 4
      %v2760 = vrot.slane %v2224, 5
      %v2761 = vsel %vm1692, %v2759, %v2760
      %v2762 = vrot.slane %v2760, 4
      %v2763 = vrot.slane %v2225, 5
      %v2764 = vsel %vm1692, %v2762, %v2763
      %v2765 = vrot.slane %v2677, 5
      %v2766 = vrot.slane %v2765, 4
      %v2767 = vrot.slane %v2227, 5
      %v2768 = vsel %vm1692, %v2766, %v2767
      %v2769 = vrot.slane %v2767, 4
      %v2770 = vrot.slane %v2228, 5
      %v2771 = vsel %vm1692, %v2769, %v2770
      %v2772 = vrot.slane %v2678, 5
      %v2773 = vrot.slane %v2772, 4
      %v2774 = vrot.slane %v2230, 5
      %v2775 = vsel %vm1692, %v2773, %v2774
      %v2776 = vrot.slane %v2774, 4
      %v2777 = vrot.slane %v2231, 5
      %v2778 = vsel %vm1692, %v2776, %v2777
      %v2779 = vld [vmem:[%s3 + $0x8] sm:$0xc]
      %v2780 = vunpack.c.l.b16 %v2712
      %v2781 = vunpack.c.l.b16 %v2715
      %v2782 = vunpack.c.l.b16 %v2719
      %v2783 = vunpack.c.l.b16 %v2722
      %v2784 = vunpack.c.l.b16 %v2726
      %v2785 = vunpack.c.l.b16 %v2729
      %v2786 = vunpack.c.l.b16 %v2733
      %v2787 = vunpack.c.l.b16 %v2736
      %v2788 = vunpack.c.l.b16 %v2740
      %v2789 = vunpack.c.l.b16 %v2743
      %v2790 = vunpack.c.l.b16 %v2747
      %v2791 = vunpack.c.l.b16 %v2750
      %v2792 = vunpack.c.l.b16 %v2754
      %v2793 = vunpack.c.l.b16 %v2757
      %v2794 = vunpack.c.l.b16 %v2761
      %v2795 = vunpack.c.l.b16 %v2764
      %v2796 = vunpack.c.l.b16 %v2768
      %v2797 = vunpack.c.l.b16 %v2771
      %v2798 = vunpack.c.l.b16 %v2775
      %v2799 = vunpack.c.l.b16 %v2778
      %v2800 = vpack.c.b16 %v2781, %v2780
      %v2801 = vpack.c.b16 %v2783, %v2782
      %v2802 = vpack.c.b16 %v2785, %v2784
      %v2803 = vpack.c.b16 %v2787, %v2786
      %v2804 = vpack.c.b16 %v2789, %v2788
      %v2805 = vpack.c.b16 %v2791, %v2790
      %v2806 = vpack.c.b16 %v2793, %v2792
      %v2807 = vpack.c.b16 %v2795, %v2794
      %v2808 = vpack.c.b16 %v2797, %v2796
      %v2809 = vpack.c.b16 %v2799, %v2798
      %v2811 = vunpack.c.l.b16 %v2779
      %v2812 = vpack.c.b16 %v2811, %v2811
      %v2813 = vrot.slane %v2812, 2
      %v2815 = vsel %vm1316, %v2800, 0
      %v2818 = vsel %vm1316, %v2801, 0
      %v2821 = vsel %vm1316, %v2802, 0
      %v2824 = vsel %vm1316, %v2803, 0
      %v2827 = vsel %vm1316, %v2804, 0
      %v2830 = vsel %vm1316, %v2805, 0
      %v2833 = vsel %vm1316, %v2806, 0
      %v2836 = vsel %vm1316, %v2807, 0
      %v2839 = vsel %vm1316, %v2808, 0
      %v2842 = vsel %vm1316, %v2809, 0
      %v2845 = vsel %vm1347, %v2813, 0
      %2847 = vmatprep.subr.bf16.mxu0 0
      %2848 = vmatpush1.bf16.msra.mxu0 %v2845
      %2849 = vmatprep.subr.bf16.mxu0 0
      %2850 = vmatpush1.bf16.msra.mxu0 0
      %2851 = vmatprep.subr.bf16.mxu0 0
      %2852 = vmatpush1.bf16.msra.mxu0 0
      %2853 = vmatprep.subr.bf16.mxu0 0
      %2854 = vmatpush1.bf16.msra.mxu0 0
      %2855 = vmatprep.subr.bf16.mxu0 0
      %2856 = vmatpush1.bf16.msra.mxu0 0
      %2857 = vmatprep.subr.bf16.mxu0 0
      %2858 = vmatpush1.bf16.msra.mxu0 0
      %2859 = vmatprep.subr.bf16.mxu0 0
      %2860 = vmatpush1.bf16.msra.mxu0 0
      %2861 = vmatprep.subr.bf16.mxu0 0
      %2862 = vmatpush1.bf16.msra.mxu0 0
      %2863 = vmatprep.subr.bf16.mxu0 0
      %2864 = vmatpush1.bf16.msra.mxu0 0
      %2865 = vmatprep.subr.bf16.mxu0 0
      %2866 = vmatpush1.bf16.msra.mxu0 0
      %2867 = vmatprep.subr.bf16.mxu0 0
      %2868 = vmatpush1.bf16.msra.mxu0 0
      %2869 = vmatprep.subr.bf16.mxu0 0
      %2870 = vmatpush1.bf16.msra.mxu0 0
      %2871 = vmatprep.subr.bf16.mxu0 0
      %2872 = vmatpush1.bf16.msra.mxu0 0
      %2873 = vmatprep.subr.bf16.mxu0 0
      %2874 = vmatpush1.bf16.msra.mxu0 0
      %2875 = vmatprep.subr.bf16.mxu0 0
      %2876 = vmatpush1.bf16.msra.mxu0 0
      %2877 = vmatprep.subr.bf16.mxu0 0
      %2878 = vmatpush1.bf16.msra.mxu0 0
      %2879 = vmatprep.mubr.bf16.mxu0 0
      %2880 = vmatmul.mubr.bf16.gmra.mrb[0].mxu0 %v2815
      %v2881 = vpop.f32.mrb[0].mxu0
      %v2882 = vadd.f32 0.0, %v2881
      %v2883 = vpop.f32.mrb[0].mxu0
      %v2884 = vpop.f32.mrb[0].mxu0
      %v2885 = vadd.f32 0.0, %v2884
      %v2886 = vpop.f32.mrb[0].mxu0
      %2887 = vmatprep.mubr.bf16.mxu0 0
      %2888 = vmatmul.mubr.bf16.gmra.mrb[0].mxu0 %v2818
      %v2889 = vpop.f32.mrb[0].mxu0
      %v2890 = vadd.f32 0.0, %v2889
      %v2891 = vpop.f32.mrb[0].mxu0
      %v2892 = vpop.f32.mrb[0].mxu0
      %v2893 = vadd.f32 0.0, %v2892
      %v2894 = vpop.f32.mrb[0].mxu0
      %2895 = vmatprep.mubr.bf16.mxu0 0
      %2896 = vmatmul.mubr.bf16.gmra.mrb[0].mxu0 %v2821
      %v2897 = vpop.f32.mrb[0].mxu0
      %v2898 = vadd.f32 0.0, %v2897
      %v2899 = vpop.f32.mrb[0].mxu0
      %v2900 = vpop.f32.mrb[0].mxu0
      %v2901 = vadd.f32 0.0, %v2900
      %v2902 = vpop.f32.mrb[0].mxu0
      %2903 = vmatprep.mubr.bf16.mxu0 0
      %2904 = vmatmul.mubr.bf16.gmra.mrb[0].mxu0 %v2824
      %v2905 = vpop.f32.mrb[0].mxu0
      %v2906 = vadd.f32 0.0, %v2905
      %v2907 = vpop.f32.mrb[0].mxu0
      %v2908 = vpop.f32.mrb[0].mxu0
      %v2909 = vadd.f32 0.0, %v2908
      %v2910 = vpop.f32.mrb[0].mxu0
      %2911 = vmatprep.mubr.bf16.mxu0 0
      %2912 = vmatmul.mubr.bf16.gmra.mrb[0].mxu0 %v2827
      %v2913 = vpop.f32.mrb[0].mxu0
      %v2914 = vadd.f32 0.0, %v2913
      %v2915 = vpop.f32.mrb[0].mxu0
      %v2916 = vpop.f32.mrb[0].mxu0
      %v2917 = vadd.f32 0.0, %v2916
      %v2918 = vpop.f32.mrb[0].mxu0
      %2919 = vmatprep.mubr.bf16.mxu0 0
      %2920 = vmatmul.mubr.bf16.gmra.mrb[0].mxu0 %v2830
      %v2921 = vpop.f32.mrb[0].mxu0
      %v2922 = vadd.f32 0.0, %v2921
      %v2923 = vpop.f32.mrb[0].mxu0
      %v2924 = vpop.f32.mrb[0].mxu0
      %v2925 = vadd.f32 0.0, %v2924
      %v2926 = vpop.f32.mrb[0].mxu0
      %2927 = vmatprep.mubr.bf16.mxu0 0
      %2928 = vmatmul.mubr.bf16.gmra.mrb[0].mxu0 %v2833
      %v2929 = vpop.f32.mrb[0].mxu0
      %v2930 = vadd.f32 0.0, %v2929
      %v2931 = vpop.f32.mrb[0].mxu0
      %v2932 = vpop.f32.mrb[0].mxu0
      %v2933 = vadd.f32 0.0, %v2932
      %v2934 = vpop.f32.mrb[0].mxu0
      %2935 = vmatprep.mubr.bf16.mxu0 0
      %2936 = vmatmul.mubr.bf16.gmra.mrb[0].mxu0 %v2836
      %v2937 = vpop.f32.mrb[0].mxu0
      %v2938 = vadd.f32 0.0, %v2937
      %v2939 = vpop.f32.mrb[0].mxu0
      %v2940 = vpop.f32.mrb[0].mxu0
      %v2941 = vadd.f32 0.0, %v2940
      %v2942 = vpop.f32.mrb[0].mxu0
      %2943 = vmatprep.mubr.bf16.mxu0 0
      %2944 = vmatmul.mubr.bf16.gmra.mrb[0].mxu0 %v2839
      %v2945 = vpop.f32.mrb[0].mxu0
      %v2946 = vadd.f32 0.0, %v2945
      %v2947 = vpop.f32.mrb[0].mxu0
      %v2948 = vpop.f32.mrb[0].mxu0
      %v2949 = vadd.f32 0.0, %v2948
      %v2950 = vpop.f32.mrb[0].mxu0
      %2951 = vmatprep.mubr.bf16.mxu0 0
      %2952 = vmatmul.mubr.bf16.gmra.mrb[0].mxu0 %v2842
      %v2953 = vpop.f32.mrb[0].mxu0
      %v2954 = vadd.f32 0.0, %v2953
      %v2955 = vpop.f32.mrb[0].mxu0
      %v2956 = vpop.f32.mrb[0].mxu0
      %v2957 = vadd.f32 0.0, %v2956
      %v2958 = vpop.f32.mrb[0].mxu0
      %2959 = vdwg.mxu0
      %v2960 = vadd.f32 %v2649, %v2882
      %v2961 = vadd.f32 %v2650, %v2885
      %v2962 = vadd.f32 %v2651, %v2890
      %v2963 = vadd.f32 %v2652, %v2893
      %v2964 = vadd.f32 %v2653, %v2898
      %v2965 = vadd.f32 %v2654, %v2901
      %v2966 = vadd.f32 %v2655, %v2906
      %v2967 = vadd.f32 %v2656, %v2909
      %v2968 = vadd.f32 %v2657, %v2914
      %v2969 = vadd.f32 %v2658, %v2917
      %v2970 = vadd.f32 %v2659, %v2922
      %v2971 = vadd.f32 %v2660, %v2925
      %v2972 = vadd.f32 %v2661, %v2930
      %v2973 = vadd.f32 %v2662, %v2933
      %v2974 = vadd.f32 %v2663, %v2938
      %v2975 = vadd.f32 %v2664, %v2941
      %v2976 = vadd.f32 %v2665, %v2946
      %v2977 = vadd.f32 %v2666, %v2949
      %v2978 = vadd.f32 %v2667, %v2954
      %v2979 = vadd.f32 %v2668, %v2957
      %v2980 = vld [vmem:[%s761] sm:$0xf]
      %v2981 = vld [vmem:[%s761 + $0x4] sm:$0xf]
      %v2982 = vld [vmem:[%s761 + $0xc] sm:$0xf]
      %v2983 = vld [vmem:[%s761 + $0x10] sm:$0xf]
      %v2984 = vld [vmem:[%s761 + $0x18] sm:$0xf]
      %v2985 = vld [vmem:[%s761 + $0x1c] sm:$0xf]
      %v2986 = vld [vmem:[%s761 + $0x24] sm:$0xf]
      %v2987 = vld [vmem:[%s761 + $0x28] sm:$0xf]
      %v2988 = vld [vmem:[%s761 + $0x30] sm:$0xf]
      %v2989 = vld [vmem:[%s761 + $0x34] sm:$0xf]
      %v2990 = vld [vmem:[%s761 + $0x3c] sm:$0xf]
      %v2991 = vld [vmem:[%s761 + $0x40] sm:$0xf]
      %v2992 = vld [vmem:[%s761 + $0x48] sm:$0xf]
      %v2993 = vld [vmem:[%s761 + $0x4c] sm:$0xf]
      %v2994 = vld [vmem:[%s761 + $0x54] sm:$0xf]
      %v2995 = vld [vmem:[%s761 + $0x58] sm:$0xf]
      %v2996 = vld [vmem:[%s761 + $0x60] sm:$0xf]
      %v2997 = vld [vmem:[%s761 + $0x64] sm:$0xf]
      %v2998 = vld [vmem:[%s761 + $0x6c] sm:$0xf]
      %v2999 = vld [vmem:[%s761 + $0x70] sm:$0xf]
      %v3000 = vld [vmem:[%s3 + $0xc] sm:$0x3]
      %v3021 = vunpack.c.l.b16 %v2980
      %v3022 = vunpack.c.l.b16 %v2981
      %v3023 = vunpack.c.l.b16 %v2982
      %v3024 = vunpack.c.l.b16 %v2983
      %v3025 = vunpack.c.l.b16 %v2984
      %v3026 = vunpack.c.l.b16 %v2985
      %v3027 = vunpack.c.l.b16 %v2986
      %v3028 = vunpack.c.l.b16 %v2987
      %v3029 = vunpack.c.l.b16 %v2988
      %v3030 = vunpack.c.l.b16 %v2989
      %v3031 = vunpack.c.l.b16 %v2990
      %v3032 = vunpack.c.l.b16 %v2991
      %v3033 = vunpack.c.l.b16 %v2992
      %v3034 = vunpack.c.l.b16 %v2993
      %v3035 = vunpack.c.l.b16 %v2994
      %v3036 = vunpack.c.l.b16 %v2995
      %v3037 = vunpack.c.l.b16 %v2996
      %v3038 = vunpack.c.l.b16 %v2997
      %v3039 = vunpack.c.l.b16 %v2998
      %v3040 = vunpack.c.l.b16 %v2999
      %v3041 = vpack.c.b16 %v3022, %v3021
      %v3042 = vpack.c.b16 %v3024, %v3023
      %v3043 = vpack.c.b16 %v3026, %v3025
      %v3044 = vpack.c.b16 %v3028, %v3027
      %v3045 = vpack.c.b16 %v3030, %v3029
      %v3046 = vpack.c.b16 %v3032, %v3031
      %v3047 = vpack.c.b16 %v3034, %v3033
      %v3048 = vpack.c.b16 %v3036, %v3035
      %v3049 = vpack.c.b16 %v3038, %v3037
      %v3050 = vpack.c.b16 %v3040, %v3039
      %v3052 = vsel %vm1316, %v3041, 0
      %v3055 = vsel %vm1316, %v3042, 0
      %v3058 = vsel %vm1316, %v3043, 0
      %v3061 = vsel %vm1316, %v3044, 0
      %v3064 = vsel %vm1316, %v3045, 0
      %v3067 = vsel %vm1316, %v3046, 0
      %v3070 = vsel %vm1316, %v3047, 0
      %v3073 = vsel %vm1316, %v3048, 0
      %v3076 = vsel %vm1316, %v3049, 0
      %v3079 = vsel %vm1316, %v3050, 0
      %v3082 = vsel %vm1347, %v3000, 0
      %3084 = vmatprep.subr.bf16.mxu0 0
      %3085 = vmatpush1.bf16.msra.mxu0 %v3082
      %3086 = vmatprep.subr.bf16.mxu0 0
      %3087 = vmatpush1.bf16.msra.mxu0 0
      %3088 = vmatprep.subr.bf16.mxu0 0
      %3089 = vmatpush1.bf16.msra.mxu0 0
      %3090 = vmatprep.subr.bf16.mxu0 0
      %3091 = vmatpush1.bf16.msra.mxu0 0
      %3092 = vmatprep.subr.bf16.mxu0 0
      %3093 = vmatpush1.bf16.msra.mxu0 0
      %3094 = vmatprep.subr.bf16.mxu0 0
      %3095 = vmatpush1.bf16.msra.mxu0 0
      %3096 = vmatprep.subr.bf16.mxu0 0
      %3097 = vmatpush1.bf16.msra.mxu0 0
      %3098 = vmatprep.subr.bf16.mxu0 0
      %3099 = vmatpush1.bf16.msra.mxu0 0
      %3100 = vmatprep.subr.bf16.mxu0 0
      %3101 = vmatpush1.bf16.msra.mxu0 0
      %3102 = vmatprep.subr.bf16.mxu0 0
      %3103 = vmatpush1.bf16.msra.mxu0 0
      %3104 = vmatprep.subr.bf16.mxu0 0
      %3105 = vmatpush1.bf16.msra.mxu0 0
      %3106 = vmatprep.subr.bf16.mxu0 0
      %3107 = vmatpush1.bf16.msra.mxu0 0
      %3108 = vmatprep.subr.bf16.mxu0 0
      %3109 = vmatpush1.bf16.msra.mxu0 0
      %3110 = vmatprep.subr.bf16.mxu0 0
      %3111 = vmatpush1.bf16.msra.mxu0 0
      %3112 = vmatprep.subr.bf16.mxu0 0
      %3113 = vmatpush1.bf16.msra.mxu0 0
      %3114 = vmatprep.subr.bf16.mxu0 0
      %3115 = vmatpush1.bf16.msra.mxu0 0
      %3116 = vmatprep.mubr.bf16.mxu0 0
      %3117 = vmatmul.mubr.bf16.gmra.mrb[0].mxu0 %v3052
      %v3118 = vpop.f32.mrb[0].mxu0
      %v3119 = vadd.f32 0.0, %v3118
      %v3120 = vpop.f32.mrb[0].mxu0
      %v3121 = vpop.f32.mrb[0].mxu0
      %v3122 = vadd.f32 0.0, %v3121
      %v3123 = vpop.f32.mrb[0].mxu0
      %3124 = vmatprep.mubr.bf16.mxu0 0
      %3125 = vmatmul.mubr.bf16.gmra.mrb[0].mxu0 %v3055
      %v3126 = vpop.f32.mrb[0].mxu0
      %v3127 = vadd.f32 0.0, %v3126
      %v3128 = vpop.f32.mrb[0].mxu0
      %v3129 = vpop.f32.mrb[0].mxu0
      %v3130 = vadd.f32 0.0, %v3129
      %v3131 = vpop.f32.mrb[0].mxu0
      %3132 = vmatprep.mubr.bf16.mxu0 0
      %3133 = vmatmul.mubr.bf16.gmra.mrb[0].mxu0 %v3058
      %v3134 = vpop.f32.mrb[0].mxu0
      %v3135 = vadd.f32 0.0, %v3134
      %v3136 = vpop.f32.mrb[0].mxu0
      %v3137 = vpop.f32.mrb[0].mxu0
      %v3138 = vadd.f32 0.0, %v3137
      %v3139 = vpop.f32.mrb[0].mxu0
      %3140 = vmatprep.mubr.bf16.mxu0 0
      %3141 = vmatmul.mubr.bf16.gmra.mrb[0].mxu0 %v3061
      %v3142 = vpop.f32.mrb[0].mxu0
      %v3143 = vadd.f32 0.0, %v3142
      %v3144 = vpop.f32.mrb[0].mxu0
      %v3145 = vpop.f32.mrb[0].mxu0
      %v3146 = vadd.f32 0.0, %v3145
      %v3147 = vpop.f32.mrb[0].mxu0
      %3148 = vmatprep.mubr.bf16.mxu0 0
      %3149 = vmatmul.mubr.bf16.gmra.mrb[0].mxu0 %v3064
      %v3150 = vpop.f32.mrb[0].mxu0
      %v3151 = vadd.f32 0.0, %v3150
      %v3152 = vpop.f32.mrb[0].mxu0
      %v3153 = vpop.f32.mrb[0].mxu0
      %v3154 = vadd.f32 0.0, %v3153
      %v3155 = vpop.f32.mrb[0].mxu0
      %3156 = vmatprep.mubr.bf16.mxu0 0
      %3157 = vmatmul.mubr.bf16.gmra.mrb[0].mxu0 %v3067
      %v3158 = vpop.f32.mrb[0].mxu0
      %v3159 = vadd.f32 0.0, %v3158
      %v3160 = vpop.f32.mrb[0].mxu0
      %v3161 = vpop.f32.mrb[0].mxu0
      %v3162 = vadd.f32 0.0, %v3161
      %v3163 = vpop.f32.mrb[0].mxu0
      %3164 = vmatprep.mubr.bf16.mxu0 0
      %3165 = vmatmul.mubr.bf16.gmra.mrb[0].mxu0 %v3070
      %v3166 = vpop.f32.mrb[0].mxu0
      %v3167 = vadd.f32 0.0, %v3166
      %v3168 = vpop.f32.mrb[0].mxu0
      %v3169 = vpop.f32.mrb[0].mxu0
      %v3170 = vadd.f32 0.0, %v3169
      %v3171 = vpop.f32.mrb[0].mxu0
      %3172 = vmatprep.mubr.bf16.mxu0 0
      %3173 = vmatmul.mubr.bf16.gmra.mrb[0].mxu0 %v3073
      %v3174 = vpop.f32.mrb[0].mxu0
      %v3175 = vadd.f32 0.0, %v3174
      %v3176 = vpop.f32.mrb[0].mxu0
      %v3177 = vpop.f32.mrb[0].mxu0
      %v3178 = vadd.f32 0.0, %v3177
      %v3179 = vpop.f32.mrb[0].mxu0
      %3180 = vmatprep.mubr.bf16.mxu0 0
      %3181 = vmatmul.mubr.bf16.gmra.mrb[0].mxu0 %v3076
      %v3182 = vpop.f32.mrb[0].mxu0
      %v3183 = vadd.f32 0.0, %v3182
      %v3184 = vpop.f32.mrb[0].mxu0
      %v3185 = vpop.f32.mrb[0].mxu0
      %v3186 = vadd.f32 0.0, %v3185
      %v3187 = vpop.f32.mrb[0].mxu0
      %3188 = vmatprep.mubr.bf16.mxu0 0
      %3189 = vmatmul.mubr.bf16.gmra.mrb[0].mxu0 %v3079
      %v3190 = vpop.f32.mrb[0].mxu0
      %v3191 = vadd.f32 0.0, %v3190
      %v3192 = vpop.f32.mrb[0].mxu0
      %v3193 = vpop.f32.mrb[0].mxu0
      %v3194 = vadd.f32 0.0, %v3193
      %v3195 = vpop.f32.mrb[0].mxu0
      %3196 = vdwg.mxu0
      %v3197 = vadd.f32 %v2960, %v3119
      %v3198 = vadd.f32 %v2961, %v3122
      %v3199 = vadd.f32 %v2962, %v3127
      %v3200 = vadd.f32 %v2963, %v3130
      %v3201 = vadd.f32 %v2964, %v3135
      %v3202 = vadd.f32 %v2965, %v3138
      %v3203 = vadd.f32 %v2966, %v3143
      %v3204 = vadd.f32 %v2967, %v3146
      %v3205 = vadd.f32 %v2968, %v3151
      %v3206 = vadd.f32 %v2969, %v3154
      %v3207 = vadd.f32 %v2970, %v3159
      %v3208 = vadd.f32 %v2971, %v3162
      %v3209 = vadd.f32 %v2972, %v3167
      %v3210 = vadd.f32 %v2973, %v3170
      %v3211 = vadd.f32 %v2974, %v3175
      %v3212 = vadd.f32 %v2975, %v3178
      %v3213 = vadd.f32 %v2976, %v3183
      %v3214 = vadd.f32 %v2977, %v3186
      %v3215 = vadd.f32 %v2978, %v3191
      %v3216 = vadd.f32 %v2979, %v3194
      %v3217 = vld [vmem:[%s761] sm:$0xf]
      %v3218 = vld [vmem:[%s761 + $0x4] sm:$0xf]
      %v3219 = vld [vmem:[%s761 + $0x8] sm:$0x1]
      %v3220 = vld [vmem:[%s761 + $0xc] sm:$0xf]
      %v3221 = vld [vmem:[%s761 + $0x10] sm:$0xf]
      %v3222 = vld [vmem:[%s761 + $0x14] sm:$0x1]
      %v3223 = vld [vmem:[%s761 + $0x18] sm:$0xf]
      %v3224 = vld [vmem:[%s761 + $0x1c] sm:$0xf]
      %v3225 = vld [vmem:[%s761 + $0x20] sm:$0x1]
      %v3226 = vld [vmem:[%s761 + $0x24] sm:$0xf]
      %v3227 = vld [vmem:[%s761 + $0x28] sm:$0xf]
      %v3228 = vld [vmem:[%s761 + $0x2c] sm:$0x1]
      %v3229 = vld [vmem:[%s761 + $0x30] sm:$0xf]
      %v3230 = vld [vmem:[%s761 + $0x34] sm:$0xf]
      %v3231 = vld [vmem:[%s761 + $0x38] sm:$0x1]
      %v3232 = vld [vmem:[%s761 + $0x3c] sm:$0xf]
      %v3233 = vld [vmem:[%s761 + $0x40] sm:$0xf]
      %v3234 = vld [vmem:[%s761 + $0x44] sm:$0x1]
      %v3235 = vld [vmem:[%s761 + $0x48] sm:$0xf]
      %v3236 = vld [vmem:[%s761 + $0x4c] sm:$0xf]
      %v3237 = vld [vmem:[%s761 + $0x50] sm:$0x1]
      %v3238 = vld [vmem:[%s761 + $0x54] sm:$0xf]
      %v3239 = vld [vmem:[%s761 + $0x58] sm:$0xf]
      %v3240 = vld [vmem:[%s761 + $0x5c] sm:$0x1]
      %v3241 = vld [vmem:[%s761 + $0x60] sm:$0xf]
      %v3242 = vld [vmem:[%s761 + $0x64] sm:$0xf]
      %v3243 = vld [vmem:[%s761 + $0x68] sm:$0x1]
      %v3244 = vld [vmem:[%s761 + $0x6c] sm:$0xf]
      %v3245 = vld [vmem:[%s761 + $0x70] sm:$0xf]
      %v3246 = vld [vmem:[%s761 + $0x74] sm:$0x1]
      %v3248 = vshrl.u32 %v3217, 16
      %v3250 = vrot.slane %v3248, 4
      %v3251 = vshll.u32 %v3217, 16
      %v3253 = vrot.slane %v3251, 5
      %v3254 = vor.u32 %v3250, %v3253
      %v3255 = vrot.slane %v3254, 4
      %v3257 = vshll.u32 %v3218, 16
      %v3259 = vrot.slane %v3257, 5
      %v3260 = vsel %vm1040, %v3255, %v3259
      %v3261 = vshrl.u32 %v3218, 16
      %v3263 = vrot.slane %v3261, 4
      %v3264 = vor.u32 %v3263, %v3259
      %v3265 = vrot.slane %v3264, 4
      %v3267 = vshll.u32 %v3219, 16
      %v3269 = vrot.slane %v3267, 5
      %v3270 = vsel %vm1040, %v3265, %v3269
      %v3272 = vshrl.u32 %v3220, 16
      %v3274 = vrot.slane %v3272, 4
      %v3275 = vshll.u32 %v3220, 16
      %v3277 = vrot.slane %v3275, 5
      %v3278 = vor.u32 %v3274, %v3277
      %v3279 = vrot.slane %v3278, 4
      %v3281 = vshll.u32 %v3221, 16
      %v3283 = vrot.slane %v3281, 5
      %v3284 = vsel %vm1040, %v3279, %v3283
      %v3285 = vshrl.u32 %v3221, 16
      %v3287 = vrot.slane %v3285, 4
      %v3288 = vor.u32 %v3287, %v3283
      %v3289 = vrot.slane %v3288, 4
      %v3291 = vshll.u32 %v3222, 16
      %v3293 = vrot.slane %v3291, 5
      %v3294 = vsel %vm1040, %v3289, %v3293
      %v3296 = vshrl.u32 %v3223, 16
      %v3298 = vrot.slane %v3296, 4
      %v3299 = vshll.u32 %v3223, 16
      %v3301 = vrot.slane %v3299, 5
      %v3302 = vor.u32 %v3298, %v3301
      %v3303 = vrot.slane %v3302, 4
      %v3305 = vshll.u32 %v3224, 16
      %v3307 = vrot.slane %v3305, 5
      %v3308 = vsel %vm1040, %v3303, %v3307
      %v3309 = vshrl.u32 %v3224, 16
      %v3311 = vrot.slane %v3309, 4
      %v3312 = vor.u32 %v3311, %v3307
      %v3313 = vrot.slane %v3312, 4
      %v3315 = vshll.u32 %v3225, 16
      %v3317 = vrot.slane %v3315, 5
      %v3318 = vsel %vm1040, %v3313, %v3317
      %v3320 = vshrl.u32 %v3226, 16
      %v3322 = vrot.slane %v3320, 4
      %v3323 = vshll.u32 %v3226, 16
      %v3325 = vrot.slane %v3323, 5
      %v3326 = vor.u32 %v3322, %v3325
      %v3327 = vrot.slane %v3326, 4
      %v3329 = vshll.u32 %v3227, 16
      %v3331 = vrot.slane %v3329, 5
      %v3332 = vsel %vm1040, %v3327, %v3331
      %v3333 = vshrl.u32 %v3227, 16
      %v3335 = vrot.slane %v3333, 4
      %v3336 = vor.u32 %v3335, %v3331
      %v3337 = vrot.slane %v3336, 4
      %v3339 = vshll.u32 %v3228, 16
      %v3341 = vrot.slane %v3339, 5
      %v3342 = vsel %vm1040, %v3337, %v3341
      %v3344 = vshrl.u32 %v3229, 16
      %v3346 = vrot.slane %v3344, 4
      %v3347 = vshll.u32 %v3229, 16
      %v3349 = vrot.slane %v3347, 5
      %v3350 = vor.u32 %v3346, %v3349
      %v3351 = vrot.slane %v3350, 4
      %v3353 = vshll.u32 %v3230, 16
      %v3355 = vrot.slane %v3353, 5
      %v3356 = vsel %vm1040, %v3351, %v3355
      %v3357 = vshrl.u32 %v3230, 16
      %v3359 = vrot.slane %v3357, 4
      %v3360 = vor.u32 %v3359, %v3355
      %v3361 = vrot.slane %v3360, 4
      %v3363 = vshll.u32 %v3231, 16
      %v3365 = vrot.slane %v3363, 5
      %v3366 = vsel %vm1040, %v3361, %v3365
      %v3368 = vshrl.u32 %v3232, 16
      %v3370 = vrot.slane %v3368, 4
      %v3371 = vshll.u32 %v3232, 16
      %v3373 = vrot.slane %v3371, 5
      %v3374 = vor.u32 %v3370, %v3373
      %v3375 = vrot.slane %v3374, 4
      %v3377 = vshll.u32 %v3233, 16
      %v3379 = vrot.slane %v3377, 5
      %v3380 = vsel %vm1040, %v3375, %v3379
      %v3381 = vshrl.u32 %v3233, 16
      %v3383 = vrot.slane %v3381, 4
      %v3384 = vor.u32 %v3383, %v3379
      %v3385 = vrot.slane %v3384, 4
      %v3387 = vshll.u32 %v3234, 16
      %v3389 = vrot.slane %v3387, 5
      %v3390 = vsel %vm1040, %v3385, %v3389
      %v3392 = vshrl.u32 %v3235, 16
      %v3394 = vrot.slane %v3392, 4
      %v3395 = vshll.u32 %v3235, 16
      %v3397 = vrot.slane %v3395, 5
      %v3398 = vor.u32 %v3394, %v3397
      %v3399 = vrot.slane %v3398, 4
      %v3401 = vshll.u32 %v3236, 16
      %v3403 = vrot.slane %v3401, 5
      %v3404 = vsel %vm1040, %v3399, %v3403
      %v3405 = vshrl.u32 %v3236, 16
      %v3407 = vrot.slane %v3405, 4
      %v3408 = vor.u32 %v3407, %v3403
      %v3409 = vrot.slane %v3408, 4
      %v3411 = vshll.u32 %v3237, 16
      %v3413 = vrot.slane %v3411, 5
      %v3414 = vsel %vm1040, %v3409, %v3413
      %v3416 = vshrl.u32 %v3238, 16
      %v3418 = vrot.slane %v3416, 4
      %v3419 = vshll.u32 %v3238, 16
      %v3421 = vrot.slane %v3419, 5
      %v3422 = vor.u32 %v3418, %v3421
      %v3423 = vrot.slane %v3422, 4
      %v3425 = vshll.u32 %v3239, 16
      %v3427 = vrot.slane %v3425, 5
      %v3428 = vsel %vm1040, %v3423, %v3427
      %v3429 = vshrl.u32 %v3239, 16
      %v3431 = vrot.slane %v3429, 4
      %v3432 = vor.u32 %v3431, %v3427
      %v3433 = vrot.slane %v3432, 4
      %v3435 = vshll.u32 %v3240, 16
      %v3437 = vrot.slane %v3435, 5
      %v3438 = vsel %vm1040, %v3433, %v3437
      %v3440 = vshrl.u32 %v3241, 16
      %v3442 = vrot.slane %v3440, 4
      %v3443 = vshll.u32 %v3241, 16
      %v3445 = vrot.slane %v3443, 5
      %v3446 = vor.u32 %v3442, %v3445
      %v3447 = vrot.slane %v3446, 4
      %v3449 = vshll.u32 %v3242, 16
      %v3451 = vrot.slane %v3449, 5
      %v3452 = vsel %vm1040, %v3447, %v3451
      %v3453 = vshrl.u32 %v3242, 16
      %v3455 = vrot.slane %v3453, 4
      %v3456 = vor.u32 %v3455, %v3451
      %v3457 = vrot.slane %v3456, 4
      %v3459 = vshll.u32 %v3243, 16
      %v3461 = vrot.slane %v3459, 5
      %v3462 = vsel %vm1040, %v3457, %v3461
      %v3464 = vshrl.u32 %v3244, 16
      %v3466 = vrot.slane %v3464, 4
      %v3467 = vshll.u32 %v3244, 16
      %v3469 = vrot.slane %v3467, 5
      %v3470 = vor.u32 %v3466, %v3469
      %v3471 = vrot.slane %v3470, 4
      %v3473 = vshll.u32 %v3245, 16
      %v3475 = vrot.slane %v3473, 5
      %v3476 = vsel %vm1040, %v3471, %v3475
      %v3477 = vshrl.u32 %v3245, 16
      %v3479 = vrot.slane %v3477, 4
      %v3480 = vor.u32 %v3479, %v3475
      %v3481 = vrot.slane %v3480, 4
      %v3483 = vshll.u32 %v3246, 16
      %v3485 = vrot.slane %v3483, 5
      %v3486 = vsel %vm1040, %v3481, %v3485
      %v3487 = vld [vmem:[%s3 + $0xc] sm:$0xc]
      %v3488 = vunpack.c.l.b16 %v3260
      %v3489 = vunpack.c.l.b16 %v3270
      %v3490 = vunpack.c.l.b16 %v3284
      %v3491 = vunpack.c.l.b16 %v3294
      %v3492 = vunpack.c.l.b16 %v3308
      %v3493 = vunpack.c.l.b16 %v3318
      %v3494 = vunpack.c.l.b16 %v3332
      %v3495 = vunpack.c.l.b16 %v3342
      %v3496 = vunpack.c.l.b16 %v3356
      %v3497 = vunpack.c.l.b16 %v3366
      %v3498 = vunpack.c.l.b16 %v3380
      %v3499 = vunpack.c.l.b16 %v3390
      %v3500 = vunpack.c.l.b16 %v3404
      %v3501 = vunpack.c.l.b16 %v3414
      %v3502 = vunpack.c.l.b16 %v3428
      %v3503 = vunpack.c.l.b16 %v3438
      %v3504 = vunpack.c.l.b16 %v3452
      %v3505 = vunpack.c.l.b16 %v3462
      %v3506 = vunpack.c.l.b16 %v3476
      %v3507 = vunpack.c.l.b16 %v3486
      %v3508 = vpack.c.b16 %v3489, %v3488
      %v3509 = vpack.c.b16 %v3491, %v3490
      %v3510 = vpack.c.b16 %v3493, %v3492
      %v3511 = vpack.c.b16 %v3495, %v3494
      %v3512 = vpack.c.b16 %v3497, %v3496
      %v3513 = vpack.c.b16 %v3499, %v3498
      %v3514 = vpack.c.b16 %v3501, %v3500
      %v3515 = vpack.c.b16 %v3503, %v3502
      %v3516 = vpack.c.b16 %v3505, %v3504
      %v3517 = vpack.c.b16 %v3507, %v3506
      %v3519 = vunpack.c.l.b16 %v3487
      %v3520 = vpack.c.b16 %v3519, %v3519
      %v3521 = vrot.slane %v3520, 2
      %v3523 = vsel %vm1316, %v3508, 0
      %v3526 = vsel %vm1316, %v3509, 0
      %v3529 = vsel %vm1316, %v3510, 0
      %v3532 = vsel %vm1316, %v3511, 0
      %v3535 = vsel %vm1316, %v3512, 0
      %v3538 = vsel %vm1316, %v3513, 0
      %v3541 = vsel %vm1316, %v3514, 0
      %v3544 = vsel %vm1316, %v3515, 0
      %v3547 = vsel %vm1316, %v3516, 0
      %v3550 = vsel %vm1316, %v3517, 0
      %v3553 = vsel %vm1347, %v3521, 0
      %3555 = vmatprep.subr.bf16.mxu0 0
      %3556 = vmatpush1.bf16.msra.mxu0 %v3553
      %3557 = vmatprep.subr.bf16.mxu0 0
      %3558 = vmatpush1.bf16.msra.mxu0 0
      %3559 = vmatprep.subr.bf16.mxu0 0
      %3560 = vmatpush1.bf16.msra.mxu0 0
      %3561 = vmatprep.subr.bf16.mxu0 0
      %3562 = vmatpush1.bf16.msra.mxu0 0
      %3563 = vmatprep.subr.bf16.mxu0 0
      %3564 = vmatpush1.bf16.msra.mxu0 0
      %3565 = vmatprep.subr.bf16.mxu0 0
      %3566 = vmatpush1.bf16.msra.mxu0 0
      %3567 = vmatprep.subr.bf16.mxu0 0
      %3568 = vmatpush1.bf16.msra.mxu0 0
      %3569 = vmatprep.subr.bf16.mxu0 0
      %3570 = vmatpush1.bf16.msra.mxu0 0
      %3571 = vmatprep.subr.bf16.mxu0 0
      %3572 = vmatpush1.bf16.msra.mxu0 0
      %3573 = vmatprep.subr.bf16.mxu0 0
      %3574 = vmatpush1.bf16.msra.mxu0 0
      %3575 = vmatprep.subr.bf16.mxu0 0
      %3576 = vmatpush1.bf16.msra.mxu0 0
      %3577 = vmatprep.subr.bf16.mxu0 0
      %3578 = vmatpush1.bf16.msra.mxu0 0
      %3579 = vmatprep.subr.bf16.mxu0 0
      %3580 = vmatpush1.bf16.msra.mxu0 0
      %3581 = vmatprep.subr.bf16.mxu0 0
      %3582 = vmatpush1.bf16.msra.mxu0 0
      %3583 = vmatprep.subr.bf16.mxu0 0
      %3584 = vmatpush1.bf16.msra.mxu0 0
      %3585 = vmatprep.subr.bf16.mxu0 0
      %3586 = vmatpush1.bf16.msra.mxu0 0
      %3587 = vmatprep.mubr.bf16.mxu0 0
      %3588 = vmatmul.mubr.bf16.gmra.mrb[0].mxu0 %v3523
      %v3589 = vpop.f32.mrb[0].mxu0
      %v3590 = vadd.f32 0.0, %v3589
      %v3591 = vpop.f32.mrb[0].mxu0
      %v3592 = vpop.f32.mrb[0].mxu0
      %v3593 = vadd.f32 0.0, %v3592
      %v3594 = vpop.f32.mrb[0].mxu0
      %3595 = vmatprep.mubr.bf16.mxu0 0
      %3596 = vmatmul.mubr.bf16.gmra.mrb[0].mxu0 %v3526
      %v3597 = vpop.f32.mrb[0].mxu0
      %v3598 = vadd.f32 0.0, %v3597
      %v3599 = vpop.f32.mrb[0].mxu0
      %v3600 = vpop.f32.mrb[0].mxu0
      %v3601 = vadd.f32 0.0, %v3600
      %v3602 = vpop.f32.mrb[0].mxu0
      %3603 = vmatprep.mubr.bf16.mxu0 0
      %3604 = vmatmul.mubr.bf16.gmra.mrb[0].mxu0 %v3529
      %v3605 = vpop.f32.mrb[0].mxu0
      %v3606 = vadd.f32 0.0, %v3605
      %v3607 = vpop.f32.mrb[0].mxu0
      %v3608 = vpop.f32.mrb[0].mxu0
      %v3609 = vadd.f32 0.0, %v3608
      %v3610 = vpop.f32.mrb[0].mxu0
      %3611 = vmatprep.mubr.bf16.mxu0 0
      %3612 = vmatmul.mubr.bf16.gmra.mrb[0].mxu0 %v3532
      %v3613 = vpop.f32.mrb[0].mxu0
      %v3614 = vadd.f32 0.0, %v3613
      %v3615 = vpop.f32.mrb[0].mxu0
      %v3616 = vpop.f32.mrb[0].mxu0
      %v3617 = vadd.f32 0.0, %v3616
      %v3618 = vpop.f32.mrb[0].mxu0
      %3619 = vmatprep.mubr.bf16.mxu0 0
      %3620 = vmatmul.mubr.bf16.gmra.mrb[0].mxu0 %v3535
      %v3621 = vpop.f32.mrb[0].mxu0
      %v3622 = vadd.f32 0.0, %v3621
      %v3623 = vpop.f32.mrb[0].mxu0
      %v3624 = vpop.f32.mrb[0].mxu0
      %v3625 = vadd.f32 0.0, %v3624
      %v3626 = vpop.f32.mrb[0].mxu0
      %3627 = vmatprep.mubr.bf16.mxu0 0
      %3628 = vmatmul.mubr.bf16.gmra.mrb[0].mxu0 %v3538
      %v3629 = vpop.f32.mrb[0].mxu0
      %v3630 = vadd.f32 0.0, %v3629
      %v3631 = vpop.f32.mrb[0].mxu0
      %v3632 = vpop.f32.mrb[0].mxu0
      %v3633 = vadd.f32 0.0, %v3632
      %v3634 = vpop.f32.mrb[0].mxu0
      %3635 = vmatprep.mubr.bf16.mxu0 0
      %3636 = vmatmul.mubr.bf16.gmra.mrb[0].mxu0 %v3541
      %v3637 = vpop.f32.mrb[0].mxu0
      %v3638 = vadd.f32 0.0, %v3637
      %v3639 = vpop.f32.mrb[0].mxu0
      %v3640 = vpop.f32.mrb[0].mxu0
      %v3641 = vadd.f32 0.0, %v3640
      %v3642 = vpop.f32.mrb[0].mxu0
      %3643 = vmatprep.mubr.bf16.mxu0 0
      %3644 = vmatmul.mubr.bf16.gmra.mrb[0].mxu0 %v3544
      %v3645 = vpop.f32.mrb[0].mxu0
      %v3646 = vadd.f32 0.0, %v3645
      %v3647 = vpop.f32.mrb[0].mxu0
      %v3648 = vpop.f32.mrb[0].mxu0
      %v3649 = vadd.f32 0.0, %v3648
      %v3650 = vpop.f32.mrb[0].mxu0
      %3651 = vmatprep.mubr.bf16.mxu0 0
      %3652 = vmatmul.mubr.bf16.gmra.mrb[0].mxu0 %v3547
      %v3653 = vpop.f32.mrb[0].mxu0
      %v3654 = vadd.f32 0.0, %v3653
      %v3655 = vpop.f32.mrb[0].mxu0
      %v3656 = vpop.f32.mrb[0].mxu0
      %v3657 = vadd.f32 0.0, %v3656
      %v3658 = vpop.f32.mrb[0].mxu0
      %3659 = vmatprep.mubr.bf16.mxu0 0
      %3660 = vmatmul.mubr.bf16.gmra.mrb[0].mxu0 %v3550
      %v3661 = vpop.f32.mrb[0].mxu0
      %v3662 = vadd.f32 0.0, %v3661
      %v3663 = vpop.f32.mrb[0].mxu0
      %v3664 = vpop.f32.mrb[0].mxu0
      %v3665 = vadd.f32 0.0, %v3664
      %v3666 = vpop.f32.mrb[0].mxu0
      %3667 = vdwg.mxu0
      %v3668 = vadd.f32 %v3197, %v3590
      %v3669 = vadd.f32 %v3198, %v3593
      %v3670 = vadd.f32 %v3199, %v3598
      %v3671 = vadd.f32 %v3200, %v3601
      %v3672 = vadd.f32 %v3201, %v3606
      %v3673 = vadd.f32 %v3202, %v3609
      %v3674 = vadd.f32 %v3203, %v3614
      %v3675 = vadd.f32 %v3204, %v3617
      %v3676 = vadd.f32 %v3205, %v3622
      %v3677 = vadd.f32 %v3206, %v3625
      %v3678 = vadd.f32 %v3207, %v3630
      %v3679 = vadd.f32 %v3208, %v3633
      %v3680 = vadd.f32 %v3209, %v3638
      %v3681 = vadd.f32 %v3210, %v3641
      %v3682 = vadd.f32 %v3211, %v3646
      %v3683 = vadd.f32 %v3212, %v3649
      %v3684 = vadd.f32 %v3213, %v3654
      %v3685 = vadd.f32 %v3214, %v3657
      %v3686 = vadd.f32 %v3215, %v3662
      %v3687 = vadd.f32 %v3216, %v3665
      %v3688 = vld [vmem:[%s761] sm:$0xe]
      %v3689 = vld [vmem:[%s761 + $0xc] sm:$0xe]
      %v3690 = vld [vmem:[%s761 + $0x18] sm:$0xe]
      %v3691 = vld [vmem:[%s761 + $0x24] sm:$0xe]
      %v3692 = vld [vmem:[%s761 + $0x30] sm:$0xe]
      %v3693 = vld [vmem:[%s761 + $0x3c] sm:$0xe]
      %v3694 = vld [vmem:[%s761 + $0x48] sm:$0xe]
      %v3695 = vld [vmem:[%s761 + $0x54] sm:$0xe]
      %v3696 = vld [vmem:[%s761 + $0x60] sm:$0xe]
      %v3697 = vld [vmem:[%s761 + $0x6c] sm:$0xe]
      %v3728 = vrot.slane %v3688, 5
      %v3729 = vrot.slane %v3728, 4
      %v3730 = vrot.slane %v3218, 5
      %v3731 = vsel %vm1692, %v3729, %v3730
      %v3732 = vrot.slane %v3730, 4
      %v3733 = vrot.slane %v3219, 5
      %v3734 = vsel %vm1692, %v3732, %v3733
      %v3735 = vrot.slane %v3689, 5
      %v3736 = vrot.slane %v3735, 4
      %v3737 = vrot.slane %v3221, 5
      %v3738 = vsel %vm1692, %v3736, %v3737
      %v3739 = vrot.slane %v3737, 4
      %v3740 = vrot.slane %v3222, 5
      %v3741 = vsel %vm1692, %v3739, %v3740
      %v3742 = vrot.slane %v3690, 5
      %v3743 = vrot.slane %v3742, 4
      %v3744 = vrot.slane %v3224, 5
      %v3745 = vsel %vm1692, %v3743, %v3744
      %v3746 = vrot.slane %v3744, 4
      %v3747 = vrot.slane %v3225, 5
      %v3748 = vsel %vm1692, %v3746, %v3747
      %v3749 = vrot.slane %v3691, 5
      %v3750 = vrot.slane %v3749, 4
      %v3751 = vrot.slane %v3227, 5
      %v3752 = vsel %vm1692, %v3750, %v3751
      %v3753 = vrot.slane %v3751, 4
      %v3754 = vrot.slane %v3228, 5
      %v3755 = vsel %vm1692, %v3753, %v3754
      %v3756 = vrot.slane %v3692, 5
      %v3757 = vrot.slane %v3756, 4
      %v3758 = vrot.slane %v3230, 5
      %v3759 = vsel %vm1692, %v3757, %v3758
      %v3760 = vrot.slane %v3758, 4
      %v3761 = vrot.slane %v3231, 5
      %v3762 = vsel %vm1692, %v3760, %v3761
      %v3763 = vrot.slane %v3693, 5
      %v3764 = vrot.slane %v3763, 4
      %v3765 = vrot.slane %v3233, 5
      %v3766 = vsel %vm1692, %v3764, %v3765
      %v3767 = vrot.slane %v3765, 4
      %v3768 = vrot.slane %v3234, 5
      %v3769 = vsel %vm1692, %v3767, %v3768
      %v3770 = vrot.slane %v3694, 5
      %v3771 = vrot.slane %v3770, 4
      %v3772 = vrot.slane %v3236, 5
      %v3773 = vsel %vm1692, %v3771, %v3772
      %v3774 = vrot.slane %v3772, 4
      %v3775 = vrot.slane %v3237, 5
      %v3776 = vsel %vm1692, %v3774, %v3775
      %v3777 = vrot.slane %v3695, 5
      %v3778 = vrot.slane %v3777, 4
      %v3779 = vrot.slane %v3239, 5
      %v3780 = vsel %vm1692, %v3778, %v3779
      %v3781 = vrot.slane %v3779, 4
      %v3782 = vrot.slane %v3240, 5
      %v3783 = vsel %vm1692, %v3781, %v3782
      %v3784 = vrot.slane %v3696, 5
      %v3785 = vrot.slane %v3784, 4
      %v3786 = vrot.slane %v3242, 5
      %v3787 = vsel %vm1692, %v3785, %v3786
      %v3788 = vrot.slane %v3786, 4
      %v3789 = vrot.slane %v3243, 5
      %v3790 = vsel %vm1692, %v3788, %v3789
      %v3791 = vrot.slane %v3697, 5
      %v3792 = vrot.slane %v3791, 4
      %v3793 = vrot.slane %v3245, 5
      %v3794 = vsel %vm1692, %v3792, %v3793
      %v3795 = vrot.slane %v3793, 4
      %v3796 = vrot.slane %v3246, 5
      %v3797 = vsel %vm1692, %v3795, %v3796
      %v3798 = vld [vmem:[%s3 + $0x10] sm:$0x3]
      %v3799 = vunpack.c.l.b16 %v3731
      %v3800 = vunpack.c.l.b16 %v3734
      %v3801 = vunpack.c.l.b16 %v3738
      %v3802 = vunpack.c.l.b16 %v3741
      %v3803 = vunpack.c.l.b16 %v3745
      %v3804 = vunpack.c.l.b16 %v3748
      %v3805 = vunpack.c.l.b16 %v3752
      %v3806 = vunpack.c.l.b16 %v3755
      %v3807 = vunpack.c.l.b16 %v3759
      %v3808 = vunpack.c.l.b16 %v3762
      %v3809 = vunpack.c.l.b16 %v3766
      %v3810 = vunpack.c.l.b16 %v3769
      %v3811 = vunpack.c.l.b16 %v3773
      %v3812 = vunpack.c.l.b16 %v3776
      %v3813 = vunpack.c.l.b16 %v3780
      %v3814 = vunpack.c.l.b16 %v3783
      %v3815 = vunpack.c.l.b16 %v3787
      %v3816 = vunpack.c.l.b16 %v3790
      %v3817 = vunpack.c.l.b16 %v3794
      %v3818 = vunpack.c.l.b16 %v3797
      %v3819 = vpack.c.b16 %v3800, %v3799
      %v3820 = vpack.c.b16 %v3802, %v3801
      %v3821 = vpack.c.b16 %v3804, %v3803
      %v3822 = vpack.c.b16 %v3806, %v3805
      %v3823 = vpack.c.b16 %v3808, %v3807
      %v3824 = vpack.c.b16 %v3810, %v3809
      %v3825 = vpack.c.b16 %v3812, %v3811
      %v3826 = vpack.c.b16 %v3814, %v3813
      %v3827 = vpack.c.b16 %v3816, %v3815
      %v3828 = vpack.c.b16 %v3818, %v3817
      %v3830 = vsel %vm1316, %v3819, 0
      %v3833 = vsel %vm1316, %v3820, 0
      %v3836 = vsel %vm1316, %v3821, 0
      %v3839 = vsel %vm1316, %v3822, 0
      %v3842 = vsel %vm1316, %v3823, 0
      %v3845 = vsel %vm1316, %v3824, 0
      %v3848 = vsel %vm1316, %v3825, 0
      %v3851 = vsel %vm1316, %v3826, 0
      %v3854 = vsel %vm1316, %v3827, 0
      %v3857 = vsel %vm1316, %v3828, 0
      %v3860 = vsel %vm1347, %v3798, 0
      %3862 = vmatprep.subr.bf16.mxu0 0
      %3863 = vmatpush1.bf16.msra.mxu0 %v3860
      %3864 = vmatprep.subr.bf16.mxu0 0
      %3865 = vmatpush1.bf16.msra.mxu0 0
      %3866 = vmatprep.subr.bf16.mxu0 0
      %3867 = vmatpush1.bf16.msra.mxu0 0
      %3868 = vmatprep.subr.bf16.mxu0 0
      %3869 = vmatpush1.bf16.msra.mxu0 0
      %3870 = vmatprep.subr.bf16.mxu0 0
      %3871 = vmatpush1.bf16.msra.mxu0 0
      %3872 = vmatprep.subr.bf16.mxu0 0
      %3873 = vmatpush1.bf16.msra.mxu0 0
      %3874 = vmatprep.subr.bf16.mxu0 0
      %3875 = vmatpush1.bf16.msra.mxu0 0
      %3876 = vmatprep.subr.bf16.mxu0 0
      %3877 = vmatpush1.bf16.msra.mxu0 0
      %3878 = vmatprep.subr.bf16.mxu0 0
      %3879 = vmatpush1.bf16.msra.mxu0 0
      %3880 = vmatprep.subr.bf16.mxu0 0
      %3881 = vmatpush1.bf16.msra.mxu0 0
      %3882 = vmatprep.subr.bf16.mxu0 0
      %3883 = vmatpush1.bf16.msra.mxu0 0
      %3884 = vmatprep.subr.bf16.mxu0 0
      %3885 = vmatpush1.bf16.msra.mxu0 0
      %3886 = vmatprep.subr.bf16.mxu0 0
      %3887 = vmatpush1.bf16.msra.mxu0 0
      %3888 = vmatprep.subr.bf16.mxu0 0
      %3889 = vmatpush1.bf16.msra.mxu0 0
      %3890 = vmatprep.subr.bf16.mxu0 0
      %3891 = vmatpush1.bf16.msra.mxu0 0
      %3892 = vmatprep.subr.bf16.mxu0 0
      %3893 = vmatpush1.bf16.msra.mxu0 0
      %3894 = vmatprep.mubr.bf16.mxu0 0
      %3895 = vmatmul.mubr.bf16.gmra.mrb[0].mxu0 %v3830
      %v3896 = vpop.f32.mrb[0].mxu0
      %v3897 = vadd.f32 0.0, %v3896
      %v3898 = vpop.f32.mrb[0].mxu0
      %v3899 = vpop.f32.mrb[0].mxu0
      %v3900 = vadd.f32 0.0, %v3899
      %v3901 = vpop.f32.mrb[0].mxu0
      %3902 = vmatprep.mubr.bf16.mxu0 0
      %3903 = vmatmul.mubr.bf16.gmra.mrb[0].mxu0 %v3833
      %v3904 = vpop.f32.mrb[0].mxu0
      %v3905 = vadd.f32 0.0, %v3904
      %v3906 = vpop.f32.mrb[0].mxu0
      %v3907 = vpop.f32.mrb[0].mxu0
      %v3908 = vadd.f32 0.0, %v3907
      %v3909 = vpop.f32.mrb[0].mxu0
      %3910 = vmatprep.mubr.bf16.mxu0 0
      %3911 = vmatmul.mubr.bf16.gmra.mrb[0].mxu0 %v3836
      %v3912 = vpop.f32.mrb[0].mxu0
      %v3913 = vadd.f32 0.0, %v3912
      %v3914 = vpop.f32.mrb[0].mxu0
      %v3915 = vpop.f32.mrb[0].mxu0
      %v3916 = vadd.f32 0.0, %v3915
      %v3917 = vpop.f32.mrb[0].mxu0
      %3918 = vmatprep.mubr.bf16.mxu0 0
      %3919 = vmatmul.mubr.bf16.gmra.mrb[0].mxu0 %v3839
      %v3920 = vpop.f32.mrb[0].mxu0
      %v3921 = vadd.f32 0.0, %v3920
      %v3922 = vpop.f32.mrb[0].mxu0
      %v3923 = vpop.f32.mrb[0].mxu0
      %v3924 = vadd.f32 0.0, %v3923
      %v3925 = vpop.f32.mrb[0].mxu0
      %3926 = vmatprep.mubr.bf16.mxu0 0
      %3927 = vmatmul.mubr.bf16.gmra.mrb[0].mxu0 %v3842
      %v3928 = vpop.f32.mrb[0].mxu0
      %v3929 = vadd.f32 0.0, %v3928
      %v3930 = vpop.f32.mrb[0].mxu0
      %v3931 = vpop.f32.mrb[0].mxu0
      %v3932 = vadd.f32 0.0, %v3931
      %v3933 = vpop.f32.mrb[0].mxu0
      %3934 = vmatprep.mubr.bf16.mxu0 0
      %3935 = vmatmul.mubr.bf16.gmra.mrb[0].mxu0 %v3845
      %v3936 = vpop.f32.mrb[0].mxu0
      %v3937 = vadd.f32 0.0, %v3936
      %v3938 = vpop.f32.mrb[0].mxu0
      %v3939 = vpop.f32.mrb[0].mxu0
      %v3940 = vadd.f32 0.0, %v3939
      %v3941 = vpop.f32.mrb[0].mxu0
      %3942 = vmatprep.mubr.bf16.mxu0 0
      %3943 = vmatmul.mubr.bf16.gmra.mrb[0].mxu0 %v3848
      %v3944 = vpop.f32.mrb[0].mxu0
      %v3945 = vadd.f32 0.0, %v3944
      %v3946 = vpop.f32.mrb[0].mxu0
      %v3947 = vpop.f32.mrb[0].mxu0
      %v3948 = vadd.f32 0.0, %v3947
      %v3949 = vpop.f32.mrb[0].mxu0
      %3950 = vmatprep.mubr.bf16.mxu0 0
      %3951 = vmatmul.mubr.bf16.gmra.mrb[0].mxu0 %v3851
      %v3952 = vpop.f32.mrb[0].mxu0
      %v3953 = vadd.f32 0.0, %v3952
      %v3954 = vpop.f32.mrb[0].mxu0
      %v3955 = vpop.f32.mrb[0].mxu0
      %v3956 = vadd.f32 0.0, %v3955
      %v3957 = vpop.f32.mrb[0].mxu0
      %3958 = vmatprep.mubr.bf16.mxu0 0
      %3959 = vmatmul.mubr.bf16.gmra.mrb[0].mxu0 %v3854
      %v3960 = vpop.f32.mrb[0].mxu0
      %v3961 = vadd.f32 0.0, %v3960
      %v3962 = vpop.f32.mrb[0].mxu0
      %v3963 = vpop.f32.mrb[0].mxu0
      %v3964 = vadd.f32 0.0, %v3963
      %v3965 = vpop.f32.mrb[0].mxu0
      %3966 = vmatprep.mubr.bf16.mxu0 0
      %3967 = vmatmul.mubr.bf16.gmra.mrb[0].mxu0 %v3857
      %v3968 = vpop.f32.mrb[0].mxu0
      %v3969 = vadd.f32 0.0, %v3968
      %v3970 = vpop.f32.mrb[0].mxu0
      %v3971 = vpop.f32.mrb[0].mxu0
      %v3972 = vadd.f32 0.0, %v3971
      %v3973 = vpop.f32.mrb[0].mxu0
      %3974 = vdwg.mxu0
      %v3975 = vadd.f32 %v3668, %v3897
      %v3976 = vadd.f32 %v3669, %v3900
      %v3977 = vadd.f32 %v3670, %v3905
      %v3978 = vadd.f32 %v3671, %v3908
      %v3979 = vadd.f32 %v3672, %v3913
      %v3980 = vadd.f32 %v3673, %v3916
      %v3981 = vadd.f32 %v3674, %v3921
      %v3982 = vadd.f32 %v3675, %v3924
      %v3983 = vadd.f32 %v3676, %v3929
      %v3984 = vadd.f32 %v3677, %v3932
      %v3985 = vadd.f32 %v3678, %v3937
      %v3986 = vadd.f32 %v3679, %v3940
      %v3987 = vadd.f32 %v3680, %v3945
      %v3988 = vadd.f32 %v3681, %v3948
      %v3989 = vadd.f32 %v3682, %v3953
      %v3990 = vadd.f32 %v3683, %v3956
      %v3991 = vadd.f32 %v3684, %v3961
      %v3992 = vadd.f32 %v3685, %v3964
      %v3993 = vadd.f32 %v3686, %v3969
      %v3994 = vadd.f32 %v3687, %v3972
      %v3995 = vld [vmem:[%s4] sm:$0x1]
      %v3997 = vlaneseq
      %v3998 = vshrl.u32 %v3997, 7
      %v3999 = vsub.s32 0, %v3998
      %v4000 = vrot.slane %v3995, %v3999
      %v4002 = vadd.f32 %v3975, %v4000
      %v4003 = vadd.f32 %v3976, %v4000
      %v4004 = vadd.f32 %v3977, %v4000
      %v4005 = vadd.f32 %v3978, %v4000
      %v4006 = vadd.f32 %v3979, %v4000
      %v4007 = vadd.f32 %v3980, %v4000
      %v4008 = vadd.f32 %v3981, %v4000
      %v4009 = vadd.f32 %v3982, %v4000
      %v4010 = vadd.f32 %v3983, %v4000
      %v4011 = vadd.f32 %v3984, %v4000
      %v4012 = vadd.f32 %v3985, %v4000
      %v4013 = vadd.f32 %v3986, %v4000
      %v4014 = vadd.f32 %v3987, %v4000
      %v4015 = vadd.f32 %v3988, %v4000
      %v4016 = vadd.f32 %v3989, %v4000
      %v4017 = vadd.f32 %v3990, %v4000
      %v4018 = vadd.f32 %v3991, %v4000
      %v4019 = vadd.f32 %v3992, %v4000
      %v4020 = vadd.f32 %v3993, %v4000
      %v4021 = vadd.f32 %v3994, %v4000
      %v4022 = vmax.f32 %v4002, 0.0
      %v4023 = vmax.f32 %v4003, 0.0
      %v4024 = vmax.f32 %v4004, 0.0
      %v4025 = vmax.f32 %v4005, 0.0
      %v4026 = vmax.f32 %v4006, 0.0
      %v4027 = vmax.f32 %v4007, 0.0
      %v4028 = vmax.f32 %v4008, 0.0
      %v4029 = vmax.f32 %v4009, 0.0
      %v4030 = vmax.f32 %v4010, 0.0
      %v4031 = vmax.f32 %v4011, 0.0
      %v4032 = vmax.f32 %v4012, 0.0
      %v4033 = vmax.f32 %v4013, 0.0
      %v4034 = vmax.f32 %v4014, 0.0
      %v4035 = vmax.f32 %v4015, 0.0
      %v4036 = vmax.f32 %v4016, 0.0
      %v4037 = vmax.f32 %v4017, 0.0
      %v4038 = vmax.f32 %v4018, 0.0
      %v4039 = vmax.f32 %v4019, 0.0
      %v4040 = vmax.f32 %v4020, 0.0
      %v4041 = vmax.f32 %v4021, 0.0
      %v4042 = vld [vmem:[#allocation3] sm:$0x1]
      %v4043 = vsel %vm460, 0, %v4042
      %4044 = vst [vmem:[#allocation3] sm:$0x1] %v4043
      %v4045 = vld [vmem:[#allocation3 + $0xc] sm:$0x1]
      %v4046 = vsel %vm460, 0, %v4045
      %4047 = vst [vmem:[#allocation3 + $0xc] sm:$0x1] %v4046
      %v4048 = vld [vmem:[#allocation3 + $0x18] sm:$0x1]
      %v4049 = vsel %vm460, 0, %v4048
      %4050 = vst [vmem:[#allocation3 + $0x18] sm:$0x1] %v4049
      %v4051 = vld [vmem:[#allocation3 + $0x24] sm:$0x1]
      %v4052 = vsel %vm460, 0, %v4051
      %4053 = vst [vmem:[#allocation3 + $0x24] sm:$0x1] %v4052
      %v4054 = vld [vmem:[#allocation3 + $0x30] sm:$0x1]
      %v4055 = vsel %vm460, 0, %v4054
      %4056 = vst [vmem:[#allocation3 + $0x30] sm:$0x1] %v4055
      %v4057 = vld [vmem:[#allocation3 + $0x3c] sm:$0x1]
      %v4058 = vsel %vm460, 0, %v4057
      %4059 = vst [vmem:[#allocation3 + $0x3c] sm:$0x1] %v4058
      %v4060 = vld [vmem:[#allocation3 + $0x48] sm:$0x1]
      %v4061 = vsel %vm460, 0, %v4060
      %4062 = vst [vmem:[#allocation3 + $0x48] sm:$0x1] %v4061
      %v4063 = vld [vmem:[#allocation3 + $0x54] sm:$0x1]
      %v4064 = vsel %vm460, 0, %v4063
      %4065 = vst [vmem:[#allocation3 + $0x54] sm:$0x1] %v4064
      %v4066 = vld [vmem:[#allocation3 + $0x60] sm:$0x1]
      %v4067 = vsel %vm460, 0, %v4066
      %4068 = vst [vmem:[#allocation3 + $0x60] sm:$0x1] %v4067
      %v4069 = vld [vmem:[#allocation3 + $0x6c] sm:$0x1]
      %v4070 = vsel %vm460, 0, %v4069
      %4071 = vst [vmem:[#allocation3 + $0x6c] sm:$0x1] %v4070
      %v4072 = vld [vmem:[#allocation3 + $0x8] sm:$0x1]
      %v4073 = vsel %vm498, 0, %v4072
      %4074 = vst [vmem:[#allocation3 + $0x8] sm:$0x1] %v4073
      %v4075 = vld [vmem:[#allocation3 + $0x14] sm:$0x1]
      %v4076 = vsel %vm498, 0, %v4075
      %4077 = vst [vmem:[#allocation3 + $0x14] sm:$0x1] %v4076
      %v4078 = vld [vmem:[#allocation3 + $0x20] sm:$0x1]
      %v4079 = vsel %vm498, 0, %v4078
      %4080 = vst [vmem:[#allocation3 + $0x20] sm:$0x1] %v4079
      %v4081 = vld [vmem:[#allocation3 + $0x2c] sm:$0x1]
      %v4082 = vsel %vm498, 0, %v4081
      %4083 = vst [vmem:[#allocation3 + $0x2c] sm:$0x1] %v4082
      %v4084 = vld [vmem:[#allocation3 + $0x38] sm:$0x1]
      %v4085 = vsel %vm498, 0, %v4084
      %4086 = vst [vmem:[#allocation3 + $0x38] sm:$0x1] %v4085
      %v4087 = vld [vmem:[#allocation3 + $0x44] sm:$0x1]
      %v4088 = vsel %vm498, 0, %v4087
      %4089 = vst [vmem:[#allocation3 + $0x44] sm:$0x1] %v4088
      %v4090 = vld [vmem:[#allocation3 + $0x50] sm:$0x1]
      %v4091 = vsel %vm498, 0, %v4090
      %4092 = vst [vmem:[#allocation3 + $0x50] sm:$0x1] %v4091
      %v4093 = vld [vmem:[#allocation3 + $0x5c] sm:$0x1]
      %v4094 = vsel %vm498, 0, %v4093
      %4095 = vst [vmem:[#allocation3 + $0x5c] sm:$0x1] %v4094
      %v4096 = vld [vmem:[#allocation3 + $0x68] sm:$0x1]
      %v4097 = vsel %vm498, 0, %v4096
      %4098 = vst [vmem:[#allocation3 + $0x68] sm:$0x1] %v4097
      %v4099 = vld [vmem:[#allocation3 + $0x74] sm:$0x1]
      %v4100 = vsel %vm498, 0, %v4099
      %4101 = vst [vmem:[#allocation3 + $0x74] sm:$0x1] %v4100
      %v4102 = vpack.c.bf16 %v4023, %v4022
      %v4103 = vpack.c.bf16 %v4025, %v4024
      %v4104 = vpack.c.bf16 %v4027, %v4026
      %v4105 = vpack.c.bf16 %v4029, %v4028
      %v4106 = vpack.c.bf16 %v4031, %v4030
      %v4107 = vpack.c.bf16 %v4033, %v4032
      %v4108 = vpack.c.bf16 %v4035, %v4034
      %v4109 = vpack.c.bf16 %v4037, %v4036
      %v4110 = vpack.c.bf16 %v4039, %v4038
      %v4111 = vpack.c.bf16 %v4041, %v4040
      %v4122 = vunpack.c.l.b16 %v4102
      %v4123 = vunpack.c.h.b16 %v4102
      %v4124 = vunpack.c.l.b16 %v4103
      %v4125 = vunpack.c.h.b16 %v4103
      %v4126 = vunpack.c.l.b16 %v4104
      %v4127 = vunpack.c.h.b16 %v4104
      %v4128 = vunpack.c.l.b16 %v4105
      %v4129 = vunpack.c.h.b16 %v4105
      %v4130 = vunpack.c.l.b16 %v4106
      %v4131 = vunpack.c.h.b16 %v4106
      %v4132 = vunpack.c.l.b16 %v4107
      %v4133 = vunpack.c.h.b16 %v4107
      %v4134 = vunpack.c.l.b16 %v4108
      %v4135 = vunpack.c.h.b16 %v4108
      %v4136 = vunpack.c.l.b16 %v4109
      %v4137 = vunpack.c.h.b16 %v4109
      %v4138 = vunpack.c.l.b16 %v4110
      %v4139 = vunpack.c.h.b16 %v4110
      %v4140 = vunpack.c.l.b16 %v4111
      %v4141 = vunpack.c.h.b16 %v4111
      %v4142 = vpack.c.b16 %v4122, %v4122
      %v4143 = vpack.c.b16 %v4123, %v4123
      %v4144 = vpack.c.b16 %v4124, %v4124
      %v4145 = vpack.c.b16 %v4125, %v4125
      %v4146 = vpack.c.b16 %v4126, %v4126
      %v4147 = vpack.c.b16 %v4127, %v4127
      %v4148 = vpack.c.b16 %v4128, %v4128
      %v4149 = vpack.c.b16 %v4129, %v4129
      %v4150 = vpack.c.b16 %v4130, %v4130
      %v4151 = vpack.c.b16 %v4131, %v4131
      %v4152 = vpack.c.b16 %v4132, %v4132
      %v4153 = vpack.c.b16 %v4133, %v4133
      %v4154 = vpack.c.b16 %v4134, %v4134
      %v4155 = vpack.c.b16 %v4135, %v4135
      %v4156 = vpack.c.b16 %v4136, %v4136
      %v4157 = vpack.c.b16 %v4137, %v4137
      %v4158 = vpack.c.b16 %v4138, %v4138
      %v4159 = vpack.c.b16 %v4139, %v4139
      %v4160 = vpack.c.b16 %v4140, %v4140
      %v4161 = vpack.c.b16 %v4141, %v4141
      %v4163 = vshrl.u32 %v4142, 16
      %v4165 = vrot.slane %v4163, 7
      %v4166 = vshll.u32 %v4142, 16
      %v4168 = vor.u32 %v4165, %v4166
      %v4169 = vrot.slane %v4165, 4
      %v4171 = vshrl.u32 %v4143, 16
      %v4173 = vrot.slane %v4171, 7
      %v4174 = vshll.u32 %v4143, 16
      %v4176 = vor.u32 %v4173, %v4174
      %v4177 = vsel %vm600, %v4169, %v4176
      %v4178 = vrot.slane %v4173, 4
      %v4180 = vshrl.u32 %v4144, 16
      %v4182 = vrot.slane %v4180, 7
      %v4183 = vshll.u32 %v4144, 16
      %v4185 = vor.u32 %v4182, %v4183
      %v4186 = vrot.slane %v4182, 4
      %v4188 = vshrl.u32 %v4145, 16
      %v4190 = vrot.slane %v4188, 7
      %v4191 = vshll.u32 %v4145, 16
      %v4193 = vor.u32 %v4190, %v4191
      %v4194 = vsel %vm600, %v4186, %v4193
      %v4195 = vrot.slane %v4190, 4
      %v4197 = vshrl.u32 %v4146, 16
      %v4199 = vrot.slane %v4197, 7
      %v4200 = vshll.u32 %v4146, 16
      %v4202 = vor.u32 %v4199, %v4200
      %v4203 = vrot.slane %v4199, 4
      %v4205 = vshrl.u32 %v4147, 16
      %v4207 = vrot.slane %v4205, 7
      %v4208 = vshll.u32 %v4147, 16
      %v4210 = vor.u32 %v4207, %v4208
      %v4211 = vsel %vm600, %v4203, %v4210
      %v4212 = vrot.slane %v4207, 4
      %v4214 = vshrl.u32 %v4148, 16
      %v4216 = vrot.slane %v4214, 7
      %v4217 = vshll.u32 %v4148, 16
      %v4219 = vor.u32 %v4216, %v4217
      %v4220 = vrot.slane %v4216, 4
      %v4222 = vshrl.u32 %v4149, 16
      %v4224 = vrot.slane %v4222, 7
      %v4225 = vshll.u32 %v4149, 16
      %v4227 = vor.u32 %v4224, %v4225
      %v4228 = vsel %vm600, %v4220, %v4227
      %v4229 = vrot.slane %v4224, 4
      %v4231 = vshrl.u32 %v4150, 16
      %v4233 = vrot.slane %v4231, 7
      %v4234 = vshll.u32 %v4150, 16
      %v4236 = vor.u32 %v4233, %v4234
      %v4237 = vrot.slane %v4233, 4
      %v4239 = vshrl.u32 %v4151, 16
      %v4241 = vrot.slane %v4239, 7
      %v4242 = vshll.u32 %v4151, 16
      %v4244 = vor.u32 %v4241, %v4242
      %v4245 = vsel %vm600, %v4237, %v4244
      %v4246 = vrot.slane %v4241, 4
      %v4248 = vshrl.u32 %v4152, 16
      %v4250 = vrot.slane %v4248, 7
      %v4251 = vshll.u32 %v4152, 16
      %v4253 = vor.u32 %v4250, %v4251
      %v4254 = vrot.slane %v4250, 4
      %v4256 = vshrl.u32 %v4153, 16
      %v4258 = vrot.slane %v4256, 7
      %v4259 = vshll.u32 %v4153, 16
      %v4261 = vor.u32 %v4258, %v4259
      %v4262 = vsel %vm600, %v4254, %v4261
      %v4263 = vrot.slane %v4258, 4
      %v4265 = vshrl.u32 %v4154, 16
      %v4267 = vrot.slane %v4265, 7
      %v4268 = vshll.u32 %v4154, 16
      %v4270 = vor.u32 %v4267, %v4268
      %v4271 = vrot.slane %v4267, 4
      %v4273 = vshrl.u32 %v4155, 16
      %v4275 = vrot.slane %v4273, 7
      %v4276 = vshll.u32 %v4155, 16
      %v4278 = vor.u32 %v4275, %v4276
      %v4279 = vsel %vm600, %v4271, %v4278
      %v4280 = vrot.slane %v4275, 4
      %v4282 = vshrl.u32 %v4156, 16
      %v4284 = vrot.slane %v4282, 7
      %v4285 = vshll.u32 %v4156, 16
      %v4287 = vor.u32 %v4284, %v4285
      %v4288 = vrot.slane %v4284, 4
      %v4290 = vshrl.u32 %v4157, 16
      %v4292 = vrot.slane %v4290, 7
      %v4293 = vshll.u32 %v4157, 16
      %v4295 = vor.u32 %v4292, %v4293
      %v4296 = vsel %vm600, %v4288, %v4295
      %v4297 = vrot.slane %v4292, 4
      %v4299 = vshrl.u32 %v4158, 16
      %v4301 = vrot.slane %v4299, 7
      %v4302 = vshll.u32 %v4158, 16
      %v4304 = vor.u32 %v4301, %v4302
      %v4305 = vrot.slane %v4301, 4
      %v4307 = vshrl.u32 %v4159, 16
      %v4309 = vrot.slane %v4307, 7
      %v4310 = vshll.u32 %v4159, 16
      %v4312 = vor.u32 %v4309, %v4310
      %v4313 = vsel %vm600, %v4305, %v4312
      %v4314 = vrot.slane %v4309, 4
      %v4316 = vshrl.u32 %v4160, 16
      %v4318 = vrot.slane %v4316, 7
      %v4319 = vshll.u32 %v4160, 16
      %v4321 = vor.u32 %v4318, %v4319
      %v4322 = vrot.slane %v4318, 4
      %v4324 = vshrl.u32 %v4161, 16
      %v4326 = vrot.slane %v4324, 7
      %v4327 = vshll.u32 %v4161, 16
      %v4329 = vor.u32 %v4326, %v4327
      %v4330 = vsel %vm600, %v4322, %v4329
      %v4331 = vrot.slane %v4326, 4
      %v4362 = vld [vmem:[#allocation3] sm:$0xf]
      %v4363 = vsel %vm763, %v4168, %v4362
      %4364 = vst [vmem:[#allocation3] sm:$0xf] %v4363
      %4365 = vst.msk [vmem:[#allocation3 + $0x4] sm:$0xf] %vm767, %v4177
      %v4366 = vld [vmem:[#allocation3 + $0x8] sm:$0x1]
      %v4367 = vsel %vm460, %v4178, %v4366
      %4368 = vst [vmem:[#allocation3 + $0x8] sm:$0x1] %v4367
      %v4369 = vld [vmem:[#allocation3 + $0xc] sm:$0xf]
      %v4370 = vsel %vm763, %v4185, %v4369
      %4371 = vst [vmem:[#allocation3 + $0xc] sm:$0xf] %v4370
      %4372 = vst.msk [vmem:[#allocation3 + $0x10] sm:$0xf] %vm767, %v4194
      %v4373 = vld [vmem:[#allocation3 + $0x14] sm:$0x1]
      %v4374 = vsel %vm460, %v4195, %v4373
      %4375 = vst [vmem:[#allocation3 + $0x14] sm:$0x1] %v4374
      %v4376 = vld [vmem:[#allocation3 + $0x18] sm:$0xf]
      %v4377 = vsel %vm763, %v4202, %v4376
      %4378 = vst [vmem:[#allocation3 + $0x18] sm:$0xf] %v4377
      %4379 = vst.msk [vmem:[#allocation3 + $0x1c] sm:$0xf] %vm767, %v4211
      %v4380 = vld [vmem:[#allocation3 + $0x20] sm:$0x1]
      %v4381 = vsel %vm460, %v4212, %v4380
      %4382 = vst [vmem:[#allocation3 + $0x20] sm:$0x1] %v4381
      %v4383 = vld [vmem:[#allocation3 + $0x24] sm:$0xf]
      %v4384 = vsel %vm763, %v4219, %v4383
      %4385 = vst [vmem:[#allocation3 + $0x24] sm:$0xf] %v4384
      %4386 = vst.msk [vmem:[#allocation3 + $0x28] sm:$0xf] %vm767, %v4228
      %v4387 = vld [vmem:[#allocation3 + $0x2c] sm:$0x1]
      %v4388 = vsel %vm460, %v4229, %v4387
      %4389 = vst [vmem:[#allocation3 + $0x2c] sm:$0x1] %v4388
      %v4390 = vld [vmem:[#allocation3 + $0x30] sm:$0xf]
      %v4391 = vsel %vm763, %v4236, %v4390
      %4392 = vst [vmem:[#allocation3 + $0x30] sm:$0xf] %v4391
      %4393 = vst.msk [vmem:[#allocation3 + $0x34] sm:$0xf] %vm767, %v4245
      %v4394 = vld [vmem:[#allocation3 + $0x38] sm:$0x1]
      %v4395 = vsel %vm460, %v4246, %v4394
      %4396 = vst [vmem:[#allocation3 + $0x38] sm:$0x1] %v4395
      %v4397 = vld [vmem:[#allocation3 + $0x3c] sm:$0xf]
      %v4398 = vsel %vm763, %v4253, %v4397
      %4399 = vst [vmem:[#allocation3 + $0x3c] sm:$0xf] %v4398
      %4400 = vst.msk [vmem:[#allocation3 + $0x40] sm:$0xf] %vm767, %v4262
      %v4401 = vld [vmem:[#allocation3 + $0x44] sm:$0x1]
      %v4402 = vsel %vm460, %v4263, %v4401
      %4403 = vst [vmem:[#allocation3 + $0x44] sm:$0x1] %v4402
      %v4404 = vld [vmem:[#allocation3 + $0x48] sm:$0xf]
      %v4405 = vsel %vm763, %v4270, %v4404
      %4406 = vst [vmem:[#allocation3 + $0x48] sm:$0xf] %v4405
      %4407 = vst.msk [vmem:[#allocation3 + $0x4c] sm:$0xf] %vm767, %v4279
      %v4408 = vld [vmem:[#allocation3 + $0x50] sm:$0x1]
      %v4409 = vsel %vm460, %v4280, %v4408
      %4410 = vst [vmem:[#allocation3 + $0x50] sm:$0x1] %v4409
      %v4411 = vld [vmem:[#allocation3 + $0x54] sm:$0xf]
      %v4412 = vsel %vm763, %v4287, %v4411
      %4413 = vst [vmem:[#allocation3 + $0x54] sm:$0xf] %v4412
      %4414 = vst.msk [vmem:[#allocation3 + $0x58] sm:$0xf] %vm767, %v4296
      %v4415 = vld [vmem:[#allocation3 + $0x5c] sm:$0x1]
      %v4416 = vsel %vm460, %v4297, %v4415
      %4417 = vst [vmem:[#allocation3 + $0x5c] sm:$0x1] %v4416
      %v4418 = vld [vmem:[#allocation3 + $0x60] sm:$0xf]
      %v4419 = vsel %vm763, %v4304, %v4418
      %4420 = vst [vmem:[#allocation3 + $0x60] sm:$0xf] %v4419
      %4421 = vst.msk [vmem:[#allocation3 + $0x64] sm:$0xf] %vm767, %v4313
      %v4422 = vld [vmem:[#allocation3 + $0x68] sm:$0x1]
      %v4423 = vsel %vm460, %v4314, %v4422
      %4424 = vst [vmem:[#allocation3 + $0x68] sm:$0x1] %v4423
      %v4425 = vld [vmem:[#allocation3 + $0x6c] sm:$0xf]
      %v4426 = vsel %vm763, %v4321, %v4425
      %4427 = vst [vmem:[#allocation3 + $0x6c] sm:$0xf] %v4426
      %4428 = vst.msk [vmem:[#allocation3 + $0x70] sm:$0xf] %vm767, %v4330
      %v4429 = vld [vmem:[#allocation3 + $0x74] sm:$0x1]
      %v4430 = vsel %vm460, %v4331, %v4429
      %4431 = vst [vmem:[#allocation3 + $0x74] sm:$0x1] %v4430
      // Predicated region
      $region65: #{tpu_custom_call.1} parent=47 // pred_check
        %p4432 = pneg %p895
      $region66: #{tpu_custom_call.1} parent=47 // pred_check_branch
        %4434 = sbr.rel (%p4432) target = $region68
      $region67: #{tpu_custom_call.1} parent=47 // pred_region
        %4435 = vst.msk [vmem:[#allocation3] sm:$0xf] %vm767, 0
        %4436 = vst.msk [vmem:[#allocation3 + $0x4] sm:$0xf] %vm767, 0
        %vm4437 = vcmask 24576
        %4438 = vst.msk [vmem:[#allocation3 + $0x8] sm:$0x1] %vm4437, 0
      $region68: #{tpu_custom_call.1} parent=47 // pred_fallthru
        _
      // Predicated region
      $region69: #{tpu_custom_call.1} parent=47 // pred_check
        %p4439 = pneg %p988
      $region70: #{tpu_custom_call.1} parent=47 // pred_check_branch
        %4441 = sbr.rel (%p4439) target = $region72
      $region71: #{tpu_custom_call.1} parent=47 // pred_region
        %s4442 = scalar_lea.vmem [#allocation3], 108
        %4443 = vst.msk [vmem:[%s4442] sm:$0xf] %vm767, 0
        %4444 = vst.msk [vmem:[%s4442 + $0x4] sm:$0xf] %vm767, 0
        %vm4445 = vcmask 24576
        %4446 = vst.msk [vmem:[%s4442 + $0x8] sm:$0x1] %vm4445, 0
      $region72: #{tpu_custom_call.1} parent=47 // pred_fallthru
        _
      %v4447 = vld [vmem:[#allocation3] sm:$0xf]
      %v4448 = vld [vmem:[#allocation3 + $0x4] sm:$0xf]
      %v4449 = vld [vmem:[#allocation3 + $0xc] sm:$0xf]
      %v4450 = vld [vmem:[#allocation3 + $0x10] sm:$0xf]
      %v4451 = vld [vmem:[#allocation3 + $0x18] sm:$0xf]
      %v4452 = vld [vmem:[#allocation3 + $0x1c] sm:$0xf]
      %v4453 = vld [vmem:[#allocation3 + $0x24] sm:$0xf]
      %v4454 = vld [vmem:[#allocation3 + $0x28] sm:$0xf]
      %v4455 = vld [vmem:[#allocation3 + $0x30] sm:$0xf]
      %v4456 = vld [vmem:[#allocation3 + $0x34] sm:$0xf]
      %v4457 = vld [vmem:[#allocation3 + $0x3c] sm:$0xf]
      %v4458 = vld [vmem:[#allocation3 + $0x40] sm:$0xf]
      %v4459 = vld [vmem:[#allocation3 + $0x48] sm:$0xf]
      %v4460 = vld [vmem:[#allocation3 + $0x4c] sm:$0xf]
      %v4461 = vld [vmem:[#allocation3 + $0x54] sm:$0xf]
      %v4462 = vld [vmem:[#allocation3 + $0x58] sm:$0xf]
      %v4463 = vld [vmem:[%s5] sm:$0x3]
      %v4464 = vld [vmem:[#allocation3 + $0x8] sm:$0x1]
      %v4465 = vld [vmem:[#allocation3 + $0x14] sm:$0x1]
      %v4466 = vld [vmem:[#allocation3 + $0x20] sm:$0x1]
      %v4467 = vld [vmem:[#allocation3 + $0x2c] sm:$0x1]
      %v4468 = vld [vmem:[#allocation3 + $0x38] sm:$0x1]
      %v4469 = vld [vmem:[#allocation3 + $0x44] sm:$0x1]
      %v4470 = vld [vmem:[#allocation3 + $0x50] sm:$0x1]
      %v4471 = vld [vmem:[#allocation3 + $0x5c] sm:$0x1]
      %v4473 = vshrl.u32 %v4447, 16
      %v4475 = vrot.slane %v4473, 4
      %v4476 = vshll.u32 %v4447, 16
      %v4478 = vrot.slane %v4476, 5
      %v4479 = vor.u32 %v4475, %v4478
      %v4480 = vrot.slane %v4479, 4
      %v4482 = vshll.u32 %v4448, 16
      %v4484 = vrot.slane %v4482, 5
      %v4485 = vsel %vm1040, %v4480, %v4484
      %v4486 = vshrl.u32 %v4448, 16
      %v4488 = vrot.slane %v4486, 4
      %v4489 = vor.u32 %v4488, %v4484
      %v4490 = vrot.slane %v4489, 4
      %v4492 = vshll.u32 %v4464, 16
      %v4494 = vrot.slane %v4492, 5
      %v4495 = vsel %vm1040, %v4490, %v4494
      %v4497 = vshrl.u32 %v4449, 16
      %v4499 = vrot.slane %v4497, 4
      %v4500 = vshll.u32 %v4449, 16
      %v4502 = vrot.slane %v4500, 5
      %v4503 = vor.u32 %v4499, %v4502
      %v4504 = vrot.slane %v4503, 4
      %v4506 = vshll.u32 %v4450, 16
      %v4508 = vrot.slane %v4506, 5
      %v4509 = vsel %vm1040, %v4504, %v4508
      %v4510 = vshrl.u32 %v4450, 16
      %v4512 = vrot.slane %v4510, 4
      %v4513 = vor.u32 %v4512, %v4508
      %v4514 = vrot.slane %v4513, 4
      %v4516 = vshll.u32 %v4465, 16
      %v4518 = vrot.slane %v4516, 5
      %v4519 = vsel %vm1040, %v4514, %v4518
      %v4521 = vshrl.u32 %v4451, 16
      %v4523 = vrot.slane %v4521, 4
      %v4524 = vshll.u32 %v4451, 16
      %v4526 = vrot.slane %v4524, 5
      %v4527 = vor.u32 %v4523, %v4526
      %v4528 = vrot.slane %v4527, 4
      %v4530 = vshll.u32 %v4452, 16
      %v4532 = vrot.slane %v4530, 5
      %v4533 = vsel %vm1040, %v4528, %v4532
      %v4534 = vshrl.u32 %v4452, 16
      %v4536 = vrot.slane %v4534, 4
      %v4537 = vor.u32 %v4536, %v4532
      %v4538 = vrot.slane %v4537, 4
      %v4540 = vshll.u32 %v4466, 16
      %v4542 = vrot.slane %v4540, 5
      %v4543 = vsel %vm1040, %v4538, %v4542
      %v4545 = vshrl.u32 %v4453, 16
      %v4547 = vrot.slane %v4545, 4
      %v4548 = vshll.u32 %v4453, 16
      %v4550 = vrot.slane %v4548, 5
      %v4551 = vor.u32 %v4547, %v4550
      %v4552 = vrot.slane %v4551, 4
      %v4554 = vshll.u32 %v4454, 16
      %v4556 = vrot.slane %v4554, 5
      %v4557 = vsel %vm1040, %v4552, %v4556
      %v4558 = vshrl.u32 %v4454, 16
      %v4560 = vrot.slane %v4558, 4
      %v4561 = vor.u32 %v4560, %v4556
      %v4562 = vrot.slane %v4561, 4
      %v4564 = vshll.u32 %v4467, 16
      %v4566 = vrot.slane %v4564, 5
      %v4567 = vsel %vm1040, %v4562, %v4566
      %v4569 = vshrl.u32 %v4455, 16
      %v4571 = vrot.slane %v4569, 4
      %v4572 = vshll.u32 %v4455, 16
      %v4574 = vrot.slane %v4572, 5
      %v4575 = vor.u32 %v4571, %v4574
      %v4576 = vrot.slane %v4575, 4
      %v4578 = vshll.u32 %v4456, 16
      %v4580 = vrot.slane %v4578, 5
      %v4581 = vsel %vm1040, %v4576, %v4580
      %v4582 = vshrl.u32 %v4456, 16
      %v4584 = vrot.slane %v4582, 4
      %v4585 = vor.u32 %v4584, %v4580
      %v4586 = vrot.slane %v4585, 4
      %v4588 = vshll.u32 %v4468, 16
      %v4590 = vrot.slane %v4588, 5
      %v4591 = vsel %vm1040, %v4586, %v4590
      %v4593 = vshrl.u32 %v4457, 16
      %v4595 = vrot.slane %v4593, 4
      %v4596 = vshll.u32 %v4457, 16
      %v4598 = vrot.slane %v4596, 5
      %v4599 = vor.u32 %v4595, %v4598
      %v4600 = vrot.slane %v4599, 4
      %v4602 = vshll.u32 %v4458, 16
      %v4604 = vrot.slane %v4602, 5
      %v4605 = vsel %vm1040, %v4600, %v4604
      %v4606 = vshrl.u32 %v4458, 16
      %v4608 = vrot.slane %v4606, 4
      %v4609 = vor.u32 %v4608, %v4604
      %v4610 = vrot.slane %v4609, 4
      %v4612 = vshll.u32 %v4469, 16
      %v4614 = vrot.slane %v4612, 5
      %v4615 = vsel %vm1040, %v4610, %v4614
      %v4617 = vshrl.u32 %v4459, 16
      %v4619 = vrot.slane %v4617, 4
      %v4620 = vshll.u32 %v4459, 16
      %v4622 = vrot.slane %v4620, 5
      %v4623 = vor.u32 %v4619, %v4622
      %v4624 = vrot.slane %v4623, 4
      %v4626 = vshll.u32 %v4460, 16
      %v4628 = vrot.slane %v4626, 5
      %v4629 = vsel %vm1040, %v4624, %v4628
      %v4630 = vshrl.u32 %v4460, 16
      %v4632 = vrot.slane %v4630, 4
      %v4633 = vor.u32 %v4632, %v4628
      %v4634 = vrot.slane %v4633, 4
      %v4636 = vshll.u32 %v4470, 16
      %v4638 = vrot.slane %v4636, 5
      %v4639 = vsel %vm1040, %v4634, %v4638
      %v4641 = vshrl.u32 %v4461, 16
      %v4643 = vrot.slane %v4641, 4
      %v4644 = vshll.u32 %v4461, 16
      %v4646 = vrot.slane %v4644, 5
      %v4647 = vor.u32 %v4643, %v4646
      %v4648 = vrot.slane %v4647, 4
      %v4650 = vshll.u32 %v4462, 16
      %v4652 = vrot.slane %v4650, 5
      %v4653 = vsel %vm1040, %v4648, %v4652
      %v4654 = vshrl.u32 %v4462, 16
      %v4656 = vrot.slane %v4654, 4
      %v4657 = vor.u32 %v4656, %v4652
      %v4658 = vrot.slane %v4657, 4
      %v4660 = vshll.u32 %v4471, 16
      %v4662 = vrot.slane %v4660, 5
      %v4663 = vsel %vm1040, %v4658, %v4662
      %v4664 = vld [vmem:[%s5] sm:$0xc]
      %v4665 = vunpack.c.l.b16 %v4485
      %v4666 = vunpack.c.l.b16 %v4495
      %v4667 = vunpack.c.l.b16 %v4509
      %v4668 = vunpack.c.l.b16 %v4519
      %v4669 = vunpack.c.l.b16 %v4533
      %v4670 = vunpack.c.l.b16 %v4543
      %v4671 = vunpack.c.l.b16 %v4557
      %v4672 = vunpack.c.l.b16 %v4567
      %v4673 = vunpack.c.l.b16 %v4581
      %v4674 = vunpack.c.l.b16 %v4591
      %v4675 = vunpack.c.l.b16 %v4605
      %v4676 = vunpack.c.l.b16 %v4615
      %v4677 = vunpack.c.l.b16 %v4629
      %v4678 = vunpack.c.l.b16 %v4639
      %v4679 = vunpack.c.l.b16 %v4653
      %v4680 = vunpack.c.l.b16 %v4663
      %v4681 = vpack.c.b16 %v4666, %v4665
      %v4682 = vpack.c.b16 %v4668, %v4667
      %v4683 = vpack.c.b16 %v4670, %v4669
      %v4684 = vpack.c.b16 %v4672, %v4671
      %v4685 = vpack.c.b16 %v4674, %v4673
      %v4686 = vpack.c.b16 %v4676, %v4675
      %v4687 = vpack.c.b16 %v4678, %v4677
      %v4688 = vpack.c.b16 %v4680, %v4679
      %v4690 = vunpack.c.l.b16 %v4664
      %v4691 = vpack.c.b16 %v4690, %v4690
      %v4692 = vrot.slane %v4691, 2
      %v4694 = vsel %vm1316, %v4681, 0
      %v4697 = vsel %vm1316, %v4682, 0
      %v4700 = vsel %vm1316, %v4683, 0
      %v4703 = vsel %vm1316, %v4684, 0
      %v4706 = vsel %vm1316, %v4685, 0
      %v4709 = vsel %vm1316, %v4686, 0
      %v4712 = vsel %vm1316, %v4687, 0
      %v4715 = vsel %vm1316, %v4688, 0
      %v4718 = vsel %vm1347, %v4692, 0
      %4720 = vmatprep.subr.bf16.mxu0 0
      %4721 = vmatpush1.bf16.msra.mxu0 %v4718
      %4722 = vmatprep.subr.bf16.mxu0 0
      %4723 = vmatpush1.bf16.msra.mxu0 0
      %4724 = vmatprep.subr.bf16.mxu0 0
      %4725 = vmatpush1.bf16.msra.mxu0 0
      %4726 = vmatprep.subr.bf16.mxu0 0
      %4727 = vmatpush1.bf16.msra.mxu0 0
      %4728 = vmatprep.subr.bf16.mxu0 0
      %4729 = vmatpush1.bf16.msra.mxu0 0
      %4730 = vmatprep.subr.bf16.mxu0 0
      %4731 = vmatpush1.bf16.msra.mxu0 0
      %4732 = vmatprep.subr.bf16.mxu0 0
      %4733 = vmatpush1.bf16.msra.mxu0 0
      %4734 = vmatprep.subr.bf16.mxu0 0
      %4735 = vmatpush1.bf16.msra.mxu0 0
      %4736 = vmatprep.subr.bf16.mxu0 0
      %4737 = vmatpush1.bf16.msra.mxu0 0
      %4738 = vmatprep.subr.bf16.mxu0 0
      %4739 = vmatpush1.bf16.msra.mxu0 0
      %4740 = vmatprep.subr.bf16.mxu0 0
      %4741 = vmatpush1.bf16.msra.mxu0 0
      %4742 = vmatprep.subr.bf16.mxu0 0
      %4743 = vmatpush1.bf16.msra.mxu0 0
      %4744 = vmatprep.subr.bf16.mxu0 0
      %4745 = vmatpush1.bf16.msra.mxu0 0
      %4746 = vmatprep.subr.bf16.mxu0 0
      %4747 = vmatpush1.bf16.msra.mxu0 0
      %4748 = vmatprep.subr.bf16.mxu0 0
      %4749 = vmatpush1.bf16.msra.mxu0 0
      %4750 = vmatprep.subr.bf16.mxu0 0
      %4751 = vmatpush1.bf16.msra.mxu0 0
      %4752 = vmatprep.mubr.bf16.mxu0 0
      %4753 = vmatmul.mubr.bf16.gmra.mrb[0].mxu0 %v4694
      %v4754 = vpop.f32.mrb[0].mxu0
      %v4755 = vadd.f32 0.0, %v4754
      %v4756 = vpop.f32.mrb[0].mxu0
      %v4757 = vpop.f32.mrb[0].mxu0
      %v4758 = vadd.f32 0.0, %v4757
      %v4759 = vpop.f32.mrb[0].mxu0
      %4760 = vmatprep.mubr.bf16.mxu0 0
      %4761 = vmatmul.mubr.bf16.gmra.mrb[0].mxu0 %v4697
      %v4762 = vpop.f32.mrb[0].mxu0
      %v4763 = vadd.f32 0.0, %v4762
      %v4764 = vpop.f32.mrb[0].mxu0
      %v4765 = vpop.f32.mrb[0].mxu0
      %v4766 = vadd.f32 0.0, %v4765
      %v4767 = vpop.f32.mrb[0].mxu0
      %4768 = vmatprep.mubr.bf16.mxu0 0
      %4769 = vmatmul.mubr.bf16.gmra.mrb[0].mxu0 %v4700
      %v4770 = vpop.f32.mrb[0].mxu0
      %v4771 = vadd.f32 0.0, %v4770
      %v4772 = vpop.f32.mrb[0].mxu0
      %v4773 = vpop.f32.mrb[0].mxu0
      %v4774 = vadd.f32 0.0, %v4773
      %v4775 = vpop.f32.mrb[0].mxu0
      %4776 = vmatprep.mubr.bf16.mxu0 0
      %4777 = vmatmul.mubr.bf16.gmra.mrb[0].mxu0 %v4703
      %v4778 = vpop.f32.mrb[0].mxu0
      %v4779 = vadd.f32 0.0, %v4778
      %v4780 = vpop.f32.mrb[0].mxu0
      %v4781 = vpop.f32.mrb[0].mxu0
      %v4782 = vadd.f32 0.0, %v4781
      %v4783 = vpop.f32.mrb[0].mxu0
      %4784 = vmatprep.mubr.bf16.mxu0 0
      %4785 = vmatmul.mubr.bf16.gmra.mrb[0].mxu0 %v4706
      %v4786 = vpop.f32.mrb[0].mxu0
      %v4787 = vadd.f32 0.0, %v4786
      %v4788 = vpop.f32.mrb[0].mxu0
      %v4789 = vpop.f32.mrb[0].mxu0
      %v4790 = vadd.f32 0.0, %v4789
      %v4791 = vpop.f32.mrb[0].mxu0
      %4792 = vmatprep.mubr.bf16.mxu0 0
      %4793 = vmatmul.mubr.bf16.gmra.mrb[0].mxu0 %v4709
      %v4794 = vpop.f32.mrb[0].mxu0
      %v4795 = vadd.f32 0.0, %v4794
      %v4796 = vpop.f32.mrb[0].mxu0
      %v4797 = vpop.f32.mrb[0].mxu0
      %v4798 = vadd.f32 0.0, %v4797
      %v4799 = vpop.f32.mrb[0].mxu0
      %4800 = vmatprep.mubr.bf16.mxu0 0
      %4801 = vmatmul.mubr.bf16.gmra.mrb[0].mxu0 %v4712
      %v4802 = vpop.f32.mrb[0].mxu0
      %v4803 = vadd.f32 0.0, %v4802
      %v4804 = vpop.f32.mrb[0].mxu0
      %v4805 = vpop.f32.mrb[0].mxu0
      %v4806 = vadd.f32 0.0, %v4805
      %v4807 = vpop.f32.mrb[0].mxu0
      %4808 = vmatprep.mubr.bf16.mxu0 0
      %4809 = vmatmul.mubr.bf16.gmra.mrb[0].mxu0 %v4715
      %v4810 = vpop.f32.mrb[0].mxu0
      %v4811 = vadd.f32 0.0, %v4810
      %v4812 = vpop.f32.mrb[0].mxu0
      %v4813 = vpop.f32.mrb[0].mxu0
      %v4814 = vadd.f32 0.0, %v4813
      %v4815 = vpop.f32.mrb[0].mxu0
      %4816 = vdwg.mxu0
      %v4833 = vunpack.c.l.b16 %v4447
      %v4834 = vunpack.c.l.b16 %v4448
      %v4835 = vunpack.c.l.b16 %v4449
      %v4836 = vunpack.c.l.b16 %v4450
      %v4837 = vunpack.c.l.b16 %v4451
      %v4838 = vunpack.c.l.b16 %v4452
      %v4839 = vunpack.c.l.b16 %v4453
      %v4840 = vunpack.c.l.b16 %v4454
      %v4841 = vunpack.c.l.b16 %v4455
      %v4842 = vunpack.c.l.b16 %v4456
      %v4843 = vunpack.c.l.b16 %v4457
      %v4844 = vunpack.c.l.b16 %v4458
      %v4845 = vunpack.c.l.b16 %v4459
      %v4846 = vunpack.c.l.b16 %v4460
      %v4847 = vunpack.c.l.b16 %v4461
      %v4848 = vunpack.c.l.b16 %v4462
      %v4849 = vpack.c.b16 %v4834, %v4833
      %v4850 = vpack.c.b16 %v4836, %v4835
      %v4851 = vpack.c.b16 %v4838, %v4837
      %v4852 = vpack.c.b16 %v4840, %v4839
      %v4853 = vpack.c.b16 %v4842, %v4841
      %v4854 = vpack.c.b16 %v4844, %v4843
      %v4855 = vpack.c.b16 %v4846, %v4845
      %v4856 = vpack.c.b16 %v4848, %v4847
      %v4858 = vsel %vm1316, %v4849, 0
      %v4861 = vsel %vm1316, %v4850, 0
      %v4864 = vsel %vm1316, %v4851, 0
      %v4867 = vsel %vm1316, %v4852, 0
      %v4870 = vsel %vm1316, %v4853, 0
      %v4873 = vsel %vm1316, %v4854, 0
      %v4876 = vsel %vm1316, %v4855, 0
      %v4879 = vsel %vm1316, %v4856, 0
      %v4882 = vsel %vm1347, %v4463, 0
      %4884 = vmatprep.subr.bf16.mxu0 0
      %4885 = vmatpush1.bf16.msra.mxu0 %v4882
      %4886 = vmatprep.subr.bf16.mxu0 0
      %4887 = vmatpush1.bf16.msra.mxu0 0
      %4888 = vmatprep.subr.bf16.mxu0 0
      %4889 = vmatpush1.bf16.msra.mxu0 0
      %4890 = vmatprep.subr.bf16.mxu0 0
      %4891 = vmatpush1.bf16.msra.mxu0 0
      %4892 = vmatprep.subr.bf16.mxu0 0
      %4893 = vmatpush1.bf16.msra.mxu0 0
      %4894 = vmatprep.subr.bf16.mxu0 0
      %4895 = vmatpush1.bf16.msra.mxu0 0
      %4896 = vmatprep.subr.bf16.mxu0 0
      %4897 = vmatpush1.bf16.msra.mxu0 0
      %4898 = vmatprep.subr.bf16.mxu0 0
      %4899 = vmatpush1.bf16.msra.mxu0 0
      %4900 = vmatprep.subr.bf16.mxu0 0
      %4901 = vmatpush1.bf16.msra.mxu0 0
      %4902 = vmatprep.subr.bf16.mxu0 0
      %4903 = vmatpush1.bf16.msra.mxu0 0
      %4904 = vmatprep.subr.bf16.mxu0 0
      %4905 = vmatpush1.bf16.msra.mxu0 0
      %4906 = vmatprep.subr.bf16.mxu0 0
      %4907 = vmatpush1.bf16.msra.mxu0 0
      %4908 = vmatprep.subr.bf16.mxu0 0
      %4909 = vmatpush1.bf16.msra.mxu0 0
      %4910 = vmatprep.subr.bf16.mxu0 0
      %4911 = vmatpush1.bf16.msra.mxu0 0
      %4912 = vmatprep.subr.bf16.mxu0 0
      %4913 = vmatpush1.bf16.msra.mxu0 0
      %4914 = vmatprep.subr.bf16.mxu0 0
      %4915 = vmatpush1.bf16.msra.mxu0 0
      %4916 = vmatprep.mubr.bf16.mxu0 0
      %4917 = vmatmul.mubr.bf16.gmra.mrb[0].mxu0 %v4858
      %v4918 = vpop.f32.mrb[0].mxu0
      %v4919 = vadd.f32 %v4755, %v4918
      %v4920 = vpop.f32.mrb[0].mxu0
      %v4921 = vpop.f32.mrb[0].mxu0
      %v4922 = vadd.f32 %v4758, %v4921
      %v4923 = vpop.f32.mrb[0].mxu0
      %4924 = vmatprep.mubr.bf16.mxu0 0
      %4925 = vmatmul.mubr.bf16.gmra.mrb[0].mxu0 %v4861
      %v4926 = vpop.f32.mrb[0].mxu0
      %v4927 = vadd.f32 %v4763, %v4926
      %v4928 = vpop.f32.mrb[0].mxu0
      %v4929 = vpop.f32.mrb[0].mxu0
      %v4930 = vadd.f32 %v4766, %v4929
      %v4931 = vpop.f32.mrb[0].mxu0
      %4932 = vmatprep.mubr.bf16.mxu0 0
      %4933 = vmatmul.mubr.bf16.gmra.mrb[0].mxu0 %v4864
      %v4934 = vpop.f32.mrb[0].mxu0
      %v4935 = vadd.f32 %v4771, %v4934
      %v4936 = vpop.f32.mrb[0].mxu0
      %v4937 = vpop.f32.mrb[0].mxu0
      %v4938 = vadd.f32 %v4774, %v4937
      %v4939 = vpop.f32.mrb[0].mxu0
      %4940 = vmatprep.mubr.bf16.mxu0 0
      %4941 = vmatmul.mubr.bf16.gmra.mrb[0].mxu0 %v4867
      %v4942 = vpop.f32.mrb[0].mxu0
      %v4943 = vadd.f32 %v4779, %v4942
      %v4944 = vpop.f32.mrb[0].mxu0
      %v4945 = vpop.f32.mrb[0].mxu0
      %v4946 = vadd.f32 %v4782, %v4945
      %v4947 = vpop.f32.mrb[0].mxu0
      %4948 = vmatprep.mubr.bf16.mxu0 0
      %4949 = vmatmul.mubr.bf16.gmra.mrb[0].mxu0 %v4870
      %v4950 = vpop.f32.mrb[0].mxu0
      %v4951 = vadd.f32 %v4787, %v4950
      %v4952 = vpop.f32.mrb[0].mxu0
      %v4953 = vpop.f32.mrb[0].mxu0
      %v4954 = vadd.f32 %v4790, %v4953
      %v4955 = vpop.f32.mrb[0].mxu0
      %4956 = vmatprep.mubr.bf16.mxu0 0
      %4957 = vmatmul.mubr.bf16.gmra.mrb[0].mxu0 %v4873
      %v4958 = vpop.f32.mrb[0].mxu0
      %v4959 = vadd.f32 %v4795, %v4958
      %v4960 = vpop.f32.mrb[0].mxu0
      %v4961 = vpop.f32.mrb[0].mxu0
      %v4962 = vadd.f32 %v4798, %v4961
      %v4963 = vpop.f32.mrb[0].mxu0
      %4964 = vmatprep.mubr.bf16.mxu0 0
      %4965 = vmatmul.mubr.bf16.gmra.mrb[0].mxu0 %v4876
      %v4966 = vpop.f32.mrb[0].mxu0
      %v4967 = vadd.f32 %v4803, %v4966
      %v4968 = vpop.f32.mrb[0].mxu0
      %v4969 = vpop.f32.mrb[0].mxu0
      %v4970 = vadd.f32 %v4806, %v4969
      %v4971 = vpop.f32.mrb[0].mxu0
      %4972 = vmatprep.mubr.bf16.mxu0 0
      %4973 = vmatmul.mubr.bf16.gmra.mrb[0].mxu0 %v4879
      %v4974 = vpop.f32.mrb[0].mxu0
      %v4975 = vadd.f32 %v4811, %v4974
      %v4976 = vpop.f32.mrb[0].mxu0
      %v4977 = vpop.f32.mrb[0].mxu0
      %v4978 = vadd.f32 %v4814, %v4977
      %v4979 = vpop.f32.mrb[0].mxu0
      %4980 = vdwg.mxu0
      %v4981 = vld [vmem:[#allocation3] sm:$0xe]
      %v4982 = vld [vmem:[#allocation3 + $0xc] sm:$0xe]
      %v4983 = vld [vmem:[#allocation3 + $0x18] sm:$0xe]
      %v4984 = vld [vmem:[#allocation3 + $0x24] sm:$0xe]
      %v4985 = vld [vmem:[#allocation3 + $0x30] sm:$0xe]
      %v4986 = vld [vmem:[#allocation3 + $0x3c] sm:$0xe]
      %v4987 = vld [vmem:[#allocation3 + $0x48] sm:$0xe]
      %v4988 = vld [vmem:[#allocation3 + $0x54] sm:$0xe]
      %v5005 = vrot.slane %v4981, 5
      %v5006 = vrot.slane %v5005, 4
      %v5007 = vrot.slane %v4448, 5
      %v5008 = vsel %vm1692, %v5006, %v5007
      %v5009 = vrot.slane %v5007, 4
      %v5010 = vrot.slane %v4464, 5
      %v5011 = vsel %vm1692, %v5009, %v5010
      %v5012 = vrot.slane %v4982, 5
      %v5013 = vrot.slane %v5012, 4
      %v5014 = vrot.slane %v4450, 5
      %v5015 = vsel %vm1692, %v5013, %v5014
      %v5016 = vrot.slane %v5014, 4
      %v5017 = vrot.slane %v4465, 5
      %v5018 = vsel %vm1692, %v5016, %v5017
      %v5019 = vrot.slane %v4983, 5
      %v5020 = vrot.slane %v5019, 4
      %v5021 = vrot.slane %v4452, 5
      %v5022 = vsel %vm1692, %v5020, %v5021
      %v5023 = vrot.slane %v5021, 4
      %v5024 = vrot.slane %v4466, 5
      %v5025 = vsel %vm1692, %v5023, %v5024
      %v5026 = vrot.slane %v4984, 5
      %v5027 = vrot.slane %v5026, 4
      %v5028 = vrot.slane %v4454, 5
      %v5029 = vsel %vm1692, %v5027, %v5028
      %v5030 = vrot.slane %v5028, 4
      %v5031 = vrot.slane %v4467, 5
      %v5032 = vsel %vm1692, %v5030, %v5031
      %v5033 = vrot.slane %v4985, 5
      %v5034 = vrot.slane %v5033, 4
      %v5035 = vrot.slane %v4456, 5
      %v5036 = vsel %vm1692, %v5034, %v5035
      %v5037 = vrot.slane %v5035, 4
      %v5038 = vrot.slane %v4468, 5
      %v5039 = vsel %vm1692, %v5037, %v5038
      %v5040 = vrot.slane %v4986, 5
      %v5041 = vrot.slane %v5040, 4
      %v5042 = vrot.slane %v4458, 5
      %v5043 = vsel %vm1692, %v5041, %v5042
      %v5044 = vrot.slane %v5042, 4
      %v5045 = vrot.slane %v4469, 5
      %v5046 = vsel %vm1692, %v5044, %v5045
      %v5047 = vrot.slane %v4987, 5
      %v5048 = vrot.slane %v5047, 4
      %v5049 = vrot.slane %v4460, 5
      %v5050 = vsel %vm1692, %v5048, %v5049
      %v5051 = vrot.slane %v5049, 4
      %v5052 = vrot.slane %v4470, 5
      %v5053 = vsel %vm1692, %v5051, %v5052
      %v5054 = vrot.slane %v4988, 5
      %v5055 = vrot.slane %v5054, 4
      %v5056 = vrot.slane %v4462, 5
      %v5057 = vsel %vm1692, %v5055, %v5056
      %v5058 = vrot.slane %v5056, 4
      %v5059 = vrot.slane %v4471, 5
      %v5060 = vsel %vm1692, %v5058, %v5059
      %v5061 = vld [vmem:[%s5 + $0x4] sm:$0x3]
      %v5062 = vunpack.c.l.b16 %v5008
      %v5063 = vunpack.c.l.b16 %v5011
      %v5064 = vunpack.c.l.b16 %v5015
      %v5065 = vunpack.c.l.b16 %v5018
      %v5066 = vunpack.c.l.b16 %v5022
      %v5067 = vunpack.c.l.b16 %v5025
      %v5068 = vunpack.c.l.b16 %v5029
      %v5069 = vunpack.c.l.b16 %v5032
      %v5070 = vunpack.c.l.b16 %v5036
      %v5071 = vunpack.c.l.b16 %v5039
      %v5072 = vunpack.c.l.b16 %v5043
      %v5073 = vunpack.c.l.b16 %v5046
      %v5074 = vunpack.c.l.b16 %v5050
      %v5075 = vunpack.c.l.b16 %v5053
      %v5076 = vunpack.c.l.b16 %v5057
      %v5077 = vunpack.c.l.b16 %v5060
      %v5078 = vpack.c.b16 %v5063, %v5062
      %v5079 = vpack.c.b16 %v5065, %v5064
      %v5080 = vpack.c.b16 %v5067, %v5066
      %v5081 = vpack.c.b16 %v5069, %v5068
      %v5082 = vpack.c.b16 %v5071, %v5070
      %v5083 = vpack.c.b16 %v5073, %v5072
      %v5084 = vpack.c.b16 %v5075, %v5074
      %v5085 = vpack.c.b16 %v5077, %v5076
      %v5087 = vsel %vm1316, %v5078, 0
      %v5090 = vsel %vm1316, %v5079, 0
      %v5093 = vsel %vm1316, %v5080, 0
      %v5096 = vsel %vm1316, %v5081, 0
      %v5099 = vsel %vm1316, %v5082, 0
      %v5102 = vsel %vm1316, %v5083, 0
      %v5105 = vsel %vm1316, %v5084, 0
      %v5108 = vsel %vm1316, %v5085, 0
      %v5111 = vsel %vm1347, %v5061, 0
      %5113 = vmatprep.subr.bf16.mxu0 0
      %5114 = vmatpush1.bf16.msra.mxu0 %v5111
      %5115 = vmatprep.subr.bf16.mxu0 0
      %5116 = vmatpush1.bf16.msra.mxu0 0
      %5117 = vmatprep.subr.bf16.mxu0 0
      %5118 = vmatpush1.bf16.msra.mxu0 0
      %5119 = vmatprep.subr.bf16.mxu0 0
      %5120 = vmatpush1.bf16.msra.mxu0 0
      %5121 = vmatprep.subr.bf16.mxu0 0
      %5122 = vmatpush1.bf16.msra.mxu0 0
      %5123 = vmatprep.subr.bf16.mxu0 0
      %5124 = vmatpush1.bf16.msra.mxu0 0
      %5125 = vmatprep.subr.bf16.mxu0 0
      %5126 = vmatpush1.bf16.msra.mxu0 0
      %5127 = vmatprep.subr.bf16.mxu0 0
      %5128 = vmatpush1.bf16.msra.mxu0 0
      %5129 = vmatprep.subr.bf16.mxu0 0
      %5130 = vmatpush1.bf16.msra.mxu0 0
      %5131 = vmatprep.subr.bf16.mxu0 0
      %5132 = vmatpush1.bf16.msra.mxu0 0
      %5133 = vmatprep.subr.bf16.mxu0 0
      %5134 = vmatpush1.bf16.msra.mxu0 0
      %5135 = vmatprep.subr.bf16.mxu0 0
      %5136 = vmatpush1.bf16.msra.mxu0 0
      %5137 = vmatprep.subr.bf16.mxu0 0
      %5138 = vmatpush1.bf16.msra.mxu0 0
      %5139 = vmatprep.subr.bf16.mxu0 0
      %5140 = vmatpush1.bf16.msra.mxu0 0
      %5141 = vmatprep.subr.bf16.mxu0 0
      %5142 = vmatpush1.bf16.msra.mxu0 0
      %5143 = vmatprep.subr.bf16.mxu0 0
      %5144 = vmatpush1.bf16.msra.mxu0 0
      %5145 = vmatprep.mubr.bf16.mxu0 0
      %5146 = vmatmul.mubr.bf16.gmra.mrb[0].mxu0 %v5087
      %v5147 = vpop.f32.mrb[0].mxu0
      %v5148 = vadd.f32 0.0, %v5147
      %v5149 = vpop.f32.mrb[0].mxu0
      %v5150 = vpop.f32.mrb[0].mxu0
      %v5151 = vadd.f32 0.0, %v5150
      %v5152 = vpop.f32.mrb[0].mxu0
      %5153 = vmatprep.mubr.bf16.mxu0 0
      %5154 = vmatmul.mubr.bf16.gmra.mrb[0].mxu0 %v5090
      %v5155 = vpop.f32.mrb[0].mxu0
      %v5156 = vadd.f32 0.0, %v5155
      %v5157 = vpop.f32.mrb[0].mxu0
      %v5158 = vpop.f32.mrb[0].mxu0
      %v5159 = vadd.f32 0.0, %v5158
      %v5160 = vpop.f32.mrb[0].mxu0
      %5161 = vmatprep.mubr.bf16.mxu0 0
      %5162 = vmatmul.mubr.bf16.gmra.mrb[0].mxu0 %v5093
      %v5163 = vpop.f32.mrb[0].mxu0
      %v5164 = vadd.f32 0.0, %v5163
      %v5165 = vpop.f32.mrb[0].mxu0
      %v5166 = vpop.f32.mrb[0].mxu0
      %v5167 = vadd.f32 0.0, %v5166
      %v5168 = vpop.f32.mrb[0].mxu0
      %5169 = vmatprep.mubr.bf16.mxu0 0
      %5170 = vmatmul.mubr.bf16.gmra.mrb[0].mxu0 %v5096
      %v5171 = vpop.f32.mrb[0].mxu0
      %v5172 = vadd.f32 0.0, %v5171
      %v5173 = vpop.f32.mrb[0].mxu0
      %v5174 = vpop.f32.mrb[0].mxu0
      %v5175 = vadd.f32 0.0, %v5174
      %v5176 = vpop.f32.mrb[0].mxu0
      %5177 = vmatprep.mubr.bf16.mxu0 0
      %5178 = vmatmul.mubr.bf16.gmra.mrb[0].mxu0 %v5099
      %v5179 = vpop.f32.mrb[0].mxu0
      %v5180 = vadd.f32 0.0, %v5179
      %v5181 = vpop.f32.mrb[0].mxu0
      %v5182 = vpop.f32.mrb[0].mxu0
      %v5183 = vadd.f32 0.0, %v5182
      %v5184 = vpop.f32.mrb[0].mxu0
      %5185 = vmatprep.mubr.bf16.mxu0 0
      %5186 = vmatmul.mubr.bf16.gmra.mrb[0].mxu0 %v5102
      %v5187 = vpop.f32.mrb[0].mxu0
      %v5188 = vadd.f32 0.0, %v5187
      %v5189 = vpop.f32.mrb[0].mxu0
      %v5190 = vpop.f32.mrb[0].mxu0
      %v5191 = vadd.f32 0.0, %v5190
      %v5192 = vpop.f32.mrb[0].mxu0
      %5193 = vmatprep.mubr.bf16.mxu0 0
      %5194 = vmatmul.mubr.bf16.gmra.mrb[0].mxu0 %v5105
      %v5195 = vpop.f32.mrb[0].mxu0
      %v5196 = vadd.f32 0.0, %v5195
      %v5197 = vpop.f32.mrb[0].mxu0
      %v5198 = vpop.f32.mrb[0].mxu0
      %v5199 = vadd.f32 0.0, %v5198
      %v5200 = vpop.f32.mrb[0].mxu0
      %5201 = vmatprep.mubr.bf16.mxu0 0
      %5202 = vmatmul.mubr.bf16.gmra.mrb[0].mxu0 %v5108
      %v5203 = vpop.f32.mrb[0].mxu0
      %v5204 = vadd.f32 0.0, %v5203
      %v5205 = vpop.f32.mrb[0].mxu0
      %v5206 = vpop.f32.mrb[0].mxu0
      %v5207 = vadd.f32 0.0, %v5206
      %v5208 = vpop.f32.mrb[0].mxu0
      %5209 = vdwg.mxu0
      %v5210 = vadd.f32 %v4919, %v5148
      %v5211 = vadd.f32 %v4922, %v5151
      %v5212 = vadd.f32 %v4927, %v5156
      %v5213 = vadd.f32 %v4930, %v5159
      %v5214 = vadd.f32 %v4935, %v5164
      %v5215 = vadd.f32 %v4938, %v5167
      %v5216 = vadd.f32 %v4943, %v5172
      %v5217 = vadd.f32 %v4946, %v5175
      %v5218 = vadd.f32 %v4951, %v5180
      %v5219 = vadd.f32 %v4954, %v5183
      %v5220 = vadd.f32 %v4959, %v5188
      %v5221 = vadd.f32 %v4962, %v5191
      %v5222 = vadd.f32 %v4967, %v5196
      %v5223 = vadd.f32 %v4970, %v5199
      %v5224 = vadd.f32 %v4975, %v5204
      %v5225 = vadd.f32 %v4978, %v5207
      %s5226 = scalar_lea.vmem [#allocation3], 12
      %v5227 = vld [vmem:[%s5226] sm:$0xf]
      %v5228 = vld [vmem:[%s5226 + $0x4] sm:$0xf]
      %v5229 = vld [vmem:[%s5226 + $0xc] sm:$0xf]
      %v5230 = vld [vmem:[%s5226 + $0x10] sm:$0xf]
      %v5231 = vld [vmem:[%s5226 + $0x18] sm:$0xf]
      %v5232 = vld [vmem:[%s5226 + $0x1c] sm:$0xf]
      %v5233 = vld [vmem:[%s5226 + $0x24] sm:$0xf]
      %v5234 = vld [vmem:[%s5226 + $0x28] sm:$0xf]
      %v5235 = vld [vmem:[%s5226 + $0x30] sm:$0xf]
      %v5236 = vld [vmem:[%s5226 + $0x34] sm:$0xf]
      %v5237 = vld [vmem:[%s5226 + $0x3c] sm:$0xf]
      %v5238 = vld [vmem:[%s5226 + $0x40] sm:$0xf]
      %v5239 = vld [vmem:[%s5226 + $0x48] sm:$0xf]
      %v5240 = vld [vmem:[%s5226 + $0x4c] sm:$0xf]
      %v5241 = vld [vmem:[%s5226 + $0x54] sm:$0xf]
      %v5242 = vld [vmem:[%s5226 + $0x58] sm:$0xf]
      %v5243 = vld [vmem:[%s5 + $0x4] sm:$0xc]
      %v5260 = vunpack.c.l.b16 %v5227
      %v5261 = vunpack.c.l.b16 %v5228
      %v5262 = vunpack.c.l.b16 %v5229
      %v5263 = vunpack.c.l.b16 %v5230
      %v5264 = vunpack.c.l.b16 %v5231
      %v5265 = vunpack.c.l.b16 %v5232
      %v5266 = vunpack.c.l.b16 %v5233
      %v5267 = vunpack.c.l.b16 %v5234
      %v5268 = vunpack.c.l.b16 %v5235
      %v5269 = vunpack.c.l.b16 %v5236
      %v5270 = vunpack.c.l.b16 %v5237
      %v5271 = vunpack.c.l.b16 %v5238
      %v5272 = vunpack.c.l.b16 %v5239
      %v5273 = vunpack.c.l.b16 %v5240
      %v5274 = vunpack.c.l.b16 %v5241
      %v5275 = vunpack.c.l.b16 %v5242
      %v5276 = vpack.c.b16 %v5261, %v5260
      %v5277 = vpack.c.b16 %v5263, %v5262
      %v5278 = vpack.c.b16 %v5265, %v5264
      %v5279 = vpack.c.b16 %v5267, %v5266
      %v5280 = vpack.c.b16 %v5269, %v5268
      %v5281 = vpack.c.b16 %v5271, %v5270
      %v5282 = vpack.c.b16 %v5273, %v5272
      %v5283 = vpack.c.b16 %v5275, %v5274
      %v5285 = vunpack.c.l.b16 %v5243
      %v5286 = vpack.c.b16 %v5285, %v5285
      %v5287 = vrot.slane %v5286, 2
      %v5289 = vsel %vm1316, %v5276, 0
      %v5292 = vsel %vm1316, %v5277, 0
      %v5295 = vsel %vm1316, %v5278, 0
      %v5298 = vsel %vm1316, %v5279, 0
      %v5301 = vsel %vm1316, %v5280, 0
      %v5304 = vsel %vm1316, %v5281, 0
      %v5307 = vsel %vm1316, %v5282, 0
      %v5310 = vsel %vm1316, %v5283, 0
      %v5313 = vsel %vm1347, %v5287, 0
      %5315 = vmatprep.subr.bf16.mxu0 0
      %5316 = vmatpush1.bf16.msra.mxu0 %v5313
      %5317 = vmatprep.subr.bf16.mxu0 0
      %5318 = vmatpush1.bf16.msra.mxu0 0
      %5319 = vmatprep.subr.bf16.mxu0 0
      %5320 = vmatpush1.bf16.msra.mxu0 0
      %5321 = vmatprep.subr.bf16.mxu0 0
      %5322 = vmatpush1.bf16.msra.mxu0 0
      %5323 = vmatprep.subr.bf16.mxu0 0
      %5324 = vmatpush1.bf16.msra.mxu0 0
      %5325 = vmatprep.subr.bf16.mxu0 0
      %5326 = vmatpush1.bf16.msra.mxu0 0
      %5327 = vmatprep.subr.bf16.mxu0 0
      %5328 = vmatpush1.bf16.msra.mxu0 0
      %5329 = vmatprep.subr.bf16.mxu0 0
      %5330 = vmatpush1.bf16.msra.mxu0 0
      %5331 = vmatprep.subr.bf16.mxu0 0
      %5332 = vmatpush1.bf16.msra.mxu0 0
      %5333 = vmatprep.subr.bf16.mxu0 0
      %5334 = vmatpush1.bf16.msra.mxu0 0
      %5335 = vmatprep.subr.bf16.mxu0 0
      %5336 = vmatpush1.bf16.msra.mxu0 0
      %5337 = vmatprep.subr.bf16.mxu0 0
      %5338 = vmatpush1.bf16.msra.mxu0 0
      %5339 = vmatprep.subr.bf16.mxu0 0
      %5340 = vmatpush1.bf16.msra.mxu0 0
      %5341 = vmatprep.subr.bf16.mxu0 0
      %5342 = vmatpush1.bf16.msra.mxu0 0
      %5343 = vmatprep.subr.bf16.mxu0 0
      %5344 = vmatpush1.bf16.msra.mxu0 0
      %5345 = vmatprep.subr.bf16.mxu0 0
      %5346 = vmatpush1.bf16.msra.mxu0 0
      %5347 = vmatprep.mubr.bf16.mxu0 0
      %5348 = vmatmul.mubr.bf16.gmra.mrb[0].mxu0 %v5289
      %v5349 = vpop.f32.mrb[0].mxu0
      %v5350 = vadd.f32 0.0, %v5349
      %v5351 = vpop.f32.mrb[0].mxu0
      %v5352 = vpop.f32.mrb[0].mxu0
      %v5353 = vadd.f32 0.0, %v5352
      %v5354 = vpop.f32.mrb[0].mxu0
      %5355 = vmatprep.mubr.bf16.mxu0 0
      %5356 = vmatmul.mubr.bf16.gmra.mrb[0].mxu0 %v5292
      %v5357 = vpop.f32.mrb[0].mxu0
      %v5358 = vadd.f32 0.0, %v5357
      %v5359 = vpop.f32.mrb[0].mxu0
      %v5360 = vpop.f32.mrb[0].mxu0
      %v5361 = vadd.f32 0.0, %v5360
      %v5362 = vpop.f32.mrb[0].mxu0
      %5363 = vmatprep.mubr.bf16.mxu0 0
      %5364 = vmatmul.mubr.bf16.gmra.mrb[0].mxu0 %v5295
      %v5365 = vpop.f32.mrb[0].mxu0
      %v5366 = vadd.f32 0.0, %v5365
      %v5367 = vpop.f32.mrb[0].mxu0
      %v5368 = vpop.f32.mrb[0].mxu0
      %v5369 = vadd.f32 0.0, %v5368
      %v5370 = vpop.f32.mrb[0].mxu0
      %5371 = vmatprep.mubr.bf16.mxu0 0
      %5372 = vmatmul.mubr.bf16.gmra.mrb[0].mxu0 %v5298
      %v5373 = vpop.f32.mrb[0].mxu0
      %v5374 = vadd.f32 0.0, %v5373
      %v5375 = vpop.f32.mrb[0].mxu0
      %v5376 = vpop.f32.mrb[0].mxu0
      %v5377 = vadd.f32 0.0, %v5376
      %v5378 = vpop.f32.mrb[0].mxu0
      %5379 = vmatprep.mubr.bf16.mxu0 0
      %5380 = vmatmul.mubr.bf16.gmra.mrb[0].mxu0 %v5301
      %v5381 = vpop.f32.mrb[0].mxu0
      %v5382 = vadd.f32 0.0, %v5381
      %v5383 = vpop.f32.mrb[0].mxu0
      %v5384 = vpop.f32.mrb[0].mxu0
      %v5385 = vadd.f32 0.0, %v5384
      %v5386 = vpop.f32.mrb[0].mxu0
      %5387 = vmatprep.mubr.bf16.mxu0 0
      %5388 = vmatmul.mubr.bf16.gmra.mrb[0].mxu0 %v5304
      %v5389 = vpop.f32.mrb[0].mxu0
      %v5390 = vadd.f32 0.0, %v5389
      %v5391 = vpop.f32.mrb[0].mxu0
      %v5392 = vpop.f32.mrb[0].mxu0
      %v5393 = vadd.f32 0.0, %v5392
      %v5394 = vpop.f32.mrb[0].mxu0
      %5395 = vmatprep.mubr.bf16.mxu0 0
      %5396 = vmatmul.mubr.bf16.gmra.mrb[0].mxu0 %v5307
      %v5397 = vpop.f32.mrb[0].mxu0
      %v5398 = vadd.f32 0.0, %v5397
      %v5399 = vpop.f32.mrb[0].mxu0
      %v5400 = vpop.f32.mrb[0].mxu0
      %v5401 = vadd.f32 0.0, %v5400
      %v5402 = vpop.f32.mrb[0].mxu0
      %5403 = vmatprep.mubr.bf16.mxu0 0
      %5404 = vmatmul.mubr.bf16.gmra.mrb[0].mxu0 %v5310
      %v5405 = vpop.f32.mrb[0].mxu0
      %v5406 = vadd.f32 0.0, %v5405
      %v5407 = vpop.f32.mrb[0].mxu0
      %v5408 = vpop.f32.mrb[0].mxu0
      %v5409 = vadd.f32 0.0, %v5408
      %v5410 = vpop.f32.mrb[0].mxu0
      %5411 = vdwg.mxu0
      %v5412 = vadd.f32 %v5210, %v5350
      %v5413 = vadd.f32 %v5211, %v5353
      %v5414 = vadd.f32 %v5212, %v5358
      %v5415 = vadd.f32 %v5213, %v5361
      %v5416 = vadd.f32 %v5214, %v5366
      %v5417 = vadd.f32 %v5215, %v5369
      %v5418 = vadd.f32 %v5216, %v5374
      %v5419 = vadd.f32 %v5217, %v5377
      %v5420 = vadd.f32 %v5218, %v5382
      %v5421 = vadd.f32 %v5219, %v5385
      %v5422 = vadd.f32 %v5220, %v5390
      %v5423 = vadd.f32 %v5221, %v5393
      %v5424 = vadd.f32 %v5222, %v5398
      %v5425 = vadd.f32 %v5223, %v5401
      %v5426 = vadd.f32 %v5224, %v5406
      %v5427 = vadd.f32 %v5225, %v5409
      %v5428 = vld [vmem:[%s5226] sm:$0xf]
      %v5429 = vld [vmem:[%s5226 + $0x4] sm:$0xf]
      %v5430 = vld [vmem:[%s5226 + $0x8] sm:$0x1]
      %v5431 = vld [vmem:[%s5226 + $0xc] sm:$0xf]
      %v5432 = vld [vmem:[%s5226 + $0x10] sm:$0xf]
      %v5433 = vld [vmem:[%s5226 + $0x14] sm:$0x1]
      %v5434 = vld [vmem:[%s5226 + $0x18] sm:$0xf]
      %v5435 = vld [vmem:[%s5226 + $0x1c] sm:$0xf]
      %v5436 = vld [vmem:[%s5226 + $0x20] sm:$0x1]
      %v5437 = vld [vmem:[%s5226 + $0x24] sm:$0xf]
      %v5438 = vld [vmem:[%s5226 + $0x28] sm:$0xf]
      %v5439 = vld [vmem:[%s5226 + $0x2c] sm:$0x1]
      %v5440 = vld [vmem:[%s5226 + $0x30] sm:$0xf]
      %v5441 = vld [vmem:[%s5226 + $0x34] sm:$0xf]
      %v5442 = vld [vmem:[%s5226 + $0x38] sm:$0x1]
      %v5443 = vld [vmem:[%s5226 + $0x3c] sm:$0xf]
      %v5444 = vld [vmem:[%s5226 + $0x40] sm:$0xf]
      %v5445 = vld [vmem:[%s5226 + $0x44] sm:$0x1]
      %v5446 = vld [vmem:[%s5226 + $0x48] sm:$0xf]
      %v5447 = vld [vmem:[%s5226 + $0x4c] sm:$0xf]
      %v5448 = vld [vmem:[%s5226 + $0x50] sm:$0x1]
      %v5449 = vld [vmem:[%s5226 + $0x54] sm:$0xf]
      %v5450 = vld [vmem:[%s5226 + $0x58] sm:$0xf]
      %v5451 = vld [vmem:[%s5226 + $0x5c] sm:$0x1]
      %v5453 = vshrl.u32 %v5428, 16
      %v5455 = vrot.slane %v5453, 4
      %v5456 = vshll.u32 %v5428, 16
      %v5458 = vrot.slane %v5456, 5
      %v5459 = vor.u32 %v5455, %v5458
      %v5460 = vrot.slane %v5459, 4
      %v5462 = vshll.u32 %v5429, 16
      %v5464 = vrot.slane %v5462, 5
      %v5465 = vsel %vm1040, %v5460, %v5464
      %v5466 = vshrl.u32 %v5429, 16
      %v5468 = vrot.slane %v5466, 4
      %v5469 = vor.u32 %v5468, %v5464
      %v5470 = vrot.slane %v5469, 4
      %v5472 = vshll.u32 %v5430, 16
      %v5474 = vrot.slane %v5472, 5
      %v5475 = vsel %vm1040, %v5470, %v5474
      %v5477 = vshrl.u32 %v5431, 16
      %v5479 = vrot.slane %v5477, 4
      %v5480 = vshll.u32 %v5431, 16
      %v5482 = vrot.slane %v5480, 5
      %v5483 = vor.u32 %v5479, %v5482
      %v5484 = vrot.slane %v5483, 4
      %v5486 = vshll.u32 %v5432, 16
      %v5488 = vrot.slane %v5486, 5
      %v5489 = vsel %vm1040, %v5484, %v5488
      %v5490 = vshrl.u32 %v5432, 16
      %v5492 = vrot.slane %v5490, 4
      %v5493 = vor.u32 %v5492, %v5488
      %v5494 = vrot.slane %v5493, 4
      %v5496 = vshll.u32 %v5433, 16
      %v5498 = vrot.slane %v5496, 5
      %v5499 = vsel %vm1040, %v5494, %v5498
      %v5501 = vshrl.u32 %v5434, 16
      %v5503 = vrot.slane %v5501, 4
      %v5504 = vshll.u32 %v5434, 16
      %v5506 = vrot.slane %v5504, 5
      %v5507 = vor.u32 %v5503, %v5506
      %v5508 = vrot.slane %v5507, 4
      %v5510 = vshll.u32 %v5435, 16
      %v5512 = vrot.slane %v5510, 5
      %v5513 = vsel %vm1040, %v5508, %v5512
      %v5514 = vshrl.u32 %v5435, 16
      %v5516 = vrot.slane %v5514, 4
      %v5517 = vor.u32 %v5516, %v5512
      %v5518 = vrot.slane %v5517, 4
      %v5520 = vshll.u32 %v5436, 16
      %v5522 = vrot.slane %v5520, 5
      %v5523 = vsel %vm1040, %v5518, %v5522
      %v5525 = vshrl.u32 %v5437, 16
      %v5527 = vrot.slane %v5525, 4
      %v5528 = vshll.u32 %v5437, 16
      %v5530 = vrot.slane %v5528, 5
      %v5531 = vor.u32 %v5527, %v5530
      %v5532 = vrot.slane %v5531, 4
      %v5534 = vshll.u32 %v5438, 16
      %v5536 = vrot.slane %v5534, 5
      %v5537 = vsel %vm1040, %v5532, %v5536
      %v5538 = vshrl.u32 %v5438, 16
      %v5540 = vrot.slane %v5538, 4
      %v5541 = vor.u32 %v5540, %v5536
      %v5542 = vrot.slane %v5541, 4
      %v5544 = vshll.u32 %v5439, 16
      %v5546 = vrot.slane %v5544, 5
      %v5547 = vsel %vm1040, %v5542, %v5546
      %v5549 = vshrl.u32 %v5440, 16
      %v5551 = vrot.slane %v5549, 4
      %v5552 = vshll.u32 %v5440, 16
      %v5554 = vrot.slane %v5552, 5
      %v5555 = vor.u32 %v5551, %v5554
      %v5556 = vrot.slane %v5555, 4
      %v5558 = vshll.u32 %v5441, 16
      %v5560 = vrot.slane %v5558, 5
      %v5561 = vsel %vm1040, %v5556, %v5560
      %v5562 = vshrl.u32 %v5441, 16
      %v5564 = vrot.slane %v5562, 4
      %v5565 = vor.u32 %v5564, %v5560
      %v5566 = vrot.slane %v5565, 4
      %v5568 = vshll.u32 %v5442, 16
      %v5570 = vrot.slane %v5568, 5
      %v5571 = vsel %vm1040, %v5566, %v5570
      %v5573 = vshrl.u32 %v5443, 16
      %v5575 = vrot.slane %v5573, 4
      %v5576 = vshll.u32 %v5443, 16
      %v5578 = vrot.slane %v5576, 5
      %v5579 = vor.u32 %v5575, %v5578
      %v5580 = vrot.slane %v5579, 4
      %v5582 = vshll.u32 %v5444, 16
      %v5584 = vrot.slane %v5582, 5
      %v5585 = vsel %vm1040, %v5580, %v5584
      %v5586 = vshrl.u32 %v5444, 16
      %v5588 = vrot.slane %v5586, 4
      %v5589 = vor.u32 %v5588, %v5584
      %v5590 = vrot.slane %v5589, 4
      %v5592 = vshll.u32 %v5445, 16
      %v5594 = vrot.slane %v5592, 5
      %v5595 = vsel %vm1040, %v5590, %v5594
      %v5597 = vshrl.u32 %v5446, 16
      %v5599 = vrot.slane %v5597, 4
      %v5600 = vshll.u32 %v5446, 16
      %v5602 = vrot.slane %v5600, 5
      %v5603 = vor.u32 %v5599, %v5602
      %v5604 = vrot.slane %v5603, 4
      %v5606 = vshll.u32 %v5447, 16
      %v5608 = vrot.slane %v5606, 5
      %v5609 = vsel %vm1040, %v5604, %v5608
      %v5610 = vshrl.u32 %v5447, 16
      %v5612 = vrot.slane %v5610, 4
      %v5613 = vor.u32 %v5612, %v5608
      %v5614 = vrot.slane %v5613, 4
      %v5616 = vshll.u32 %v5448, 16
      %v5618 = vrot.slane %v5616, 5
      %v5619 = vsel %vm1040, %v5614, %v5618
      %v5621 = vshrl.u32 %v5449, 16
      %v5623 = vrot.slane %v5621, 4
      %v5624 = vshll.u32 %v5449, 16
      %v5626 = vrot.slane %v5624, 5
      %v5627 = vor.u32 %v5623, %v5626
      %v5628 = vrot.slane %v5627, 4
      %v5630 = vshll.u32 %v5450, 16
      %v5632 = vrot.slane %v5630, 5
      %v5633 = vsel %vm1040, %v5628, %v5632
      %v5634 = vshrl.u32 %v5450, 16
      %v5636 = vrot.slane %v5634, 4
      %v5637 = vor.u32 %v5636, %v5632
      %v5638 = vrot.slane %v5637, 4
      %v5640 = vshll.u32 %v5451, 16
      %v5642 = vrot.slane %v5640, 5
      %v5643 = vsel %vm1040, %v5638, %v5642
      %v5644 = vld [vmem:[%s5 + $0x8] sm:$0x3]
      %v5645 = vunpack.c.l.b16 %v5465
      %v5646 = vunpack.c.l.b16 %v5475
      %v5647 = vunpack.c.l.b16 %v5489
      %v5648 = vunpack.c.l.b16 %v5499
      %v5649 = vunpack.c.l.b16 %v5513
      %v5650 = vunpack.c.l.b16 %v5523
      %v5651 = vunpack.c.l.b16 %v5537
      %v5652 = vunpack.c.l.b16 %v5547
      %v5653 = vunpack.c.l.b16 %v5561
      %v5654 = vunpack.c.l.b16 %v5571
      %v5655 = vunpack.c.l.b16 %v5585
      %v5656 = vunpack.c.l.b16 %v5595
      %v5657 = vunpack.c.l.b16 %v5609
      %v5658 = vunpack.c.l.b16 %v5619
      %v5659 = vunpack.c.l.b16 %v5633
      %v5660 = vunpack.c.l.b16 %v5643
      %v5661 = vpack.c.b16 %v5646, %v5645
      %v5662 = vpack.c.b16 %v5648, %v5647
      %v5663 = vpack.c.b16 %v5650, %v5649
      %v5664 = vpack.c.b16 %v5652, %v5651
      %v5665 = vpack.c.b16 %v5654, %v5653
      %v5666 = vpack.c.b16 %v5656, %v5655
      %v5667 = vpack.c.b16 %v5658, %v5657
      %v5668 = vpack.c.b16 %v5660, %v5659
      %v5670 = vsel %vm1316, %v5661, 0
      %v5673 = vsel %vm1316, %v5662, 0
      %v5676 = vsel %vm1316, %v5663, 0
      %v5679 = vsel %vm1316, %v5664, 0
      %v5682 = vsel %vm1316, %v5665, 0
      %v5685 = vsel %vm1316, %v5666, 0
      %v5688 = vsel %vm1316, %v5667, 0
      %v5691 = vsel %vm1316, %v5668, 0
      %v5694 = vsel %vm1347, %v5644, 0
      %5696 = vmatprep.subr.bf16.mxu0 0
      %5697 = vmatpush1.bf16.msra.mxu0 %v5694
      %5698 = vmatprep.subr.bf16.mxu0 0
      %5699 = vmatpush1.bf16.msra.mxu0 0
      %5700 = vmatprep.subr.bf16.mxu0 0
      %5701 = vmatpush1.bf16.msra.mxu0 0
      %5702 = vmatprep.subr.bf16.mxu0 0
      %5703 = vmatpush1.bf16.msra.mxu0 0
      %5704 = vmatprep.subr.bf16.mxu0 0
      %5705 = vmatpush1.bf16.msra.mxu0 0
      %5706 = vmatprep.subr.bf16.mxu0 0
      %5707 = vmatpush1.bf16.msra.mxu0 0
      %5708 = vmatprep.subr.bf16.mxu0 0
      %5709 = vmatpush1.bf16.msra.mxu0 0
      %5710 = vmatprep.subr.bf16.mxu0 0
      %5711 = vmatpush1.bf16.msra.mxu0 0
      %5712 = vmatprep.subr.bf16.mxu0 0
      %5713 = vmatpush1.bf16.msra.mxu0 0
      %5714 = vmatprep.subr.bf16.mxu0 0
      %5715 = vmatpush1.bf16.msra.mxu0 0
      %5716 = vmatprep.subr.bf16.mxu0 0
      %5717 = vmatpush1.bf16.msra.mxu0 0
      %5718 = vmatprep.subr.bf16.mxu0 0
      %5719 = vmatpush1.bf16.msra.mxu0 0
      %5720 = vmatprep.subr.bf16.mxu0 0
      %5721 = vmatpush1.bf16.msra.mxu0 0
      %5722 = vmatprep.subr.bf16.mxu0 0
      %5723 = vmatpush1.bf16.msra.mxu0 0
      %5724 = vmatprep.subr.bf16.mxu0 0
      %5725 = vmatpush1.bf16.msra.mxu0 0
      %5726 = vmatprep.subr.bf16.mxu0 0
      %5727 = vmatpush1.bf16.msra.mxu0 0
      %5728 = vmatprep.mubr.bf16.mxu0 0
      %5729 = vmatmul.mubr.bf16.gmra.mrb[0].mxu0 %v5670
      %v5730 = vpop.f32.mrb[0].mxu0
      %v5731 = vadd.f32 0.0, %v5730
      %v5732 = vpop.f32.mrb[0].mxu0
      %v5733 = vpop.f32.mrb[0].mxu0
      %v5734 = vadd.f32 0.0, %v5733
      %v5735 = vpop.f32.mrb[0].mxu0
      %5736 = vmatprep.mubr.bf16.mxu0 0
      %5737 = vmatmul.mubr.bf16.gmra.mrb[0].mxu0 %v5673
      %v5738 = vpop.f32.mrb[0].mxu0
      %v5739 = vadd.f32 0.0, %v5738
      %v5740 = vpop.f32.mrb[0].mxu0
      %v5741 = vpop.f32.mrb[0].mxu0
      %v5742 = vadd.f32 0.0, %v5741
      %v5743 = vpop.f32.mrb[0].mxu0
      %5744 = vmatprep.mubr.bf16.mxu0 0
      %5745 = vmatmul.mubr.bf16.gmra.mrb[0].mxu0 %v5676
      %v5746 = vpop.f32.mrb[0].mxu0
      %v5747 = vadd.f32 0.0, %v5746
      %v5748 = vpop.f32.mrb[0].mxu0
      %v5749 = vpop.f32.mrb[0].mxu0
      %v5750 = vadd.f32 0.0, %v5749
      %v5751 = vpop.f32.mrb[0].mxu0
      %5752 = vmatprep.mubr.bf16.mxu0 0
      %5753 = vmatmul.mubr.bf16.gmra.mrb[0].mxu0 %v5679
      %v5754 = vpop.f32.mrb[0].mxu0
      %v5755 = vadd.f32 0.0, %v5754
      %v5756 = vpop.f32.mrb[0].mxu0
      %v5757 = vpop.f32.mrb[0].mxu0
      %v5758 = vadd.f32 0.0, %v5757
      %v5759 = vpop.f32.mrb[0].mxu0
      %5760 = vmatprep.mubr.bf16.mxu0 0
      %5761 = vmatmul.mubr.bf16.gmra.mrb[0].mxu0 %v5682
      %v5762 = vpop.f32.mrb[0].mxu0
      %v5763 = vadd.f32 0.0, %v5762
      %v5764 = vpop.f32.mrb[0].mxu0
      %v5765 = vpop.f32.mrb[0].mxu0
      %v5766 = vadd.f32 0.0, %v5765
      %v5767 = vpop.f32.mrb[0].mxu0
      %5768 = vmatprep.mubr.bf16.mxu0 0
      %5769 = vmatmul.mubr.bf16.gmra.mrb[0].mxu0 %v5685
      %v5770 = vpop.f32.mrb[0].mxu0
      %v5771 = vadd.f32 0.0, %v5770
      %v5772 = vpop.f32.mrb[0].mxu0
      %v5773 = vpop.f32.mrb[0].mxu0
      %v5774 = vadd.f32 0.0, %v5773
      %v5775 = vpop.f32.mrb[0].mxu0
      %5776 = vmatprep.mubr.bf16.mxu0 0
      %5777 = vmatmul.mubr.bf16.gmra.mrb[0].mxu0 %v5688
      %v5778 = vpop.f32.mrb[0].mxu0
      %v5779 = vadd.f32 0.0, %v5778
      %v5780 = vpop.f32.mrb[0].mxu0
      %v5781 = vpop.f32.mrb[0].mxu0
      %v5782 = vadd.f32 0.0, %v5781
      %v5783 = vpop.f32.mrb[0].mxu0
      %5784 = vmatprep.mubr.bf16.mxu0 0
      %5785 = vmatmul.mubr.bf16.gmra.mrb[0].mxu0 %v5691
      %v5786 = vpop.f32.mrb[0].mxu0
      %v5787 = vadd.f32 0.0, %v5786
      %v5788 = vpop.f32.mrb[0].mxu0
      %v5789 = vpop.f32.mrb[0].mxu0
      %v5790 = vadd.f32 0.0, %v5789
      %v5791 = vpop.f32.mrb[0].mxu0
      %5792 = vdwg.mxu0
      %v5793 = vadd.f32 %v5412, %v5731
      %v5794 = vadd.f32 %v5413, %v5734
      %v5795 = vadd.f32 %v5414, %v5739
      %v5796 = vadd.f32 %v5415, %v5742
      %v5797 = vadd.f32 %v5416, %v5747
      %v5798 = vadd.f32 %v5417, %v5750
      %v5799 = vadd.f32 %v5418, %v5755
      %v5800 = vadd.f32 %v5419, %v5758
      %v5801 = vadd.f32 %v5420, %v5763
      %v5802 = vadd.f32 %v5421, %v5766
      %v5803 = vadd.f32 %v5422, %v5771
      %v5804 = vadd.f32 %v5423, %v5774
      %v5805 = vadd.f32 %v5424, %v5779
      %v5806 = vadd.f32 %v5425, %v5782
      %v5807 = vadd.f32 %v5426, %v5787
      %v5808 = vadd.f32 %v5427, %v5790
      %v5809 = vld [vmem:[%s5226] sm:$0xe]
      %v5810 = vld [vmem:[%s5226 + $0xc] sm:$0xe]
      %v5811 = vld [vmem:[%s5226 + $0x18] sm:$0xe]
      %v5812 = vld [vmem:[%s5226 + $0x24] sm:$0xe]
      %v5813 = vld [vmem:[%s5226 + $0x30] sm:$0xe]
      %v5814 = vld [vmem:[%s5226 + $0x3c] sm:$0xe]
      %v5815 = vld [vmem:[%s5226 + $0x48] sm:$0xe]
      %v5816 = vld [vmem:[%s5226 + $0x54] sm:$0xe]
      %v5841 = vrot.slane %v5809, 5
      %v5842 = vrot.slane %v5841, 4
      %v5843 = vrot.slane %v5429, 5
      %v5844 = vsel %vm1692, %v5842, %v5843
      %v5845 = vrot.slane %v5843, 4
      %v5846 = vrot.slane %v5430, 5
      %v5847 = vsel %vm1692, %v5845, %v5846
      %v5848 = vrot.slane %v5810, 5
      %v5849 = vrot.slane %v5848, 4
      %v5850 = vrot.slane %v5432, 5
      %v5851 = vsel %vm1692, %v5849, %v5850
      %v5852 = vrot.slane %v5850, 4
      %v5853 = vrot.slane %v5433, 5
      %v5854 = vsel %vm1692, %v5852, %v5853
      %v5855 = vrot.slane %v5811, 5
      %v5856 = vrot.slane %v5855, 4
      %v5857 = vrot.slane %v5435, 5
      %v5858 = vsel %vm1692, %v5856, %v5857
      %v5859 = vrot.slane %v5857, 4
      %v5860 = vrot.slane %v5436, 5
      %v5861 = vsel %vm1692, %v5859, %v5860
      %v5862 = vrot.slane %v5812, 5
      %v5863 = vrot.slane %v5862, 4
      %v5864 = vrot.slane %v5438, 5
      %v5865 = vsel %vm1692, %v5863, %v5864
      %v5866 = vrot.slane %v5864, 4
      %v5867 = vrot.slane %v5439, 5
      %v5868 = vsel %vm1692, %v5866, %v5867
      %v5869 = vrot.slane %v5813, 5
      %v5870 = vrot.slane %v5869, 4
      %v5871 = vrot.slane %v5441, 5
      %v5872 = vsel %vm1692, %v5870, %v5871
      %v5873 = vrot.slane %v5871, 4
      %v5874 = vrot.slane %v5442, 5
      %v5875 = vsel %vm1692, %v5873, %v5874
      %v5876 = vrot.slane %v5814, 5
      %v5877 = vrot.slane %v5876, 4
      %v5878 = vrot.slane %v5444, 5
      %v5879 = vsel %vm1692, %v5877, %v5878
      %v5880 = vrot.slane %v5878, 4
      %v5881 = vrot.slane %v5445, 5
      %v5882 = vsel %vm1692, %v5880, %v5881
      %v5883 = vrot.slane %v5815, 5
      %v5884 = vrot.slane %v5883, 4
      %v5885 = vrot.slane %v5447, 5
      %v5886 = vsel %vm1692, %v5884, %v5885
      %v5887 = vrot.slane %v5885, 4
      %v5888 = vrot.slane %v5448, 5
      %v5889 = vsel %vm1692, %v5887, %v5888
      %v5890 = vrot.slane %v5816, 5
      %v5891 = vrot.slane %v5890, 4
      %v5892 = vrot.slane %v5450, 5
      %v5893 = vsel %vm1692, %v5891, %v5892
      %v5894 = vrot.slane %v5892, 4
      %v5895 = vrot.slane %v5451, 5
      %v5896 = vsel %vm1692, %v5894, %v5895
      %v5897 = vld [vmem:[%s5 + $0x8] sm:$0xc]
      %v5898 = vunpack.c.l.b16 %v5844
      %v5899 = vunpack.c.l.b16 %v5847
      %v5900 = vunpack.c.l.b16 %v5851
      %v5901 = vunpack.c.l.b16 %v5854
      %v5902 = vunpack.c.l.b16 %v5858
      %v5903 = vunpack.c.l.b16 %v5861
      %v5904 = vunpack.c.l.b16 %v5865
      %v5905 = vunpack.c.l.b16 %v5868
      %v5906 = vunpack.c.l.b16 %v5872
      %v5907 = vunpack.c.l.b16 %v5875
      %v5908 = vunpack.c.l.b16 %v5879
      %v5909 = vunpack.c.l.b16 %v5882
      %v5910 = vunpack.c.l.b16 %v5886
      %v5911 = vunpack.c.l.b16 %v5889
      %v5912 = vunpack.c.l.b16 %v5893
      %v5913 = vunpack.c.l.b16 %v5896
      %v5914 = vpack.c.b16 %v5899, %v5898
      %v5915 = vpack.c.b16 %v5901, %v5900
      %v5916 = vpack.c.b16 %v5903, %v5902
      %v5917 = vpack.c.b16 %v5905, %v5904
      %v5918 = vpack.c.b16 %v5907, %v5906
      %v5919 = vpack.c.b16 %v5909, %v5908
      %v5920 = vpack.c.b16 %v5911, %v5910
      %v5921 = vpack.c.b16 %v5913, %v5912
      %v5923 = vunpack.c.l.b16 %v5897
      %v5924 = vpack.c.b16 %v5923, %v5923
      %v5925 = vrot.slane %v5924, 2
      %v5927 = vsel %vm1316, %v5914, 0
      %v5930 = vsel %vm1316, %v5915, 0
      %v5933 = vsel %vm1316, %v5916, 0
      %v5936 = vsel %vm1316, %v5917, 0
      %v5939 = vsel %vm1316, %v5918, 0
      %v5942 = vsel %vm1316, %v5919, 0
      %v5945 = vsel %vm1316, %v5920, 0
      %v5948 = vsel %vm1316, %v5921, 0
      %v5951 = vsel %vm1347, %v5925, 0
      %5953 = vmatprep.subr.bf16.mxu0 0
      %5954 = vmatpush1.bf16.msra.mxu0 %v5951
      %5955 = vmatprep.subr.bf16.mxu0 0
      %5956 = vmatpush1.bf16.msra.mxu0 0
      %5957 = vmatprep.subr.bf16.mxu0 0
      %5958 = vmatpush1.bf16.msra.mxu0 0
      %5959 = vmatprep.subr.bf16.mxu0 0
      %5960 = vmatpush1.bf16.msra.mxu0 0
      %5961 = vmatprep.subr.bf16.mxu0 0
      %5962 = vmatpush1.bf16.msra.mxu0 0
      %5963 = vmatprep.subr.bf16.mxu0 0
      %5964 = vmatpush1.bf16.msra.mxu0 0
      %5965 = vmatprep.subr.bf16.mxu0 0
      %5966 = vmatpush1.bf16.msra.mxu0 0
      %5967 = vmatprep.subr.bf16.mxu0 0
      %5968 = vmatpush1.bf16.msra.mxu0 0
      %5969 = vmatprep.subr.bf16.mxu0 0
      %5970 = vmatpush1.bf16.msra.mxu0 0
      %5971 = vmatprep.subr.bf16.mxu0 0
      %5972 = vmatpush1.bf16.msra.mxu0 0
      %5973 = vmatprep.subr.bf16.mxu0 0
      %5974 = vmatpush1.bf16.msra.mxu0 0
      %5975 = vmatprep.subr.bf16.mxu0 0
      %5976 = vmatpush1.bf16.msra.mxu0 0
      %5977 = vmatprep.subr.bf16.mxu0 0
      %5978 = vmatpush1.bf16.msra.mxu0 0
      %5979 = vmatprep.subr.bf16.mxu0 0
      %5980 = vmatpush1.bf16.msra.mxu0 0
      %5981 = vmatprep.subr.bf16.mxu0 0
      %5982 = vmatpush1.bf16.msra.mxu0 0
      %5983 = vmatprep.subr.bf16.mxu0 0
      %5984 = vmatpush1.bf16.msra.mxu0 0
      %5985 = vmatprep.mubr.bf16.mxu0 0
      %5986 = vmatmul.mubr.bf16.gmra.mrb[0].mxu0 %v5927
      %v5987 = vpop.f32.mrb[0].mxu0
      %v5988 = vadd.f32 0.0, %v5987
      %v5989 = vpop.f32.mrb[0].mxu0
      %v5990 = vpop.f32.mrb[0].mxu0
      %v5991 = vadd.f32 0.0, %v5990
      %v5992 = vpop.f32.mrb[0].mxu0
      %5993 = vmatprep.mubr.bf16.mxu0 0
      %5994 = vmatmul.mubr.bf16.gmra.mrb[0].mxu0 %v5930
      %v5995 = vpop.f32.mrb[0].mxu0
      %v5996 = vadd.f32 0.0, %v5995
      %v5997 = vpop.f32.mrb[0].mxu0
      %v5998 = vpop.f32.mrb[0].mxu0
      %v5999 = vadd.f32 0.0, %v5998
      %v6000 = vpop.f32.mrb[0].mxu0
      %6001 = vmatprep.mubr.bf16.mxu0 0
      %6002 = vmatmul.mubr.bf16.gmra.mrb[0].mxu0 %v5933
      %v6003 = vpop.f32.mrb[0].mxu0
      %v6004 = vadd.f32 0.0, %v6003
      %v6005 = vpop.f32.mrb[0].mxu0
      %v6006 = vpop.f32.mrb[0].mxu0
      %v6007 = vadd.f32 0.0, %v6006
      %v6008 = vpop.f32.mrb[0].mxu0
      %6009 = vmatprep.mubr.bf16.mxu0 0
      %6010 = vmatmul.mubr.bf16.gmra.mrb[0].mxu0 %v5936
      %v6011 = vpop.f32.mrb[0].mxu0
      %v6012 = vadd.f32 0.0, %v6011
      %v6013 = vpop.f32.mrb[0].mxu0
      %v6014 = vpop.f32.mrb[0].mxu0
      %v6015 = vadd.f32 0.0, %v6014
      %v6016 = vpop.f32.mrb[0].mxu0
      %6017 = vmatprep.mubr.bf16.mxu0 0
      %6018 = vmatmul.mubr.bf16.gmra.mrb[0].mxu0 %v5939
      %v6019 = vpop.f32.mrb[0].mxu0
      %v6020 = vadd.f32 0.0, %v6019
      %v6021 = vpop.f32.mrb[0].mxu0
      %v6022 = vpop.f32.mrb[0].mxu0
      %v6023 = vadd.f32 0.0, %v6022
      %v6024 = vpop.f32.mrb[0].mxu0
      %6025 = vmatprep.mubr.bf16.mxu0 0
      %6026 = vmatmul.mubr.bf16.gmra.mrb[0].mxu0 %v5942
      %v6027 = vpop.f32.mrb[0].mxu0
      %v6028 = vadd.f32 0.0, %v6027
      %v6029 = vpop.f32.mrb[0].mxu0
      %v6030 = vpop.f32.mrb[0].mxu0
      %v6031 = vadd.f32 0.0, %v6030
      %v6032 = vpop.f32.mrb[0].mxu0
      %6033 = vmatprep.mubr.bf16.mxu0 0
      %6034 = vmatmul.mubr.bf16.gmra.mrb[0].mxu0 %v5945
      %v6035 = vpop.f32.mrb[0].mxu0
      %v6036 = vadd.f32 0.0, %v6035
      %v6037 = vpop.f32.mrb[0].mxu0
      %v6038 = vpop.f32.mrb[0].mxu0
      %v6039 = vadd.f32 0.0, %v6038
      %v6040 = vpop.f32.mrb[0].mxu0
      %6041 = vmatprep.mubr.bf16.mxu0 0
      %6042 = vmatmul.mubr.bf16.gmra.mrb[0].mxu0 %v5948
      %v6043 = vpop.f32.mrb[0].mxu0
      %v6044 = vadd.f32 0.0, %v6043
      %v6045 = vpop.f32.mrb[0].mxu0
      %v6046 = vpop.f32.mrb[0].mxu0
      %v6047 = vadd.f32 0.0, %v6046
      %v6048 = vpop.f32.mrb[0].mxu0
      %6049 = vdwg.mxu0
      %v6050 = vadd.f32 %v5793, %v5988
      %v6051 = vadd.f32 %v5794, %v5991
      %v6052 = vadd.f32 %v5795, %v5996
      %v6053 = vadd.f32 %v5796, %v5999
      %v6054 = vadd.f32 %v5797, %v6004
      %v6055 = vadd.f32 %v5798, %v6007
      %v6056 = vadd.f32 %v5799, %v6012
      %v6057 = vadd.f32 %v5800, %v6015
      %v6058 = vadd.f32 %v5801, %v6020
      %v6059 = vadd.f32 %v5802, %v6023
      %v6060 = vadd.f32 %v5803, %v6028
      %v6061 = vadd.f32 %v5804, %v6031
      %v6062 = vadd.f32 %v5805, %v6036
      %v6063 = vadd.f32 %v5806, %v6039
      %v6064 = vadd.f32 %v5807, %v6044
      %v6065 = vadd.f32 %v5808, %v6047
      %s6066 = scalar_lea.vmem [#allocation3], 24
      %v6067 = vld [vmem:[%s6066] sm:$0xf]
      %v6068 = vld [vmem:[%s6066 + $0x4] sm:$0xf]
      %v6069 = vld [vmem:[%s6066 + $0xc] sm:$0xf]
      %v6070 = vld [vmem:[%s6066 + $0x10] sm:$0xf]
      %v6071 = vld [vmem:[%s6066 + $0x18] sm:$0xf]
      %v6072 = vld [vmem:[%s6066 + $0x1c] sm:$0xf]
      %v6073 = vld [vmem:[%s6066 + $0x24] sm:$0xf]
      %v6074 = vld [vmem:[%s6066 + $0x28] sm:$0xf]
      %v6075 = vld [vmem:[%s6066 + $0x30] sm:$0xf]
      %v6076 = vld [vmem:[%s6066 + $0x34] sm:$0xf]
      %v6077 = vld [vmem:[%s6066 + $0x3c] sm:$0xf]
      %v6078 = vld [vmem:[%s6066 + $0x40] sm:$0xf]
      %v6079 = vld [vmem:[%s6066 + $0x48] sm:$0xf]
      %v6080 = vld [vmem:[%s6066 + $0x4c] sm:$0xf]
      %v6081 = vld [vmem:[%s6066 + $0x54] sm:$0xf]
      %v6082 = vld [vmem:[%s6066 + $0x58] sm:$0xf]
      %v6083 = vld [vmem:[%s5 + $0xc] sm:$0x3]
      %v6100 = vunpack.c.l.b16 %v6067
      %v6101 = vunpack.c.l.b16 %v6068
      %v6102 = vunpack.c.l.b16 %v6069
      %v6103 = vunpack.c.l.b16 %v6070
      %v6104 = vunpack.c.l.b16 %v6071
      %v6105 = vunpack.c.l.b16 %v6072
      %v6106 = vunpack.c.l.b16 %v6073
      %v6107 = vunpack.c.l.b16 %v6074
      %v6108 = vunpack.c.l.b16 %v6075
      %v6109 = vunpack.c.l.b16 %v6076
      %v6110 = vunpack.c.l.b16 %v6077
      %v6111 = vunpack.c.l.b16 %v6078
      %v6112 = vunpack.c.l.b16 %v6079
      %v6113 = vunpack.c.l.b16 %v6080
      %v6114 = vunpack.c.l.b16 %v6081
      %v6115 = vunpack.c.l.b16 %v6082
      %v6116 = vpack.c.b16 %v6101, %v6100
      %v6117 = vpack.c.b16 %v6103, %v6102
      %v6118 = vpack.c.b16 %v6105, %v6104
      %v6119 = vpack.c.b16 %v6107, %v6106
      %v6120 = vpack.c.b16 %v6109, %v6108
      %v6121 = vpack.c.b16 %v6111, %v6110
      %v6122 = vpack.c.b16 %v6113, %v6112
      %v6123 = vpack.c.b16 %v6115, %v6114
      %v6125 = vsel %vm1316, %v6116, 0
      %v6128 = vsel %vm1316, %v6117, 0
      %v6131 = vsel %vm1316, %v6118, 0
      %v6134 = vsel %vm1316, %v6119, 0
      %v6137 = vsel %vm1316, %v6120, 0
      %v6140 = vsel %vm1316, %v6121, 0
      %v6143 = vsel %vm1316, %v6122, 0
      %v6146 = vsel %vm1316, %v6123, 0
      %v6149 = vsel %vm1347, %v6083, 0
      %6151 = vmatprep.subr.bf16.mxu0 0
      %6152 = vmatpush1.bf16.msra.mxu0 %v6149
      %6153 = vmatprep.subr.bf16.mxu0 0
      %6154 = vmatpush1.bf16.msra.mxu0 0
      %6155 = vmatprep.subr.bf16.mxu0 0
      %6156 = vmatpush1.bf16.msra.mxu0 0
      %6157 = vmatprep.subr.bf16.mxu0 0
      %6158 = vmatpush1.bf16.msra.mxu0 0
      %6159 = vmatprep.subr.bf16.mxu0 0
      %6160 = vmatpush1.bf16.msra.mxu0 0
      %6161 = vmatprep.subr.bf16.mxu0 0
      %6162 = vmatpush1.bf16.msra.mxu0 0
      %6163 = vmatprep.subr.bf16.mxu0 0
      %6164 = vmatpush1.bf16.msra.mxu0 0
      %6165 = vmatprep.subr.bf16.mxu0 0
      %6166 = vmatpush1.bf16.msra.mxu0 0
      %6167 = vmatprep.subr.bf16.mxu0 0
      %6168 = vmatpush1.bf16.msra.mxu0 0
      %6169 = vmatprep.subr.bf16.mxu0 0
      %6170 = vmatpush1.bf16.msra.mxu0 0
      %6171 = vmatprep.subr.bf16.mxu0 0
      %6172 = vmatpush1.bf16.msra.mxu0 0
      %6173 = vmatprep.subr.bf16.mxu0 0
      %6174 = vmatpush1.bf16.msra.mxu0 0
      %6175 = vmatprep.subr.bf16.mxu0 0
      %6176 = vmatpush1.bf16.msra.mxu0 0
      %6177 = vmatprep.subr.bf16.mxu0 0
      %6178 = vmatpush1.bf16.msra.mxu0 0
      %6179 = vmatprep.subr.bf16.mxu0 0
      %6180 = vmatpush1.bf16.msra.mxu0 0
      %6181 = vmatprep.subr.bf16.mxu0 0
      %6182 = vmatpush1.bf16.msra.mxu0 0
      %6183 = vmatprep.mubr.bf16.mxu0 0
      %6184 = vmatmul.mubr.bf16.gmra.mrb[0].mxu0 %v6125
      %v6185 = vpop.f32.mrb[0].mxu0
      %v6186 = vadd.f32 0.0, %v6185
      %v6187 = vpop.f32.mrb[0].mxu0
      %v6188 = vpop.f32.mrb[0].mxu0
      %v6189 = vadd.f32 0.0, %v6188
      %v6190 = vpop.f32.mrb[0].mxu0
      %6191 = vmatprep.mubr.bf16.mxu0 0
      %6192 = vmatmul.mubr.bf16.gmra.mrb[0].mxu0 %v6128
      %v6193 = vpop.f32.mrb[0].mxu0
      %v6194 = vadd.f32 0.0, %v6193
      %v6195 = vpop.f32.mrb[0].mxu0
      %v6196 = vpop.f32.mrb[0].mxu0
      %v6197 = vadd.f32 0.0, %v6196
      %v6198 = vpop.f32.mrb[0].mxu0
      %6199 = vmatprep.mubr.bf16.mxu0 0
      %6200 = vmatmul.mubr.bf16.gmra.mrb[0].mxu0 %v6131
      %v6201 = vpop.f32.mrb[0].mxu0
      %v6202 = vadd.f32 0.0, %v6201
      %v6203 = vpop.f32.mrb[0].mxu0
      %v6204 = vpop.f32.mrb[0].mxu0
      %v6205 = vadd.f32 0.0, %v6204
      %v6206 = vpop.f32.mrb[0].mxu0
      %6207 = vmatprep.mubr.bf16.mxu0 0
      %6208 = vmatmul.mubr.bf16.gmra.mrb[0].mxu0 %v6134
      %v6209 = vpop.f32.mrb[0].mxu0
      %v6210 = vadd.f32 0.0, %v6209
      %v6211 = vpop.f32.mrb[0].mxu0
      %v6212 = vpop.f32.mrb[0].mxu0
      %v6213 = vadd.f32 0.0, %v6212
      %v6214 = vpop.f32.mrb[0].mxu0
      %6215 = vmatprep.mubr.bf16.mxu0 0
      %6216 = vmatmul.mubr.bf16.gmra.mrb[0].mxu0 %v6137
      %v6217 = vpop.f32.mrb[0].mxu0
      %v6218 = vadd.f32 0.0, %v6217
      %v6219 = vpop.f32.mrb[0].mxu0
      %v6220 = vpop.f32.mrb[0].mxu0
      %v6221 = vadd.f32 0.0, %v6220
      %v6222 = vpop.f32.mrb[0].mxu0
      %6223 = vmatprep.mubr.bf16.mxu0 0
      %6224 = vmatmul.mubr.bf16.gmra.mrb[0].mxu0 %v6140
      %v6225 = vpop.f32.mrb[0].mxu0
      %v6226 = vadd.f32 0.0, %v6225
      %v6227 = vpop.f32.mrb[0].mxu0
      %v6228 = vpop.f32.mrb[0].mxu0
      %v6229 = vadd.f32 0.0, %v6228
      %v6230 = vpop.f32.mrb[0].mxu0
      %6231 = vmatprep.mubr.bf16.mxu0 0
      %6232 = vmatmul.mubr.bf16.gmra.mrb[0].mxu0 %v6143
      %v6233 = vpop.f32.mrb[0].mxu0
      %v6234 = vadd.f32 0.0, %v6233
      %v6235 = vpop.f32.mrb[0].mxu0
      %v6236 = vpop.f32.mrb[0].mxu0
      %v6237 = vadd.f32 0.0, %v6236
      %v6238 = vpop.f32.mrb[0].mxu0
      %6239 = vmatprep.mubr.bf16.mxu0 0
      %6240 = vmatmul.mubr.bf16.gmra.mrb[0].mxu0 %v6146
      %v6241 = vpop.f32.mrb[0].mxu0
      %v6242 = vadd.f32 0.0, %v6241
      %v6243 = vpop.f32.mrb[0].mxu0
      %v6244 = vpop.f32.mrb[0].mxu0
      %v6245 = vadd.f32 0.0, %v6244
      %v6246 = vpop.f32.mrb[0].mxu0
      %6247 = vdwg.mxu0
      %v6248 = vadd.f32 %v6050, %v6186
      %v6249 = vadd.f32 %v6051, %v6189
      %v6250 = vadd.f32 %v6052, %v6194
      %v6251 = vadd.f32 %v6053, %v6197
      %v6252 = vadd.f32 %v6054, %v6202
      %v6253 = vadd.f32 %v6055, %v6205
      %v6254 = vadd.f32 %v6056, %v6210
      %v6255 = vadd.f32 %v6057, %v6213
      %v6256 = vadd.f32 %v6058, %v6218
      %v6257 = vadd.f32 %v6059, %v6221
      %v6258 = vadd.f32 %v6060, %v6226
      %v6259 = vadd.f32 %v6061, %v6229
      %v6260 = vadd.f32 %v6062, %v6234
      %v6261 = vadd.f32 %v6063, %v6237
      %v6262 = vadd.f32 %v6064, %v6242
      %v6263 = vadd.f32 %v6065, %v6245
      %v6264 = vld [vmem:[%s6066] sm:$0xf]
      %v6265 = vld [vmem:[%s6066 + $0x4] sm:$0xf]
      %v6266 = vld [vmem:[%s6066 + $0x8] sm:$0x1]
      %v6267 = vld [vmem:[%s6066 + $0xc] sm:$0xf]
      %v6268 = vld [vmem:[%s6066 + $0x10] sm:$0xf]
      %v6269 = vld [vmem:[%s6066 + $0x14] sm:$0x1]
      %v6270 = vld [vmem:[%s6066 + $0x18] sm:$0xf]
      %v6271 = vld [vmem:[%s6066 + $0x1c] sm:$0xf]
      %v6272 = vld [vmem:[%s6066 + $0x20] sm:$0x1]
      %v6273 = vld [vmem:[%s6066 + $0x24] sm:$0xf]
      %v6274 = vld [vmem:[%s6066 + $0x28] sm:$0xf]
      %v6275 = vld [vmem:[%s6066 + $0x2c] sm:$0x1]
      %v6276 = vld [vmem:[%s6066 + $0x30] sm:$0xf]
      %v6277 = vld [vmem:[%s6066 + $0x34] sm:$0xf]
      %v6278 = vld [vmem:[%s6066 + $0x38] sm:$0x1]
      %v6279 = vld [vmem:[%s6066 + $0x3c] sm:$0xf]
      %v6280 = vld [vmem:[%s6066 + $0x40] sm:$0xf]
      %v6281 = vld [vmem:[%s6066 + $0x44] sm:$0x1]
      %v6282 = vld [vmem:[%s6066 + $0x48] sm:$0xf]
      %v6283 = vld [vmem:[%s6066 + $0x4c] sm:$0xf]
      %v6284 = vld [vmem:[%s6066 + $0x50] sm:$0x1]
      %v6285 = vld [vmem:[%s6066 + $0x54] sm:$0xf]
      %v6286 = vld [vmem:[%s6066 + $0x58] sm:$0xf]
      %v6287 = vld [vmem:[%s6066 + $0x5c] sm:$0x1]
      %v6289 = vshrl.u32 %v6264, 16
      %v6291 = vrot.slane %v6289, 4
      %v6292 = vshll.u32 %v6264, 16
      %v6294 = vrot.slane %v6292, 5
      %v6295 = vor.u32 %v6291, %v6294
      %v6296 = vrot.slane %v6295, 4
      %v6298 = vshll.u32 %v6265, 16
      %v6300 = vrot.slane %v6298, 5
      %v6301 = vsel %vm1040, %v6296, %v6300
      %v6302 = vshrl.u32 %v6265, 16
      %v6304 = vrot.slane %v6302, 4
      %v6305 = vor.u32 %v6304, %v6300
      %v6306 = vrot.slane %v6305, 4
      %v6308 = vshll.u32 %v6266, 16
      %v6310 = vrot.slane %v6308, 5
      %v6311 = vsel %vm1040, %v6306, %v6310
      %v6313 = vshrl.u32 %v6267, 16
      %v6315 = vrot.slane %v6313, 4
      %v6316 = vshll.u32 %v6267, 16
      %v6318 = vrot.slane %v6316, 5
      %v6319 = vor.u32 %v6315, %v6318
      %v6320 = vrot.slane %v6319, 4
      %v6322 = vshll.u32 %v6268, 16
      %v6324 = vrot.slane %v6322, 5
      %v6325 = vsel %vm1040, %v6320, %v6324
      %v6326 = vshrl.u32 %v6268, 16
      %v6328 = vrot.slane %v6326, 4
      %v6329 = vor.u32 %v6328, %v6324
      %v6330 = vrot.slane %v6329, 4
      %v6332 = vshll.u32 %v6269, 16
      %v6334 = vrot.slane %v6332, 5
      %v6335 = vsel %vm1040, %v6330, %v6334
      %v6337 = vshrl.u32 %v6270, 16
      %v6339 = vrot.slane %v6337, 4
      %v6340 = vshll.u32 %v6270, 16
      %v6342 = vrot.slane %v6340, 5
      %v6343 = vor.u32 %v6339, %v6342
      %v6344 = vrot.slane %v6343, 4
      %v6346 = vshll.u32 %v6271, 16
      %v6348 = vrot.slane %v6346, 5
      %v6349 = vsel %vm1040, %v6344, %v6348
      %v6350 = vshrl.u32 %v6271, 16
      %v6352 = vrot.slane %v6350, 4
      %v6353 = vor.u32 %v6352, %v6348
      %v6354 = vrot.slane %v6353, 4
      %v6356 = vshll.u32 %v6272, 16
      %v6358 = vrot.slane %v6356, 5
      %v6359 = vsel %vm1040, %v6354, %v6358
      %v6361 = vshrl.u32 %v6273, 16
      %v6363 = vrot.slane %v6361, 4
      %v6364 = vshll.u32 %v6273, 16
      %v6366 = vrot.slane %v6364, 5
      %v6367 = vor.u32 %v6363, %v6366
      %v6368 = vrot.slane %v6367, 4
      %v6370 = vshll.u32 %v6274, 16
      %v6372 = vrot.slane %v6370, 5
      %v6373 = vsel %vm1040, %v6368, %v6372
      %v6374 = vshrl.u32 %v6274, 16
      %v6376 = vrot.slane %v6374, 4
      %v6377 = vor.u32 %v6376, %v6372
      %v6378 = vrot.slane %v6377, 4
      %v6380 = vshll.u32 %v6275, 16
      %v6382 = vrot.slane %v6380, 5
      %v6383 = vsel %vm1040, %v6378, %v6382
      %v6385 = vshrl.u32 %v6276, 16
      %v6387 = vrot.slane %v6385, 4
      %v6388 = vshll.u32 %v6276, 16
      %v6390 = vrot.slane %v6388, 5
      %v6391 = vor.u32 %v6387, %v6390
      %v6392 = vrot.slane %v6391, 4
      %v6394 = vshll.u32 %v6277, 16
      %v6396 = vrot.slane %v6394, 5
      %v6397 = vsel %vm1040, %v6392, %v6396
      %v6398 = vshrl.u32 %v6277, 16
      %v6400 = vrot.slane %v6398, 4
      %v6401 = vor.u32 %v6400, %v6396
      %v6402 = vrot.slane %v6401, 4
      %v6404 = vshll.u32 %v6278, 16
      %v6406 = vrot.slane %v6404, 5
      %v6407 = vsel %vm1040, %v6402, %v6406
      %v6409 = vshrl.u32 %v6279, 16
      %v6411 = vrot.slane %v6409, 4
      %v6412 = vshll.u32 %v6279, 16
      %v6414 = vrot.slane %v6412, 5
      %v6415 = vor.u32 %v6411, %v6414
      %v6416 = vrot.slane %v6415, 4
      %v6418 = vshll.u32 %v6280, 16
      %v6420 = vrot.slane %v6418, 5
      %v6421 = vsel %vm1040, %v6416, %v6420
      %v6422 = vshrl.u32 %v6280, 16
      %v6424 = vrot.slane %v6422, 4
      %v6425 = vor.u32 %v6424, %v6420
      %v6426 = vrot.slane %v6425, 4
      %v6428 = vshll.u32 %v6281, 16
      %v6430 = vrot.slane %v6428, 5
      %v6431 = vsel %vm1040, %v6426, %v6430
      %v6433 = vshrl.u32 %v6282, 16
      %v6435 = vrot.slane %v6433, 4
      %v6436 = vshll.u32 %v6282, 16
      %v6438 = vrot.slane %v6436, 5
      %v6439 = vor.u32 %v6435, %v6438
      %v6440 = vrot.slane %v6439, 4
      %v6442 = vshll.u32 %v6283, 16
      %v6444 = vrot.slane %v6442, 5
      %v6445 = vsel %vm1040, %v6440, %v6444
      %v6446 = vshrl.u32 %v6283, 16
      %v6448 = vrot.slane %v6446, 4
      %v6449 = vor.u32 %v6448, %v6444
      %v6450 = vrot.slane %v6449, 4
      %v6452 = vshll.u32 %v6284, 16
      %v6454 = vrot.slane %v6452, 5
      %v6455 = vsel %vm1040, %v6450, %v6454
      %v6457 = vshrl.u32 %v6285, 16
      %v6459 = vrot.slane %v6457, 4
      %v6460 = vshll.u32 %v6285, 16
      %v6462 = vrot.slane %v6460, 5
      %v6463 = vor.u32 %v6459, %v6462
      %v6464 = vrot.slane %v6463, 4
      %v6466 = vshll.u32 %v6286, 16
      %v6468 = vrot.slane %v6466, 5
      %v6469 = vsel %vm1040, %v6464, %v6468
      %v6470 = vshrl.u32 %v6286, 16
      %v6472 = vrot.slane %v6470, 4
      %v6473 = vor.u32 %v6472, %v6468
      %v6474 = vrot.slane %v6473, 4
      %v6476 = vshll.u32 %v6287, 16
      %v6478 = vrot.slane %v6476, 5
      %v6479 = vsel %vm1040, %v6474, %v6478
      %v6480 = vld [vmem:[%s5 + $0xc] sm:$0xc]
      %v6481 = vunpack.c.l.b16 %v6301
      %v6482 = vunpack.c.l.b16 %v6311
      %v6483 = vunpack.c.l.b16 %v6325
      %v6484 = vunpack.c.l.b16 %v6335
      %v6485 = vunpack.c.l.b16 %v6349
      %v6486 = vunpack.c.l.b16 %v6359
      %v6487 = vunpack.c.l.b16 %v6373
      %v6488 = vunpack.c.l.b16 %v6383
      %v6489 = vunpack.c.l.b16 %v6397
      %v6490 = vunpack.c.l.b16 %v6407
      %v6491 = vunpack.c.l.b16 %v6421
      %v6492 = vunpack.c.l.b16 %v6431
      %v6493 = vunpack.c.l.b16 %v6445
      %v6494 = vunpack.c.l.b16 %v6455
      %v6495 = vunpack.c.l.b16 %v6469
      %v6496 = vunpack.c.l.b16 %v6479
      %v6497 = vpack.c.b16 %v6482, %v6481
      %v6498 = vpack.c.b16 %v6484, %v6483
      %v6499 = vpack.c.b16 %v6486, %v6485
      %v6500 = vpack.c.b16 %v6488, %v6487
      %v6501 = vpack.c.b16 %v6490, %v6489
      %v6502 = vpack.c.b16 %v6492, %v6491
      %v6503 = vpack.c.b16 %v6494, %v6493
      %v6504 = vpack.c.b16 %v6496, %v6495
      %v6506 = vunpack.c.l.b16 %v6480
      %v6507 = vpack.c.b16 %v6506, %v6506
      %v6508 = vrot.slane %v6507, 2
      %v6510 = vsel %vm1316, %v6497, 0
      %v6513 = vsel %vm1316, %v6498, 0
      %v6516 = vsel %vm1316, %v6499, 0
      %v6519 = vsel %vm1316, %v6500, 0
      %v6522 = vsel %vm1316, %v6501, 0
      %v6525 = vsel %vm1316, %v6502, 0
      %v6528 = vsel %vm1316, %v6503, 0
      %v6531 = vsel %vm1316, %v6504, 0
      %v6534 = vsel %vm1347, %v6508, 0
      %6536 = vmatprep.subr.bf16.mxu0 0
      %6537 = vmatpush1.bf16.msra.mxu0 %v6534
      %6538 = vmatprep.subr.bf16.mxu0 0
      %6539 = vmatpush1.bf16.msra.mxu0 0
      %6540 = vmatprep.subr.bf16.mxu0 0
      %6541 = vmatpush1.bf16.msra.mxu0 0
      %6542 = vmatprep.subr.bf16.mxu0 0
      %6543 = vmatpush1.bf16.msra.mxu0 0
      %6544 = vmatprep.subr.bf16.mxu0 0
      %6545 = vmatpush1.bf16.msra.mxu0 0
      %6546 = vmatprep.subr.bf16.mxu0 0
      %6547 = vmatpush1.bf16.msra.mxu0 0
      %6548 = vmatprep.subr.bf16.mxu0 0
      %6549 = vmatpush1.bf16.msra.mxu0 0
      %6550 = vmatprep.subr.bf16.mxu0 0
      %6551 = vmatpush1.bf16.msra.mxu0 0
      %6552 = vmatprep.subr.bf16.mxu0 0
      %6553 = vmatpush1.bf16.msra.mxu0 0
      %6554 = vmatprep.subr.bf16.mxu0 0
      %6555 = vmatpush1.bf16.msra.mxu0 0
      %6556 = vmatprep.subr.bf16.mxu0 0
      %6557 = vmatpush1.bf16.msra.mxu0 0
      %6558 = vmatprep.subr.bf16.mxu0 0
      %6559 = vmatpush1.bf16.msra.mxu0 0
      %6560 = vmatprep.subr.bf16.mxu0 0
      %6561 = vmatpush1.bf16.msra.mxu0 0
      %6562 = vmatprep.subr.bf16.mxu0 0
      %6563 = vmatpush1.bf16.msra.mxu0 0
      %6564 = vmatprep.subr.bf16.mxu0 0
      %6565 = vmatpush1.bf16.msra.mxu0 0
      %6566 = vmatprep.subr.bf16.mxu0 0
      %6567 = vmatpush1.bf16.msra.mxu0 0
      %6568 = vmatprep.mubr.bf16.mxu0 0
      %6569 = vmatmul.mubr.bf16.gmra.mrb[0].mxu0 %v6510
      %v6570 = vpop.f32.mrb[0].mxu0
      %v6571 = vadd.f32 0.0, %v6570
      %v6572 = vpop.f32.mrb[0].mxu0
      %v6573 = vpop.f32.mrb[0].mxu0
      %v6574 = vadd.f32 0.0, %v6573
      %v6575 = vpop.f32.mrb[0].mxu0
      %6576 = vmatprep.mubr.bf16.mxu0 0
      %6577 = vmatmul.mubr.bf16.gmra.mrb[0].mxu0 %v6513
      %v6578 = vpop.f32.mrb[0].mxu0
      %v6579 = vadd.f32 0.0, %v6578
      %v6580 = vpop.f32.mrb[0].mxu0
      %v6581 = vpop.f32.mrb[0].mxu0
      %v6582 = vadd.f32 0.0, %v6581
      %v6583 = vpop.f32.mrb[0].mxu0
      %6584 = vmatprep.mubr.bf16.mxu0 0
      %6585 = vmatmul.mubr.bf16.gmra.mrb[0].mxu0 %v6516
      %v6586 = vpop.f32.mrb[0].mxu0
      %v6587 = vadd.f32 0.0, %v6586
      %v6588 = vpop.f32.mrb[0].mxu0
      %v6589 = vpop.f32.mrb[0].mxu0
      %v6590 = vadd.f32 0.0, %v6589
      %v6591 = vpop.f32.mrb[0].mxu0
      %6592 = vmatprep.mubr.bf16.mxu0 0
      %6593 = vmatmul.mubr.bf16.gmra.mrb[0].mxu0 %v6519
      %v6594 = vpop.f32.mrb[0].mxu0
      %v6595 = vadd.f32 0.0, %v6594
      %v6596 = vpop.f32.mrb[0].mxu0
      %v6597 = vpop.f32.mrb[0].mxu0
      %v6598 = vadd.f32 0.0, %v6597
      %v6599 = vpop.f32.mrb[0].mxu0
      %6600 = vmatprep.mubr.bf16.mxu0 0
      %6601 = vmatmul.mubr.bf16.gmra.mrb[0].mxu0 %v6522
      %v6602 = vpop.f32.mrb[0].mxu0
      %v6603 = vadd.f32 0.0, %v6602
      %v6604 = vpop.f32.mrb[0].mxu0
      %v6605 = vpop.f32.mrb[0].mxu0
      %v6606 = vadd.f32 0.0, %v6605
      %v6607 = vpop.f32.mrb[0].mxu0
      %6608 = vmatprep.mubr.bf16.mxu0 0
      %6609 = vmatmul.mubr.bf16.gmra.mrb[0].mxu0 %v6525
      %v6610 = vpop.f32.mrb[0].mxu0
      %v6611 = vadd.f32 0.0, %v6610
      %v6612 = vpop.f32.mrb[0].mxu0
      %v6613 = vpop.f32.mrb[0].mxu0
      %v6614 = vadd.f32 0.0, %v6613
      %v6615 = vpop.f32.mrb[0].mxu0
      %6616 = vmatprep.mubr.bf16.mxu0 0
      %6617 = vmatmul.mubr.bf16.gmra.mrb[0].mxu0 %v6528
      %v6618 = vpop.f32.mrb[0].mxu0
      %v6619 = vadd.f32 0.0, %v6618
      %v6620 = vpop.f32.mrb[0].mxu0
      %v6621 = vpop.f32.mrb[0].mxu0
      %v6622 = vadd.f32 0.0, %v6621
      %v6623 = vpop.f32.mrb[0].mxu0
      %6624 = vmatprep.mubr.bf16.mxu0 0
      %6625 = vmatmul.mubr.bf16.gmra.mrb[0].mxu0 %v6531
      %v6626 = vpop.f32.mrb[0].mxu0
      %v6627 = vadd.f32 0.0, %v6626
      %v6628 = vpop.f32.mrb[0].mxu0
      %v6629 = vpop.f32.mrb[0].mxu0
      %v6630 = vadd.f32 0.0, %v6629
      %v6631 = vpop.f32.mrb[0].mxu0
      %6632 = vdwg.mxu0
      %v6633 = vadd.f32 %v6248, %v6571
      %v6634 = vadd.f32 %v6249, %v6574
      %v6635 = vadd.f32 %v6250, %v6579
      %v6636 = vadd.f32 %v6251, %v6582
      %v6637 = vadd.f32 %v6252, %v6587
      %v6638 = vadd.f32 %v6253, %v6590
      %v6639 = vadd.f32 %v6254, %v6595
      %v6640 = vadd.f32 %v6255, %v6598
      %v6641 = vadd.f32 %v6256, %v6603
      %v6642 = vadd.f32 %v6257, %v6606
      %v6643 = vadd.f32 %v6258, %v6611
      %v6644 = vadd.f32 %v6259, %v6614
      %v6645 = vadd.f32 %v6260, %v6619
      %v6646 = vadd.f32 %v6261, %v6622
      %v6647 = vadd.f32 %v6262, %v6627
      %v6648 = vadd.f32 %v6263, %v6630
      %v6649 = vld [vmem:[%s6066] sm:$0xe]
      %v6650 = vld [vmem:[%s6066 + $0xc] sm:$0xe]
      %v6651 = vld [vmem:[%s6066 + $0x18] sm:$0xe]
      %v6652 = vld [vmem:[%s6066 + $0x24] sm:$0xe]
      %v6653 = vld [vmem:[%s6066 + $0x30] sm:$0xe]
      %v6654 = vld [vmem:[%s6066 + $0x3c] sm:$0xe]
      %v6655 = vld [vmem:[%s6066 + $0x48] sm:$0xe]
      %v6656 = vld [vmem:[%s6066 + $0x54] sm:$0xe]
      %v6681 = vrot.slane %v6649, 5
      %v6682 = vrot.slane %v6681, 4
      %v6683 = vrot.slane %v6265, 5
      %v6684 = vsel %vm1692, %v6682, %v6683
      %v6685 = vrot.slane %v6683, 4
      %v6686 = vrot.slane %v6266, 5
      %v6687 = vsel %vm1692, %v6685, %v6686
      %v6688 = vrot.slane %v6650, 5
      %v6689 = vrot.slane %v6688, 4
      %v6690 = vrot.slane %v6268, 5
      %v6691 = vsel %vm1692, %v6689, %v6690
      %v6692 = vrot.slane %v6690, 4
      %v6693 = vrot.slane %v6269, 5
      %v6694 = vsel %vm1692, %v6692, %v6693
      %v6695 = vrot.slane %v6651, 5
      %v6696 = vrot.slane %v6695, 4
      %v6697 = vrot.slane %v6271, 5
      %v6698 = vsel %vm1692, %v6696, %v6697
      %v6699 = vrot.slane %v6697, 4
      %v6700 = vrot.slane %v6272, 5
      %v6701 = vsel %vm1692, %v6699, %v6700
      %v6702 = vrot.slane %v6652, 5
      %v6703 = vrot.slane %v6702, 4
      %v6704 = vrot.slane %v6274, 5
      %v6705 = vsel %vm1692, %v6703, %v6704
      %v6706 = vrot.slane %v6704, 4
      %v6707 = vrot.slane %v6275, 5
      %v6708 = vsel %vm1692, %v6706, %v6707
      %v6709 = vrot.slane %v6653, 5
      %v6710 = vrot.slane %v6709, 4
      %v6711 = vrot.slane %v6277, 5
      %v6712 = vsel %vm1692, %v6710, %v6711
      %v6713 = vrot.slane %v6711, 4
      %v6714 = vrot.slane %v6278, 5
      %v6715 = vsel %vm1692, %v6713, %v6714
      %v6716 = vrot.slane %v6654, 5
      %v6717 = vrot.slane %v6716, 4
      %v6718 = vrot.slane %v6280, 5
      %v6719 = vsel %vm1692, %v6717, %v6718
      %v6720 = vrot.slane %v6718, 4
      %v6721 = vrot.slane %v6281, 5
      %v6722 = vsel %vm1692, %v6720, %v6721
      %v6723 = vrot.slane %v6655, 5
      %v6724 = vrot.slane %v6723, 4
      %v6725 = vrot.slane %v6283, 5
      %v6726 = vsel %vm1692, %v6724, %v6725
      %v6727 = vrot.slane %v6725, 4
      %v6728 = vrot.slane %v6284, 5
      %v6729 = vsel %vm1692, %v6727, %v6728
      %v6730 = vrot.slane %v6656, 5
      %v6731 = vrot.slane %v6730, 4
      %v6732 = vrot.slane %v6286, 5
      %v6733 = vsel %vm1692, %v6731, %v6732
      %v6734 = vrot.slane %v6732, 4
      %v6735 = vrot.slane %v6287, 5
      %v6736 = vsel %vm1692, %v6734, %v6735
      %v6737 = vld [vmem:[%s5 + $0x10] sm:$0x3]
      %v6738 = vunpack.c.l.b16 %v6684
      %v6739 = vunpack.c.l.b16 %v6687
      %v6740 = vunpack.c.l.b16 %v6691
      %v6741 = vunpack.c.l.b16 %v6694
      %v6742 = vunpack.c.l.b16 %v6698
      %v6743 = vunpack.c.l.b16 %v6701
      %v6744 = vunpack.c.l.b16 %v6705
      %v6745 = vunpack.c.l.b16 %v6708
      %v6746 = vunpack.c.l.b16 %v6712
      %v6747 = vunpack.c.l.b16 %v6715
      %v6748 = vunpack.c.l.b16 %v6719
      %v6749 = vunpack.c.l.b16 %v6722
      %v6750 = vunpack.c.l.b16 %v6726
      %v6751 = vunpack.c.l.b16 %v6729
      %v6752 = vunpack.c.l.b16 %v6733
      %v6753 = vunpack.c.l.b16 %v6736
      %v6754 = vpack.c.b16 %v6739, %v6738
      %v6755 = vpack.c.b16 %v6741, %v6740
      %v6756 = vpack.c.b16 %v6743, %v6742
      %v6757 = vpack.c.b16 %v6745, %v6744
      %v6758 = vpack.c.b16 %v6747, %v6746
      %v6759 = vpack.c.b16 %v6749, %v6748
      %v6760 = vpack.c.b16 %v6751, %v6750
      %v6761 = vpack.c.b16 %v6753, %v6752
      %v6763 = vsel %vm1316, %v6754, 0
      %v6766 = vsel %vm1316, %v6755, 0
      %v6769 = vsel %vm1316, %v6756, 0
      %v6772 = vsel %vm1316, %v6757, 0
      %v6775 = vsel %vm1316, %v6758, 0
      %v6778 = vsel %vm1316, %v6759, 0
      %v6781 = vsel %vm1316, %v6760, 0
      %v6784 = vsel %vm1316, %v6761, 0
      %v6787 = vsel %vm1347, %v6737, 0
      %6789 = vmatprep.subr.bf16.mxu0 0
      %6790 = vmatpush1.bf16.msra.mxu0 %v6787
      %6791 = vmatprep.subr.bf16.mxu0 0
      %6792 = vmatpush1.bf16.msra.mxu0 0
      %6793 = vmatprep.subr.bf16.mxu0 0
      %6794 = vmatpush1.bf16.msra.mxu0 0
      %6795 = vmatprep.subr.bf16.mxu0 0
      %6796 = vmatpush1.bf16.msra.mxu0 0
      %6797 = vmatprep.subr.bf16.mxu0 0
      %6798 = vmatpush1.bf16.msra.mxu0 0
      %6799 = vmatprep.subr.bf16.mxu0 0
      %6800 = vmatpush1.bf16.msra.mxu0 0
      %6801 = vmatprep.subr.bf16.mxu0 0
      %6802 = vmatpush1.bf16.msra.mxu0 0
      %6803 = vmatprep.subr.bf16.mxu0 0
      %6804 = vmatpush1.bf16.msra.mxu0 0
      %6805 = vmatprep.subr.bf16.mxu0 0
      %6806 = vmatpush1.bf16.msra.mxu0 0
      %6807 = vmatprep.subr.bf16.mxu0 0
      %6808 = vmatpush1.bf16.msra.mxu0 0
      %6809 = vmatprep.subr.bf16.mxu0 0
      %6810 = vmatpush1.bf16.msra.mxu0 0
      %6811 = vmatprep.subr.bf16.mxu0 0
      %6812 = vmatpush1.bf16.msra.mxu0 0
      %6813 = vmatprep.subr.bf16.mxu0 0
      %6814 = vmatpush1.bf16.msra.mxu0 0
      %6815 = vmatprep.subr.bf16.mxu0 0
      %6816 = vmatpush1.bf16.msra.mxu0 0
      %6817 = vmatprep.subr.bf16.mxu0 0
      %6818 = vmatpush1.bf16.msra.mxu0 0
      %6819 = vmatprep.subr.bf16.mxu0 0
      %6820 = vmatpush1.bf16.msra.mxu0 0
      %6821 = vmatprep.mubr.bf16.mxu0 0
      %6822 = vmatmul.mubr.bf16.gmra.mrb[0].mxu0 %v6763
      %v6823 = vpop.f32.mrb[0].mxu0
      %v6824 = vadd.f32 0.0, %v6823
      %v6825 = vpop.f32.mrb[0].mxu0
      %v6826 = vpop.f32.mrb[0].mxu0
      %v6827 = vadd.f32 0.0, %v6826
      %v6828 = vpop.f32.mrb[0].mxu0
      %6829 = vmatprep.mubr.bf16.mxu0 0
      %6830 = vmatmul.mubr.bf16.gmra.mrb[0].mxu0 %v6766
      %v6831 = vpop.f32.mrb[0].mxu0
      %v6832 = vadd.f32 0.0, %v6831
      %v6833 = vpop.f32.mrb[0].mxu0
      %v6834 = vpop.f32.mrb[0].mxu0
      %v6835 = vadd.f32 0.0, %v6834
      %v6836 = vpop.f32.mrb[0].mxu0
      %6837 = vmatprep.mubr.bf16.mxu0 0
      %6838 = vmatmul.mubr.bf16.gmra.mrb[0].mxu0 %v6769
      %v6839 = vpop.f32.mrb[0].mxu0
      %v6840 = vadd.f32 0.0, %v6839
      %v6841 = vpop.f32.mrb[0].mxu0
      %v6842 = vpop.f32.mrb[0].mxu0
      %v6843 = vadd.f32 0.0, %v6842
      %v6844 = vpop.f32.mrb[0].mxu0
      %6845 = vmatprep.mubr.bf16.mxu0 0
      %6846 = vmatmul.mubr.bf16.gmra.mrb[0].mxu0 %v6772
      %v6847 = vpop.f32.mrb[0].mxu0
      %v6848 = vadd.f32 0.0, %v6847
      %v6849 = vpop.f32.mrb[0].mxu0
      %v6850 = vpop.f32.mrb[0].mxu0
      %v6851 = vadd.f32 0.0, %v6850
      %v6852 = vpop.f32.mrb[0].mxu0
      %6853 = vmatprep.mubr.bf16.mxu0 0
      %6854 = vmatmul.mubr.bf16.gmra.mrb[0].mxu0 %v6775
      %v6855 = vpop.f32.mrb[0].mxu0
      %v6856 = vadd.f32 0.0, %v6855
      %v6857 = vpop.f32.mrb[0].mxu0
      %v6858 = vpop.f32.mrb[0].mxu0
      %v6859 = vadd.f32 0.0, %v6858
      %v6860 = vpop.f32.mrb[0].mxu0
      %6861 = vmatprep.mubr.bf16.mxu0 0
      %6862 = vmatmul.mubr.bf16.gmra.mrb[0].mxu0 %v6778
      %v6863 = vpop.f32.mrb[0].mxu0
      %v6864 = vadd.f32 0.0, %v6863
      %v6865 = vpop.f32.mrb[0].mxu0
      %v6866 = vpop.f32.mrb[0].mxu0
      %v6867 = vadd.f32 0.0, %v6866
      %v6868 = vpop.f32.mrb[0].mxu0
      %6869 = vmatprep.mubr.bf16.mxu0 0
      %6870 = vmatmul.mubr.bf16.gmra.mrb[0].mxu0 %v6781
      %v6871 = vpop.f32.mrb[0].mxu0
      %v6872 = vadd.f32 0.0, %v6871
      %v6873 = vpop.f32.mrb[0].mxu0
      %v6874 = vpop.f32.mrb[0].mxu0
      %v6875 = vadd.f32 0.0, %v6874
      %v6876 = vpop.f32.mrb[0].mxu0
      %6877 = vmatprep.mubr.bf16.mxu0 0
      %6878 = vmatmul.mubr.bf16.gmra.mrb[0].mxu0 %v6784
      %v6879 = vpop.f32.mrb[0].mxu0
      %v6880 = vadd.f32 0.0, %v6879
      %v6881 = vpop.f32.mrb[0].mxu0
      %v6882 = vpop.f32.mrb[0].mxu0
      %v6883 = vadd.f32 0.0, %v6882
      %v6884 = vpop.f32.mrb[0].mxu0
      %6885 = vdwg.mxu0
      %v6886 = vadd.f32 %v6633, %v6824
      %v6887 = vadd.f32 %v6634, %v6827
      %v6888 = vadd.f32 %v6635, %v6832
      %v6889 = vadd.f32 %v6636, %v6835
      %v6890 = vadd.f32 %v6637, %v6840
      %v6891 = vadd.f32 %v6638, %v6843
      %v6892 = vadd.f32 %v6639, %v6848
      %v6893 = vadd.f32 %v6640, %v6851
      %v6894 = vadd.f32 %v6641, %v6856
      %v6895 = vadd.f32 %v6642, %v6859
      %v6896 = vadd.f32 %v6643, %v6864
      %v6897 = vadd.f32 %v6644, %v6867
      %v6898 = vadd.f32 %v6645, %v6872
      %v6899 = vadd.f32 %v6646, %v6875
      %v6900 = vadd.f32 %v6647, %v6880
      %v6901 = vadd.f32 %v6648, %v6883
      %v6902 = vld [vmem:[%s6] sm:$0x1]
      %v6904 = vlaneseq
      %v6905 = vshrl.u32 %v6904, 7
      %v6906 = vsub.s32 0, %v6905
      %v6907 = vrot.slane %v6902, %v6906
      %v6909 = vadd.f32 %v6886, %v6907
      %v6910 = vadd.f32 %v6887, %v6907
      %v6911 = vadd.f32 %v6888, %v6907
      %v6912 = vadd.f32 %v6889, %v6907
      %v6913 = vadd.f32 %v6890, %v6907
      %v6914 = vadd.f32 %v6891, %v6907
      %v6915 = vadd.f32 %v6892, %v6907
      %v6916 = vadd.f32 %v6893, %v6907
      %v6917 = vadd.f32 %v6894, %v6907
      %v6918 = vadd.f32 %v6895, %v6907
      %v6919 = vadd.f32 %v6896, %v6907
      %v6920 = vadd.f32 %v6897, %v6907
      %v6921 = vadd.f32 %v6898, %v6907
      %v6922 = vadd.f32 %v6899, %v6907
      %v6923 = vadd.f32 %v6900, %v6907
      %v6924 = vadd.f32 %v6901, %v6907
      %v6925 = vadd.f32 %v6909, %v535
      %v6926 = vadd.f32 %v6910, %v536
      %v6927 = vadd.f32 %v6911, %v537
      %v6928 = vadd.f32 %v6912, %v538
      %v6929 = vadd.f32 %v6913, %v539
      %v6930 = vadd.f32 %v6914, %v540
      %v6931 = vadd.f32 %v6915, %v541
      %v6932 = vadd.f32 %v6916, %v542
      %v6933 = vadd.f32 %v6917, %v543
      %v6934 = vadd.f32 %v6918, %v544
      %v6935 = vadd.f32 %v6919, %v545
      %v6936 = vadd.f32 %v6920, %v546
      %v6937 = vadd.f32 %v6921, %v547
      %v6938 = vadd.f32 %v6922, %v548
      %v6939 = vadd.f32 %v6923, %v549
      %v6940 = vadd.f32 %v6924, %v550
      %6941 = vst.msk [vmem:[%s455] sm:$0xff] %vm1316, %v6925
      %6942 = vst.msk [vmem:[%s455 + $0x8] sm:$0xff] %vm1316, %v6926
      %6943 = vst.msk [vmem:[%s455 + $0x10] sm:$0xff] %vm1316, %v6927
      %6944 = vst.msk [vmem:[%s455 + $0x18] sm:$0xff] %vm1316, %v6928
      %6945 = vst.msk [vmem:[%s455 + $0x20] sm:$0xff] %vm1316, %v6929
      %6946 = vst.msk [vmem:[%s455 + $0x28] sm:$0xff] %vm1316, %v6930
      %6947 = vst.msk [vmem:[%s455 + $0x30] sm:$0xff] %vm1316, %v6931
      %6948 = vst.msk [vmem:[%s455 + $0x38] sm:$0xff] %vm1316, %v6932
      %6949 = vst.msk [vmem:[%s455 + $0x40] sm:$0xff] %vm1316, %v6933
      %6950 = vst.msk [vmem:[%s455 + $0x48] sm:$0xff] %vm1316, %v6934
      %6951 = vst.msk [vmem:[%s455 + $0x50] sm:$0xff] %vm1316, %v6935
      %6952 = vst.msk [vmem:[%s455 + $0x58] sm:$0xff] %vm1316, %v6936
      %6953 = vst.msk [vmem:[%s455 + $0x60] sm:$0xff] %vm1316, %v6937
      %6954 = vst.msk [vmem:[%s455 + $0x68] sm:$0xff] %vm1316, %v6938
      %6955 = vst.msk [vmem:[%s455 + $0x70] sm:$0xff] %vm1316, %v6939
      %6956 = vst.msk [vmem:[%s455 + $0x78] sm:$0xff] %vm1316, %v6940
      %s6957 = smul.u32 8, %s23
      %p6958 = scmp.lt.s32.totalorder %s22, 1
      %s6959 = scalar_select %p6958, %s22, 1
      %p6960 = scmp.lt.s32.totalorder %s6957, 15
      %s6961 = scalar_select %p6960, %s6957, 15
      %s6962 = smul.addr %s6961, 2
      %s6963 = smul.addr %s6959, 32
      %s6964 = sadd.s32 %s6962, %s6963
      %s6965 = smul.addr %s6964, 8
      %s6966 = scalar_lea.vmem %s7, %s6965
      // Predicated region
      $region73: #{tpu_custom_call.1} parent=47 // pred_check
        %p6967 = pneg %p234
      $region74: #{tpu_custom_call.1} parent=47 // pred_check_branch
        %6969 = sbr.rel (%p6967) target = $region76
      $region75: #{tpu_custom_call.1} parent=47 // pred_region
        %s6970 = smul.u32 8, %s23
      $region76: #{tpu_custom_call.1} parent=47 // pred_fallthru
        _
    $region48: #{tpu_custom_call.1} parent=5 // pred_fallthru
      _
    %p6971 = scmp.le.s32.totalorder 2, %s13
    // Predicated region
    $region77: #{tpu_custom_call.1} parent=5 // pred_check
      %p6972 = pneg %p6971
    $region78: #{tpu_custom_call.1} parent=5 // pred_check_branch
      %6974 = sbr.rel (%p6972) target = $region80
    $region79: #{tpu_custom_call.1} parent=5 // pred_region
      %s6975 = ssub.s32 %s13, 2
      // Predicated region
      $region81: #{tpu_custom_call.1} parent=79 // pred_check
        %p6976 = pneg %p240
      $region82: #{tpu_custom_call.1} parent=79 // pred_check_branch
        %6978 = sbr.rel (%p6976) target = $region84
      $region83: #{tpu_custom_call.1} parent=79 // pred_region
        %s6979 = smul.u32 8, %s25
        %p6980 = scmp.lt.s32.totalorder %s24, 1
        %s6981 = scalar_select %p6980, %s24, 1
        %p6982 = scmp.lt.s32.totalorder %s6979, 15
        %s6983 = scalar_select %p6982, %s6979, 15
        %s6984 = smul.addr %s6983, 2
        %s6985 = smul.addr %s6981, 32
        %s6986 = sadd.s32 %s6984, %s6985
        %s6987 = smul.addr %s6986, 8
        %s6988 = scalar_lea.vmem %s7, %s6987
      $region84: #{tpu_custom_call.1} parent=79 // pred_fallthru
        _
    $region80: #{tpu_custom_call.1} parent=5 // pred_fallthru
      _
  $region6: #{tpu_custom_call.1} parent=0 // loop_footer
    %s17 = sadd.s32 1, %s13
  $region7: #{tpu_custom_call.1} parent=0 // loop_footer_branch
    %12 = sbr.rel target = $region3
  $region8: #{tpu_custom_call.1} parent=0 // loop_exit
    _

</llo_original>
